<compile_context>
chip_gen: v7x
topology: tpu7x:2x2x1
jax: 0.10.0
libtpu: 0.0.40
codegen_flags: <defaults>
</compile_context>

<pallas_src>
import functools

import jax
import jax.numpy as jnp
from jax.experimental import pallas as pl
from jax.experimental.pallas import tpu as pltpu


# ------------------------------- Pallas kernels ------------------------------

def _maxpool_kernel(x_ref, o_ref):
    # x_ref: (1, 2, H2, W2) f32 block ; o_ref: (1, H, W) bf16.  2x2x2 max pool.
    m = jnp.maximum(x_ref[0, 0], x_ref[0, 1])                 # depth pair -> (H2, W2)
    H2, W2 = m.shape
    m = jnp.max(m.reshape(H2, W2 // 2, 2), axis=-1)           # width pairs -> (H2, W)
    m = jnp.max(m.reshape(H2 // 2, 2, W2 // 2), axis=1)       # height pairs -> (H, W)
    o_ref[0] = m.astype(o_ref.dtype)


def _conv3d_tap_kernel(x_ref, w_ref, b_ref, o_ref, acc_ref, *, k, Wp, PLo):
    # Streamed 'same' Conv3d.  Grid = (N, D, kd); each step consumes one padded
    # depth slab (Cin, PLx) and accumulates its k*k in-plane taps; the kd grid
    # axis ("arbitrary") sums the k depth taps into the f32 VMEM accumulator.
    kd = pl.program_id(2)

    @pl.when(kd == 0)
    def _():
        acc_ref[...] = jnp.zeros_like(acc_ref)

    xs = x_ref[0]                                             # (Cin, PLx) bf16
    part = None
    for i in range(k * k):                                    # static unroll over (kh, kw)
        kh, kw = divmod(i, k)
        off = kh * Wp + kw
        xt = xs[:, off:off + PLo]                             # (Cin, PLo) shifted window
        d = jnp.dot(w_ref[0, i], xt, preferred_element_type=jnp.float32)
        part = d if part is None else part + d
    acc_ref[...] += part

    @pl.when(kd == pl.num_programs(2) - 1)
    def _():
        o_ref[0] = (acc_ref[...] + b_ref[...]).astype(o_ref.dtype)


def _ln_stats_kernel(x_ref, mask_ref, mean_ref, rstd_ref, s_ref, ss_ref, *, eps, inv_l):
    # Per-(n, c) LayerNorm stats, accumulated over the depth grid axis.  The
    # mask zeroes the never-valid lane columns of the conv-output layout.
    d = pl.program_id(1)

    @pl.when(d == 0)
    def _():
        s_ref[...] = jnp.zeros_like(s_ref)
        ss_ref[...] = jnp.zeros_like(ss_ref)

    x = x_ref[0].astype(jnp.float32) * mask_ref[...]          # (C, PLo)
    s_ref[...] += jnp.sum(x, axis=-1, keepdims=True)
    ss_ref[...] += jnp.sum(x * x, axis=-1, keepdims=True)

    @pl.when(d == pl.num_programs(1) - 1)
    def _():
        mean = s_ref[...] * inv_l
        # TODO(synk): E[x^2]-mean^2 in f32 can cancel for large-mean inputs;
        # switch to a centered second pass if that regime matters.
        var = ss_ref[...] * inv_l - mean * mean
        mean_ref[0] = mean
        rstd_ref[0] = jax.lax.rsqrt(var + eps)


def _ln_apply_relu_kernel(x_ref, mean_ref, rstd_ref, g_ref, b_ref, o_ref):
    x = x_ref[0].astype(jnp.float32)                          # (C, PLo)
    y = (x - mean_ref[0]) * rstd_ref[0]                       # (C, 1) broadcast
    y = y * g_ref[0] + b_ref[0]                               # (1, PLo) broadcast
    o_ref[0] = jnp.maximum(y, 0.0).astype(o_ref.dtype)


def _ln_relu_conv1x1_kernel(x_ref, mean_ref, rstd_ref, g_ref, b_ref,
                            w_ref, bias_ref, o_ref):
    # LayerNorm-apply + ReLU fused with the following 1x1x1 conv (channel mix).
    x = x_ref[0].astype(jnp.float32)
    y = (x - mean_ref[0]) * rstd_ref[0]
    y = jnp.maximum(y * g_ref[0] + b_ref[0], 0.0).astype(jnp.bfloat16)   # (C, PLo)
    z = jnp.dot(w_ref[...], y, preferred_element_type=jnp.float32) + bias_ref[...]
    o_ref[0] = z.astype(o_ref.dtype)


# ------------------------------ Pallas wrappers -------------------------------

def maxpool3d_2x2(x):
    """(N, C, 2D, 2H, 2W) f32 -> (N, D, C, H, W) bf16 (depth-major layout)."""
    N, C, D2, H2, W2 = x.shape
    assert D2 % 2 == 0 and H2 % 2 == 0 and W2 % 2 == 0
    D, H, W = D2 // 2, H2 // 2, W2 // 2
    xr = x.reshape(N * C * D, 2, H2, W2)                      # free reshape
    out = pl.pallas_call(
        _maxpool_kernel,
        out_shape=jax.ShapeDtypeStruct((N * D * C, H, W), jnp.bfloat16),
        grid=(N, C, D),
        in_specs=[pl.BlockSpec((1, 2, H2, W2),
                               lambda n, c, d: ((n * C + c) * D + d, 0, 0, 0))],
        out_specs=pl.BlockSpec((1, H, W),
                               lambda n, c, d: ((n * D + d) * C + c, 0, 0)),
        compiler_params=pltpu.CompilerParams(
            dimension_semantics=("parallel", "parallel", "parallel")),
    )(xr)
    return out.reshape(N, D, C, H, W)


def conv3d_stream(x5, w, b, *, k, pad):
    """'Same' Conv3d, streamed over taps (no materialized im2col).

    x5: (N, D, Cin, H, W) valid activations.  Returns (N, D, Cout, H, Wp) bf16
    where the trailing Wp - W lane columns per row are junk (never-valid output
    positions); downstream kernels mask / slice them."""
    N, D, Cin, H, W = x5.shape
    Cout = w.shape[0]
    Dp, Hp, Wp = D + 2 * pad, H + 2 * pad, W + 2 * pad
    PLx = (Hp + 1) * Wp                    # one extra zero row keeps tap windows in bounds
    PLo = H * Wp

    xp = jnp.pad(x5.astype(jnp.bfloat16),
                 ((0, 0), (pad, pad), (0, 0), (pad, pad + 1), (pad, pad)))
    xp = xp.reshape(N * Dp, Cin, PLx)                         # free reshape
    wr = jnp.transpose(w, (2, 3, 4, 0, 1)).reshape(k, k * k, Cout, Cin)
    wr = wr.astype(jnp.bfloat16)
    b2 = b.reshape(Cout, 1).astype(jnp.float32)

    kern = functools.partial(_conv3d_tap_kernel, k=k, Wp=Wp, PLo=PLo)
    out = pl.pallas_call(
        kern,
        out_shape=jax.ShapeDtypeStruct((N * D, Cout, PLo), jnp.bfloat16),
        grid=(N, D, k),
        in_specs=[
            pl.BlockSpec((1, Cin, PLx), lambda n, d, kd: (n * Dp + d + kd, 0, 0)),
            pl.BlockSpec((1, k * k, Cout, Cin), lambda n, d, kd: (kd, 0, 0, 0)),
            pl.BlockSpec((Cout, 1), lambda n, d, kd: (0, 0)),
        ],
        out_specs=pl.BlockSpec((1, Cout, PLo), lambda n, d, kd: (n * D + d, 0, 0)),
        scratch_shapes=[pltpu.VMEM((Cout, PLo), jnp.float32)],
        compiler_params=pltpu.CompilerParams(
            dimension_semantics=("parallel", "parallel", "arbitrary")),
    )(xp, wr, b2)
    return out.reshape(N, D, Cout, H, Wp)


def ln_stats(x5, w_valid, *, eps=1e-5):
    """Per-(n, c) LayerNorm mean / rstd over the valid (d, h, w) positions."""
    N, D, C, H, Wp = x5.shape
    PLo = H * Wp
    L = D * H * w_valid
    mask = jnp.tile((jnp.arange(Wp) < w_valid).astype(jnp.float32), (H,))
    mask = mask.reshape(1, PLo)
    xf = x5.reshape(N * D, C, PLo)
    kern = functools.partial(_ln_stats_kernel, eps=eps, inv_l=1.0 / L)
    mean, rstd = pl.pallas_call(
        kern,
        out_shape=(jax.ShapeDtypeStruct((N, C, 1), jnp.float32),
                   jax.ShapeDtypeStruct((N, C, 1), jnp.float32)),
        grid=(N, D),
        in_specs=[pl.BlockSpec((1, C, PLo), lambda n, d: (n * D + d, 0, 0)),
                  pl.BlockSpec((1, PLo), lambda n, d: (0, 0))],
        out_specs=(pl.BlockSpec((1, C, 1), lambda n, d: (n, 0, 0)),
                   pl.BlockSpec((1, C, 1), lambda n, d: (n, 0, 0))),
        scratch_shapes=[pltpu.VMEM((C, 1), jnp.float32),
                        pltpu.VMEM((C, 1), jnp.float32)],
        compiler_params=pltpu.CompilerParams(
            dimension_semantics=("parallel", "arbitrary")),
    )(xf, mask)
    return mean, rstd


def ln_apply_relu(x5, mean, rstd, g3, b3, *, out_dtype):
    N, D, C, H, Wp = x5.shape
    PLo = H * Wp
    xf = x5.reshape(N * D, C, PLo)
    out = pl.pallas_call(
        _ln_apply_relu_kernel,
        out_shape=jax.ShapeDtypeStruct((N * D, C, PLo), out_dtype),
        grid=(N, D),
        in_specs=[pl.BlockSpec((1, C, PLo), lambda n, d: (n * D + d, 0, 0)),
                  pl.BlockSpec((1, C, 1), lambda n, d: (n, 0, 0)),
                  pl.BlockSpec((1, C, 1), lambda n, d: (n, 0, 0)),
                  pl.BlockSpec((1, 1, PLo), lambda n, d: (d, 0, 0)),
                  pl.BlockSpec((1, 1, PLo), lambda n, d: (d, 0, 0))],
        out_specs=pl.BlockSpec((1, C, PLo), lambda n, d: (n * D + d, 0, 0)),
        compiler_params=pltpu.CompilerParams(
            dimension_semantics=("parallel", "parallel")),
    )(xf, mean, rstd, g3, b3)
    return out.reshape(N, D, C, H, Wp)


def ln_relu_conv1x1(x5, mean, rstd, g3, b3, w1, b1):
    """Fused LayerNorm-apply + ReLU + 1x1x1 conv (replaces the third Conv3d)."""
    N, D, C, H, Wp = x5.shape
    Cout = w1.shape[0]
    PLo = H * Wp
    xf = x5.reshape(N * D, C, PLo)
    w2d = w1.reshape(Cout, C).astype(jnp.bfloat16)
    bia = b1.reshape(Cout, 1).astype(jnp.float32)
    out = pl.pallas_call(
        _ln_relu_conv1x1_kernel,
        out_shape=jax.ShapeDtypeStruct((N * D, Cout, PLo), jnp.bfloat16),
        grid=(N, D),
        in_specs=[pl.BlockSpec((1, C, PLo), lambda n, d: (n * D + d, 0, 0)),
                  pl.BlockSpec((1, C, 1), lambda n, d: (n, 0, 0)),
                  pl.BlockSpec((1, C, 1), lambda n, d: (n, 0, 0)),
                  pl.BlockSpec((1, 1, PLo), lambda n, d: (d, 0, 0)),
                  pl.BlockSpec((1, 1, PLo), lambda n, d: (d, 0, 0)),
                  pl.BlockSpec((Cout, C), lambda n, d: (0, 0)),
                  pl.BlockSpec((Cout, 1), lambda n, d: (0, 0))],
        out_specs=pl.BlockSpec((1, Cout, PLo), lambda n, d: (n * D + d, 0, 0)),
        compiler_params=pltpu.CompilerParams(
            dimension_semantics=("parallel", "parallel")),
    )(xf, mean, rstd, g3, b3, w2d, bia)
    return out.reshape(N, D, Cout, H, Wp)


def _prep_affine(p3, Wp):
    # (D, H, W) LayerNorm affine param -> (D, 1, H*Wp) f32 matching conv layout.
    D, H, W = p3.shape
    pp = jnp.pad(p3.astype(jnp.float32), ((0, 0), (0, 0), (0, Wp - W)))
    return pp.reshape(D, 1, H * Wp)


# --------------------------------- forward -----------------------------------

def down_forward(x, p):
    """x: (N, Cin, 2*dhw, 2*dhw, 2*dhw) f32 -> (N, C, dhw, dhw, dhw) f32."""
    xp = maxpool3d_2x2(x)                                    # (N, D, Cin, H, W) bf16
    N, D, _, H, W = xp.shape

    # Conv 7^3 -> LN -> ReLU
    h = conv3d_stream(xp, p['c1_w'], p['c1_b'], k=7, pad=3)  # (N, D, C, H, Wp1)
    m, r = ln_stats(h, W)
    h = ln_apply_relu(h, m, r,
                      _prep_affine(p['ln1_g'], h.shape[-1]),
                      _prep_affine(p['ln1_b'], h.shape[-1]),
                      out_dtype=jnp.bfloat16)

    # Conv 3^3 -> LN -> ReLU -> Conv 1^3 (fused into the LN-apply kernel)
    h = conv3d_stream(h[..., :W], p['c2_w'], p['c2_b'], k=3, pad=1)  # (N, D, C, H, Wp2)
    m, r = ln_stats(h, W)
    h = ln_relu_conv1x1(h, m, r,
                        _prep_affine(p['ln2_g'], h.shape[-1]),
                        _prep_affine(p['ln2_b'], h.shape[-1]),
                        p['c3_w'], p['c3_b'])

    # Final LN -> ReLU
    m, r = ln_stats(h, W)
    h = ln_apply_relu(h, m, r,
                      _prep_affine(p['ln3_g'], h.shape[-1]),
                      _prep_affine(p['ln3_b'], h.shape[-1]),
                      out_dtype=jnp.float32)

    out = h[..., :W]                                         # drop junk lane columns
    return jnp.transpose(out, (0, 2, 1, 3, 4))               # back to (N, C, D, H, W)


# ------------------------------ parameter init --------------------------------

def init_params(key, in_channels, n_channels, dhw):
    C = n_channels
    ks = jax.random.split(key, 12)

    def nrm(k, shape, scale=0.05):
        return scale * jax.random.normal(k, shape, jnp.float32)

    return {
        'c1_w': nrm(ks[0], (C, in_channels, 7, 7, 7)),
        'c1_b': nrm(ks[1], (C,)),
        'ln1_g': 1.0 + nrm(ks[2], (dhw, dhw, dhw), 0.01),
        'ln1_b': nrm(ks[3], (dhw, dhw, dhw), 0.01),
        'c2_w': nrm(ks[4], (C, C, 3, 3, 3)),
        'c2_b': nrm(ks[5], (C,)),
        'ln2_g': 1.0 + nrm(ks[6], (dhw, dhw, dhw), 0.01),
        'ln2_b': nrm(ks[7], (dhw, dhw, dhw), 0.01),
        'c3_w': nrm(ks[8], (C, C, 1, 1, 1)),
        'c3_b': nrm(ks[9], (C,)),
        'ln3_g': 1.0 + nrm(ks[10], (dhw, dhw, dhw), 0.01),
        'ln3_b': nrm(ks[11], (dhw, dhw, dhw), 0.01),
    }


# ------------------------------------ main -------------------------------------

if __name__ == "__main__":
    N, Cin, C, dhw = 2, 4, 16, 8           # dhw = spatial size AFTER the 2x2x2 maxpool
    D0 = 2 * dhw                           # input spatial size
    key = jax.random.PRNGKey(0)
    kx, kp = jax.random.split(key)
    x = jax.random.normal(kx, (N, Cin, D0, D0, D0), jnp.float32)
    params = init_params(kp, Cin, C, dhw)

    fwd = jax.jit(down_forward)
    out = jax.block_until_ready(fwd(x, params))

    assert out.shape == (N, C, dhw, dhw, dhw)
    assert bool(jnp.isfinite(out).all())
    print("KERNEL_OK")
</pallas_src>

<mosaic_0001>
module attributes {stable_mosaic.version = 11 : i64} {
  func.func @_maxpool_kernel(%arg0: i32, %arg1: i32, %arg2: i32, %arg3: memref<1x2x16x16xf32, #tpu.memory_space<vmem>>, %arg4: memref<1x8x8xbf16, #tpu.memory_space<vmem>>) attributes {dimension_semantics = [#tpu.dimension_semantics<parallel>, #tpu.dimension_semantics<parallel>, #tpu.dimension_semantics<parallel>], iteration_bounds = array<i64: 2, 4, 8>, scalar_prefetch = 0 : i64, scratch_operands = 0 : i64, tpu.core_type = #tpu.core_type<tc>, window_params = [{transform_indices = @transform_0, window_bounds = array<i64: 1, 2, 16, 16>}, {transform_indices = @transform_1, window_bounds = array<i64: 1, 8, 8>}]} {
    %c0 = arith.constant 0 : index
    %c0_0 = arith.constant 0 : index
    %c0_1 = arith.constant 0 : index
    %c0_2 = arith.constant 0 : index
    %0 = vector.load %arg3[%c0, %c0_0, %c0_1, %c0_2] : memref<1x2x16x16xf32, #tpu.memory_space<vmem>>, vector<1x1x16x16xf32>
    %1 = vector.shape_cast %0 : vector<1x1x16x16xf32> to vector<16x16xf32>
    %c0_3 = arith.constant 0 : index
    %c1 = arith.constant 1 : index
    %c0_4 = arith.constant 0 : index
    %c0_5 = arith.constant 0 : index
    %2 = vector.load %arg3[%c0_3, %c1, %c0_4, %c0_5] : memref<1x2x16x16xf32, #tpu.memory_space<vmem>>, vector<1x1x16x16xf32>
    %3 = vector.shape_cast %2 : vector<1x1x16x16xf32> to vector<16x16xf32>
    %4 = arith.maximumf %1, %3 : vector<16x16xf32>
    %5 = vector.shape_cast %4 : vector<16x16xf32> to vector<16x8x2xf32>
    %cst = arith.constant dense<0xFF800000> : vector<16x8xf32>
    %6 = vector.multi_reduction <maximumf>, %5, %cst [2] : vector<16x8x2xf32> to vector<16x8xf32>
    %7 = vector.shape_cast %6 : vector<16x8xf32> to vector<8x2x8xf32>
    %cst_6 = arith.constant dense<0xFF800000> : vector<8x8xf32>
    %8 = vector.multi_reduction <maximumf>, %7, %cst_6 [1] : vector<8x2x8xf32> to vector<8x8xf32>
    %9 = arith.truncf %8 : vector<8x8xf32> to vector<8x8xbf16>
    %c0_7 = arith.constant 0 : index
    %c0_8 = arith.constant 0 : index
    %c0_9 = arith.constant 0 : index
    %10 = vector.load %arg4[%c0_7, %c0_8, %c0_9] : memref<1x8x8xbf16, #tpu.memory_space<vmem>>, vector<1x8x8xbf16>
    %11 = vector.shape_cast %10 : vector<1x8x8xbf16> to vector<8x8xbf16>
    %12 = vector.shape_cast %9 : vector<8x8xbf16> to vector<1x8x8xbf16>
    tpu.vector_store %arg4[%c0_7, %c0_8, %c0_9], %12 {strides = array<i32>} : memref<1x8x8xbf16, #tpu.memory_space<vmem>>, vector<1x8x8xbf16>,
    return
  }
  func.func @transform_0(%arg0: i32, %arg1: i32, %arg2: i32) -> (i32, i32, i32, i32) {
    %c4_i32 = arith.constant 4 : i32
    %0 = arith.muli %arg0, %c4_i32 : i32
    %1 = arith.addi %0, %arg1 : i32
    %c8_i32 = arith.constant 8 : i32
    %2 = arith.muli %1, %c8_i32 : i32
    %3 = arith.addi %2, %arg2 : i32
    %c0_i32 = arith.constant 0 : i32
    %c0_i32_0 = arith.constant 0 : i32
    %c0_i32_1 = arith.constant 0 : i32
    %c0_i32_2 = arith.constant 0 : i32
    return %3, %c0_i32, %c0_i32_0, %c0_i32_1 : i32, i32, i32, i32
  }
  func.func @transform_1(%arg0: i32, %arg1: i32, %arg2: i32) -> (i32, i32, i32) {
    %c8_i32 = arith.constant 8 : i32
    %0 = arith.muli %arg0, %c8_i32 : i32
    %1 = arith.addi %0, %arg2 : i32
    %c4_i32 = arith.constant 4 : i32
    %2 = arith.muli %1, %c4_i32 : i32
    %3 = arith.addi %2, %arg1 : i32
    %c0_i32 = arith.constant 0 : i32
    %c0_i32_0 = arith.constant 0 : i32
    %c0_i32_1 = arith.constant 0 : i32
    return %3, %c0_i32, %c0_i32_0 : i32, i32, i32
  }
}

module attributes {stable_mosaic.version = 11 : i64} {
  func.func @_conv3d_tap_kernel(%arg0: i32, %arg1: i32, %arg2: i32, %arg3: memref<1x4x210xbf16, #tpu.memory_space<vmem>>, %arg4: memref<1x49x16x4xbf16, #tpu.memory_space<vmem>>, %arg5: memref<16x1xf32, #tpu.memory_space<vmem>>, %arg6: memref<1x16x112xbf16, #tpu.memory_space<vmem>>, %arg7: memref<16x112xf32, #tpu.memory_space<vmem>>) attributes {dimension_semantics = [#tpu.dimension_semantics<parallel>, #tpu.dimension_semantics<parallel>, #tpu.dimension_semantics<arbitrary>], iteration_bounds = array<i64: 2, 8, 7>, scalar_prefetch = 0 : i64, scratch_operands = 1 : i64, tpu.core_type = #tpu.core_type<tc>, window_params = [{transform_indices = @transform_0, window_bounds = array<i64: 1, 4, 210>}, {transform_indices = @transform_1, window_bounds = array<i64: 1, 49, 16, 4>}, {pipeline_mode = #tpu.pipeline_mode<synchronous>, transform_indices = @transform_2, window_bounds = array<i64: 16, 1>}, {transform_indices = @transform_3, window_bounds = array<i64: 1, 16, 112>}]} {
    %c0_i32 = arith.constant 0 : i32
    %0 = arith.cmpi eq, %arg2, %c0_i32 : i32
    %1 = arith.extui %0 : i1 to i32
    %c0_i32_0 = arith.constant 0 : i32
    %2 = arith.cmpi ne, %1, %c0_i32_0 : i32
    scf.if %2 {
      %cst_204 = arith.constant 0.000000e+00 : f32
      %255 = vector.broadcast %cst_204 : f32 to vector<16x112xf32>
      %c0_205 = arith.constant 0 : index
      %c0_206 = arith.constant 0 : index
      %256 = vector.load %arg7[%c0_205, %c0_206] : memref<16x112xf32, #tpu.memory_space<vmem>>, vector<16x112xf32>
      tpu.vector_store %arg7[%c0_205, %c0_206], %255 {strides = array<i32>} : memref<16x112xf32, #tpu.memory_space<vmem>>, vector<16x112xf32>,
    } else {
    }
    %c0 = arith.constant 0 : index
    %c0_1 = arith.constant 0 : index
    %c0_2 = arith.constant 0 : index
    %3 = vector.load %arg3[%c0, %c0_1, %c0_2] : memref<1x4x210xbf16, #tpu.memory_space<vmem>>, vector<1x4x210xbf16>
    %4 = vector.shape_cast %3 : vector<1x4x210xbf16> to vector<4x210xbf16>
    %5 = vector.extract_strided_slice %4 {offsets = [0, 0], sizes = [4, 112], strides = [1, 1]} : vector<4x210xbf16> to vector<4x112xbf16>
    %c0_3 = arith.constant 0 : index
    %c0_4 = arith.constant 0 : index
    %c0_5 = arith.constant 0 : index
    %c0_6 = arith.constant 0 : index
    %6 = vector.load %arg4[%c0_3, %c0_4, %c0_5, %c0_6] : memref<1x49x16x4xbf16, #tpu.memory_space<vmem>>, vector<1x1x16x4xbf16>
    %7 = vector.shape_cast %6 : vector<1x1x16x4xbf16> to vector<16x4xbf16>
    %cst = arith.constant dense<0.000000e+00> : vector<16x112xf32>
    %8 = tpu.matmul %7, %5, %cst {dimension_numbers = #tpu.dot_dimension_numbers<[1], [0], [0], [1], [0, 0, 1, 1], [], []>} : vector<16x4xbf16>, vector<4x112xbf16>, vector<16x112xf32> -> vector<16x112xf32>
    %9 = vector.extract_strided_slice %4 {offsets = [0, 1], sizes = [4, 112], strides = [1, 1]} : vector<4x210xbf16> to vector<4x112xbf16>
    %c0_7 = arith.constant 0 : index
    %c1 = arith.constant 1 : index
    %c0_8 = arith.constant 0 : index
    %c0_9 = arith.constant 0 : index
    %10 = vector.load %arg4[%c0_7, %c1, %c0_8, %c0_9] : memref<1x49x16x4xbf16, #tpu.memory_space<vmem>>, vector<1x1x16x4xbf16>
    %11 = vector.shape_cast %10 : vector<1x1x16x4xbf16> to vector<16x4xbf16>
    %cst_10 = arith.constant dense<0.000000e+00> : vector<16x112xf32>
    %12 = tpu.matmul %11, %9, %cst_10 {dimension_numbers = #tpu.dot_dimension_numbers<[1], [0], [0], [1], [0, 0, 1, 1], [], []>} : vector<16x4xbf16>, vector<4x112xbf16>, vector<16x112xf32> -> vector<16x112xf32>
    %13 = arith.addf %8, %12 : vector<16x112xf32>
    %14 = vector.extract_strided_slice %4 {offsets = [0, 2], sizes = [4, 112], strides = [1, 1]} : vector<4x210xbf16> to vector<4x112xbf16>
    %c0_11 = arith.constant 0 : index
    %c2 = arith.constant 2 : index
    %c0_12 = arith.constant 0 : index
    %c0_13 = arith.constant 0 : index
    %15 = vector.load %arg4[%c0_11, %c2, %c0_12, %c0_13] : memref<1x49x16x4xbf16, #tpu.memory_space<vmem>>, vector<1x1x16x4xbf16>
    %16 = vector.shape_cast %15 : vector<1x1x16x4xbf16> to vector<16x4xbf16>
    %cst_14 = arith.constant dense<0.000000e+00> : vector<16x112xf32>
    %17 = tpu.matmul %16, %14, %cst_14 {dimension_numbers = #tpu.dot_dimension_numbers<[1], [0], [0], [1], [0, 0, 1, 1], [], []>} : vector<16x4xbf16>, vector<4x112xbf16>, vector<16x112xf32> -> vector<16x112xf32>
    %18 = arith.addf %13, %17 : vector<16x112xf32>
    %19 = vector.extract_strided_slice %4 {offsets = [0, 3], sizes = [4, 112], strides = [1, 1]} : vector<4x210xbf16> to vector<4x112xbf16>
    %c0_15 = arith.constant 0 : index
    %c3 = arith.constant 3 : index
    %c0_16 = arith.constant 0 : index
    %c0_17 = arith.constant 0 : index
    %20 = vector.load %arg4[%c0_15, %c3, %c0_16, %c0_17] : memref<1x49x16x4xbf16, #tpu.memory_space<vmem>>, vector<1x1x16x4xbf16>
    %21 = vector.shape_cast %20 : vector<1x1x16x4xbf16> to vector<16x4xbf16>
    %cst_18 = arith.constant dense<0.000000e+00> : vector<16x112xf32>
    %22 = tpu.matmul %21, %19, %cst_18 {dimension_numbers = #tpu.dot_dimension_numbers<[1], [0], [0], [1], [0, 0, 1, 1], [], []>} : vector<16x4xbf16>, vector<4x112xbf16>, vector<16x112xf32> -> vector<16x112xf32>
    %23 = arith.addf %18, %22 : vector<16x112xf32>
    %24 = vector.extract_strided_slice %4 {offsets = [0, 4], sizes = [4, 112], strides = [1, 1]} : vector<4x210xbf16> to vector<4x112xbf16>
    %c0_19 = arith.constant 0 : index
    %c4 = arith.constant 4 : index
    %c0_20 = arith.constant 0 : index
    %c0_21 = arith.constant 0 : index
    %25 = vector.load %arg4[%c0_19, %c4, %c0_20, %c0_21] : memref<1x49x16x4xbf16, #tpu.memory_space<vmem>>, vector<1x1x16x4xbf16>
    %26 = vector.shape_cast %25 : vector<1x1x16x4xbf16> to vector<16x4xbf16>
    %cst_22 = arith.constant dense<0.000000e+00> : vector<16x112xf32>
    %27 = tpu.matmul %26, %24, %cst_22 {dimension_numbers = #tpu.dot_dimension_numbers<[1], [0], [0], [1], [0, 0, 1, 1], [], []>} : vector<16x4xbf16>, vector<4x112xbf16>, vector<16x112xf32> -> vector<16x112xf32>
    %28 = arith.addf %23, %27 : vector<16x112xf32>
    %29 = vector.extract_strided_slice %4 {offsets = [0, 5], sizes = [4, 112], strides = [1, 1]} : vector<4x210xbf16> to vector<4x112xbf16>
    %c0_23 = arith.constant 0 : index
    %c5 = arith.constant 5 : index
    %c0_24 = arith.constant 0 : index
    %c0_25 = arith.constant 0 : index
    %30 = vector.load %arg4[%c0_23, %c5, %c0_24, %c0_25] : memref<1x49x16x4xbf16, #tpu.memory_space<vmem>>, vector<1x1x16x4xbf16>
    %31 = vector.shape_cast %30 : vector<1x1x16x4xbf16> to vector<16x4xbf16>
    %cst_26 = arith.constant dense<0.000000e+00> : vector<16x112xf32>
    %32 = tpu.matmul %31, %29, %cst_26 {dimension_numbers = #tpu.dot_dimension_numbers<[1], [0], [0], [1], [0, 0, 1, 1], [], []>} : vector<16x4xbf16>, vector<4x112xbf16>, vector<16x112xf32> -> vector<16x112xf32>
    %33 = arith.addf %28, %32 : vector<16x112xf32>
    %34 = vector.extract_strided_slice %4 {offsets = [0, 6], sizes = [4, 112], strides = [1, 1]} : vector<4x210xbf16> to vector<4x112xbf16>
    %c0_27 = arith.constant 0 : index
    %c6 = arith.constant 6 : index
    %c0_28 = arith.constant 0 : index
    %c0_29 = arith.constant 0 : index
    %35 = vector.load %arg4[%c0_27, %c6, %c0_28, %c0_29] : memref<1x49x16x4xbf16, #tpu.memory_space<vmem>>, vector<1x1x16x4xbf16>
    %36 = vector.shape_cast %35 : vector<1x1x16x4xbf16> to vector<16x4xbf16>
    %cst_30 = arith.constant dense<0.000000e+00> : vector<16x112xf32>
    %37 = tpu.matmul %36, %34, %cst_30 {dimension_numbers = #tpu.dot_dimension_numbers<[1], [0], [0], [1], [0, 0, 1, 1], [], []>} : vector<16x4xbf16>, vector<4x112xbf16>, vector<16x112xf32> -> vector<16x112xf32>
    %38 = arith.addf %33, %37 : vector<16x112xf32>
    %39 = vector.extract_strided_slice %4 {offsets = [0, 14], sizes = [4, 112], strides = [1, 1]} : vector<4x210xbf16> to vector<4x112xbf16>
    %c0_31 = arith.constant 0 : index
    %c7 = arith.constant 7 : index
    %c0_32 = arith.constant 0 : index
    %c0_33 = arith.constant 0 : index
    %40 = vector.load %arg4[%c0_31, %c7, %c0_32, %c0_33] : memref<1x49x16x4xbf16, #tpu.memory_space<vmem>>, vector<1x1x16x4xbf16>
    %41 = vector.shape_cast %40 : vector<1x1x16x4xbf16> to vector<16x4xbf16>
    %cst_34 = arith.constant dense<0.000000e+00> : vector<16x112xf32>
    %42 = tpu.matmul %41, %39, %cst_34 {dimension_numbers = #tpu.dot_dimension_numbers<[1], [0], [0], [1], [0, 0, 1, 1], [], []>} : vector<16x4xbf16>, vector<4x112xbf16>, vector<16x112xf32> -> vector<16x112xf32>
    %43 = arith.addf %38, %42 : vector<16x112xf32>
    %44 = vector.extract_strided_slice %4 {offsets = [0, 15], sizes = [4, 112], strides = [1, 1]} : vector<4x210xbf16> to vector<4x112xbf16>
    %c0_35 = arith.constant 0 : index
    %c8 = arith.constant 8 : index
    %c0_36 = arith.constant 0 : index
    %c0_37 = arith.constant 0 : index
    %45 = vector.load %arg4[%c0_35, %c8, %c0_36, %c0_37] : memref<1x49x16x4xbf16, #tpu.memory_space<vmem>>, vector<1x1x16x4xbf16>
    %46 = vector.shape_cast %45 : vector<1x1x16x4xbf16> to vector<16x4xbf16>
    %cst_38 = arith.constant dense<0.000000e+00> : vector<16x112xf32>
    %47 = tpu.matmul %46, %44, %cst_38 {dimension_numbers = #tpu.dot_dimension_numbers<[1], [0], [0], [1], [0, 0, 1, 1], [], []>} : vector<16x4xbf16>, vector<4x112xbf16>, vector<16x112xf32> -> vector<16x112xf32>
    %48 = arith.addf %43, %47 : vector<16x112xf32>
    %49 = vector.extract_strided_slice %4 {offsets = [0, 16], sizes = [4, 112], strides = [1, 1]} : vector<4x210xbf16> to vector<4x112xbf16>
    %c0_39 = arith.constant 0 : index
    %c9 = arith.constant 9 : index
    %c0_40 = arith.constant 0 : index
    %c0_41 = arith.constant 0 : index
    %50 = vector.load %arg4[%c0_39, %c9, %c0_40, %c0_41] : memref<1x49x16x4xbf16, #tpu.memory_space<vmem>>, vector<1x1x16x4xbf16>
    %51 = vector.shape_cast %50 : vector<1x1x16x4xbf16> to vector<16x4xbf16>
    %cst_42 = arith.constant dense<0.000000e+00> : vector<16x112xf32>
    %52 = tpu.matmul %51, %49, %cst_42 {dimension_numbers = #tpu.dot_dimension_numbers<[1], [0], [0], [1], [0, 0, 1, 1], [], []>} : vector<16x4xbf16>, vector<4x112xbf16>, vector<16x112xf32> -> vector<16x112xf32>
    %53 = arith.addf %48, %52 : vector<16x112xf32>
    %54 = vector.extract_strided_slice %4 {offsets = [0, 17], sizes = [4, 112], strides = [1, 1]} : vector<4x210xbf16> to vector<4x112xbf16>
    %c0_43 = arith.constant 0 : index
    %c10 = arith.constant 10 : index
    %c0_44 = arith.constant 0 : index
    %c0_45 = arith.constant 0 : index
    %55 = vector.load %arg4[%c0_43, %c10, %c0_44, %c0_45] : memref<1x49x16x4xbf16, #tpu.memory_space<vmem>>, vector<1x1x16x4xbf16>
    %56 = vector.shape_cast %55 : vector<1x1x16x4xbf16> to vector<16x4xbf16>
    %cst_46 = arith.constant dense<0.000000e+00> : vector<16x112xf32>
    %57 = tpu.matmul %56, %54, %cst_46 {dimension_numbers = #tpu.dot_dimension_numbers<[1], [0], [0], [1], [0, 0, 1, 1], [], []>} : vector<16x4xbf16>, vector<4x112xbf16>, vector<16x112xf32> -> vector<16x112xf32>
    %58 = arith.addf %53, %57 : vector<16x112xf32>
    %59 = vector.extract_strided_slice %4 {offsets = [0, 18], sizes = [4, 112], strides = [1, 1]} : vector<4x210xbf16> to vector<4x112xbf16>
    %c0_47 = arith.constant 0 : index
    %c11 = arith.constant 11 : index
    %c0_48 = arith.constant 0 : index
    %c0_49 = arith.constant 0 : index
    %60 = vector.load %arg4[%c0_47, %c11, %c0_48, %c0_49] : memref<1x49x16x4xbf16, #tpu.memory_space<vmem>>, vector<1x1x16x4xbf16>
    %61 = vector.shape_cast %60 : vector<1x1x16x4xbf16> to vector<16x4xbf16>
    %cst_50 = arith.constant dense<0.000000e+00> : vector<16x112xf32>
    %62 = tpu.matmul %61, %59, %cst_50 {dimension_numbers = #tpu.dot_dimension_numbers<[1], [0], [0], [1], [0, 0, 1, 1], [], []>} : vector<16x4xbf16>, vector<4x112xbf16>, vector<16x112xf32> -> vector<16x112xf32>
    %63 = arith.addf %58, %62 : vector<16x112xf32>
    %64 = vector.extract_strided_slice %4 {offsets = [0, 19], sizes = [4, 112], strides = [1, 1]} : vector<4x210xbf16> to vector<4x112xbf16>
    %c0_51 = arith.constant 0 : index
    %c12 = arith.constant 12 : index
    %c0_52 = arith.constant 0 : index
    %c0_53 = arith.constant 0 : index
    %65 = vector.load %arg4[%c0_51, %c12, %c0_52, %c0_53] : memref<1x49x16x4xbf16, #tpu.memory_space<vmem>>, vector<1x1x16x4xbf16>
    %66 = vector.shape_cast %65 : vector<1x1x16x4xbf16> to vector<16x4xbf16>
    %cst_54 = arith.constant dense<0.000000e+00> : vector<16x112xf32>
    %67 = tpu.matmul %66, %64, %cst_54 {dimension_numbers = #tpu.dot_dimension_numbers<[1], [0], [0], [1], [0, 0, 1, 1], [], []>} : vector<16x4xbf16>, vector<4x112xbf16>, vector<16x112xf32> -> vector<16x112xf32>
    %68 = arith.addf %63, %67 : vector<16x112xf32>
    %69 = vector.extract_strided_slice %4 {offsets = [0, 20], sizes = [4, 112], strides = [1, 1]} : vector<4x210xbf16> to vector<4x112xbf16>
    %c0_55 = arith.constant 0 : index
    %c13 = arith.constant 13 : index
    %c0_56 = arith.constant 0 : index
    %c0_57 = arith.constant 0 : index
    %70 = vector.load %arg4[%c0_55, %c13, %c0_56, %c0_57] : memref<1x49x16x4xbf16, #tpu.memory_space<vmem>>, vector<1x1x16x4xbf16>
    %71 = vector.shape_cast %70 : vector<1x1x16x4xbf16> to vector<16x4xbf16>
    %cst_58 = arith.constant dense<0.000000e+00> : vector<16x112xf32>
    %72 = tpu.matmul %71, %69, %cst_58 {dimension_numbers = #tpu.dot_dimension_numbers<[1], [0], [0], [1], [0, 0, 1, 1], [], []>} : vector<16x4xbf16>, vector<4x112xbf16>, vector<16x112xf32> -> vector<16x112xf32>
    %73 = arith.addf %68, %72 : vector<16x112xf32>
    %74 = vector.extract_strided_slice %4 {offsets = [0, 28], sizes = [4, 112], strides = [1, 1]} : vector<4x210xbf16> to vector<4x112xbf16>
    %c0_59 = arith.constant 0 : index
    %c14 = arith.constant 14 : index
    %c0_60 = arith.constant 0 : index
    %c0_61 = arith.constant 0 : index
    %75 = vector.load %arg4[%c0_59, %c14, %c0_60, %c0_61] : memref<1x49x16x4xbf16, #tpu.memory_space<vmem>>, vector<1x1x16x4xbf16>
    %76 = vector.shape_cast %75 : vector<1x1x16x4xbf16> to vector<16x4xbf16>
    %cst_62 = arith.constant dense<0.000000e+00> : vector<16x112xf32>
    %77 = tpu.matmul %76, %74, %cst_62 {dimension_numbers = #tpu.dot_dimension_numbers<[1], [0], [0], [1], [0, 0, 1, 1], [], []>} : vector<16x4xbf16>, vector<4x112xbf16>, vector<16x112xf32> -> vector<16x112xf32>
    %78 = arith.addf %73, %77 : vector<16x112xf32>
    %79 = vector.extract_strided_slice %4 {offsets = [0, 29], sizes = [4, 112], strides = [1, 1]} : vector<4x210xbf16> to vector<4x112xbf16>
    %c0_63 = arith.constant 0 : index
    %c15 = arith.constant 15 : index
    %c0_64 = arith.constant 0 : index
    %c0_65 = arith.constant 0 : index
    %80 = vector.load %arg4[%c0_63, %c15, %c0_64, %c0_65] : memref<1x49x16x4xbf16, #tpu.memory_space<vmem>>, vector<1x1x16x4xbf16>
    %81 = vector.shape_cast %80 : vector<1x1x16x4xbf16> to vector<16x4xbf16>
    %cst_66 = arith.constant dense<0.000000e+00> : vector<16x112xf32>
    %82 = tpu.matmul %81, %79, %cst_66 {dimension_numbers = #tpu.dot_dimension_numbers<[1], [0], [0], [1], [0, 0, 1, 1], [], []>} : vector<16x4xbf16>, vector<4x112xbf16>, vector<16x112xf32> -> vector<16x112xf32>
    %83 = arith.addf %78, %82 : vector<16x112xf32>
    %84 = vector.extract_strided_slice %4 {offsets = [0, 30], sizes = [4, 112], strides = [1, 1]} : vector<4x210xbf16> to vector<4x112xbf16>
    %c0_67 = arith.constant 0 : index
    %c16 = arith.constant 16 : index
    %c0_68 = arith.constant 0 : index
    %c0_69 = arith.constant 0 : index
    %85 = vector.load %arg4[%c0_67, %c16, %c0_68, %c0_69] : memref<1x49x16x4xbf16, #tpu.memory_space<vmem>>, vector<1x1x16x4xbf16>
    %86 = vector.shape_cast %85 : vector<1x1x16x4xbf16> to vector<16x4xbf16>
    %cst_70 = arith.constant dense<0.000000e+00> : vector<16x112xf32>
    %87 = tpu.matmul %86, %84, %cst_70 {dimension_numbers = #tpu.dot_dimension_numbers<[1], [0], [0], [1], [0, 0, 1, 1], [], []>} : vector<16x4xbf16>, vector<4x112xbf16>, vector<16x112xf32> -> vector<16x112xf32>
    %88 = arith.addf %83, %87 : vector<16x112xf32>
    %89 = vector.extract_strided_slice %4 {offsets = [0, 31], sizes = [4, 112], strides = [1, 1]} : vector<4x210xbf16> to vector<4x112xbf16>
    %c0_71 = arith.constant 0 : index
    %c17 = arith.constant 17 : index
    %c0_72 = arith.constant 0 : index
    %c0_73 = arith.constant 0 : index
    %90 = vector.load %arg4[%c0_71, %c17, %c0_72, %c0_73] : memref<1x49x16x4xbf16, #tpu.memory_space<vmem>>, vector<1x1x16x4xbf16>
    %91 = vector.shape_cast %90 : vector<1x1x16x4xbf16> to vector<16x4xbf16>
    %cst_74 = arith.constant dense<0.000000e+00> : vector<16x112xf32>
    %92 = tpu.matmul %91, %89, %cst_74 {dimension_numbers = #tpu.dot_dimension_numbers<[1], [0], [0], [1], [0, 0, 1, 1], [], []>} : vector<16x4xbf16>, vector<4x112xbf16>, vector<16x112xf32> -> vector<16x112xf32>
    %93 = arith.addf %88, %92 : vector<16x112xf32>
    %94 = vector.extract_strided_slice %4 {offsets = [0, 32], sizes = [4, 112], strides = [1, 1]} : vector<4x210xbf16> to vector<4x112xbf16>
    %c0_75 = arith.constant 0 : index
    %c18 = arith.constant 18 : index
    %c0_76 = arith.constant 0 : index
    %c0_77 = arith.constant 0 : index
    %95 = vector.load %arg4[%c0_75, %c18, %c0_76, %c0_77] : memref<1x49x16x4xbf16, #tpu.memory_space<vmem>>, vector<1x1x16x4xbf16>
    %96 = vector.shape_cast %95 : vector<1x1x16x4xbf16> to vector<16x4xbf16>
    %cst_78 = arith.constant dense<0.000000e+00> : vector<16x112xf32>
    %97 = tpu.matmul %96, %94, %cst_78 {dimension_numbers = #tpu.dot_dimension_numbers<[1], [0], [0], [1], [0, 0, 1, 1], [], []>} : vector<16x4xbf16>, vector<4x112xbf16>, vector<16x112xf32> -> vector<16x112xf32>
    %98 = arith.addf %93, %97 : vector<16x112xf32>
    %99 = vector.extract_strided_slice %4 {offsets = [0, 33], sizes = [4, 112], strides = [1, 1]} : vector<4x210xbf16> to vector<4x112xbf16>
    %c0_79 = arith.constant 0 : index
    %c19 = arith.constant 19 : index
    %c0_80 = arith.constant 0 : index
    %c0_81 = arith.constant 0 : index
    %100 = vector.load %arg4[%c0_79, %c19, %c0_80, %c0_81] : memref<1x49x16x4xbf16, #tpu.memory_space<vmem>>, vector<1x1x16x4xbf16>
    %101 = vector.shape_cast %100 : vector<1x1x16x4xbf16> to vector<16x4xbf16>
    %cst_82 = arith.constant dense<0.000000e+00> : vector<16x112xf32>
    %102 = tpu.matmul %101, %99, %cst_82 {dimension_numbers = #tpu.dot_dimension_numbers<[1], [0], [0], [1], [0, 0, 1, 1], [], []>} : vector<16x4xbf16>, vector<4x112xbf16>, vector<16x112xf32> -> vector<16x112xf32>
    %103 = arith.addf %98, %102 : vector<16x112xf32>
    %104 = vector.extract_strided_slice %4 {offsets = [0, 34], sizes = [4, 112], strides = [1, 1]} : vector<4x210xbf16> to vector<4x112xbf16>
    %c0_83 = arith.constant 0 : index
    %c20 = arith.constant 20 : index
    %c0_84 = arith.constant 0 : index
    %c0_85 = arith.constant 0 : index
    %105 = vector.load %arg4[%c0_83, %c20, %c0_84, %c0_85] : memref<1x49x16x4xbf16, #tpu.memory_space<vmem>>, vector<1x1x16x4xbf16>
    %106 = vector.shape_cast %105 : vector<1x1x16x4xbf16> to vector<16x4xbf16>
    %cst_86 = arith.constant dense<0.000000e+00> : vector<16x112xf32>
    %107 = tpu.matmul %106, %104, %cst_86 {dimension_numbers = #tpu.dot_dimension_numbers<[1], [0], [0], [1], [0, 0, 1, 1], [], []>} : vector<16x4xbf16>, vector<4x112xbf16>, vector<16x112xf32> -> vector<16x112xf32>
    %108 = arith.addf %103, %107 : vector<16x112xf32>
    %109 = vector.extract_strided_slice %4 {offsets = [0, 42], sizes = [4, 112], strides = [1, 1]} : vector<4x210xbf16> to vector<4x112xbf16>
    %c0_87 = arith.constant 0 : index
    %c21 = arith.constant 21 : index
    %c0_88 = arith.constant 0 : index
    %c0_89 = arith.constant 0 : index
    %110 = vector.load %arg4[%c0_87, %c21, %c0_88, %c0_89] : memref<1x49x16x4xbf16, #tpu.memory_space<vmem>>, vector<1x1x16x4xbf16>
    %111 = vector.shape_cast %110 : vector<1x1x16x4xbf16> to vector<16x4xbf16>
    %cst_90 = arith.constant dense<0.000000e+00> : vector<16x112xf32>
    %112 = tpu.matmul %111, %109, %cst_90 {dimension_numbers = #tpu.dot_dimension_numbers<[1], [0], [0], [1], [0, 0, 1, 1], [], []>} : vector<16x4xbf16>, vector<4x112xbf16>, vector<16x112xf32> -> vector<16x112xf32>
    %113 = arith.addf %108, %112 : vector<16x112xf32>
    %114 = vector.extract_strided_slice %4 {offsets = [0, 43], sizes = [4, 112], strides = [1, 1]} : vector<4x210xbf16> to vector<4x112xbf16>
    %c0_91 = arith.constant 0 : index
    %c22 = arith.constant 22 : index
    %c0_92 = arith.constant 0 : index
    %c0_93 = arith.constant 0 : index
    %115 = vector.load %arg4[%c0_91, %c22, %c0_92, %c0_93] : memref<1x49x16x4xbf16, #tpu.memory_space<vmem>>, vector<1x1x16x4xbf16>
    %116 = vector.shape_cast %115 : vector<1x1x16x4xbf16> to vector<16x4xbf16>
    %cst_94 = arith.constant dense<0.000000e+00> : vector<16x112xf32>
    %117 = tpu.matmul %116, %114, %cst_94 {dimension_numbers = #tpu.dot_dimension_numbers<[1], [0], [0], [1], [0, 0, 1, 1], [], []>} : vector<16x4xbf16>, vector<4x112xbf16>, vector<16x112xf32> -> vector<16x112xf32>
    %118 = arith.addf %113, %117 : vector<16x112xf32>
    %119 = vector.extract_strided_slice %4 {offsets = [0, 44], sizes = [4, 112], strides = [1, 1]} : vector<4x210xbf16> to vector<4x112xbf16>
    %c0_95 = arith.constant 0 : index
    %c23 = arith.constant 23 : index
    %c0_96 = arith.constant 0 : index
    %c0_97 = arith.constant 0 : index
    %120 = vector.load %arg4[%c0_95, %c23, %c0_96, %c0_97] : memref<1x49x16x4xbf16, #tpu.memory_space<vmem>>, vector<1x1x16x4xbf16>
    %121 = vector.shape_cast %120 : vector<1x1x16x4xbf16> to vector<16x4xbf16>
    %cst_98 = arith.constant dense<0.000000e+00> : vector<16x112xf32>
    %122 = tpu.matmul %121, %119, %cst_98 {dimension_numbers = #tpu.dot_dimension_numbers<[1], [0], [0], [1], [0, 0, 1, 1], [], []>} : vector<16x4xbf16>, vector<4x112xbf16>, vector<16x112xf32> -> vector<16x112xf32>
    %123 = arith.addf %118, %122 : vector<16x112xf32>
    %124 = vector.extract_strided_slice %4 {offsets = [0, 45], sizes = [4, 112], strides = [1, 1]} : vector<4x210xbf16> to vector<4x112xbf16>
    %c0_99 = arith.constant 0 : index
    %c24 = arith.constant 24 : index
    %c0_100 = arith.constant 0 : index
    %c0_101 = arith.constant 0 : index
    %125 = vector.load %arg4[%c0_99, %c24, %c0_100, %c0_101] : memref<1x49x16x4xbf16, #tpu.memory_space<vmem>>, vector<1x1x16x4xbf16>
    %126 = vector.shape_cast %125 : vector<1x1x16x4xbf16> to vector<16x4xbf16>
    %cst_102 = arith.constant dense<0.000000e+00> : vector<16x112xf32>
    %127 = tpu.matmul %126, %124, %cst_102 {dimension_numbers = #tpu.dot_dimension_numbers<[1], [0], [0], [1], [0, 0, 1, 1], [], []>} : vector<16x4xbf16>, vector<4x112xbf16>, vector<16x112xf32> -> vector<16x112xf32>
    %128 = arith.addf %123, %127 : vector<16x112xf32>
    %129 = vector.extract_strided_slice %4 {offsets = [0, 46], sizes = [4, 112], strides = [1, 1]} : vector<4x210xbf16> to vector<4x112xbf16>
    %c0_103 = arith.constant 0 : index
    %c25 = arith.constant 25 : index
    %c0_104 = arith.constant 0 : index
    %c0_105 = arith.constant 0 : index
    %130 = vector.load %arg4[%c0_103, %c25, %c0_104, %c0_105] : memref<1x49x16x4xbf16, #tpu.memory_space<vmem>>, vector<1x1x16x4xbf16>
    %131 = vector.shape_cast %130 : vector<1x1x16x4xbf16> to vector<16x4xbf16>
    %cst_106 = arith.constant dense<0.000000e+00> : vector<16x112xf32>
    %132 = tpu.matmul %131, %129, %cst_106 {dimension_numbers = #tpu.dot_dimension_numbers<[1], [0], [0], [1], [0, 0, 1, 1], [], []>} : vector<16x4xbf16>, vector<4x112xbf16>, vector<16x112xf32> -> vector<16x112xf32>
    %133 = arith.addf %128, %132 : vector<16x112xf32>
    %134 = vector.extract_strided_slice %4 {offsets = [0, 47], sizes = [4, 112], strides = [1, 1]} : vector<4x210xbf16> to vector<4x112xbf16>
    %c0_107 = arith.constant 0 : index
    %c26 = arith.constant 26 : index
    %c0_108 = arith.constant 0 : index
    %c0_109 = arith.constant 0 : index
    %135 = vector.load %arg4[%c0_107, %c26, %c0_108, %c0_109] : memref<1x49x16x4xbf16, #tpu.memory_space<vmem>>, vector<1x1x16x4xbf16>
    %136 = vector.shape_cast %135 : vector<1x1x16x4xbf16> to vector<16x4xbf16>
    %cst_110 = arith.constant dense<0.000000e+00> : vector<16x112xf32>
    %137 = tpu.matmul %136, %134, %cst_110 {dimension_numbers = #tpu.dot_dimension_numbers<[1], [0], [0], [1], [0, 0, 1, 1], [], []>} : vector<16x4xbf16>, vector<4x112xbf16>, vector<16x112xf32> -> vector<16x112xf32>
    %138 = arith.addf %133, %137 : vector<16x112xf32>
    %139 = vector.extract_strided_slice %4 {offsets = [0, 48], sizes = [4, 112], strides = [1, 1]} : vector<4x210xbf16> to vector<4x112xbf16>
    %c0_111 = arith.constant 0 : index
    %c27 = arith.constant 27 : index
    %c0_112 = arith.constant 0 : index
    %c0_113 = arith.constant 0 : index
    %140 = vector.load %arg4[%c0_111, %c27, %c0_112, %c0_113] : memref<1x49x16x4xbf16, #tpu.memory_space<vmem>>, vector<1x1x16x4xbf16>
    %141 = vector.shape_cast %140 : vector<1x1x16x4xbf16> to vector<16x4xbf16>
    %cst_114 = arith.constant dense<0.000000e+00> : vector<16x112xf32>
    %142 = tpu.matmul %141, %139, %cst_114 {dimension_numbers = #tpu.dot_dimension_numbers<[1], [0], [0], [1], [0, 0, 1, 1], [], []>} : vector<16x4xbf16>, vector<4x112xbf16>, vector<16x112xf32> -> vector<16x112xf32>
    %143 = arith.addf %138, %142 : vector<16x112xf32>
    %144 = vector.extract_strided_slice %4 {offsets = [0, 56], sizes = [4, 112], strides = [1, 1]} : vector<4x210xbf16> to vector<4x112xbf16>
    %c0_115 = arith.constant 0 : index
    %c28 = arith.constant 28 : index
    %c0_116 = arith.constant 0 : index
    %c0_117 = arith.constant 0 : index
    %145 = vector.load %arg4[%c0_115, %c28, %c0_116, %c0_117] : memref<1x49x16x4xbf16, #tpu.memory_space<vmem>>, vector<1x1x16x4xbf16>
    %146 = vector.shape_cast %145 : vector<1x1x16x4xbf16> to vector<16x4xbf16>
    %cst_118 = arith.constant dense<0.000000e+00> : vector<16x112xf32>
    %147 = tpu.matmul %146, %144, %cst_118 {dimension_numbers = #tpu.dot_dimension_numbers<[1], [0], [0], [1], [0, 0, 1, 1], [], []>} : vector<16x4xbf16>, vector<4x112xbf16>, vector<16x112xf32> -> vector<16x112xf32>
    %148 = arith.addf %143, %147 : vector<16x112xf32>
    %149 = vector.extract_strided_slice %4 {offsets = [0, 57], sizes = [4, 112], strides = [1, 1]} : vector<4x210xbf16> to vector<4x112xbf16>
    %c0_119 = arith.constant 0 : index
    %c29 = arith.constant 29 : index
    %c0_120 = arith.constant 0 : index
    %c0_121 = arith.constant 0 : index
    %150 = vector.load %arg4[%c0_119, %c29, %c0_120, %c0_121] : memref<1x49x16x4xbf16, #tpu.memory_space<vmem>>, vector<1x1x16x4xbf16>
    %151 = vector.shape_cast %150 : vector<1x1x16x4xbf16> to vector<16x4xbf16>
    %cst_122 = arith.constant dense<0.000000e+00> : vector<16x112xf32>
    %152 = tpu.matmul %151, %149, %cst_122 {dimension_numbers = #tpu.dot_dimension_numbers<[1], [0], [0], [1], [0, 0, 1, 1], [], []>} : vector<16x4xbf16>, vector<4x112xbf16>, vector<16x112xf32> -> vector<16x112xf32>
    %153 = arith.addf %148, %152 : vector<16x112xf32>
    %154 = vector.extract_strided_slice %4 {offsets = [0, 58], sizes = [4, 112], strides = [1, 1]} : vector<4x210xbf16> to vector<4x112xbf16>
    %c0_123 = arith.constant 0 : index
    %c30 = arith.constant 30 : index
    %c0_124 = arith.constant 0 : index
    %c0_125 = arith.constant 0 : index
    %155 = vector.load %arg4[%c0_123, %c30, %c0_124, %c0_125] : memref<1x49x16x4xbf16, #tpu.memory_space<vmem>>, vector<1x1x16x4xbf16>
    %156 = vector.shape_cast %155 : vector<1x1x16x4xbf16> to vector<16x4xbf16>
    %cst_126 = arith.constant dense<0.000000e+00> : vector<16x112xf32>
    %157 = tpu.matmul %156, %154, %cst_126 {dimension_numbers = #tpu.dot_dimension_numbers<[1], [0], [0], [1], [0, 0, 1, 1], [], []>} : vector<16x4xbf16>, vector<4x112xbf16>, vector<16x112xf32> -> vector<16x112xf32>
    %158 = arith.addf %153, %157 : vector<16x112xf32>
    %159 = vector.extract_strided_slice %4 {offsets = [0, 59], sizes = [4, 112], strides = [1, 1]} : vector<4x210xbf16> to vector<4x112xbf16>
    %c0_127 = arith.constant 0 : index
    %c31 = arith.constant 31 : index
    %c0_128 = arith.constant 0 : index
    %c0_129 = arith.constant 0 : index
    %160 = vector.load %arg4[%c0_127, %c31, %c0_128, %c0_129] : memref<1x49x16x4xbf16, #tpu.memory_space<vmem>>, vector<1x1x16x4xbf16>
    %161 = vector.shape_cast %160 : vector<1x1x16x4xbf16> to vector<16x4xbf16>
    %cst_130 = arith.constant dense<0.000000e+00> : vector<16x112xf32>
    %162 = tpu.matmul %161, %159, %cst_130 {dimension_numbers = #tpu.dot_dimension_numbers<[1], [0], [0], [1], [0, 0, 1, 1], [], []>} : vector<16x4xbf16>, vector<4x112xbf16>, vector<16x112xf32> -> vector<16x112xf32>
    %163 = arith.addf %158, %162 : vector<16x112xf32>
    %164 = vector.extract_strided_slice %4 {offsets = [0, 60], sizes = [4, 112], strides = [1, 1]} : vector<4x210xbf16> to vector<4x112xbf16>
    %c0_131 = arith.constant 0 : index
    %c32 = arith.constant 32 : index
    %c0_132 = arith.constant 0 : index
    %c0_133 = arith.constant 0 : index
    %165 = vector.load %arg4[%c0_131, %c32, %c0_132, %c0_133] : memref<1x49x16x4xbf16, #tpu.memory_space<vmem>>, vector<1x1x16x4xbf16>
    %166 = vector.shape_cast %165 : vector<1x1x16x4xbf16> to vector<16x4xbf16>
    %cst_134 = arith.constant dense<0.000000e+00> : vector<16x112xf32>
    %167 = tpu.matmul %166, %164, %cst_134 {dimension_numbers = #tpu.dot_dimension_numbers<[1], [0], [0], [1], [0, 0, 1, 1], [], []>} : vector<16x4xbf16>, vector<4x112xbf16>, vector<16x112xf32> -> vector<16x112xf32>
    %168 = arith.addf %163, %167 : vector<16x112xf32>
    %169 = vector.extract_strided_slice %4 {offsets = [0, 61], sizes = [4, 112], strides = [1, 1]} : vector<4x210xbf16> to vector<4x112xbf16>
    %c0_135 = arith.constant 0 : index
    %c33 = arith.constant 33 : index
    %c0_136 = arith.constant 0 : index
    %c0_137 = arith.constant 0 : index
    %170 = vector.load %arg4[%c0_135, %c33, %c0_136, %c0_137] : memref<1x49x16x4xbf16, #tpu.memory_space<vmem>>, vector<1x1x16x4xbf16>
    %171 = vector.shape_cast %170 : vector<1x1x16x4xbf16> to vector<16x4xbf16>
    %cst_138 = arith.constant dense<0.000000e+00> : vector<16x112xf32>
    %172 = tpu.matmul %171, %169, %cst_138 {dimension_numbers = #tpu.dot_dimension_numbers<[1], [0], [0], [1], [0, 0, 1, 1], [], []>} : vector<16x4xbf16>, vector<4x112xbf16>, vector<16x112xf32> -> vector<16x112xf32>
    %173 = arith.addf %168, %172 : vector<16x112xf32>
    %174 = vector.extract_strided_slice %4 {offsets = [0, 62], sizes = [4, 112], strides = [1, 1]} : vector<4x210xbf16> to vector<4x112xbf16>
    %c0_139 = arith.constant 0 : index
    %c34 = arith.constant 34 : index
    %c0_140 = arith.constant 0 : index
    %c0_141 = arith.constant 0 : index
    %175 = vector.load %arg4[%c0_139, %c34, %c0_140, %c0_141] : memref<1x49x16x4xbf16, #tpu.memory_space<vmem>>, vector<1x1x16x4xbf16>
    %176 = vector.shape_cast %175 : vector<1x1x16x4xbf16> to vector<16x4xbf16>
    %cst_142 = arith.constant dense<0.000000e+00> : vector<16x112xf32>
    %177 = tpu.matmul %176, %174, %cst_142 {dimension_numbers = #tpu.dot_dimension_numbers<[1], [0], [0], [1], [0, 0, 1, 1], [], []>} : vector<16x4xbf16>, vector<4x112xbf16>, vector<16x112xf32> -> vector<16x112xf32>
    %178 = arith.addf %173, %177 : vector<16x112xf32>
    %179 = vector.extract_strided_slice %4 {offsets = [0, 70], sizes = [4, 112], strides = [1, 1]} : vector<4x210xbf16> to vector<4x112xbf16>
    %c0_143 = arith.constant 0 : index
    %c35 = arith.constant 35 : index
    %c0_144 = arith.constant 0 : index
    %c0_145 = arith.constant 0 : index
    %180 = vector.load %arg4[%c0_143, %c35, %c0_144, %c0_145] : memref<1x49x16x4xbf16, #tpu.memory_space<vmem>>, vector<1x1x16x4xbf16>
    %181 = vector.shape_cast %180 : vector<1x1x16x4xbf16> to vector<16x4xbf16>
    %cst_146 = arith.constant dense<0.000000e+00> : vector<16x112xf32>
    %182 = tpu.matmul %181, %179, %cst_146 {dimension_numbers = #tpu.dot_dimension_numbers<[1], [0], [0], [1], [0, 0, 1, 1], [], []>} : vector<16x4xbf16>, vector<4x112xbf16>, vector<16x112xf32> -> vector<16x112xf32>
    %183 = arith.addf %178, %182 : vector<16x112xf32>
    %184 = vector.extract_strided_slice %4 {offsets = [0, 71], sizes = [4, 112], strides = [1, 1]} : vector<4x210xbf16> to vector<4x112xbf16>
    %c0_147 = arith.constant 0 : index
    %c36 = arith.constant 36 : index
    %c0_148 = arith.constant 0 : index
    %c0_149 = arith.constant 0 : index
    %185 = vector.load %arg4[%c0_147, %c36, %c0_148, %c0_149] : memref<1x49x16x4xbf16, #tpu.memory_space<vmem>>, vector<1x1x16x4xbf16>
    %186 = vector.shape_cast %185 : vector<1x1x16x4xbf16> to vector<16x4xbf16>
    %cst_150 = arith.constant dense<0.000000e+00> : vector<16x112xf32>
    %187 = tpu.matmul %186, %184, %cst_150 {dimension_numbers = #tpu.dot_dimension_numbers<[1], [0], [0], [1], [0, 0, 1, 1], [], []>} : vector<16x4xbf16>, vector<4x112xbf16>, vector<16x112xf32> -> vector<16x112xf32>
    %188 = arith.addf %183, %187 : vector<16x112xf32>
    %189 = vector.extract_strided_slice %4 {offsets = [0, 72], sizes = [4, 112], strides = [1, 1]} : vector<4x210xbf16> to vector<4x112xbf16>
    %c0_151 = arith.constant 0 : index
    %c37 = arith.constant 37 : index
    %c0_152 = arith.constant 0 : index
    %c0_153 = arith.constant 0 : index
    %190 = vector.load %arg4[%c0_151, %c37, %c0_152, %c0_153] : memref<1x49x16x4xbf16, #tpu.memory_space<vmem>>, vector<1x1x16x4xbf16>
    %191 = vector.shape_cast %190 : vector<1x1x16x4xbf16> to vector<16x4xbf16>
    %cst_154 = arith.constant dense<0.000000e+00> : vector<16x112xf32>
    %192 = tpu.matmul %191, %189, %cst_154 {dimension_numbers = #tpu.dot_dimension_numbers<[1], [0], [0], [1], [0, 0, 1, 1], [], []>} : vector<16x4xbf16>, vector<4x112xbf16>, vector<16x112xf32> -> vector<16x112xf32>
    %193 = arith.addf %188, %192 : vector<16x112xf32>
    %194 = vector.extract_strided_slice %4 {offsets = [0, 73], sizes = [4, 112], strides = [1, 1]} : vector<4x210xbf16> to vector<4x112xbf16>
    %c0_155 = arith.constant 0 : index
    %c38 = arith.constant 38 : index
    %c0_156 = arith.constant 0 : index
    %c0_157 = arith.constant 0 : index
    %195 = vector.load %arg4[%c0_155, %c38, %c0_156, %c0_157] : memref<1x49x16x4xbf16, #tpu.memory_space<vmem>>, vector<1x1x16x4xbf16>
    %196 = vector.shape_cast %195 : vector<1x1x16x4xbf16> to vector<16x4xbf16>
    %cst_158 = arith.constant dense<0.000000e+00> : vector<16x112xf32>
    %197 = tpu.matmul %196, %194, %cst_158 {dimension_numbers = #tpu.dot_dimension_numbers<[1], [0], [0], [1], [0, 0, 1, 1], [], []>} : vector<16x4xbf16>, vector<4x112xbf16>, vector<16x112xf32> -> vector<16x112xf32>
    %198 = arith.addf %193, %197 : vector<16x112xf32>
    %199 = vector.extract_strided_slice %4 {offsets = [0, 74], sizes = [4, 112], strides = [1, 1]} : vector<4x210xbf16> to vector<4x112xbf16>
    %c0_159 = arith.constant 0 : index
    %c39 = arith.constant 39 : index
    %c0_160 = arith.constant 0 : index
    %c0_161 = arith.constant 0 : index
    %200 = vector.load %arg4[%c0_159, %c39, %c0_160, %c0_161] : memref<1x49x16x4xbf16, #tpu.memory_space<vmem>>, vector<1x1x16x4xbf16>
    %201 = vector.shape_cast %200 : vector<1x1x16x4xbf16> to vector<16x4xbf16>
    %cst_162 = arith.constant dense<0.000000e+00> : vector<16x112xf32>
    %202 = tpu.matmul %201, %199, %cst_162 {dimension_numbers = #tpu.dot_dimension_numbers<[1], [0], [0], [1], [0, 0, 1, 1], [], []>} : vector<16x4xbf16>, vector<4x112xbf16>, vector<16x112xf32> -> vector<16x112xf32>
    %203 = arith.addf %198, %202 : vector<16x112xf32>
    %204 = vector.extract_strided_slice %4 {offsets = [0, 75], sizes = [4, 112], strides = [1, 1]} : vector<4x210xbf16> to vector<4x112xbf16>
    %c0_163 = arith.constant 0 : index
    %c40 = arith.constant 40 : index
    %c0_164 = arith.constant 0 : index
    %c0_165 = arith.constant 0 : index
    %205 = vector.load %arg4[%c0_163, %c40, %c0_164, %c0_165] : memref<1x49x16x4xbf16, #tpu.memory_space<vmem>>, vector<1x1x16x4xbf16>
    %206 = vector.shape_cast %205 : vector<1x1x16x4xbf16> to vector<16x4xbf16>
    %cst_166 = arith.constant dense<0.000000e+00> : vector<16x112xf32>
    %207 = tpu.matmul %206, %204, %cst_166 {dimension_numbers = #tpu.dot_dimension_numbers<[1], [0], [0], [1], [0, 0, 1, 1], [], []>} : vector<16x4xbf16>, vector<4x112xbf16>, vector<16x112xf32> -> vector<16x112xf32>
    %208 = arith.addf %203, %207 : vector<16x112xf32>
    %209 = vector.extract_strided_slice %4 {offsets = [0, 76], sizes = [4, 112], strides = [1, 1]} : vector<4x210xbf16> to vector<4x112xbf16>
    %c0_167 = arith.constant 0 : index
    %c41 = arith.constant 41 : index
    %c0_168 = arith.constant 0 : index
    %c0_169 = arith.constant 0 : index
    %210 = vector.load %arg4[%c0_167, %c41, %c0_168, %c0_169] : memref<1x49x16x4xbf16, #tpu.memory_space<vmem>>, vector<1x1x16x4xbf16>
    %211 = vector.shape_cast %210 : vector<1x1x16x4xbf16> to vector<16x4xbf16>
    %cst_170 = arith.constant dense<0.000000e+00> : vector<16x112xf32>
    %212 = tpu.matmul %211, %209, %cst_170 {dimension_numbers = #tpu.dot_dimension_numbers<[1], [0], [0], [1], [0, 0, 1, 1], [], []>} : vector<16x4xbf16>, vector<4x112xbf16>, vector<16x112xf32> -> vector<16x112xf32>
    %213 = arith.addf %208, %212 : vector<16x112xf32>
    %214 = vector.extract_strided_slice %4 {offsets = [0, 84], sizes = [4, 112], strides = [1, 1]} : vector<4x210xbf16> to vector<4x112xbf16>
    %c0_171 = arith.constant 0 : index
    %c42 = arith.constant 42 : index
    %c0_172 = arith.constant 0 : index
    %c0_173 = arith.constant 0 : index
    %215 = vector.load %arg4[%c0_171, %c42, %c0_172, %c0_173] : memref<1x49x16x4xbf16, #tpu.memory_space<vmem>>, vector<1x1x16x4xbf16>
    %216 = vector.shape_cast %215 : vector<1x1x16x4xbf16> to vector<16x4xbf16>
    %cst_174 = arith.constant dense<0.000000e+00> : vector<16x112xf32>
    %217 = tpu.matmul %216, %214, %cst_174 {dimension_numbers = #tpu.dot_dimension_numbers<[1], [0], [0], [1], [0, 0, 1, 1], [], []>} : vector<16x4xbf16>, vector<4x112xbf16>, vector<16x112xf32> -> vector<16x112xf32>
    %218 = arith.addf %213, %217 : vector<16x112xf32>
    %219 = vector.extract_strided_slice %4 {offsets = [0, 85], sizes = [4, 112], strides = [1, 1]} : vector<4x210xbf16> to vector<4x112xbf16>
    %c0_175 = arith.constant 0 : index
    %c43 = arith.constant 43 : index
    %c0_176 = arith.constant 0 : index
    %c0_177 = arith.constant 0 : index
    %220 = vector.load %arg4[%c0_175, %c43, %c0_176, %c0_177] : memref<1x49x16x4xbf16, #tpu.memory_space<vmem>>, vector<1x1x16x4xbf16>
    %221 = vector.shape_cast %220 : vector<1x1x16x4xbf16> to vector<16x4xbf16>
    %cst_178 = arith.constant dense<0.000000e+00> : vector<16x112xf32>
    %222 = tpu.matmul %221, %219, %cst_178 {dimension_numbers = #tpu.dot_dimension_numbers<[1], [0], [0], [1], [0, 0, 1, 1], [], []>} : vector<16x4xbf16>, vector<4x112xbf16>, vector<16x112xf32> -> vector<16x112xf32>
    %223 = arith.addf %218, %222 : vector<16x112xf32>
    %224 = vector.extract_strided_slice %4 {offsets = [0, 86], sizes = [4, 112], strides = [1, 1]} : vector<4x210xbf16> to vector<4x112xbf16>
    %c0_179 = arith.constant 0 : index
    %c44 = arith.constant 44 : index
    %c0_180 = arith.constant 0 : index
    %c0_181 = arith.constant 0 : index
    %225 = vector.load %arg4[%c0_179, %c44, %c0_180, %c0_181] : memref<1x49x16x4xbf16, #tpu.memory_space<vmem>>, vector<1x1x16x4xbf16>
    %226 = vector.shape_cast %225 : vector<1x1x16x4xbf16> to vector<16x4xbf16>
    %cst_182 = arith.constant dense<0.000000e+00> : vector<16x112xf32>
    %227 = tpu.matmul %226, %224, %cst_182 {dimension_numbers = #tpu.dot_dimension_numbers<[1], [0], [0], [1], [0, 0, 1, 1], [], []>} : vector<16x4xbf16>, vector<4x112xbf16>, vector<16x112xf32> -> vector<16x112xf32>
    %228 = arith.addf %223, %227 : vector<16x112xf32>
    %229 = vector.extract_strided_slice %4 {offsets = [0, 87], sizes = [4, 112], strides = [1, 1]} : vector<4x210xbf16> to vector<4x112xbf16>
    %c0_183 = arith.constant 0 : index
    %c45 = arith.constant 45 : index
    %c0_184 = arith.constant 0 : index
    %c0_185 = arith.constant 0 : index
    %230 = vector.load %arg4[%c0_183, %c45, %c0_184, %c0_185] : memref<1x49x16x4xbf16, #tpu.memory_space<vmem>>, vector<1x1x16x4xbf16>
    %231 = vector.shape_cast %230 : vector<1x1x16x4xbf16> to vector<16x4xbf16>
    %cst_186 = arith.constant dense<0.000000e+00> : vector<16x112xf32>
    %232 = tpu.matmul %231, %229, %cst_186 {dimension_numbers = #tpu.dot_dimension_numbers<[1], [0], [0], [1], [0, 0, 1, 1], [], []>} : vector<16x4xbf16>, vector<4x112xbf16>, vector<16x112xf32> -> vector<16x112xf32>
    %233 = arith.addf %228, %232 : vector<16x112xf32>
    %234 = vector.extract_strided_slice %4 {offsets = [0, 88], sizes = [4, 112], strides = [1, 1]} : vector<4x210xbf16> to vector<4x112xbf16>
    %c0_187 = arith.constant 0 : index
    %c46 = arith.constant 46 : index
    %c0_188 = arith.constant 0 : index
    %c0_189 = arith.constant 0 : index
    %235 = vector.load %arg4[%c0_187, %c46, %c0_188, %c0_189] : memref<1x49x16x4xbf16, #tpu.memory_space<vmem>>, vector<1x1x16x4xbf16>
    %236 = vector.shape_cast %235 : vector<1x1x16x4xbf16> to vector<16x4xbf16>
    %cst_190 = arith.constant dense<0.000000e+00> : vector<16x112xf32>
    %237 = tpu.matmul %236, %234, %cst_190 {dimension_numbers = #tpu.dot_dimension_numbers<[1], [0], [0], [1], [0, 0, 1, 1], [], []>} : vector<16x4xbf16>, vector<4x112xbf16>, vector<16x112xf32> -> vector<16x112xf32>
    %238 = arith.addf %233, %237 : vector<16x112xf32>
    %239 = vector.extract_strided_slice %4 {offsets = [0, 89], sizes = [4, 112], strides = [1, 1]} : vector<4x210xbf16> to vector<4x112xbf16>
    %c0_191 = arith.constant 0 : index
    %c47 = arith.constant 47 : index
    %c0_192 = arith.constant 0 : index
    %c0_193 = arith.constant 0 : index
    %240 = vector.load %arg4[%c0_191, %c47, %c0_192, %c0_193] : memref<1x49x16x4xbf16, #tpu.memory_space<vmem>>, vector<1x1x16x4xbf16>
    %241 = vector.shape_cast %240 : vector<1x1x16x4xbf16> to vector<16x4xbf16>
    %cst_194 = arith.constant dense<0.000000e+00> : vector<16x112xf32>
    %242 = tpu.matmul %241, %239, %cst_194 {dimension_numbers = #tpu.dot_dimension_numbers<[1], [0], [0], [1], [0, 0, 1, 1], [], []>} : vector<16x4xbf16>, vector<4x112xbf16>, vector<16x112xf32> -> vector<16x112xf32>
    %243 = arith.addf %238, %242 : vector<16x112xf32>
    %244 = vector.extract_strided_slice %4 {offsets = [0, 90], sizes = [4, 112], strides = [1, 1]} : vector<4x210xbf16> to vector<4x112xbf16>
    %c0_195 = arith.constant 0 : index
    %c48 = arith.constant 48 : index
    %c0_196 = arith.constant 0 : index
    %c0_197 = arith.constant 0 : index
    %245 = vector.load %arg4[%c0_195, %c48, %c0_196, %c0_197] : memref<1x49x16x4xbf16, #tpu.memory_space<vmem>>, vector<1x1x16x4xbf16>
    %246 = vector.shape_cast %245 : vector<1x1x16x4xbf16> to vector<16x4xbf16>
    %cst_198 = arith.constant dense<0.000000e+00> : vector<16x112xf32>
    %247 = tpu.matmul %246, %244, %cst_198 {dimension_numbers = #tpu.dot_dimension_numbers<[1], [0], [0], [1], [0, 0, 1, 1], [], []>} : vector<16x4xbf16>, vector<4x112xbf16>, vector<16x112xf32> -> vector<16x112xf32>
    %248 = arith.addf %243, %247 : vector<16x112xf32>
    %c0_199 = arith.constant 0 : index
    %c0_200 = arith.constant 0 : index
    %249 = vector.load %arg7[%c0_199, %c0_200] : memref<16x112xf32, #tpu.memory_space<vmem>>, vector<16x112xf32>
    %250 = arith.addf %249, %248 : vector<16x112xf32>
    %c0_201 = arith.constant 0 : index
    %c0_202 = arith.constant 0 : index
    %251 = vector.load %arg7[%c0_201, %c0_202] : memref<16x112xf32, #tpu.memory_space<vmem>>, vector<16x112xf32>
    tpu.vector_store %arg7[%c0_201, %c0_202], %250 {strides = array<i32>} : memref<16x112xf32, #tpu.memory_space<vmem>>, vector<16x112xf32>,
    %c6_i32 = arith.constant 6 : i32
    %252 = arith.cmpi eq, %arg2, %c6_i32 : i32
    %253 = arith.extui %252 : i1 to i32
    %c0_i32_203 = arith.constant 0 : i32
    %254 = arith.cmpi ne, %253, %c0_i32_203 : i32
    scf.if %254 {
      %c0_204 = arith.constant 0 : index
      %c0_205 = arith.constant 0 : index
      %255 = vector.load %arg7[%c0_204, %c0_205] : memref<16x112xf32, #tpu.memory_space<vmem>>, vector<16x112xf32>
      %c0_206 = arith.constant 0 : index
      %c0_207 = arith.constant 0 : index
      %256 = vector.load %arg5[%c0_206, %c0_207] : memref<16x1xf32, #tpu.memory_space<vmem>>, vector<16x1xf32>
      %257 = vector.broadcast %256 : vector<16x1xf32> to vector<16x112xf32>
      %258 = arith.addf %255, %257 : vector<16x112xf32>
      %259 = arith.truncf %258 : vector<16x112xf32> to vector<16x112xbf16>
      %c0_208 = arith.constant 0 : index
      %c0_209 = arith.constant 0 : index
      %c0_210 = arith.constant 0 : index
      %260 = vector.load %arg6[%c0_208, %c0_209, %c0_210] : memref<1x16x112xbf16, #tpu.memory_space<vmem>>, vector<1x16x112xbf16>
      %261 = vector.shape_cast %260 : vector<1x16x112xbf16> to vector<16x112xbf16>
      %262 = vector.shape_cast %259 : vector<16x112xbf16> to vector<1x16x112xbf16>
      tpu.vector_store %arg6[%c0_208, %c0_209, %c0_210], %262 {strides = array<i32>} : memref<1x16x112xbf16, #tpu.memory_space<vmem>>, vector<1x16x112xbf16>,
    } else {
    }
    return
  }
  func.func @transform_0(%arg0: i32, %arg1: i32, %arg2: i32) -> (i32, i32, i32) {
    %c14_i32 = arith.constant 14 : i32
    %0 = arith.muli %arg0, %c14_i32 : i32
    %1 = arith.addi %0, %arg1 : i32
    %2 = arith.addi %1, %arg2 : i32
    %c0_i32 = arith.constant 0 : i32
    %c0_i32_0 = arith.constant 0 : i32
    %c0_i32_1 = arith.constant 0 : i32
    return %2, %c0_i32, %c0_i32_0 : i32, i32, i32
  }
  func.func @transform_1(%arg0: i32, %arg1: i32, %arg2: i32) -> (i32, i32, i32, i32) {
    %c0_i32 = arith.constant 0 : i32
    %c0_i32_0 = arith.constant 0 : i32
    %c0_i32_1 = arith.constant 0 : i32
    %c0_i32_2 = arith.constant 0 : i32
    return %arg2, %c0_i32, %c0_i32_0, %c0_i32_1 : i32, i32, i32, i32
  }
  func.func @transform_2(%arg0: i32, %arg1: i32, %arg2: i32) -> (i32, i32) {
    %c0_i32 = arith.constant 0 : i32
    %c0_i32_0 = arith.constant 0 : i32
    %c0_i32_1 = arith.constant 0 : i32
    return %c0_i32, %c0_i32_0 : i32, i32
  }
  func.func @transform_3(%arg0: i32, %arg1: i32, %arg2: i32) -> (i32, i32, i32) {
    %c8_i32 = arith.constant 8 : i32
    %0 = arith.muli %arg0, %c8_i32 : i32
    %1 = arith.addi %0, %arg1 : i32
    %c0_i32 = arith.constant 0 : i32
    %c0_i32_0 = arith.constant 0 : i32
    %c0_i32_1 = arith.constant 0 : i32
    return %1, %c0_i32, %c0_i32_0 : i32, i32, i32
  }
}

module attributes {stable_mosaic.version = 11 : i64} {
  func.func @_ln_stats_kernel(%arg0: i32, %arg1: i32, %arg2: memref<1x16x112xbf16, #tpu.memory_space<vmem>>, %arg3: memref<1x112xf32, #tpu.memory_space<vmem>>, %arg4: memref<1x16x1xf32, #tpu.memory_space<vmem>>, %arg5: memref<1x16x1xf32, #tpu.memory_space<vmem>>, %arg6: memref<16x1xf32, #tpu.memory_space<vmem>>, %arg7: memref<16x1xf32, #tpu.memory_space<vmem>>) attributes {dimension_semantics = [#tpu.dimension_semantics<parallel>, #tpu.dimension_semantics<arbitrary>], iteration_bounds = array<i64: 2, 8>, scalar_prefetch = 0 : i64, scratch_operands = 2 : i64, tpu.core_type = #tpu.core_type<tc>, window_params = [{transform_indices = @transform_0, window_bounds = array<i64: 1, 16, 112>}, {pipeline_mode = #tpu.pipeline_mode<synchronous>, transform_indices = @transform_1, window_bounds = array<i64: 1, 112>}, {transform_indices = @transform_2, window_bounds = array<i64: 1, 16, 1>}, {transform_indices = @transform_3, window_bounds = array<i64: 1, 16, 1>}]} {
    %c0_i32 = arith.constant 0 : i32
    %0 = arith.cmpi eq, %arg1, %c0_i32 : i32
    %1 = arith.extui %0 : i1 to i32
    %c0_i32_0 = arith.constant 0 : i32
    %2 = arith.cmpi ne, %1, %c0_i32_0 : i32
    scf.if %2 {
      %cst_15 = arith.constant 0.000000e+00 : f32
      %23 = vector.broadcast %cst_15 : f32 to vector<16x1xf32>
      %c0_16 = arith.constant 0 : index
      %c0_17 = arith.constant 0 : index
      %24 = vector.load %arg6[%c0_16, %c0_17] : memref<16x1xf32, #tpu.memory_space<vmem>>, vector<16x1xf32>
      tpu.vector_store %arg6[%c0_16, %c0_17], %23 {strides = array<i32>} : memref<16x1xf32, #tpu.memory_space<vmem>>, vector<16x1xf32>,
      %cst_18 = arith.constant 0.000000e+00 : f32
      %25 = vector.broadcast %cst_18 : f32 to vector<16x1xf32>
      %c0_19 = arith.constant 0 : index
      %c0_20 = arith.constant 0 : index
      %26 = vector.load %arg7[%c0_19, %c0_20] : memref<16x1xf32, #tpu.memory_space<vmem>>, vector<16x1xf32>
      tpu.vector_store %arg7[%c0_19, %c0_20], %25 {strides = array<i32>} : memref<16x1xf32, #tpu.memory_space<vmem>>, vector<16x1xf32>,
    } else {
    }
    %c0 = arith.constant 0 : index
    %c0_1 = arith.constant 0 : index
    %c0_2 = arith.constant 0 : index
    %3 = vector.load %arg2[%c0, %c0_1, %c0_2] : memref<1x16x112xbf16, #tpu.memory_space<vmem>>, vector<1x16x112xbf16>
    %4 = vector.shape_cast %3 : vector<1x16x112xbf16> to vector<16x112xbf16>
    %5 = arith.extf %4 : vector<16x112xbf16> to vector<16x112xf32>
    %c0_3 = arith.constant 0 : index
    %c0_4 = arith.constant 0 : index
    %6 = vector.load %arg3[%c0_3, %c0_4] : memref<1x112xf32, #tpu.memory_space<vmem>>, vector<1x112xf32>
    %7 = vector.broadcast %6 : vector<1x112xf32> to vector<16x112xf32>
    %8 = arith.mulf %5, %7 : vector<16x112xf32>
    %c0_5 = arith.constant 0 : index
    %c0_6 = arith.constant 0 : index
    %9 = vector.load %arg6[%c0_5, %c0_6] : memref<16x1xf32, #tpu.memory_space<vmem>>, vector<16x1xf32>
    %cst = arith.constant dense<0.000000e+00> : vector<16xf32>
    %10 = vector.multi_reduction <add>, %8, %cst [1] : vector<16x112xf32> to vector<16xf32>
    %11 = vector.shape_cast %10 : vector<16xf32> to vector<16x1xf32>
    %12 = arith.addf %9, %11 : vector<16x1xf32>
    %c0_7 = arith.constant 0 : index
    %c0_8 = arith.constant 0 : index
    %13 = vector.load %arg6[%c0_7, %c0_8] : memref<16x1xf32, #tpu.memory_space<vmem>>, vector<16x1xf32>
    tpu.vector_store %arg6[%c0_7, %c0_8], %12 {strides = array<i32>} : memref<16x1xf32, #tpu.memory_space<vmem>>, vector<16x1xf32>,
    %c0_9 = arith.constant 0 : index
    %c0_10 = arith.constant 0 : index
    %14 = vector.load %arg7[%c0_9, %c0_10] : memref<16x1xf32, #tpu.memory_space<vmem>>, vector<16x1xf32>
    %15 = arith.mulf %8, %8 : vector<16x112xf32>
    %cst_11 = arith.constant dense<0.000000e+00> : vector<16xf32>
    %16 = vector.multi_reduction <add>, %15, %cst_11 [1] : vector<16x112xf32> to vector<16xf32>
    %17 = vector.shape_cast %16 : vector<16xf32> to vector<16x1xf32>
    %18 = arith.addf %14, %17 : vector<16x1xf32>
    %c0_12 = arith.constant 0 : index
    %c0_13 = arith.constant 0 : index
    %19 = vector.load %arg7[%c0_12, %c0_13] : memref<16x1xf32, #tpu.memory_space<vmem>>, vector<16x1xf32>
    tpu.vector_store %arg7[%c0_12, %c0_13], %18 {strides = array<i32>} : memref<16x1xf32, #tpu.memory_space<vmem>>, vector<16x1xf32>,
    %c7_i32 = arith.constant 7 : i32
    %20 = arith.cmpi eq, %arg1, %c7_i32 : i32
    %21 = arith.extui %20 : i1 to i32
    %c0_i32_14 = arith.constant 0 : i32
    %22 = arith.cmpi ne, %21, %c0_i32_14 : i32
    scf.if %22 {
      %c0_15 = arith.constant 0 : index
      %c0_16 = arith.constant 0 : index
      %23 = vector.load %arg6[%c0_15, %c0_16] : memref<16x1xf32, #tpu.memory_space<vmem>>, vector<16x1xf32>
      %cst_17 = arith.constant 0.001953125 : f32
      %24 = vector.broadcast %cst_17 : f32 to vector<16x1xf32>
      %25 = arith.mulf %23, %24 : vector<16x1xf32>
      %c0_18 = arith.constant 0 : index
      %c0_19 = arith.constant 0 : index
      %26 = vector.load %arg7[%c0_18, %c0_19] : memref<16x1xf32, #tpu.memory_space<vmem>>, vector<16x1xf32>
      %cst_20 = arith.constant 0.001953125 : f32
      %27 = vector.broadcast %cst_20 : f32 to vector<16x1xf32>
      %28 = arith.mulf %26, %27 : vector<16x1xf32>
      %29 = arith.mulf %25, %25 : vector<16x1xf32>
      %30 = arith.subf %28, %29 : vector<16x1xf32>
      %c0_21 = arith.constant 0 : index
      %c0_22 = arith.constant 0 : index
      %c0_23 = arith.constant 0 : index
      %31 = vector.load %arg4[%c0_21, %c0_22, %c0_23] : memref<1x16x1xf32, #tpu.memory_space<vmem>>, vector<1x16x1xf32>
      %32 = vector.shape_cast %31 : vector<1x16x1xf32> to vector<16x1xf32>
      %33 = vector.shape_cast %25 : vector<16x1xf32> to vector<1x16x1xf32>
      tpu.vector_store %arg4[%c0_21, %c0_22, %c0_23], %33 {strides = array<i32>} : memref<1x16x1xf32, #tpu.memory_space<vmem>>, vector<1x16x1xf32>,
      %cst_24 = arith.constant 9.99999974E-6 : f32
      %34 = vector.broadcast %cst_24 : f32 to vector<16x1xf32>
      %35 = arith.addf %30, %34 : vector<16x1xf32>
      %36 = math.rsqrt %35 : vector<16x1xf32>
      %c0_25 = arith.constant 0 : index
      %c0_26 = arith.constant 0 : index
      %c0_27 = arith.constant 0 : index
      %37 = vector.load %arg5[%c0_25, %c0_26, %c0_27] : memref<1x16x1xf32, #tpu.memory_space<vmem>>, vector<1x16x1xf32>
      %38 = vector.shape_cast %37 : vector<1x16x1xf32> to vector<16x1xf32>
      %39 = vector.shape_cast %36 : vector<16x1xf32> to vector<1x16x1xf32>
      tpu.vector_store %arg5[%c0_25, %c0_26, %c0_27], %39 {strides = array<i32>} : memref<1x16x1xf32, #tpu.memory_space<vmem>>, vector<1x16x1xf32>,
    } else {
    }
    return
  }
  func.func @transform_0(%arg0: i32, %arg1: i32) -> (i32, i32, i32) {
    %c8_i32 = arith.constant 8 : i32
    %0 = arith.muli %arg0, %c8_i32 : i32
    %1 = arith.addi %0, %arg1 : i32
    %c0_i32 = arith.constant 0 : i32
    %c0_i32_0 = arith.constant 0 : i32
    %c0_i32_1 = arith.constant 0 : i32
    return %1, %c0_i32, %c0_i32_0 : i32, i32, i32
  }
  func.func @transform_1(%arg0: i32, %arg1: i32) -> (i32, i32) {
    %c0_i32 = arith.constant 0 : i32
    %c0_i32_0 = arith.constant 0 : i32
    %c0_i32_1 = arith.constant 0 : i32
    return %c0_i32, %c0_i32_0 : i32, i32
  }
  func.func @transform_2(%arg0: i32, %arg1: i32) -> (i32, i32, i32) {
    %c0_i32 = arith.constant 0 : i32
    %c0_i32_0 = arith.constant 0 : i32
    %c0_i32_1 = arith.constant 0 : i32
    return %arg0, %c0_i32, %c0_i32_0 : i32, i32, i32
  }
  func.func @transform_3(%arg0: i32, %arg1: i32) -> (i32, i32, i32) {
    %c0_i32 = arith.constant 0 : i32
    %c0_i32_0 = arith.constant 0 : i32
    %c0_i32_1 = arith.constant 0 : i32
    return %arg0, %c0_i32, %c0_i32_0 : i32, i32, i32
  }
}

module attributes {stable_mosaic.version = 11 : i64} {
  func.func @_ln_apply_relu_kernel(%arg0: i32, %arg1: i32, %arg2: memref<1x16x112xbf16, #tpu.memory_space<vmem>>, %arg3: memref<1x16x1xf32, #tpu.memory_space<vmem>>, %arg4: memref<1x16x1xf32, #tpu.memory_space<vmem>>, %arg5: memref<1x1x112xf32, #tpu.memory_space<vmem>>, %arg6: memref<1x1x112xf32, #tpu.memory_space<vmem>>, %arg7: memref<1x16x112xbf16, #tpu.memory_space<vmem>>) attributes {dimension_semantics = [#tpu.dimension_semantics<parallel>, #tpu.dimension_semantics<parallel>], iteration_bounds = array<i64: 2, 8>, scalar_prefetch = 0 : i64, scratch_operands = 0 : i64, tpu.core_type = #tpu.core_type<tc>, window_params = [{transform_indices = @transform_0, window_bounds = array<i64: 1, 16, 112>}, {transform_indices = @transform_1, window_bounds = array<i64: 1, 16, 1>}, {transform_indices = @transform_2, window_bounds = array<i64: 1, 16, 1>}, {transform_indices = @transform_3, window_bounds = array<i64: 1, 1, 112>}, {transform_indices = @transform_4, window_bounds = array<i64: 1, 1, 112>}, {transform_indices = @transform_5, window_bounds = array<i64: 1, 16, 112>}]} {
    %c0 = arith.constant 0 : index
    %c0_0 = arith.constant 0 : index
    %c0_1 = arith.constant 0 : index
    %0 = vector.load %arg2[%c0, %c0_0, %c0_1] : memref<1x16x112xbf16, #tpu.memory_space<vmem>>, vector<1x16x112xbf16>
    %1 = vector.shape_cast %0 : vector<1x16x112xbf16> to vector<16x112xbf16>
    %2 = arith.extf %1 : vector<16x112xbf16> to vector<16x112xf32>
    %c0_2 = arith.constant 0 : index
    %c0_3 = arith.constant 0 : index
    %c0_4 = arith.constant 0 : index
    %3 = vector.load %arg3[%c0_2, %c0_3, %c0_4] : memref<1x16x1xf32, #tpu.memory_space<vmem>>, vector<1x16x1xf32>
    %4 = vector.shape_cast %3 : vector<1x16x1xf32> to vector<16x1xf32>
    %5 = vector.broadcast %4 : vector<16x1xf32> to vector<16x112xf32>
    %6 = arith.subf %2, %5 : vector<16x112xf32>
    %c0_5 = arith.constant 0 : index
    %c0_6 = arith.constant 0 : index
    %c0_7 = arith.constant 0 : index
    %7 = vector.load %arg4[%c0_5, %c0_6, %c0_7] : memref<1x16x1xf32, #tpu.memory_space<vmem>>, vector<1x16x1xf32>
    %8 = vector.shape_cast %7 : vector<1x16x1xf32> to vector<16x1xf32>
    %9 = vector.broadcast %8 : vector<16x1xf32> to vector<16x112xf32>
    %10 = arith.mulf %6, %9 : vector<16x112xf32>
    %c0_8 = arith.constant 0 : index
    %c0_9 = arith.constant 0 : index
    %c0_10 = arith.constant 0 : index
    %11 = vector.load %arg5[%c0_8, %c0_9, %c0_10] : memref<1x1x112xf32, #tpu.memory_space<vmem>>, vector<1x1x112xf32>
    %12 = vector.shape_cast %11 : vector<1x1x112xf32> to vector<1x112xf32>
    %13 = vector.broadcast %12 : vector<1x112xf32> to vector<16x112xf32>
    %14 = arith.mulf %10, %13 : vector<16x112xf32>
    %c0_11 = arith.constant 0 : index
    %c0_12 = arith.constant 0 : index
    %c0_13 = arith.constant 0 : index
    %15 = vector.load %arg6[%c0_11, %c0_12, %c0_13] : memref<1x1x112xf32, #tpu.memory_space<vmem>>, vector<1x1x112xf32>
    %16 = vector.shape_cast %15 : vector<1x1x112xf32> to vector<1x112xf32>
    %17 = vector.broadcast %16 : vector<1x112xf32> to vector<16x112xf32>
    %18 = arith.addf %14, %17 : vector<16x112xf32>
    %cst = arith.constant 0.000000e+00 : f32
    %19 = vector.broadcast %cst : f32 to vector<16x112xf32>
    %20 = arith.maximumf %18, %19 : vector<16x112xf32>
    %21 = arith.truncf %20 : vector<16x112xf32> to vector<16x112xbf16>
    %c0_14 = arith.constant 0 : index
    %c0_15 = arith.constant 0 : index
    %c0_16 = arith.constant 0 : index
    %22 = vector.load %arg7[%c0_14, %c0_15, %c0_16] : memref<1x16x112xbf16, #tpu.memory_space<vmem>>, vector<1x16x112xbf16>
    %23 = vector.shape_cast %22 : vector<1x16x112xbf16> to vector<16x112xbf16>
    %24 = vector.shape_cast %21 : vector<16x112xbf16> to vector<1x16x112xbf16>
    tpu.vector_store %arg7[%c0_14, %c0_15, %c0_16], %24 {strides = array<i32>} : memref<1x16x112xbf16, #tpu.memory_space<vmem>>, vector<1x16x112xbf16>,
    return
  }
  func.func @transform_0(%arg0: i32, %arg1: i32) -> (i32, i32, i32) {
    %c8_i32 = arith.constant 8 : i32
    %0 = arith.muli %arg0, %c8_i32 : i32
    %1 = arith.addi %0, %arg1 : i32
    %c0_i32 = arith.constant 0 : i32
    %c0_i32_0 = arith.constant 0 : i32
    %c0_i32_1 = arith.constant 0 : i32
    return %1, %c0_i32, %c0_i32_0 : i32, i32, i32
  }
  func.func @transform_1(%arg0: i32, %arg1: i32) -> (i32, i32, i32) {
    %c0_i32 = arith.constant 0 : i32
    %c0_i32_0 = arith.constant 0 : i32
    %c0_i32_1 = arith.constant 0 : i32
    return %arg0, %c0_i32, %c0_i32_0 : i32, i32, i32
  }
  func.func @transform_2(%arg0: i32, %arg1: i32) -> (i32, i32, i32) {
    %c0_i32 = arith.constant 0 : i32
    %c0_i32_0 = arith.constant 0 : i32
    %c0_i32_1 = arith.constant 0 : i32
    return %arg0, %c0_i32, %c0_i32_0 : i32, i32, i32
  }
  func.func @transform_3(%arg0: i32, %arg1: i32) -> (i32, i32, i32) {
    %c0_i32 = arith.constant 0 : i32
    %c0_i32_0 = arith.constant 0 : i32
    %c0_i32_1 = arith.constant 0 : i32
    return %arg1, %c0_i32, %c0_i32_0 : i32, i32, i32
  }
  func.func @transform_4(%arg0: i32, %arg1: i32) -> (i32, i32, i32) {
    %c0_i32 = arith.constant 0 : i32
    %c0_i32_0 = arith.constant 0 : i32
    %c0_i32_1 = arith.constant 0 : i32
    return %arg1, %c0_i32, %c0_i32_0 : i32, i32, i32
  }
  func.func @transform_5(%arg0: i32, %arg1: i32) -> (i32, i32, i32) {
    %c8_i32 = arith.constant 8 : i32
    %0 = arith.muli %arg0, %c8_i32 : i32
    %1 = arith.addi %0, %arg1 : i32
    %c0_i32 = arith.constant 0 : i32
    %c0_i32_0 = arith.constant 0 : i32
    %c0_i32_1 = arith.constant 0 : i32
    return %1, %c0_i32, %c0_i32_0 : i32, i32, i32
  }
}

module attributes {stable_mosaic.version = 11 : i64} {
  func.func @_conv3d_tap_kernel(%arg0: i32, %arg1: i32, %arg2: i32, %arg3: memref<1x16x110xbf16, #tpu.memory_space<vmem>>, %arg4: memref<1x9x16x16xbf16, #tpu.memory_space<vmem>>, %arg5: memref<16x1xf32, #tpu.memory_space<vmem>>, %arg6: memref<1x16x80xbf16, #tpu.memory_space<vmem>>, %arg7: memref<16x80xf32, #tpu.memory_space<vmem>>) attributes {dimension_semantics = [#tpu.dimension_semantics<parallel>, #tpu.dimension_semantics<parallel>, #tpu.dimension_semantics<arbitrary>], iteration_bounds = array<i64: 2, 8, 3>, scalar_prefetch = 0 : i64, scratch_operands = 1 : i64, tpu.core_type = #tpu.core_type<tc>, window_params = [{transform_indices = @transform_0, window_bounds = array<i64: 1, 16, 110>}, {transform_indices = @transform_1, window_bounds = array<i64: 1, 9, 16, 16>}, {pipeline_mode = #tpu.pipeline_mode<synchronous>, transform_indices = @transform_2, window_bounds = array<i64: 16, 1>}, {transform_indices = @transform_3, window_bounds = array<i64: 1, 16, 80>}]} {
    %c0_i32 = arith.constant 0 : i32
    %0 = arith.cmpi eq, %arg2, %c0_i32 : i32
    %1 = arith.extui %0 : i1 to i32
    %c0_i32_0 = arith.constant 0 : i32
    %2 = arith.cmpi ne, %1, %c0_i32_0 : i32
    scf.if %2 {
      %cst_44 = arith.constant 0.000000e+00 : f32
      %55 = vector.broadcast %cst_44 : f32 to vector<16x80xf32>
      %c0_45 = arith.constant 0 : index
      %c0_46 = arith.constant 0 : index
      %56 = vector.load %arg7[%c0_45, %c0_46] : memref<16x80xf32, #tpu.memory_space<vmem>>, vector<16x80xf32>
      tpu.vector_store %arg7[%c0_45, %c0_46], %55 {strides = array<i32>} : memref<16x80xf32, #tpu.memory_space<vmem>>, vector<16x80xf32>,
    } else {
    }
    %c0 = arith.constant 0 : index
    %c0_1 = arith.constant 0 : index
    %c0_2 = arith.constant 0 : index
    %3 = vector.load %arg3[%c0, %c0_1, %c0_2] : memref<1x16x110xbf16, #tpu.memory_space<vmem>>, vector<1x16x110xbf16>
    %4 = vector.shape_cast %3 : vector<1x16x110xbf16> to vector<16x110xbf16>
    %5 = vector.extract_strided_slice %4 {offsets = [0, 0], sizes = [16, 80], strides = [1, 1]} : vector<16x110xbf16> to vector<16x80xbf16>
    %c0_3 = arith.constant 0 : index
    %c0_4 = arith.constant 0 : index
    %c0_5 = arith.constant 0 : index
    %c0_6 = arith.constant 0 : index
    %6 = vector.load %arg4[%c0_3, %c0_4, %c0_5, %c0_6] : memref<1x9x16x16xbf16, #tpu.memory_space<vmem>>, vector<1x1x16x16xbf16>
    %7 = vector.shape_cast %6 : vector<1x1x16x16xbf16> to vector<16x16xbf16>
    %cst = arith.constant dense<0.000000e+00> : vector<16x80xf32>
    %8 = tpu.matmul %7, %5, %cst {dimension_numbers = #tpu.dot_dimension_numbers<[1], [0], [0], [1], [0, 0, 1, 1], [], []>} : vector<16x16xbf16>, vector<16x80xbf16>, vector<16x80xf32> -> vector<16x80xf32>
    %9 = vector.extract_strided_slice %4 {offsets = [0, 1], sizes = [16, 80], strides = [1, 1]} : vector<16x110xbf16> to vector<16x80xbf16>
    %c0_7 = arith.constant 0 : index
    %c1 = arith.constant 1 : index
    %c0_8 = arith.constant 0 : index
    %c0_9 = arith.constant 0 : index
    %10 = vector.load %arg4[%c0_7, %c1, %c0_8, %c0_9] : memref<1x9x16x16xbf16, #tpu.memory_space<vmem>>, vector<1x1x16x16xbf16>
    %11 = vector.shape_cast %10 : vector<1x1x16x16xbf16> to vector<16x16xbf16>
    %cst_10 = arith.constant dense<0.000000e+00> : vector<16x80xf32>
    %12 = tpu.matmul %11, %9, %cst_10 {dimension_numbers = #tpu.dot_dimension_numbers<[1], [0], [0], [1], [0, 0, 1, 1], [], []>} : vector<16x16xbf16>, vector<16x80xbf16>, vector<16x80xf32> -> vector<16x80xf32>
    %13 = arith.addf %8, %12 : vector<16x80xf32>
    %14 = vector.extract_strided_slice %4 {offsets = [0, 2], sizes = [16, 80], strides = [1, 1]} : vector<16x110xbf16> to vector<16x80xbf16>
    %c0_11 = arith.constant 0 : index
    %c2 = arith.constant 2 : index
    %c0_12 = arith.constant 0 : index
    %c0_13 = arith.constant 0 : index
    %15 = vector.load %arg4[%c0_11, %c2, %c0_12, %c0_13] : memref<1x9x16x16xbf16, #tpu.memory_space<vmem>>, vector<1x1x16x16xbf16>
    %16 = vector.shape_cast %15 : vector<1x1x16x16xbf16> to vector<16x16xbf16>
    %cst_14 = arith.constant dense<0.000000e+00> : vector<16x80xf32>
    %17 = tpu.matmul %16, %14, %cst_14 {dimension_numbers = #tpu.dot_dimension_numbers<[1], [0], [0], [1], [0, 0, 1, 1], [], []>} : vector<16x16xbf16>, vector<16x80xbf16>, vector<16x80xf32> -> vector<16x80xf32>
    %18 = arith.addf %13, %17 : vector<16x80xf32>
    %19 = vector.extract_strided_slice %4 {offsets = [0, 10], sizes = [16, 80], strides = [1, 1]} : vector<16x110xbf16> to vector<16x80xbf16>
    %c0_15 = arith.constant 0 : index
    %c3 = arith.constant 3 : index
    %c0_16 = arith.constant 0 : index
    %c0_17 = arith.constant 0 : index
    %20 = vector.load %arg4[%c0_15, %c3, %c0_16, %c0_17] : memref<1x9x16x16xbf16, #tpu.memory_space<vmem>>, vector<1x1x16x16xbf16>
    %21 = vector.shape_cast %20 : vector<1x1x16x16xbf16> to vector<16x16xbf16>
    %cst_18 = arith.constant dense<0.000000e+00> : vector<16x80xf32>
    %22 = tpu.matmul %21, %19, %cst_18 {dimension_numbers = #tpu.dot_dimension_numbers<[1], [0], [0], [1], [0, 0, 1, 1], [], []>} : vector<16x16xbf16>, vector<16x80xbf16>, vector<16x80xf32> -> vector<16x80xf32>
    %23 = arith.addf %18, %22 : vector<16x80xf32>
    %24 = vector.extract_strided_slice %4 {offsets = [0, 11], sizes = [16, 80], strides = [1, 1]} : vector<16x110xbf16> to vector<16x80xbf16>
    %c0_19 = arith.constant 0 : index
    %c4 = arith.constant 4 : index
    %c0_20 = arith.constant 0 : index
    %c0_21 = arith.constant 0 : index
    %25 = vector.load %arg4[%c0_19, %c4, %c0_20, %c0_21] : memref<1x9x16x16xbf16, #tpu.memory_space<vmem>>, vector<1x1x16x16xbf16>
    %26 = vector.shape_cast %25 : vector<1x1x16x16xbf16> to vector<16x16xbf16>
    %cst_22 = arith.constant dense<0.000000e+00> : vector<16x80xf32>
    %27 = tpu.matmul %26, %24, %cst_22 {dimension_numbers = #tpu.dot_dimension_numbers<[1], [0], [0], [1], [0, 0, 1, 1], [], []>} : vector<16x16xbf16>, vector<16x80xbf16>, vector<16x80xf32> -> vector<16x80xf32>
    %28 = arith.addf %23, %27 : vector<16x80xf32>
    %29 = vector.extract_strided_slice %4 {offsets = [0, 12], sizes = [16, 80], strides = [1, 1]} : vector<16x110xbf16> to vector<16x80xbf16>
    %c0_23 = arith.constant 0 : index
    %c5 = arith.constant 5 : index
    %c0_24 = arith.constant 0 : index
    %c0_25 = arith.constant 0 : index
    %30 = vector.load %arg4[%c0_23, %c5, %c0_24, %c0_25] : memref<1x9x16x16xbf16, #tpu.memory_space<vmem>>, vector<1x1x16x16xbf16>
    %31 = vector.shape_cast %30 : vector<1x1x16x16xbf16> to vector<16x16xbf16>
    %cst_26 = arith.constant dense<0.000000e+00> : vector<16x80xf32>
    %32 = tpu.matmul %31, %29, %cst_26 {dimension_numbers = #tpu.dot_dimension_numbers<[1], [0], [0], [1], [0, 0, 1, 1], [], []>} : vector<16x16xbf16>, vector<16x80xbf16>, vector<16x80xf32> -> vector<16x80xf32>
    %33 = arith.addf %28, %32 : vector<16x80xf32>
    %34 = vector.extract_strided_slice %4 {offsets = [0, 20], sizes = [16, 80], strides = [1, 1]} : vector<16x110xbf16> to vector<16x80xbf16>
    %c0_27 = arith.constant 0 : index
    %c6 = arith.constant 6 : index
    %c0_28 = arith.constant 0 : index
    %c0_29 = arith.constant 0 : index
    %35 = vector.load %arg4[%c0_27, %c6, %c0_28, %c0_29] : memref<1x9x16x16xbf16, #tpu.memory_space<vmem>>, vector<1x1x16x16xbf16>
    %36 = vector.shape_cast %35 : vector<1x1x16x16xbf16> to vector<16x16xbf16>
    %cst_30 = arith.constant dense<0.000000e+00> : vector<16x80xf32>
    %37 = tpu.matmul %36, %34, %cst_30 {dimension_numbers = #tpu.dot_dimension_numbers<[1], [0], [0], [1], [0, 0, 1, 1], [], []>} : vector<16x16xbf16>, vector<16x80xbf16>, vector<16x80xf32> -> vector<16x80xf32>
    %38 = arith.addf %33, %37 : vector<16x80xf32>
    %39 = vector.extract_strided_slice %4 {offsets = [0, 21], sizes = [16, 80], strides = [1, 1]} : vector<16x110xbf16> to vector<16x80xbf16>
    %c0_31 = arith.constant 0 : index
    %c7 = arith.constant 7 : index
    %c0_32 = arith.constant 0 : index
    %c0_33 = arith.constant 0 : index
    %40 = vector.load %arg4[%c0_31, %c7, %c0_32, %c0_33] : memref<1x9x16x16xbf16, #tpu.memory_space<vmem>>, vector<1x1x16x16xbf16>
    %41 = vector.shape_cast %40 : vector<1x1x16x16xbf16> to vector<16x16xbf16>
    %cst_34 = arith.constant dense<0.000000e+00> : vector<16x80xf32>
    %42 = tpu.matmul %41, %39, %cst_34 {dimension_numbers = #tpu.dot_dimension_numbers<[1], [0], [0], [1], [0, 0, 1, 1], [], []>} : vector<16x16xbf16>, vector<16x80xbf16>, vector<16x80xf32> -> vector<16x80xf32>
    %43 = arith.addf %38, %42 : vector<16x80xf32>
    %44 = vector.extract_strided_slice %4 {offsets = [0, 22], sizes = [16, 80], strides = [1, 1]} : vector<16x110xbf16> to vector<16x80xbf16>
    %c0_35 = arith.constant 0 : index
    %c8 = arith.constant 8 : index
    %c0_36 = arith.constant 0 : index
    %c0_37 = arith.constant 0 : index
    %45 = vector.load %arg4[%c0_35, %c8, %c0_36, %c0_37] : memref<1x9x16x16xbf16, #tpu.memory_space<vmem>>, vector<1x1x16x16xbf16>
    %46 = vector.shape_cast %45 : vector<1x1x16x16xbf16> to vector<16x16xbf16>
    %cst_38 = arith.constant dense<0.000000e+00> : vector<16x80xf32>
    %47 = tpu.matmul %46, %44, %cst_38 {dimension_numbers = #tpu.dot_dimension_numbers<[1], [0], [0], [1], [0, 0, 1, 1], [], []>} : vector<16x16xbf16>, vector<16x80xbf16>, vector<16x80xf32> -> vector<16x80xf32>
    %48 = arith.addf %43, %47 : vector<16x80xf32>
    %c0_39 = arith.constant 0 : index
    %c0_40 = arith.constant 0 : index
    %49 = vector.load %arg7[%c0_39, %c0_40] : memref<16x80xf32, #tpu.memory_space<vmem>>, vector<16x80xf32>
    %50 = arith.addf %49, %48 : vector<16x80xf32>
    %c0_41 = arith.constant 0 : index
    %c0_42 = arith.constant 0 : index
    %51 = vector.load %arg7[%c0_41, %c0_42] : memref<16x80xf32, #tpu.memory_space<vmem>>, vector<16x80xf32>
    tpu.vector_store %arg7[%c0_41, %c0_42], %50 {strides = array<i32>} : memref<16x80xf32, #tpu.memory_space<vmem>>, vector<16x80xf32>,
    %c2_i32 = arith.constant 2 : i32
    %52 = arith.cmpi eq, %arg2, %c2_i32 : i32
    %53 = arith.extui %52 : i1 to i32
    %c0_i32_43 = arith.constant 0 : i32
    %54 = arith.cmpi ne, %53, %c0_i32_43 : i32
    scf.if %54 {
      %c0_44 = arith.constant 0 : index
      %c0_45 = arith.constant 0 : index
      %55 = vector.load %arg7[%c0_44, %c0_45] : memref<16x80xf32, #tpu.memory_space<vmem>>, vector<16x80xf32>
      %c0_46 = arith.constant 0 : index
      %c0_47 = arith.constant 0 : index
      %56 = vector.load %arg5[%c0_46, %c0_47] : memref<16x1xf32, #tpu.memory_space<vmem>>, vector<16x1xf32>
      %57 = vector.broadcast %56 : vector<16x1xf32> to vector<16x80xf32>
      %58 = arith.addf %55, %57 : vector<16x80xf32>
      %59 = arith.truncf %58 : vector<16x80xf32> to vector<16x80xbf16>
      %c0_48 = arith.constant 0 : index
      %c0_49 = arith.constant 0 : index
      %c0_50 = arith.constant 0 : index
      %60 = vector.load %arg6[%c0_48, %c0_49, %c0_50] : memref<1x16x80xbf16, #tpu.memory_space<vmem>>, vector<1x16x80xbf16>
      %61 = vector.shape_cast %60 : vector<1x16x80xbf16> to vector<16x80xbf16>
      %62 = vector.shape_cast %59 : vector<16x80xbf16> to vector<1x16x80xbf16>
      tpu.vector_store %arg6[%c0_48, %c0_49, %c0_50], %62 {strides = array<i32>} : memref<1x16x80xbf16, #tpu.memory_space<vmem>>, vector<1x16x80xbf16>,
    } else {
    }
    return
  }
  func.func @transform_0(%arg0: i32, %arg1: i32, %arg2: i32) -> (i32, i32, i32) {
    %c10_i32 = arith.constant 10 : i32
    %0 = arith.muli %arg0, %c10_i32 : i32
    %1 = arith.addi %0, %arg1 : i32
    %2 = arith.addi %1, %arg2 : i32
    %c0_i32 = arith.constant 0 : i32
    %c0_i32_0 = arith.constant 0 : i32
    %c0_i32_1 = arith.constant 0 : i32
    return %2, %c0_i32, %c0_i32_0 : i32, i32, i32
  }
  func.func @transform_1(%arg0: i32, %arg1: i32, %arg2: i32) -> (i32, i32, i32, i32) {
    %c0_i32 = arith.constant 0 : i32
    %c0_i32_0 = arith.constant 0 : i32
    %c0_i32_1 = arith.constant 0 : i32
    %c0_i32_2 = arith.constant 0 : i32
    return %arg2, %c0_i32, %c0_i32_0, %c0_i32_1 : i32, i32, i32, i32
  }
  func.func @transform_2(%arg0: i32, %arg1: i32, %arg2: i32) -> (i32, i32) {
    %c0_i32 = arith.constant 0 : i32
    %c0_i32_0 = arith.constant 0 : i32
    %c0_i32_1 = arith.constant 0 : i32
    return %c0_i32, %c0_i32_0 : i32, i32
  }
  func.func @transform_3(%arg0: i32, %arg1: i32, %arg2: i32) -> (i32, i32, i32) {
    %c8_i32 = arith.constant 8 : i32
    %0 = arith.muli %arg0, %c8_i32 : i32
    %1 = arith.addi %0, %arg1 : i32
    %c0_i32 = arith.constant 0 : i32
    %c0_i32_0 = arith.constant 0 : i32
    %c0_i32_1 = arith.constant 0 : i32
    return %1, %c0_i32, %c0_i32_0 : i32, i32, i32
  }
}

module attributes {stable_mosaic.version = 11 : i64} {
  func.func @_ln_stats_kernel(%arg0: i32, %arg1: i32, %arg2: memref<1x16x80xbf16, #tpu.memory_space<vmem>>, %arg3: memref<1x80xf32, #tpu.memory_space<vmem>>, %arg4: memref<1x16x1xf32, #tpu.memory_space<vmem>>, %arg5: memref<1x16x1xf32, #tpu.memory_space<vmem>>, %arg6: memref<16x1xf32, #tpu.memory_space<vmem>>, %arg7: memref<16x1xf32, #tpu.memory_space<vmem>>) attributes {dimension_semantics = [#tpu.dimension_semantics<parallel>, #tpu.dimension_semantics<arbitrary>], iteration_bounds = array<i64: 2, 8>, scalar_prefetch = 0 : i64, scratch_operands = 2 : i64, tpu.core_type = #tpu.core_type<tc>, window_params = [{transform_indices = @transform_0, window_bounds = array<i64: 1, 16, 80>}, {pipeline_mode = #tpu.pipeline_mode<synchronous>, transform_indices = @transform_1, window_bounds = array<i64: 1, 80>}, {transform_indices = @transform_2, window_bounds = array<i64: 1, 16, 1>}, {transform_indices = @transform_3, window_bounds = array<i64: 1, 16, 1>}]} {
    %c0_i32 = arith.constant 0 : i32
    %0 = arith.cmpi eq, %arg1, %c0_i32 : i32
    %1 = arith.extui %0 : i1 to i32
    %c0_i32_0 = arith.constant 0 : i32
    %2 = arith.cmpi ne, %1, %c0_i32_0 : i32
    scf.if %2 {
      %cst_15 = arith.constant 0.000000e+00 : f32
      %23 = vector.broadcast %cst_15 : f32 to vector<16x1xf32>
      %c0_16 = arith.constant 0 : index
      %c0_17 = arith.constant 0 : index
      %24 = vector.load %arg6[%c0_16, %c0_17] : memref<16x1xf32, #tpu.memory_space<vmem>>, vector<16x1xf32>
      tpu.vector_store %arg6[%c0_16, %c0_17], %23 {strides = array<i32>} : memref<16x1xf32, #tpu.memory_space<vmem>>, vector<16x1xf32>,
      %cst_18 = arith.constant 0.000000e+00 : f32
      %25 = vector.broadcast %cst_18 : f32 to vector<16x1xf32>
      %c0_19 = arith.constant 0 : index
      %c0_20 = arith.constant 0 : index
      %26 = vector.load %arg7[%c0_19, %c0_20] : memref<16x1xf32, #tpu.memory_space<vmem>>, vector<16x1xf32>
      tpu.vector_store %arg7[%c0_19, %c0_20], %25 {strides = array<i32>} : memref<16x1xf32, #tpu.memory_space<vmem>>, vector<16x1xf32>,
    } else {
    }
    %c0 = arith.constant 0 : index
    %c0_1 = arith.constant 0 : index
    %c0_2 = arith.constant 0 : index
    %3 = vector.load %arg2[%c0, %c0_1, %c0_2] : memref<1x16x80xbf16, #tpu.memory_space<vmem>>, vector<1x16x80xbf16>
    %4 = vector.shape_cast %3 : vector<1x16x80xbf16> to vector<16x80xbf16>
    %5 = arith.extf %4 : vector<16x80xbf16> to vector<16x80xf32>
    %c0_3 = arith.constant 0 : index
    %c0_4 = arith.constant 0 : index
    %6 = vector.load %arg3[%c0_3, %c0_4] : memref<1x80xf32, #tpu.memory_space<vmem>>, vector<1x80xf32>
    %7 = vector.broadcast %6 : vector<1x80xf32> to vector<16x80xf32>
    %8 = arith.mulf %5, %7 : vector<16x80xf32>
    %c0_5 = arith.constant 0 : index
    %c0_6 = arith.constant 0 : index
    %9 = vector.load %arg6[%c0_5, %c0_6] : memref<16x1xf32, #tpu.memory_space<vmem>>, vector<16x1xf32>
    %cst = arith.constant dense<0.000000e+00> : vector<16xf32>
    %10 = vector.multi_reduction <add>, %8, %cst [1] : vector<16x80xf32> to vector<16xf32>
    %11 = vector.shape_cast %10 : vector<16xf32> to vector<16x1xf32>
    %12 = arith.addf %9, %11 : vector<16x1xf32>
    %c0_7 = arith.constant 0 : index
    %c0_8 = arith.constant 0 : index
    %13 = vector.load %arg6[%c0_7, %c0_8] : memref<16x1xf32, #tpu.memory_space<vmem>>, vector<16x1xf32>
    tpu.vector_store %arg6[%c0_7, %c0_8], %12 {strides = array<i32>} : memref<16x1xf32, #tpu.memory_space<vmem>>, vector<16x1xf32>,
    %c0_9 = arith.constant 0 : index
    %c0_10 = arith.constant 0 : index
    %14 = vector.load %arg7[%c0_9, %c0_10] : memref<16x1xf32, #tpu.memory_space<vmem>>, vector<16x1xf32>
    %15 = arith.mulf %8, %8 : vector<16x80xf32>
    %cst_11 = arith.constant dense<0.000000e+00> : vector<16xf32>
    %16 = vector.multi_reduction <add>, %15, %cst_11 [1] : vector<16x80xf32> to vector<16xf32>
    %17 = vector.shape_cast %16 : vector<16xf32> to vector<16x1xf32>
    %18 = arith.addf %14, %17 : vector<16x1xf32>
    %c0_12 = arith.constant 0 : index
    %c0_13 = arith.constant 0 : index
    %19 = vector.load %arg7[%c0_12, %c0_13] : memref<16x1xf32, #tpu.memory_space<vmem>>, vector<16x1xf32>
    tpu.vector_store %arg7[%c0_12, %c0_13], %18 {strides = array<i32>} : memref<16x1xf32, #tpu.memory_space<vmem>>, vector<16x1xf32>,
    %c7_i32 = arith.constant 7 : i32
    %20 = arith.cmpi eq, %arg1, %c7_i32 : i32
    %21 = arith.extui %20 : i1 to i32
    %c0_i32_14 = arith.constant 0 : i32
    %22 = arith.cmpi ne, %21, %c0_i32_14 : i32
    scf.if %22 {
      %c0_15 = arith.constant 0 : index
      %c0_16 = arith.constant 0 : index
      %23 = vector.load %arg6[%c0_15, %c0_16] : memref<16x1xf32, #tpu.memory_space<vmem>>, vector<16x1xf32>
      %cst_17 = arith.constant 0.001953125 : f32
      %24 = vector.broadcast %cst_17 : f32 to vector<16x1xf32>
      %25 = arith.mulf %23, %24 : vector<16x1xf32>
      %c0_18 = arith.constant 0 : index
      %c0_19 = arith.constant 0 : index
      %26 = vector.load %arg7[%c0_18, %c0_19] : memref<16x1xf32, #tpu.memory_space<vmem>>, vector<16x1xf32>
      %cst_20 = arith.constant 0.001953125 : f32
      %27 = vector.broadcast %cst_20 : f32 to vector<16x1xf32>
      %28 = arith.mulf %26, %27 : vector<16x1xf32>
      %29 = arith.mulf %25, %25 : vector<16x1xf32>
      %30 = arith.subf %28, %29 : vector<16x1xf32>
      %c0_21 = arith.constant 0 : index
      %c0_22 = arith.constant 0 : index
      %c0_23 = arith.constant 0 : index
      %31 = vector.load %arg4[%c0_21, %c0_22, %c0_23] : memref<1x16x1xf32, #tpu.memory_space<vmem>>, vector<1x16x1xf32>
      %32 = vector.shape_cast %31 : vector<1x16x1xf32> to vector<16x1xf32>
      %33 = vector.shape_cast %25 : vector<16x1xf32> to vector<1x16x1xf32>
      tpu.vector_store %arg4[%c0_21, %c0_22, %c0_23], %33 {strides = array<i32>} : memref<1x16x1xf32, #tpu.memory_space<vmem>>, vector<1x16x1xf32>,
      %cst_24 = arith.constant 9.99999974E-6 : f32
      %34 = vector.broadcast %cst_24 : f32 to vector<16x1xf32>
      %35 = arith.addf %30, %34 : vector<16x1xf32>
      %36 = math.rsqrt %35 : vector<16x1xf32>
      %c0_25 = arith.constant 0 : index
      %c0_26 = arith.constant 0 : index
      %c0_27 = arith.constant 0 : index
      %37 = vector.load %arg5[%c0_25, %c0_26, %c0_27] : memref<1x16x1xf32, #tpu.memory_space<vmem>>, vector<1x16x1xf32>
      %38 = vector.shape_cast %37 : vector<1x16x1xf32> to vector<16x1xf32>
      %39 = vector.shape_cast %36 : vector<16x1xf32> to vector<1x16x1xf32>
      tpu.vector_store %arg5[%c0_25, %c0_26, %c0_27], %39 {strides = array<i32>} : memref<1x16x1xf32, #tpu.memory_space<vmem>>, vector<1x16x1xf32>,
    } else {
    }
    return
  }
  func.func @transform_0(%arg0: i32, %arg1: i32) -> (i32, i32, i32) {
    %c8_i32 = arith.constant 8 : i32
    %0 = arith.muli %arg0, %c8_i32 : i32
    %1 = arith.addi %0, %arg1 : i32
    %c0_i32 = arith.constant 0 : i32
    %c0_i32_0 = arith.constant 0 : i32
    %c0_i32_1 = arith.constant 0 : i32
    return %1, %c0_i32, %c0_i32_0 : i32, i32, i32
  }
  func.func @transform_1(%arg0: i32, %arg1: i32) -> (i32, i32) {
    %c0_i32 = arith.constant 0 : i32
    %c0_i32_0 = arith.constant 0 : i32
    %c0_i32_1 = arith.constant 0 : i32
    return %c0_i32, %c0_i32_0 : i32, i32
  }
  func.func @transform_2(%arg0: i32, %arg1: i32) -> (i32, i32, i32) {
    %c0_i32 = arith.constant 0 : i32
    %c0_i32_0 = arith.constant 0 : i32
    %c0_i32_1 = arith.constant 0 : i32
    return %arg0, %c0_i32, %c0_i32_0 : i32, i32, i32
  }
  func.func @transform_3(%arg0: i32, %arg1: i32) -> (i32, i32, i32) {
    %c0_i32 = arith.constant 0 : i32
    %c0_i32_0 = arith.constant 0 : i32
    %c0_i32_1 = arith.constant 0 : i32
    return %arg0, %c0_i32, %c0_i32_0 : i32, i32, i32
  }
}

module attributes {stable_mosaic.version = 11 : i64} {
  func.func @_ln_relu_conv1x1_kernel(%arg0: i32, %arg1: i32, %arg2: memref<1x16x80xbf16, #tpu.memory_space<vmem>>, %arg3: memref<1x16x1xf32, #tpu.memory_space<vmem>>, %arg4: memref<1x16x1xf32, #tpu.memory_space<vmem>>, %arg5: memref<1x1x80xf32, #tpu.memory_space<vmem>>, %arg6: memref<1x1x80xf32, #tpu.memory_space<vmem>>, %arg7: memref<16x16xbf16, #tpu.memory_space<vmem>>, %arg8: memref<16x1xf32, #tpu.memory_space<vmem>>, %arg9: memref<1x16x80xbf16, #tpu.memory_space<vmem>>) attributes {dimension_semantics = [#tpu.dimension_semantics<parallel>, #tpu.dimension_semantics<parallel>], iteration_bounds = array<i64: 2, 8>, scalar_prefetch = 0 : i64, scratch_operands = 0 : i64, tpu.core_type = #tpu.core_type<tc>, window_params = [{transform_indices = @transform_0, window_bounds = array<i64: 1, 16, 80>}, {transform_indices = @transform_1, window_bounds = array<i64: 1, 16, 1>}, {transform_indices = @transform_2, window_bounds = array<i64: 1, 16, 1>}, {transform_indices = @transform_3, window_bounds = array<i64: 1, 1, 80>}, {transform_indices = @transform_4, window_bounds = array<i64: 1, 1, 80>}, {pipeline_mode = #tpu.pipeline_mode<synchronous>, transform_indices = @transform_5, window_bounds = array<i64: 16, 16>}, {pipeline_mode = #tpu.pipeline_mode<synchronous>, transform_indices = @transform_6, window_bounds = array<i64: 16, 1>}, {transform_indices = @transform_7, window_bounds = array<i64: 1, 16, 80>}]} {
    %c0 = arith.constant 0 : index
    %c0_0 = arith.constant 0 : index
    %c0_1 = arith.constant 0 : index
    %0 = vector.load %arg2[%c0, %c0_0, %c0_1] : memref<1x16x80xbf16, #tpu.memory_space<vmem>>, vector<1x16x80xbf16>
    %1 = vector.shape_cast %0 : vector<1x16x80xbf16> to vector<16x80xbf16>
    %2 = arith.extf %1 : vector<16x80xbf16> to vector<16x80xf32>
    %c0_2 = arith.constant 0 : index
    %c0_3 = arith.constant 0 : index
    %c0_4 = arith.constant 0 : index
    %3 = vector.load %arg3[%c0_2, %c0_3, %c0_4] : memref<1x16x1xf32, #tpu.memory_space<vmem>>, vector<1x16x1xf32>
    %4 = vector.shape_cast %3 : vector<1x16x1xf32> to vector<16x1xf32>
    %5 = vector.broadcast %4 : vector<16x1xf32> to vector<16x80xf32>
    %6 = arith.subf %2, %5 : vector<16x80xf32>
    %c0_5 = arith.constant 0 : index
    %c0_6 = arith.constant 0 : index
    %c0_7 = arith.constant 0 : index
    %7 = vector.load %arg4[%c0_5, %c0_6, %c0_7] : memref<1x16x1xf32, #tpu.memory_space<vmem>>, vector<1x16x1xf32>
    %8 = vector.shape_cast %7 : vector<1x16x1xf32> to vector<16x1xf32>
    %9 = vector.broadcast %8 : vector<16x1xf32> to vector<16x80xf32>
    %10 = arith.mulf %6, %9 : vector<16x80xf32>
    %c0_8 = arith.constant 0 : index
    %c0_9 = arith.constant 0 : index
    %c0_10 = arith.constant 0 : index
    %11 = vector.load %arg5[%c0_8, %c0_9, %c0_10] : memref<1x1x80xf32, #tpu.memory_space<vmem>>, vector<1x1x80xf32>
    %12 = vector.shape_cast %11 : vector<1x1x80xf32> to vector<1x80xf32>
    %13 = vector.broadcast %12 : vector<1x80xf32> to vector<16x80xf32>
    %14 = arith.mulf %10, %13 : vector<16x80xf32>
    %c0_11 = arith.constant 0 : index
    %c0_12 = arith.constant 0 : index
    %c0_13 = arith.constant 0 : index
    %15 = vector.load %arg6[%c0_11, %c0_12, %c0_13] : memref<1x1x80xf32, #tpu.memory_space<vmem>>, vector<1x1x80xf32>
    %16 = vector.shape_cast %15 : vector<1x1x80xf32> to vector<1x80xf32>
    %17 = vector.broadcast %16 : vector<1x80xf32> to vector<16x80xf32>
    %18 = arith.addf %14, %17 : vector<16x80xf32>
    %cst = arith.constant 0.000000e+00 : f32
    %19 = vector.broadcast %cst : f32 to vector<16x80xf32>
    %20 = arith.maximumf %18, %19 : vector<16x80xf32>
    %21 = arith.truncf %20 : vector<16x80xf32> to vector<16x80xbf16>
    %c0_14 = arith.constant 0 : index
    %c0_15 = arith.constant 0 : index
    %22 = vector.load %arg7[%c0_14, %c0_15] : memref<16x16xbf16, #tpu.memory_space<vmem>>, vector<16x16xbf16>
    %cst_16 = arith.constant dense<0.000000e+00> : vector<16x80xf32>
    %23 = tpu.matmul %22, %21, %cst_16 {dimension_numbers = #tpu.dot_dimension_numbers<[1], [0], [0], [1], [0, 0, 1, 1], [], []>} : vector<16x16xbf16>, vector<16x80xbf16>, vector<16x80xf32> -> vector<16x80xf32>
    %c0_17 = arith.constant 0 : index
    %c0_18 = arith.constant 0 : index
    %24 = vector.load %arg8[%c0_17, %c0_18] : memref<16x1xf32, #tpu.memory_space<vmem>>, vector<16x1xf32>
    %25 = vector.broadcast %24 : vector<16x1xf32> to vector<16x80xf32>
    %26 = arith.addf %23, %25 : vector<16x80xf32>
    %27 = arith.truncf %26 : vector<16x80xf32> to vector<16x80xbf16>
    %c0_19 = arith.constant 0 : index
    %c0_20 = arith.constant 0 : index
    %c0_21 = arith.constant 0 : index
    %28 = vector.load %arg9[%c0_19, %c0_20, %c0_21] : memref<1x16x80xbf16, #tpu.memory_space<vmem>>, vector<1x16x80xbf16>
    %29 = vector.shape_cast %28 : vector<1x16x80xbf16> to vector<16x80xbf16>
    %30 = vector.shape_cast %27 : vector<16x80xbf16> to vector<1x16x80xbf16>
    tpu.vector_store %arg9[%c0_19, %c0_20, %c0_21], %30 {strides = array<i32>} : memref<1x16x80xbf16, #tpu.memory_space<vmem>>, vector<1x16x80xbf16>,
    return
  }
  func.func @transform_0(%arg0: i32, %arg1: i32) -> (i32, i32, i32) {
    %c8_i32 = arith.constant 8 : i32
    %0 = arith.muli %arg0, %c8_i32 : i32
    %1 = arith.addi %0, %arg1 : i32
    %c0_i32 = arith.constant 0 : i32
    %c0_i32_0 = arith.constant 0 : i32
    %c0_i32_1 = arith.constant 0 : i32
    return %1, %c0_i32, %c0_i32_0 : i32, i32, i32
  }
  func.func @transform_1(%arg0: i32, %arg1: i32) -> (i32, i32, i32) {
    %c0_i32 = arith.constant 0 : i32
    %c0_i32_0 = arith.constant 0 : i32
    %c0_i32_1 = arith.constant 0 : i32
    return %arg0, %c0_i32, %c0_i32_0 : i32, i32, i32
  }
  func.func @transform_2(%arg0: i32, %arg1: i32) -> (i32, i32, i32) {
    %c0_i32 = arith.constant 0 : i32
    %c0_i32_0 = arith.constant 0 : i32
    %c0_i32_1 = arith.constant 0 : i32
    return %arg0, %c0_i32, %c0_i32_0 : i32, i32, i32
  }
  func.func @transform_3(%arg0: i32, %arg1: i32) -> (i32, i32, i32) {
    %c0_i32 = arith.constant 0 : i32
    %c0_i32_0 = arith.constant 0 : i32
    %c0_i32_1 = arith.constant 0 : i32
    return %arg1, %c0_i32, %c0_i32_0 : i32, i32, i32
  }
  func.func @transform_4(%arg0: i32, %arg1: i32) -> (i32, i32, i32) {
    %c0_i32 = arith.constant 0 : i32
    %c0_i32_0 = arith.constant 0 : i32
    %c0_i32_1 = arith.constant 0 : i32
    return %arg1, %c0_i32, %c0_i32_0 : i32, i32, i32
  }
  func.func @transform_5(%arg0: i32, %arg1: i32) -> (i32, i32) {
    %c0_i32 = arith.constant 0 : i32
    %c0_i32_0 = arith.constant 0 : i32
    %c0_i32_1 = arith.constant 0 : i32
    return %c0_i32, %c0_i32_0 : i32, i32
  }
  func.func @transform_6(%arg0: i32, %arg1: i32) -> (i32, i32) {
    %c0_i32 = arith.constant 0 : i32
    %c0_i32_0 = arith.constant 0 : i32
    %c0_i32_1 = arith.constant 0 : i32
    return %c0_i32, %c0_i32_0 : i32, i32
  }
  func.func @transform_7(%arg0: i32, %arg1: i32) -> (i32, i32, i32) {
    %c8_i32 = arith.constant 8 : i32
    %0 = arith.muli %arg0, %c8_i32 : i32
    %1 = arith.addi %0, %arg1 : i32
    %c0_i32 = arith.constant 0 : i32
    %c0_i32_0 = arith.constant 0 : i32
    %c0_i32_1 = arith.constant 0 : i32
    return %1, %c0_i32, %c0_i32_0 : i32, i32, i32
  }
}

module attributes {stable_mosaic.version = 11 : i64} {
  func.func @_ln_apply_relu_kernel(%arg0: i32, %arg1: i32, %arg2: memref<1x16x80xbf16, #tpu.memory_space<vmem>>, %arg3: memref<1x16x1xf32, #tpu.memory_space<vmem>>, %arg4: memref<1x16x1xf32, #tpu.memory_space<vmem>>, %arg5: memref<1x1x80xf32, #tpu.memory_space<vmem>>, %arg6: memref<1x1x80xf32, #tpu.memory_space<vmem>>, %arg7: memref<1x16x80xf32, #tpu.memory_space<vmem>>) attributes {dimension_semantics = [#tpu.dimension_semantics<parallel>, #tpu.dimension_semantics<parallel>], iteration_bounds = array<i64: 2, 8>, scalar_prefetch = 0 : i64, scratch_operands = 0 : i64, tpu.core_type = #tpu.core_type<tc>, window_params = [{transform_indices = @transform_0, window_bounds = array<i64: 1, 16, 80>}, {transform_indices = @transform_1, window_bounds = array<i64: 1, 16, 1>}, {transform_indices = @transform_2, window_bounds = array<i64: 1, 16, 1>}, {transform_indices = @transform_3, window_bounds = array<i64: 1, 1, 80>}, {transform_indices = @transform_4, window_bounds = array<i64: 1, 1, 80>}, {transform_indices = @transform_5, window_bounds = array<i64: 1, 16, 80>}]} {
    %c0 = arith.constant 0 : index
    %c0_0 = arith.constant 0 : index
    %c0_1 = arith.constant 0 : index
    %0 = vector.load %arg2[%c0, %c0_0, %c0_1] : memref<1x16x80xbf16, #tpu.memory_space<vmem>>, vector<1x16x80xbf16>
    %1 = vector.shape_cast %0 : vector<1x16x80xbf16> to vector<16x80xbf16>
    %2 = arith.extf %1 : vector<16x80xbf16> to vector<16x80xf32>
    %c0_2 = arith.constant 0 : index
    %c0_3 = arith.constant 0 : index
    %c0_4 = arith.constant 0 : index
    %3 = vector.load %arg3[%c0_2, %c0_3, %c0_4] : memref<1x16x1xf32, #tpu.memory_space<vmem>>, vector<1x16x1xf32>
    %4 = vector.shape_cast %3 : vector<1x16x1xf32> to vector<16x1xf32>
    %5 = vector.broadcast %4 : vector<16x1xf32> to vector<16x80xf32>
    %6 = arith.subf %2, %5 : vector<16x80xf32>
    %c0_5 = arith.constant 0 : index
    %c0_6 = arith.constant 0 : index
    %c0_7 = arith.constant 0 : index
    %7 = vector.load %arg4[%c0_5, %c0_6, %c0_7] : memref<1x16x1xf32, #tpu.memory_space<vmem>>, vector<1x16x1xf32>
    %8 = vector.shape_cast %7 : vector<1x16x1xf32> to vector<16x1xf32>
    %9 = vector.broadcast %8 : vector<16x1xf32> to vector<16x80xf32>
    %10 = arith.mulf %6, %9 : vector<16x80xf32>
    %c0_8 = arith.constant 0 : index
    %c0_9 = arith.constant 0 : index
    %c0_10 = arith.constant 0 : index
    %11 = vector.load %arg5[%c0_8, %c0_9, %c0_10] : memref<1x1x80xf32, #tpu.memory_space<vmem>>, vector<1x1x80xf32>
    %12 = vector.shape_cast %11 : vector<1x1x80xf32> to vector<1x80xf32>
    %13 = vector.broadcast %12 : vector<1x80xf32> to vector<16x80xf32>
    %14 = arith.mulf %10, %13 : vector<16x80xf32>
    %c0_11 = arith.constant 0 : index
    %c0_12 = arith.constant 0 : index
    %c0_13 = arith.constant 0 : index
    %15 = vector.load %arg6[%c0_11, %c0_12, %c0_13] : memref<1x1x80xf32, #tpu.memory_space<vmem>>, vector<1x1x80xf32>
    %16 = vector.shape_cast %15 : vector<1x1x80xf32> to vector<1x80xf32>
    %17 = vector.broadcast %16 : vector<1x80xf32> to vector<16x80xf32>
    %18 = arith.addf %14, %17 : vector<16x80xf32>
    %cst = arith.constant 0.000000e+00 : f32
    %19 = vector.broadcast %cst : f32 to vector<16x80xf32>
    %20 = arith.maximumf %18, %19 : vector<16x80xf32>
    %c0_14 = arith.constant 0 : index
    %c0_15 = arith.constant 0 : index
    %c0_16 = arith.constant 0 : index
    %21 = vector.load %arg7[%c0_14, %c0_15, %c0_16] : memref<1x16x80xf32, #tpu.memory_space<vmem>>, vector<1x16x80xf32>
    %22 = vector.shape_cast %21 : vector<1x16x80xf32> to vector<16x80xf32>
    %23 = vector.shape_cast %20 : vector<16x80xf32> to vector<1x16x80xf32>
    tpu.vector_store %arg7[%c0_14, %c0_15, %c0_16], %23 {strides = array<i32>} : memref<1x16x80xf32, #tpu.memory_space<vmem>>, vector<1x16x80xf32>,
    return
  }
  func.func @transform_0(%arg0: i32, %arg1: i32) -> (i32, i32, i32) {
    %c8_i32 = arith.constant 8 : i32
    %0 = arith.muli %arg0, %c8_i32 : i32
    %1 = arith.addi %0, %arg1 : i32
    %c0_i32 = arith.constant 0 : i32
    %c0_i32_0 = arith.constant 0 : i32
    %c0_i32_1 = arith.constant 0 : i32
    return %1, %c0_i32, %c0_i32_0 : i32, i32, i32
  }
  func.func @transform_1(%arg0: i32, %arg1: i32) -> (i32, i32, i32) {
    %c0_i32 = arith.constant 0 : i32
    %c0_i32_0 = arith.constant 0 : i32
    %c0_i32_1 = arith.constant 0 : i32
    return %arg0, %c0_i32, %c0_i32_0 : i32, i32, i32
  }
  func.func @transform_2(%arg0: i32, %arg1: i32) -> (i32, i32, i32) {
    %c0_i32 = arith.constant 0 : i32
    %c0_i32_0 = arith.constant 0 : i32
    %c0_i32_1 = arith.constant 0 : i32
    return %arg0, %c0_i32, %c0_i32_0 : i32, i32, i32
  }
  func.func @transform_3(%arg0: i32, %arg1: i32) -> (i32, i32, i32) {
    %c0_i32 = arith.constant 0 : i32
    %c0_i32_0 = arith.constant 0 : i32
    %c0_i32_1 = arith.constant 0 : i32
    return %arg1, %c0_i32, %c0_i32_0 : i32, i32, i32
  }
  func.func @transform_4(%arg0: i32, %arg1: i32) -> (i32, i32, i32) {
    %c0_i32 = arith.constant 0 : i32
    %c0_i32_0 = arith.constant 0 : i32
    %c0_i32_1 = arith.constant 0 : i32
    return %arg1, %c0_i32, %c0_i32_0 : i32, i32, i32
  }
  func.func @transform_5(%arg0: i32, %arg1: i32) -> (i32, i32, i32) {
    %c8_i32 = arith.constant 8 : i32
    %0 = arith.muli %arg0, %c8_i32 : i32
    %1 = arith.addi %0, %arg1 : i32
    %c0_i32 = arith.constant 0 : i32
    %c0_i32_0 = arith.constant 0 : i32
    %c0_i32_1 = arith.constant 0 : i32
    return %1, %c0_i32, %c0_i32_0 : i32, i32, i32
  }
}

</mosaic_0001>

<llo_original>
// kernel: tile.23
$region0: #{tile.23}
  #allocation0 [shape = 's32[1]{0}', space=sflag, size = 0x4, scoped, tag = 'scoped memory for tile.23']
  %s0 = inlined_call_operand.vmem [shape: f32[10], index: 0, kind: input, shape index: {}]
  %s1 = inlined_call_operand.vmem [shape: f32[8,10], index: 1, kind: output, shape index: {}]
  // Predicated region
  $region2: #{tile.23} parent=0 // pred_check
    _
  $region3: #{tile.23} parent=0 // pred_check_branch
    %3 = sbr.rel (0) target = $region5
  $region4: #{tile.23} parent=0 // pred_region
    _
  $region5: #{tile.23} parent=0 // pred_fallthru
    _
  %v4 = vld [vmem:[%s0] ss:$0 sm:$0xff]
  %5 = vst [vmem:[%s1] sm:$0xff] %v4

// kernel: tile.24
$region0: #{tile.24}
  %s0 = inlined_call_operand.vmem [shape: f32[8,10], index: 0, kind: input, shape index: {}]
  %s1 = inlined_call_operand.vmem [shape: f32[1,80], index: 1, kind: output, shape index: {}]
  $region1: #{tile.24} parent=0
    #allocation0 [shape = 'u8[4096]{0}', space=vmem, size = 0x1000, scoped, tag = 'scoped mem for output reshape']
    %v2 = vld [vmem:[%s0] sm:$0x1]
    %vm3 = vcmask 80896
    %4 = vst.msk [vmem:[#allocation0] sm:$0x1] %vm3, %v2
    %s5 = scalar_lea.vmem %s0, 7
    %v6 = vld [vmem:[%s5] sm:$0x1]
    %7 = vrot.lane.b32.xlu0 %v6, 70
    %v8 = vpop.permute.xlu0 %7
    %vm9 = vcmask 654896
    %10 = vst.msk [vmem:[#allocation0] sm:$0x1] %vm9, %v8
    %s11 = scalar_lea.vmem %s0, 6
    %v12 = vld [vmem:[%s11] sm:$0x1]
    %13 = vrot.lane.b32.xlu0 %v12, 60
    %v14 = vpop.permute.xlu0 %13
    %vm15 = vcmask 572896
    %16 = vst.msk [vmem:[#allocation0] sm:$0x1] %vm15, %v14
    %s17 = scalar_lea.vmem %s0, 5
    %v18 = vld [vmem:[%s17] sm:$0x1]
    %19 = vrot.lane.b32.xlu0 %v18, 50
    %v20 = vpop.permute.xlu0 %19
    %vm21 = vcmask 490896
    %22 = vst.msk [vmem:[#allocation0] sm:$0x1] %vm21, %v20
    %s23 = scalar_lea.vmem %s0, 4
    %v24 = vld [vmem:[%s23] sm:$0x1]
    %25 = vrot.lane.b32.xlu0 %v24, 40
    %v26 = vpop.permute.xlu0 %25
    %vm27 = vcmask 408896
    %28 = vst.msk [vmem:[#allocation0] sm:$0x1] %vm27, %v26
    %s29 = scalar_lea.vmem %s0, 3
    %v30 = vld [vmem:[%s29] sm:$0x1]
    %31 = vrot.lane.b32.xlu0 %v30, 30
    %v32 = vpop.permute.xlu0 %31
    %vm33 = vcmask 326896
    %34 = vst.msk [vmem:[#allocation0] sm:$0x1] %vm33, %v32
    %s35 = scalar_lea.vmem %s0, 2
    %v36 = vld [vmem:[%s35] sm:$0x1]
    %37 = vrot.lane.b32.xlu0 %v36, 20
    %v38 = vpop.permute.xlu0 %37
    %vm39 = vcmask 244896
    %40 = vst.msk [vmem:[#allocation0] sm:$0x1] %vm39, %v38
    %s41 = scalar_lea.vmem %s0, 1
    %v42 = vld [vmem:[%s41] sm:$0x1]
    %43 = vrot.lane.b32.xlu0 %v42, 10
    %v44 = vpop.permute.xlu0 %43
    %vm45 = vcmask 162896
    %46 = vst.msk [vmem:[#allocation0] sm:$0x1] %vm45, %v44
    %s48 = sshllo.u32 0, 1
    %v50 = vld [vmem:[#allocation0] sm:%s48]
    %s51 = sshllo.u32 0, 1
    %52 = vst [vmem:[%s1] sm:%s51] %v50

// kernel: tile.18
$region0: #{tile.18}
  #allocation0 [shape = 's32[1]{0}', space=sflag, size = 0x4, scoped, tag = 'scoped memory for tile.18']
  %s0 = inlined_call_operand.vmem [shape: f32[14], index: 0, kind: input, shape index: {}]
  %s1 = inlined_call_operand.vmem [shape: f32[8,14], index: 1, kind: output, shape index: {}]
  // Predicated region
  $region2: #{tile.18} parent=0 // pred_check
    _
  $region3: #{tile.18} parent=0 // pred_check_branch
    %3 = sbr.rel (0) target = $region5
  $region4: #{tile.18} parent=0 // pred_region
    _
  $region5: #{tile.18} parent=0 // pred_fallthru
    _
  %v4 = vld [vmem:[%s0] ss:$0 sm:$0xff]
  %5 = vst [vmem:[%s1] sm:$0xff] %v4

// kernel: tile.19
$region0: #{tile.19}
  %s0 = inlined_call_operand.vmem [shape: f32[8,14], index: 0, kind: input, shape index: {}]
  %s1 = inlined_call_operand.vmem [shape: f32[1,112], index: 1, kind: output, shape index: {}]
  $region1: #{tile.19} parent=0
    #allocation0 [shape = 'u8[4096]{0}', space=vmem, size = 0x1000, scoped, tag = 'scoped mem for output reshape']
    %v2 = vld [vmem:[%s0] sm:$0x1]
    %vm3 = vcmask 113664
    %4 = vst.msk [vmem:[#allocation0] sm:$0x1] %vm3, %v2
    %s5 = scalar_lea.vmem %s0, 7
    %v6 = vld [vmem:[%s5] sm:$0x1]
    %7 = vrot.lane.b32.xlu0 %v6, 98
    %v8 = vpop.permute.xlu0 %7
    %vm9 = vcmask 917264
    %10 = vst.msk [vmem:[#allocation0] sm:$0x1] %vm9, %v8
    %s11 = scalar_lea.vmem %s0, 6
    %v12 = vld [vmem:[%s11] sm:$0x1]
    %13 = vrot.lane.b32.xlu0 %v12, 84
    %v14 = vpop.permute.xlu0 %13
    %vm15 = vcmask 802464
    %16 = vst.msk [vmem:[#allocation0] sm:$0x1] %vm15, %v14
    %s17 = scalar_lea.vmem %s0, 5
    %v18 = vld [vmem:[%s17] sm:$0x1]
    %19 = vrot.lane.b32.xlu0 %v18, 70
    %v20 = vpop.permute.xlu0 %19
    %vm21 = vcmask 687664
    %22 = vst.msk [vmem:[#allocation0] sm:$0x1] %vm21, %v20
    %s23 = scalar_lea.vmem %s0, 4
    %v24 = vld [vmem:[%s23] sm:$0x1]
    %25 = vrot.lane.b32.xlu0 %v24, 56
    %v26 = vpop.permute.xlu0 %25
    %vm27 = vcmask 572864
    %28 = vst.msk [vmem:[#allocation0] sm:$0x1] %vm27, %v26
    %s29 = scalar_lea.vmem %s0, 3
    %v30 = vld [vmem:[%s29] sm:$0x1]
    %31 = vrot.lane.b32.xlu0 %v30, 42
    %v32 = vpop.permute.xlu0 %31
    %vm33 = vcmask 458064
    %34 = vst.msk [vmem:[#allocation0] sm:$0x1] %vm33, %v32
    %s35 = scalar_lea.vmem %s0, 2
    %v36 = vld [vmem:[%s35] sm:$0x1]
    %37 = vrot.lane.b32.xlu0 %v36, 28
    %v38 = vpop.permute.xlu0 %37
    %vm39 = vcmask 343264
    %40 = vst.msk [vmem:[#allocation0] sm:$0x1] %vm39, %v38
    %s41 = scalar_lea.vmem %s0, 1
    %v42 = vld [vmem:[%s41] sm:$0x1]
    %43 = vrot.lane.b32.xlu0 %v42, 14
    %v44 = vpop.permute.xlu0 %43
    %vm45 = vcmask 228464
    %46 = vst.msk [vmem:[#allocation0] sm:$0x1] %vm45, %v44
    %s48 = sshllo.u32 0, 1
    %v50 = vld [vmem:[#allocation0] sm:%s48]
    %s51 = sshllo.u32 0, 1
    %52 = vst [vmem:[%s1] sm:%s51] %v50

// kernel: down_forward.9
$region0: #{down_forward.9}
  #allocation0 [shape = 'u32[]', space=smem, size = 0x4, offset = 0x4, fixed_abs, tag = 'smem constant byte address 0x4 - core index']
  #allocation1 [shape = 'u32[144,128]{1,0:T(1,128)}', space=vmem, size = 0x12000, scoped, tag = 'internal scratch']
  %s0 = inlined_call_operand.hbm [shape: f32[64,2,16,16], index: 0, kind: input, shape index: {}]
  %s1 = inlined_call_operand.vmem [shape: bf16[64,8,8], index: 1, kind: output, shape index: {}]
  %s2 = sld [smem:[#allocation0]]
  $region41: #{down_forward.9} parent=0
    _
  %s4 = ssub.s32 1, %s2
  %s5 = scalar_select 0, %s4, %s2
  $region1: #{down_forward.9} parent=0
    #allocation2 [shape = 'u8[32768]{0}', space=vmem, size = 0x8000, scoped, tag = 'input window, operand 0']
    #allocation3 [shape = 's32[2]{0}', space=sflag, size = 0x8, scoped, tag = 'scoped memory for down_forward.9']
    %6 = vsyncpa [#allocation3], 0
    %s7 = scalar_lea.sflag [#allocation3], 1
    %8 = vsyncpa %s7, 0
    loop: start=0, step=1, limit=66
    $region2: #{down_forward.9} parent=1 // loop_pre_header
      _
    $region3: #{down_forward.9} parent=1 // loop_header
      %s10 = sphi 0, %s14
      %p11 = scmp.ge.s32.totalorder %s10, 66
      %s17 = sphi 0, %s36
      %s18 = sphi 0, %s32
      %s19 = sphi 0, %s28
      %s20 = sphi 0, %s17
      %s21 = sphi 0, %s18
      %s22 = sphi 0, %s19
      %s23 = sphi 0, %s20
      %s24 = sphi 0, %s21
      %s25 = sphi 0, %s22
      %s47 = sphi 0, %s49
      %s50 = sphi 0, %s47
      %s51 = sphi 0, %s50
      %s67 = sphi 0, %s51
      %s81 = sphi 0, %s83
      %s84 = sphi 0, %s81
      %s85 = sphi 0, %s84
      %s101 = sphi 0, %s85
    $region4: #{down_forward.9} parent=1 // loop_header_branch
      %13 = sbr.rel (%p11) target = $region8
    $region5: #{down_forward.9} parent=1 // loop_body
      %s15 = ssub.s32 %s10, 1
      %s16 = ssub.s32 %s10, 2
      %s26 = sadd.s32 1, %s19
      %p27 = scmp.ge.s32.totalorder %s26, 8
      %s28 = scalar_select %p27, 0, %s26
      %s29 = sadd.s32 1, %s18
      %s30 = scalar_select %p27, %s29, %s18
      %p31 = scmp.ge.s32.totalorder %s30, 4
      %s32 = scalar_select %p31, 0, %s30
      %s33 = sadd.s32 1, %s17
      %s34 = scalar_select %p31, %s33, %s17
      %p35 = scmp.ge.s32.totalorder %s34, 2
      %s36 = scalar_select %p35, 0, %s34
      %s37 = smul.u32 %s17, 4
      %s38 = sadd.s32 %s37, %s18
      %s39 = smul.u32 %s38, 8
      %s40 = sadd.s32 %s39, %s19
      %s41 = smul.u32 %s36, 4
      %s42 = sadd.s32 %s41, %s32
      %s43 = smul.u32 %s42, 8
      %s44 = sadd.s32 %s43, %s28
      %s45 = ssub.s32 %s40, %s44
      %p46 = scmp.eq.s32.totalorder %s45, 0
      %s48 = sadd.s32 %s47, 1
      %s49 = scalar_select %p46, %s47, %s48
      %p52 = pneg %p46
      %p53 = scmp.eq.s32.totalorder %s10, 63
      %p54 = por %p52, %p53
      %p55 = scmp.ne.s32.totalorder %s47, %s50
      %p56 = scmp.eq.s32.totalorder %s10, 0
      %p57 = por %p55, %p56
      %p58 = scmp.ne.s32.totalorder %s47, %s50
      %p59 = scmp.eq.s32.totalorder %s15, 63
      %p60 = por %p58, %p59
      %p61 = scmp.ne.s32.totalorder %s50, %s51
      %p62 = scmp.eq.s32.totalorder %s15, 0
      %p63 = por %p61, %p62
      %p64 = scmp.ne.s32.totalorder %s50, %s51
      %p65 = scmp.eq.s32.totalorder %s16, 63
      %p66 = por %p64, %p65
      %p68 = scmp.ne.s32.totalorder %s51, %s67
      %p69 = scmp.eq.s32.totalorder %s16, 0
      %p70 = por %p68, %p69
      %s71 = smul.u32 %s17, 8
      %s72 = sadd.s32 %s71, %s19
      %s73 = smul.u32 %s72, 4
      %s74 = sadd.s32 %s73, %s18
      %s75 = smul.u32 %s36, 8
      %s76 = sadd.s32 %s75, %s28
      %s77 = smul.u32 %s76, 4
      %s78 = sadd.s32 %s77, %s32
      %s79 = ssub.s32 %s74, %s78
      %p80 = scmp.eq.s32.totalorder %s79, 0
      %s82 = sadd.s32 %s81, 1
      %s83 = scalar_select %p80, %s81, %s82
      %p86 = pneg %p80
      %p87 = scmp.eq.s32.totalorder %s10, 63
      %p88 = por %p86, %p87
      %p89 = scmp.ne.s32.totalorder %s81, %s84
      %p90 = scmp.eq.s32.totalorder %s10, 0
      %p91 = por %p89, %p90
      %p92 = scmp.ne.s32.totalorder %s81, %s84
      %p93 = scmp.eq.s32.totalorder %s15, 63
      %p94 = por %p92, %p93
      %p95 = scmp.ne.s32.totalorder %s84, %s85
      %p96 = scmp.eq.s32.totalorder %s15, 0
      %p97 = por %p95, %p96
      %p98 = scmp.ne.s32.totalorder %s84, %s85
      %p99 = scmp.eq.s32.totalorder %s16, 63
      %p100 = por %p98, %p99
      %p102 = scmp.ne.s32.totalorder %s85, %s101
      %p103 = scmp.eq.s32.totalorder %s16, 0
      %p104 = por %p102, %p103
      %p105 = scmp.le.s32.totalorder 1, %s10
      %p106 = scmp.lt.s32.totalorder %s10, 65
      %p107 = pnand %p105, %p106
      %p108 = pneg %p107
      // Predicated region
      $region9: #{down_forward.9} parent=5 // pred_check
        _
      $region10: #{down_forward.9} parent=5 // pred_check_branch
        %110 = sbr.rel (%p107) target = $region12
      $region11: #{down_forward.9} parent=5 // pred_region
        %s111 = ssub.s32 %s10, 1
      $region12: #{down_forward.9} parent=5 // pred_fallthru
        _
      %p112 = scmp.lt.s32.totalorder %s10, 64
      // Predicated region
      $region13: #{down_forward.9} parent=5 // pred_check
        %p113 = pneg %p112
      $region14: #{down_forward.9} parent=5 // pred_check_branch
        %115 = sbr.rel (%p113) target = $region16
      $region15: #{down_forward.9} parent=5 // pred_region
        // Predicated region
        $region17: #{down_forward.9} parent=15 // pred_check
          %p116 = pneg %p57
        $region18: #{down_forward.9} parent=15 // pred_check_branch
          %118 = sbr.rel (%p116) target = $region20
        $region19: #{down_forward.9} parent=15 // pred_region
          %s119 = sand.u32 %s47, 1
          %s120 = scalar_lea.sflag [#allocation3], %s119
          %s121 = sand.u32 %s47, 1
          %s122 = smul.addr %s121, 32
          %s123 = scalar_lea.vmem [#allocation2], %s122
          %s124 = smul.u32 %s17, 4
          %s125 = sadd.s32 %s124, %s18
          %s126 = smul.u32 %s125, 8
          %s127 = sadd.s32 %s126, %s19
          %s129 = ssub.s32 512, 512
          %130 = vsyncadd %s120, %s129
          %s131 = smul.addr %s127, 4
          %s132 = smul.addr %s131, 128
          %s133 = scalar_lea.hbm %s0, %s132
          %s134 = sshll.u32 %s123, 4
          %s135 = int_to_ptr.vmem [resolvable:$true] %s134
          %140 = dma.hbm_to_vmem [thread:$0]  %s133, 512, %s135, %s120, 128, 128, 8
        $region20: #{down_forward.9} parent=15 // pred_fallthru
          _
      $region16: #{down_forward.9} parent=5 // pred_fallthru
        _
      %p141 = scmp.le.s32.totalorder 1, %s10
      %p142 = scmp.lt.s32.totalorder %s10, 65
      %p143 = pnand %p141, %p142
      %p144 = pneg %p143
      // Predicated region
      $region21: #{down_forward.9} parent=5 // pred_check
        _
      $region22: #{down_forward.9} parent=5 // pred_check_branch
        %146 = sbr.rel (%p143) target = $region24
      $region23: #{down_forward.9} parent=5 // pred_region
        %s147 = ssub.s32 %s10, 1
        %s148 = sand.u32 %s50, 1
        %s149 = scalar_lea.sflag [#allocation3], %s148
        %s150 = sand.u32 %s50, 1
        %s151 = smul.addr %s150, 32
        %s152 = scalar_lea.vmem [#allocation2], %s151
        // Predicated region
        $region25: #{down_forward.9} parent=23 // pred_check
          %p153 = pneg %p63
        $region26: #{down_forward.9} parent=23 // pred_check_branch
          %155 = sbr.rel (%p153) target = $region28
        $region27: #{down_forward.9} parent=23 // pred_region
          %156 = dma.done %s149, 512
        $region28: #{down_forward.9} parent=23 // pred_fallthru
          _
        %s157 = sand.u32 %s50, 1
        %s158 = scalar_lea.sflag [#allocation3], %s157
        %s159 = sand.u32 %s50, 1
        %s160 = smul.addr %s159, 32
        %s161 = scalar_lea.vmem [#allocation2], %s160
        %p162 = pneg %p63
        %p163 = pneg %p60
        %p164 = pneg %p97
        %p165 = pneg %p94
        %s166 = smul.u32 %s20, 8
        %s167 = sadd.s32 %s166, %s22
        %s168 = smul.u32 %s167, 4
        %s169 = sadd.s32 %s168, %s21
        %p170 = scmp.lt.s32.totalorder %s169, 63
        %s171 = scalar_select %p170, %s169, 63
        %s172 = smul.addr %s171, 4
        %s173 = scalar_lea.vmem %s1, %s172
        %s174 = smul.u32 %s20, 4
        %s175 = sadd.s32 %s174, %s21
        %s176 = smul.u32 %s175, 8
        %s177 = sadd.s32 %s176, %s22
        %s178 = smul.u32 %s20, 8
        %s179 = sadd.s32 %s178, %s22
        %s180 = smul.u32 %s179, 4
        %s181 = sadd.s32 %s180, %s21
        %p182 = scmp.lt.s32.totalorder %s181, 63
        %s183 = scalar_select %p182, %s181, 63
        %s184 = smul.addr %s183, 4
        %s185 = scalar_lea.vmem %s1, %s184
        %s186 = smul.u32 %s20, 8
        %s187 = sadd.s32 %s186, %s22
        %s188 = smul.u32 %s187, 4
        %s189 = sadd.s32 %s188, %s21
        %v190 = vld [vmem:[%s152] sm:$0xff]
        %v191 = vld [vmem:[%s152 + $0x8] sm:$0xff]
        %s192 = scalar_lea.vmem %s152, 16 [#allocation2]
        %v193 = vld [vmem:[%s192] sm:$0xff]
        %v194 = vld [vmem:[%s192 + $0x8] sm:$0xff]
        %v195 = vmax.f32 %v190, %v193
        %v196 = vmax.f32 %v191, %v194
        %199 = vrot.lane.b32.xlu0 %v195, 126
        %v200 = vpop.permute.xlu0 %199
        %201 = vrot.lane.b32.xlu0 %v196, 126
        %v202 = vpop.permute.xlu0 %201
        %205 = vrot.lane.b32.xlu0 %v195, 124
        %v206 = vpop.permute.xlu0 %205
        %207 = vrot.lane.b32.xlu0 %v196, 124
        %v208 = vpop.permute.xlu0 %207
        %211 = vrot.lane.b32.xlu0 %v195, 122
        %v212 = vpop.permute.xlu0 %211
        %213 = vrot.lane.b32.xlu0 %v196, 122
        %v214 = vpop.permute.xlu0 %213
        %217 = vrot.lane.b32.xlu0 %v195, 120
        %v218 = vpop.permute.xlu0 %217
        %219 = vrot.lane.b32.xlu0 %v196, 120
        %v220 = vpop.permute.xlu0 %219
        %223 = vrot.lane.b32.xlu0 %v195, 118
        %v224 = vpop.permute.xlu0 %223
        %225 = vrot.lane.b32.xlu0 %v196, 118
        %v226 = vpop.permute.xlu0 %225
        %229 = vrot.lane.b32.xlu0 %v195, 116
        %v230 = vpop.permute.xlu0 %229
        %231 = vrot.lane.b32.xlu0 %v196, 116
        %v232 = vpop.permute.xlu0 %231
        %235 = vrot.lane.b32.xlu0 %v195, 114
        %v236 = vpop.permute.xlu0 %235
        %237 = vrot.lane.b32.xlu0 %v196, 114
        %v238 = vpop.permute.xlu0 %237
        %v241 = vcombine.low %v195, %v206
        %v242 = vcombine.high %v195, %v206
        %v244 = vunpack.c.l.s4 1983009808
        %v245 = vunpack.c.0.s8 %v244
        %v246 = vlaneseq
        %v247 = vshrl.u32 %v246, 7
        %v248 = vsub.s32 %v245, %v247
        %v249 = vrot.slane %v241, %v248
        %v251 = vunpack.c.l.s4 1983009808
        %v252 = vunpack.c.0.s8 %v251
        %v253 = vlaneseq
        %v254 = vshrl.u32 %v253, 7
        %v255 = vsub.s32 %v252, %v254
        %v256 = vrot.slane %v242, %v255
        %v257 = vcombine.low %v200, %v212
        %v258 = vcombine.high %v200, %v212
        %v260 = vunpack.c.l.s4 1983009808
        %v261 = vunpack.c.0.s8 %v260
        %v262 = vlaneseq
        %v263 = vshrl.u32 %v262, 7
        %v264 = vsub.s32 %v261, %v263
        %v265 = vrot.slane %v257, %v264
        %v267 = vunpack.c.l.s4 1983009808
        %v268 = vunpack.c.0.s8 %v267
        %v269 = vlaneseq
        %v270 = vshrl.u32 %v269, 7
        %v271 = vsub.s32 %v268, %v270
        %v272 = vrot.slane %v258, %v271
        %v273 = vcombine.low %v218, %v230
        %v274 = vcombine.high %v218, %v230
        %v276 = vunpack.c.l.s4 1983009808
        %v277 = vunpack.c.0.s8 %v276
        %v278 = vlaneseq
        %v279 = vshrl.u32 %v278, 7
        %v280 = vsub.s32 %v277, %v279
        %v281 = vrot.slane %v273, %v280
        %v283 = vunpack.c.l.s4 1983009808
        %v284 = vunpack.c.0.s8 %v283
        %v285 = vlaneseq
        %v286 = vshrl.u32 %v285, 7
        %v287 = vsub.s32 %v284, %v286
        %v288 = vrot.slane %v274, %v287
        %v289 = vcombine.low %v224, %v236
        %v290 = vcombine.high %v224, %v236
        %v292 = vunpack.c.l.s4 1983009808
        %v293 = vunpack.c.0.s8 %v292
        %v294 = vlaneseq
        %v295 = vshrl.u32 %v294, 7
        %v296 = vsub.s32 %v293, %v295
        %v297 = vrot.slane %v289, %v296
        %v299 = vunpack.c.l.s4 1983009808
        %v300 = vunpack.c.0.s8 %v299
        %v301 = vlaneseq
        %v302 = vshrl.u32 %v301, 7
        %v303 = vsub.s32 %v300, %v302
        %v304 = vrot.slane %v290, %v303
        %v305 = vcombine.low %v249, %v265
        %v306 = vcombine.high %v249, %v265
        %v308 = vunpack.c.l.s4 1934713408
        %v309 = vunpack.c.0.s8 %v308
        %v310 = vlaneseq
        %v311 = vshrl.u32 %v310, 7
        %v312 = vsub.s32 %v309, %v311
        %v313 = vrot.slane %v305, %v312
        %v315 = vunpack.c.l.s4 1934713408
        %v316 = vunpack.c.0.s8 %v315
        %v317 = vlaneseq
        %v318 = vshrl.u32 %v317, 7
        %v319 = vsub.s32 %v316, %v318
        %v320 = vrot.slane %v306, %v319
        %v321 = vcombine.low %v256, %v272
        %v322 = vcombine.high %v256, %v272
        %v324 = vunpack.c.l.s4 1934713408
        %v325 = vunpack.c.0.s8 %v324
        %v326 = vlaneseq
        %v327 = vshrl.u32 %v326, 7
        %v328 = vsub.s32 %v325, %v327
        %v329 = vrot.slane %v321, %v328
        %v331 = vunpack.c.l.s4 1934713408
        %v332 = vunpack.c.0.s8 %v331
        %v333 = vlaneseq
        %v334 = vshrl.u32 %v333, 7
        %v335 = vsub.s32 %v332, %v334
        %v336 = vrot.slane %v322, %v335
        %v337 = vcombine.low %v281, %v297
        %v338 = vcombine.high %v281, %v297
        %v340 = vunpack.c.l.s4 1934713408
        %v341 = vunpack.c.0.s8 %v340
        %v342 = vlaneseq
        %v343 = vshrl.u32 %v342, 7
        %v344 = vsub.s32 %v341, %v343
        %v345 = vrot.slane %v337, %v344
        %v347 = vunpack.c.l.s4 1934713408
        %v348 = vunpack.c.0.s8 %v347
        %v349 = vlaneseq
        %v350 = vshrl.u32 %v349, 7
        %v351 = vsub.s32 %v348, %v350
        %v352 = vrot.slane %v338, %v351
        %v353 = vcombine.low %v288, %v304
        %v354 = vcombine.high %v288, %v304
        %v356 = vunpack.c.l.s4 1934713408
        %v357 = vunpack.c.0.s8 %v356
        %v358 = vlaneseq
        %v359 = vshrl.u32 %v358, 7
        %v360 = vsub.s32 %v357, %v359
        %v361 = vrot.slane %v353, %v360
        %v363 = vunpack.c.l.s4 1934713408
        %v364 = vunpack.c.0.s8 %v363
        %v365 = vlaneseq
        %v366 = vshrl.u32 %v365, 7
        %v367 = vsub.s32 %v364, %v366
        %v368 = vrot.slane %v354, %v367
        %v369 = vcombine.low %v313, %v345
        %v370 = vcombine.high %v313, %v345
        %v371 = vcombine.low %v320, %v352
        %v372 = vcombine.high %v320, %v352
        %v373 = vcombine.low %v329, %v361
        %v374 = vcombine.high %v329, %v361
        %v375 = vcombine.low %v336, %v368
        %v376 = vcombine.high %v336, %v368
        %v377 = vcombine.low %v196, %v208
        %v378 = vcombine.high %v196, %v208
        %v380 = vunpack.c.l.s4 1983009808
        %v381 = vunpack.c.0.s8 %v380
        %v382 = vlaneseq
        %v383 = vshrl.u32 %v382, 7
        %v384 = vsub.s32 %v381, %v383
        %v385 = vrot.slane %v377, %v384
        %v387 = vunpack.c.l.s4 1983009808
        %v388 = vunpack.c.0.s8 %v387
        %v389 = vlaneseq
        %v390 = vshrl.u32 %v389, 7
        %v391 = vsub.s32 %v388, %v390
        %v392 = vrot.slane %v378, %v391
        %v393 = vcombine.low %v202, %v214
        %v394 = vcombine.high %v202, %v214
        %v396 = vunpack.c.l.s4 1983009808
        %v397 = vunpack.c.0.s8 %v396
        %v398 = vlaneseq
        %v399 = vshrl.u32 %v398, 7
        %v400 = vsub.s32 %v397, %v399
        %v401 = vrot.slane %v393, %v400
        %v403 = vunpack.c.l.s4 1983009808
        %v404 = vunpack.c.0.s8 %v403
        %v405 = vlaneseq
        %v406 = vshrl.u32 %v405, 7
        %v407 = vsub.s32 %v404, %v406
        %v408 = vrot.slane %v394, %v407
        %v409 = vcombine.low %v220, %v232
        %v410 = vcombine.high %v220, %v232
        %v412 = vunpack.c.l.s4 1983009808
        %v413 = vunpack.c.0.s8 %v412
        %v414 = vlaneseq
        %v415 = vshrl.u32 %v414, 7
        %v416 = vsub.s32 %v413, %v415
        %v417 = vrot.slane %v409, %v416
        %v419 = vunpack.c.l.s4 1983009808
        %v420 = vunpack.c.0.s8 %v419
        %v421 = vlaneseq
        %v422 = vshrl.u32 %v421, 7
        %v423 = vsub.s32 %v420, %v422
        %v424 = vrot.slane %v410, %v423
        %v425 = vcombine.low %v226, %v238
        %v426 = vcombine.high %v226, %v238
        %v428 = vunpack.c.l.s4 1983009808
        %v429 = vunpack.c.0.s8 %v428
        %v430 = vlaneseq
        %v431 = vshrl.u32 %v430, 7
        %v432 = vsub.s32 %v429, %v431
        %v433 = vrot.slane %v425, %v432
        %v435 = vunpack.c.l.s4 1983009808
        %v436 = vunpack.c.0.s8 %v435
        %v437 = vlaneseq
        %v438 = vshrl.u32 %v437, 7
        %v439 = vsub.s32 %v436, %v438
        %v440 = vrot.slane %v426, %v439
        %v441 = vcombine.low %v385, %v401
        %v442 = vcombine.high %v385, %v401
        %v444 = vunpack.c.l.s4 1934713408
        %v445 = vunpack.c.0.s8 %v444
        %v446 = vlaneseq
        %v447 = vshrl.u32 %v446, 7
        %v448 = vsub.s32 %v445, %v447
        %v449 = vrot.slane %v441, %v448
        %v451 = vunpack.c.l.s4 1934713408
        %v452 = vunpack.c.0.s8 %v451
        %v453 = vlaneseq
        %v454 = vshrl.u32 %v453, 7
        %v455 = vsub.s32 %v452, %v454
        %v456 = vrot.slane %v442, %v455
        %v457 = vcombine.low %v392, %v408
        %v458 = vcombine.high %v392, %v408
        %v460 = vunpack.c.l.s4 1934713408
        %v461 = vunpack.c.0.s8 %v460
        %v462 = vlaneseq
        %v463 = vshrl.u32 %v462, 7
        %v464 = vsub.s32 %v461, %v463
        %v465 = vrot.slane %v457, %v464
        %v467 = vunpack.c.l.s4 1934713408
        %v468 = vunpack.c.0.s8 %v467
        %v469 = vlaneseq
        %v470 = vshrl.u32 %v469, 7
        %v471 = vsub.s32 %v468, %v470
        %v472 = vrot.slane %v458, %v471
        %v473 = vcombine.low %v417, %v433
        %v474 = vcombine.high %v417, %v433
        %v476 = vunpack.c.l.s4 1934713408
        %v477 = vunpack.c.0.s8 %v476
        %v478 = vlaneseq
        %v479 = vshrl.u32 %v478, 7
        %v480 = vsub.s32 %v477, %v479
        %v481 = vrot.slane %v473, %v480
        %v483 = vunpack.c.l.s4 1934713408
        %v484 = vunpack.c.0.s8 %v483
        %v485 = vlaneseq
        %v486 = vshrl.u32 %v485, 7
        %v487 = vsub.s32 %v484, %v486
        %v488 = vrot.slane %v474, %v487
        %v489 = vcombine.low %v424, %v440
        %v490 = vcombine.high %v424, %v440
        %v492 = vunpack.c.l.s4 1934713408
        %v493 = vunpack.c.0.s8 %v492
        %v494 = vlaneseq
        %v495 = vshrl.u32 %v494, 7
        %v496 = vsub.s32 %v493, %v495
        %v497 = vrot.slane %v489, %v496
        %v499 = vunpack.c.l.s4 1934713408
        %v500 = vunpack.c.0.s8 %v499
        %v501 = vlaneseq
        %v502 = vshrl.u32 %v501, 7
        %v503 = vsub.s32 %v500, %v502
        %v504 = vrot.slane %v490, %v503
        %v505 = vcombine.low %v449, %v481
        %v506 = vcombine.high %v449, %v481
        %v507 = vcombine.low %v456, %v488
        %v508 = vcombine.high %v456, %v488
        %v509 = vcombine.low %v465, %v497
        %v510 = vcombine.high %v465, %v497
        %v511 = vcombine.low %v472, %v504
        %v512 = vcombine.high %v472, %v504
        %vm513 = vcmask 15360
        %v514 = vsel %vm513, %v369, -inf
        %515 = vmax.xlane.f32.xlu0 %v514
        %v516 = vpop.xlane.xlu0 %515
        %v517 = vsel %vm513, %v370, -inf
        %518 = vmax.xlane.f32.xlu0 %v517
        %v519 = vpop.xlane.xlu0 %518
        %v520 = vsel %vm513, %v371, -inf
        %521 = vmax.xlane.f32.xlu0 %v520
        %v522 = vpop.xlane.xlu0 %521
        %v523 = vsel %vm513, %v372, -inf
        %524 = vmax.xlane.f32.xlu0 %v523
        %v525 = vpop.xlane.xlu0 %524
        %v526 = vsel %vm513, %v373, -inf
        %527 = vmax.xlane.f32.xlu0 %v526
        %v528 = vpop.xlane.xlu0 %527
        %v529 = vsel %vm513, %v374, -inf
        %530 = vmax.xlane.f32.xlu0 %v529
        %v531 = vpop.xlane.xlu0 %530
        %v532 = vsel %vm513, %v375, -inf
        %533 = vmax.xlane.f32.xlu0 %v532
        %v534 = vpop.xlane.xlu0 %533
        %v535 = vsel %vm513, %v376, -inf
        %536 = vmax.xlane.f32.xlu0 %v535
        %v537 = vpop.xlane.xlu0 %536
        %v538 = vsel %vm513, %v505, -inf
        %539 = vmax.xlane.f32.xlu0 %v538
        %v540 = vpop.xlane.xlu0 %539
        %v541 = vsel %vm513, %v506, -inf
        %542 = vmax.xlane.f32.xlu0 %v541
        %v543 = vpop.xlane.xlu0 %542
        %v544 = vsel %vm513, %v507, -inf
        %545 = vmax.xlane.f32.xlu0 %v544
        %v546 = vpop.xlane.xlu0 %545
        %v547 = vsel %vm513, %v508, -inf
        %548 = vmax.xlane.f32.xlu0 %v547
        %v549 = vpop.xlane.xlu0 %548
        %v550 = vsel %vm513, %v509, -inf
        %551 = vmax.xlane.f32.xlu0 %v550
        %v552 = vpop.xlane.xlu0 %551
        %v553 = vsel %vm513, %v510, -inf
        %554 = vmax.xlane.f32.xlu0 %v553
        %v555 = vpop.xlane.xlu0 %554
        %v556 = vsel %vm513, %v511, -inf
        %557 = vmax.xlane.f32.xlu0 %v556
        %v558 = vpop.xlane.xlu0 %557
        %v559 = vsel %vm513, %v512, -inf
        %560 = vmax.xlane.f32.xlu0 %v559
        %v561 = vpop.xlane.xlu0 %560
        %v562 = vmax.f32 %v516, %v519
        %v563 = vmax.f32 %v522, %v525
        %v564 = vmax.f32 %v528, %v531
        %v565 = vmax.f32 %v534, %v537
        %v566 = vmax.f32 %v540, %v543
        %v567 = vmax.f32 %v546, %v549
        %v568 = vmax.f32 %v552, %v555
        %v569 = vmax.f32 %v558, %v561
        %v570 = vpack.c.bf16 %v562, %v562
        %v571 = vpack.c.bf16 %v563, %v563
        %v572 = vpack.c.bf16 %v564, %v564
        %v573 = vpack.c.bf16 %v565, %v565
        %v574 = vpack.c.bf16 %v566, %v566
        %v575 = vpack.c.bf16 %v567, %v567
        %v576 = vpack.c.bf16 %v568, %v568
        %v577 = vpack.c.bf16 %v569, %v569
        %v587 = vunpack.c.l.s4 839922192
        %v588 = vunpack.c.0.s8 %v587
        %v589 = vlaneseq
        %v590 = vshrl.u32 %v589, 7
        %v591 = vsub.s32 %v588, %v590
        %v592 = vrot.slane %v570, %v591
        %v594 = vunpack.c.l.s4 839922192
        %v595 = vunpack.c.0.s8 %v594
        %v596 = vlaneseq
        %v597 = vshrl.u32 %v596, 7
        %v598 = vsub.s32 %v595, %v597
        %v599 = vrot.slane %v571, %v598
        %v601 = vunpack.c.l.s4 839922192
        %v602 = vunpack.c.0.s8 %v601
        %v603 = vlaneseq
        %v604 = vshrl.u32 %v603, 7
        %v605 = vsub.s32 %v602, %v604
        %v606 = vrot.slane %v572, %v605
        %v608 = vunpack.c.l.s4 839922192
        %v609 = vunpack.c.0.s8 %v608
        %v610 = vlaneseq
        %v611 = vshrl.u32 %v610, 7
        %v612 = vsub.s32 %v609, %v611
        %v613 = vrot.slane %v573, %v612
        %v615 = vunpack.c.l.s4 839922192
        %v616 = vunpack.c.0.s8 %v615
        %v617 = vlaneseq
        %v618 = vshrl.u32 %v617, 7
        %v619 = vsub.s32 %v616, %v618
        %v620 = vrot.slane %v574, %v619
        %v622 = vunpack.c.l.s4 839922192
        %v623 = vunpack.c.0.s8 %v622
        %v624 = vlaneseq
        %v625 = vshrl.u32 %v624, 7
        %v626 = vsub.s32 %v623, %v625
        %v627 = vrot.slane %v575, %v626
        %v629 = vunpack.c.l.s4 839922192
        %v630 = vunpack.c.0.s8 %v629
        %v631 = vlaneseq
        %v632 = vshrl.u32 %v631, 7
        %v633 = vsub.s32 %v630, %v632
        %v634 = vrot.slane %v576, %v633
        %v636 = vunpack.c.l.s4 839922192
        %v637 = vunpack.c.0.s8 %v636
        %v638 = vlaneseq
        %v639 = vshrl.u32 %v638, 7
        %v640 = vsub.s32 %v637, %v639
        %v641 = vrot.slane %v577, %v640
        %v642 = vunpack.c.l.b16 %v592
        %v643 = vunpack.c.l.b16 %v599
        %v644 = vunpack.c.l.b16 %v606
        %v645 = vunpack.c.l.b16 %v613
        %v646 = vunpack.c.l.b16 %v620
        %v647 = vunpack.c.l.b16 %v627
        %v648 = vunpack.c.l.b16 %v634
        %v649 = vunpack.c.l.b16 %v641
        %v650 = vlaneseq
        %v651 = vand.u32 %v650, 127
        %v652 = vlaneseq
        %v653 = vshrl.u32 %v652, 7
        %v654 = vsub.s32 %v651, %v653
        %v655 = vrot.slane %v642, %v654
        %v656 = vlaneseq
        %v657 = vshrl.u32 %v656, 7
        %v658 = vsub.s32 %v651, %v657
        %v659 = vrot.slane %v643, %v658
        %v660 = vlaneseq
        %v661 = vshrl.u32 %v660, 7
        %v662 = vsub.s32 %v651, %v661
        %v663 = vrot.slane %v644, %v662
        %v664 = vlaneseq
        %v665 = vshrl.u32 %v664, 7
        %v666 = vsub.s32 %v651, %v665
        %v667 = vrot.slane %v645, %v666
        %v668 = vlaneseq
        %v669 = vshrl.u32 %v668, 7
        %v670 = vsub.s32 %v651, %v669
        %v671 = vrot.slane %v646, %v670
        %v672 = vlaneseq
        %v673 = vshrl.u32 %v672, 7
        %v674 = vsub.s32 %v651, %v673
        %v675 = vrot.slane %v647, %v674
        %v676 = vlaneseq
        %v677 = vshrl.u32 %v676, 7
        %v678 = vsub.s32 %v651, %v677
        %v679 = vrot.slane %v648, %v678
        %v680 = vlaneseq
        %v681 = vshrl.u32 %v680, 7
        %v682 = vsub.s32 %v651, %v681
        %v683 = vrot.slane %v649, %v682
        %vm684 = vcmask 1041409
        %v685 = vsel %vm684, %v659, %v655
        %vm686 = vcmask 1042434
        %v687 = vsel %vm686, %v663, %v685
        %vm688 = vcmask 1043459
        %v689 = vsel %vm688, %v667, %v687
        %vm690 = vcmask 1044484
        %v691 = vsel %vm690, %v671, %v689
        %vm692 = vcmask 1045509
        %v693 = vsel %vm692, %v675, %v691
        %vm694 = vcmask 1046534
        %v695 = vsel %vm694, %v679, %v693
        %vm696 = vcmask 1047559
        %v697 = vsel %vm696, %v683, %v695
        %v698 = vpack.c.b16 %v697, %v697
        %vm700 = vcmask 60416
        %701 = vst.msk [vmem:[%s185] sm:$0xf] %vm700, %v698
        %s702 = smul.u32 %s20, 8
        %s703 = sadd.s32 %s702, %s22
        %s704 = smul.u32 %s703, 4
        %s705 = sadd.s32 %s704, %s21
        %p706 = scmp.lt.s32.totalorder %s705, 63
        %s707 = scalar_select %p706, %s705, 63
        %s708 = smul.addr %s707, 4
        %s709 = scalar_lea.vmem %s1, %s708
        // Predicated region
        $region29: #{down_forward.9} parent=23 // pred_check
          %p710 = pneg %p94
        $region30: #{down_forward.9} parent=23 // pred_check_branch
          %712 = sbr.rel (%p710) target = $region32
        $region31: #{down_forward.9} parent=23 // pred_region
          %s713 = smul.u32 %s20, 8
          %s714 = sadd.s32 %s713, %s22
          %s715 = smul.u32 %s714, 4
          %s716 = sadd.s32 %s715, %s21
        $region32: #{down_forward.9} parent=23 // pred_fallthru
          _
      $region24: #{down_forward.9} parent=5 // pred_fallthru
        _
      %p717 = scmp.le.s32.totalorder 2, %s10
      // Predicated region
      $region33: #{down_forward.9} parent=5 // pred_check
        %p718 = pneg %p717
      $region34: #{down_forward.9} parent=5 // pred_check_branch
        %720 = sbr.rel (%p718) target = $region36
      $region35: #{down_forward.9} parent=5 // pred_region
        %s721 = ssub.s32 %s10, 2
        // Predicated region
        $region37: #{down_forward.9} parent=35 // pred_check
          %p722 = pneg %p100
        $region38: #{down_forward.9} parent=35 // pred_check_branch
          %724 = sbr.rel (%p722) target = $region40
        $region39: #{down_forward.9} parent=35 // pred_region
          %s725 = smul.u32 %s23, 8
          %s726 = sadd.s32 %s725, %s25
          %s727 = smul.u32 %s726, 4
          %s728 = sadd.s32 %s727, %s24
          %p729 = scmp.lt.s32.totalorder %s728, 63
          %s730 = scalar_select %p729, %s728, 63
          %s731 = smul.addr %s730, 4
          %s732 = scalar_lea.vmem %s1, %s731
        $region40: #{down_forward.9} parent=35 // pred_fallthru
          _
      $region36: #{down_forward.9} parent=5 // pred_fallthru
        _
    $region6: #{down_forward.9} parent=1 // loop_footer
      %s14 = sadd.s32 1, %s10
    $region7: #{down_forward.9} parent=1 // loop_footer_branch
      %9 = sbr.rel target = $region3
    $region8: #{down_forward.9} parent=1 // loop_exit
      _
    %733 = vsyncpa [#allocation3], 1
    %s734 = scalar_lea.sflag [#allocation3], 1
    %735 = vsyncpa %s734, 1

// kernel: down_forward.11
$region0: #{down_forward.11}
  #allocation0 [shape = 'u32[]', space=smem, size = 0x4, offset = 0x4, fixed_abs, tag = 'smem constant byte address 0x4 - core index']
  #allocation1 [shape = 'u32[144,128]{1,0:T(1,128)}', space=vmem, size = 0x12000, scoped, tag = 'internal scratch']
  #allocation2 [shape = 'f32[16,1]{1,0:T(8,128)}', space=vmem, size = 0x2000, scoped, tag = 'scratch operand']
  #allocation3 [shape = 'f32[16,1]{1,0:T(8,128)}', space=vmem, size = 0x2000, scoped, tag = 'scratch operand']
  %s0 = inlined_call_operand.vmem [shape: bf16[16,16,112], index: 0, kind: input, shape index: {}]
  %s1 = inlined_call_operand.vmem [shape: f32[1,112], index: 1, kind: input, shape index: {}]
  %s2 = inlined_call_operand.vmem [shape: f32[2,16,1], index: 2, kind: output, shape index: {0}]
  %s3 = inlined_call_operand.vmem [shape: f32[2,16,1], index: 3, kind: output, shape index: {1}]
  %4 = xla_tuple %s2, %s3
  %s5 = sld [smem:[#allocation0]]
  $region57: #{down_forward.11} parent=0
    _
  %s7 = ssub.s32 1, %s5
  %s8 = scalar_select 0, %s7, %s5
  loop: start=0, step=1, limit=18
  $region2: #{down_forward.11} parent=0 // loop_pre_header
    _
  $region3: #{down_forward.11} parent=0 // loop_header
    %s10 = sphi 0, %s14
    %p11 = scmp.ge.s32.totalorder %s10, 18
    %s17 = sphi 0, %s29
    %s18 = sphi 0, %s25
    %s19 = sphi 0, %s17
    %s20 = sphi 0, %s18
    %s21 = sphi 0, %s19
    %s22 = sphi 0, %s20
    %s36 = sphi 0, %s38
    %s39 = sphi 0, %s36
    %s40 = sphi 0, %s39
    %s56 = sphi 0, %s40
    %s60 = sphi 0, %s60
    %s62 = sphi 0, %s60
    %s63 = sphi 0, %s62
    %s77 = sphi 0, %s63
    %s83 = sphi 0, %s85
    %s86 = sphi 0, %s83
    %s87 = sphi 0, %s86
    %s103 = sphi 0, %s87
    %s109 = sphi 0, %s111
    %s112 = sphi 0, %s109
    %s113 = sphi 0, %s112
    %s129 = sphi 0, %s113
  $region4: #{down_forward.11} parent=0 // loop_header_branch
    %13 = sbr.rel (%p11) target = $region8
  $region5: #{down_forward.11} parent=0 // loop_body
    %s15 = ssub.s32 %s10, 1
    %s16 = ssub.s32 %s10, 2
    %s23 = sadd.s32 1, %s18
    %p24 = scmp.ge.s32.totalorder %s23, 8
    %s25 = scalar_select %p24, 0, %s23
    %s26 = sadd.s32 1, %s17
    %s27 = scalar_select %p24, %s26, %s17
    %p28 = scmp.ge.s32.totalorder %s27, 2
    %s29 = scalar_select %p28, 0, %s27
    %s30 = smul.u32 %s17, 8
    %s31 = sadd.s32 %s30, %s18
    %s32 = smul.u32 %s29, 8
    %s33 = sadd.s32 %s32, %s25
    %s34 = ssub.s32 %s31, %s33
    %p35 = scmp.eq.s32.totalorder %s34, 0
    %s37 = sadd.s32 %s36, 1
    %s38 = scalar_select %p35, %s36, %s37
    %p41 = pneg %p35
    %p42 = scmp.eq.s32.totalorder %s10, 15
    %p43 = por %p41, %p42
    %p44 = scmp.ne.s32.totalorder %s36, %s39
    %p45 = scmp.eq.s32.totalorder %s10, 0
    %p46 = por %p44, %p45
    %p47 = scmp.ne.s32.totalorder %s36, %s39
    %p48 = scmp.eq.s32.totalorder %s15, 15
    %p49 = por %p47, %p48
    %p50 = scmp.ne.s32.totalorder %s39, %s40
    %p51 = scmp.eq.s32.totalorder %s15, 0
    %p52 = por %p50, %p51
    %p53 = scmp.ne.s32.totalorder %s39, %s40
    %p54 = scmp.eq.s32.totalorder %s16, 15
    %p55 = por %p53, %p54
    %p57 = scmp.ne.s32.totalorder %s40, %s56
    %p58 = scmp.eq.s32.totalorder %s16, 0
    %p59 = por %p57, %p58
    %s61 = sadd.s32 %s60, 1
    %p64 = scmp.eq.s32.totalorder %s10, 15
    %p65 = scmp.ne.s32.totalorder %s60, %s62
    %p66 = scmp.eq.s32.totalorder %s10, 0
    %p67 = por %p65, %p66
    %p68 = scmp.ne.s32.totalorder %s60, %s62
    %p69 = scmp.eq.s32.totalorder %s15, 15
    %p70 = por %p68, %p69
    %p71 = scmp.ne.s32.totalorder %s62, %s63
    %p72 = scmp.eq.s32.totalorder %s15, 0
    %p73 = por %p71, %p72
    %p74 = scmp.ne.s32.totalorder %s62, %s63
    %p75 = scmp.eq.s32.totalorder %s16, 15
    %p76 = por %p74, %p75
    %p78 = scmp.ne.s32.totalorder %s63, %s77
    %p79 = scmp.eq.s32.totalorder %s16, 0
    %p80 = por %p78, %p79
    %s81 = ssub.s32 %s17, %s29
    %p82 = scmp.eq.s32.totalorder %s81, 0
    %s84 = sadd.s32 %s83, 1
    %s85 = scalar_select %p82, %s83, %s84
    %p88 = pneg %p82
    %p89 = scmp.eq.s32.totalorder %s10, 15
    %p90 = por %p88, %p89
    %p91 = scmp.ne.s32.totalorder %s83, %s86
    %p92 = scmp.eq.s32.totalorder %s10, 0
    %p93 = por %p91, %p92
    %p94 = scmp.ne.s32.totalorder %s83, %s86
    %p95 = scmp.eq.s32.totalorder %s15, 15
    %p96 = por %p94, %p95
    %p97 = scmp.ne.s32.totalorder %s86, %s87
    %p98 = scmp.eq.s32.totalorder %s15, 0
    %p99 = por %p97, %p98
    %p100 = scmp.ne.s32.totalorder %s86, %s87
    %p101 = scmp.eq.s32.totalorder %s16, 15
    %p102 = por %p100, %p101
    %p104 = scmp.ne.s32.totalorder %s87, %s103
    %p105 = scmp.eq.s32.totalorder %s16, 0
    %p106 = por %p104, %p105
    %s107 = ssub.s32 %s17, %s29
    %p108 = scmp.eq.s32.totalorder %s107, 0
    %s110 = sadd.s32 %s109, 1
    %s111 = scalar_select %p108, %s109, %s110
    %p114 = pneg %p108
    %p115 = scmp.eq.s32.totalorder %s10, 15
    %p116 = por %p114, %p115
    %p117 = scmp.ne.s32.totalorder %s109, %s112
    %p118 = scmp.eq.s32.totalorder %s10, 0
    %p119 = por %p117, %p118
    %p120 = scmp.ne.s32.totalorder %s109, %s112
    %p121 = scmp.eq.s32.totalorder %s15, 15
    %p122 = por %p120, %p121
    %p123 = scmp.ne.s32.totalorder %s112, %s113
    %p124 = scmp.eq.s32.totalorder %s15, 0
    %p125 = por %p123, %p124
    %p126 = scmp.ne.s32.totalorder %s112, %s113
    %p127 = scmp.eq.s32.totalorder %s16, 15
    %p128 = por %p126, %p127
    %p130 = scmp.ne.s32.totalorder %s113, %s129
    %p131 = scmp.eq.s32.totalorder %s16, 0
    %p132 = por %p130, %p131
    %p133 = scmp.le.s32.totalorder 1, %s10
    %p134 = scmp.lt.s32.totalorder %s10, 17
    %p135 = pnand %p133, %p134
    %p136 = pneg %p135
    // Predicated region
    $region9: #{down_forward.11} parent=5 // pred_check
      _
    $region10: #{down_forward.11} parent=5 // pred_check_branch
      %138 = sbr.rel (%p135) target = $region12
    $region11: #{down_forward.11} parent=5 // pred_region
      %s139 = ssub.s32 %s10, 1
      // Predicated region
      $region13: #{down_forward.11} parent=11 // pred_check
        %p140 = pneg %p73
      $region14: #{down_forward.11} parent=11 // pred_check_branch
        %142 = sbr.rel (%p140) target = $region16
      $region15: #{down_forward.11} parent=11 // pred_region
        _
      $region16: #{down_forward.11} parent=11 // pred_fallthru
        _
    $region12: #{down_forward.11} parent=5 // pred_fallthru
      _
    %p143 = scmp.lt.s32.totalorder %s10, 16
    // Predicated region
    $region17: #{down_forward.11} parent=5 // pred_check
      %p144 = pneg %p143
    $region18: #{down_forward.11} parent=5 // pred_check_branch
      %146 = sbr.rel (%p144) target = $region20
    $region19: #{down_forward.11} parent=5 // pred_region
      // Predicated region
      $region21: #{down_forward.11} parent=19 // pred_check
        %p147 = pneg %p46
      $region22: #{down_forward.11} parent=19 // pred_check_branch
        %149 = sbr.rel (%p147) target = $region24
      $region23: #{down_forward.11} parent=19 // pred_region
        %s150 = smul.u32 %s17, 8
        %s151 = sadd.s32 %s150, %s18
        %p152 = scmp.lt.s32.totalorder %s151, 15
        %s153 = scalar_select %p152, %s151, 15
        %s154 = smul.addr %s153, 2
        %s155 = smul.addr %s154, 4
        %s156 = scalar_lea.vmem %s0, %s155
        %s157 = smul.u32 %s17, 8
        %s158 = sadd.s32 %s157, %s18
      $region24: #{down_forward.11} parent=19 // pred_fallthru
        _
    $region20: #{down_forward.11} parent=5 // pred_fallthru
      _
    %p159 = scmp.le.s32.totalorder 1, %s10
    %p160 = scmp.lt.s32.totalorder %s10, 17
    %p161 = pnand %p159, %p160
    %p162 = pneg %p161
    // Predicated region
    $region25: #{down_forward.11} parent=5 // pred_check
      _
    $region26: #{down_forward.11} parent=5 // pred_check_branch
      %164 = sbr.rel (%p161) target = $region28
    $region27: #{down_forward.11} parent=5 // pred_region
      %s165 = ssub.s32 %s10, 1
      %s166 = smul.u32 %s19, 8
      %s167 = sadd.s32 %s166, %s20
      %p168 = scmp.lt.s32.totalorder %s167, 15
      %s169 = scalar_select %p168, %s167, 15
      %s170 = smul.addr %s169, 2
      %s171 = smul.addr %s170, 4
      %s172 = scalar_lea.vmem %s0, %s171
      %p173 = pneg %p52
      %p174 = pneg %p49
      %p175 = pneg %p73
      %p176 = pneg %p70
      %p177 = pneg %p99
      %p178 = pneg %p96
      %p179 = scmp.lt.s32.totalorder %s19, 1
      %s180 = scalar_select %p179, %s19, 1
      %s181 = smul.addr %s180, 2
      %s182 = smul.addr %s181, 8
      %s183 = scalar_lea.vmem %s2, %s182
      %p184 = pneg %p125
      %p185 = pneg %p122
      %p186 = scmp.lt.s32.totalorder %s19, 1
      %s187 = scalar_select %p186, %s19, 1
      %s188 = smul.addr %s187, 2
      %s189 = smul.addr %s188, 8
      %s190 = scalar_lea.vmem %s3, %s189
      %s191 = smul.u32 %s19, 8
      %s192 = sadd.s32 %s191, %s20
      %p193 = scmp.lt.s32.totalorder %s192, 15
      %s194 = scalar_select %p193, %s192, 15
      %s195 = smul.addr %s194, 2
      %s196 = smul.addr %s195, 4
      %s197 = scalar_lea.vmem %s0, %s196
      %s198 = smul.u32 %s19, 8
      %s199 = sadd.s32 %s198, %s20
      %p200 = scmp.lt.s32.totalorder %s19, 1
      %s201 = scalar_select %p200, %s19, 1
      %s202 = smul.addr %s201, 2
      %s203 = smul.addr %s202, 8
      %s204 = scalar_lea.vmem %s2, %s203
      %p205 = scmp.lt.s32.totalorder %s19, 1
      %s206 = scalar_select %p205, %s19, 1
      %s207 = smul.addr %s206, 2
      %s208 = smul.addr %s207, 8
      %s209 = scalar_lea.vmem %s3, %s208
      %p210 = scmp.eq.s32.totalorder %s20, 0
      // Predicated region
      $region29: #{down_forward.11} parent=27 // pred_check
        %p211 = pneg %p210
      $region30: #{down_forward.11} parent=27 // pred_check_branch
        %213 = sbr.rel (%p211) target = $region32
      $region31: #{down_forward.11} parent=27 // pred_region
        %vm214 = vcmask 7168
        %215 = vst.msk [vmem:[#allocation2] sm:$0xff] %vm214, 0.0
        %216 = vst.msk [vmem:[#allocation2 + $0x8] sm:$0xff] %vm214, 0.0
        %217 = vst.msk [vmem:[#allocation3] sm:$0xff] %vm214, 0.0
        %218 = vst.msk [vmem:[#allocation3 + $0x8] sm:$0xff] %vm214, 0.0
      $region32: #{down_forward.11} parent=27 // pred_fallthru
        _
      %v219 = vld [vmem:[%s197] sm:$0xf]
      %v220 = vld [vmem:[%s197 + $0x4] sm:$0xf]
      %v221 = vunpack.c.l.bf16 %v219
      %v222 = vunpack.c.l.bf16 %v220
      %v223 = vld [vmem:[%s1] sm:$0x1]
      %v225 = vlaneseq
      %v226 = vshrl.u32 %v225, 7
      %v227 = vsub.s32 0, %v226
      %v228 = vrot.slane %v223, %v227
      %v230 = vmul.f32 %v221, %v228
      %v231 = vmul.f32 %v222, %v228
      %v232 = vld [vmem:[#allocation2] sm:$0xff]
      %v233 = vld [vmem:[#allocation2 + $0x8] sm:$0xff]
      %vm234 = vcmask 916480
      %v235 = vsel %vm234, %v230, 0.0
      %236 = vadd.xlane.f32.xlu0 %v235
      %v237 = vpop.xlane.xlu0 %236
      %v238 = vsel %vm234, %v231, 0.0
      %239 = vadd.xlane.f32.xlu0 %v238
      %v240 = vpop.xlane.xlu0 %239
      %v241 = vadd.f32 %v232, %v237
      %v242 = vadd.f32 %v233, %v240
      %vm243 = vcmask 7168
      %244 = vst.msk [vmem:[#allocation2] sm:$0xff] %vm243, %v241
      %245 = vst.msk [vmem:[#allocation2 + $0x8] sm:$0xff] %vm243, %v242
      %v246 = vld [vmem:[#allocation3] sm:$0xff]
      %v247 = vld [vmem:[#allocation3 + $0x8] sm:$0xff]
      %v248 = vmul.f32 %v230, %v230
      %v249 = vmul.f32 %v231, %v231
      %v250 = vsel %vm234, %v248, 0.0
      %251 = vadd.xlane.f32.xlu0 %v250
      %v252 = vpop.xlane.xlu0 %251
      %v253 = vsel %vm234, %v249, 0.0
      %254 = vadd.xlane.f32.xlu0 %v253
      %v255 = vpop.xlane.xlu0 %254
      %v256 = vadd.f32 %v246, %v252
      %v257 = vadd.f32 %v247, %v255
      %258 = vst.msk [vmem:[#allocation3] sm:$0xff] %vm243, %v256
      %259 = vst.msk [vmem:[#allocation3 + $0x8] sm:$0xff] %vm243, %v257
      %p260 = scmp.eq.s32.totalorder %s20, 7
      // Predicated region
      $region33: #{down_forward.11} parent=27 // pred_check
        %p261 = pneg %p260
      $region34: #{down_forward.11} parent=27 // pred_check_branch
        %263 = sbr.rel (%p261) target = $region36
      $region35: #{down_forward.11} parent=27 // pred_region
        %v264 = vld [vmem:[#allocation2] sm:$0xff]
        %v265 = vld [vmem:[#allocation2 + $0x8] sm:$0xff]
        %v266 = vmul.f32 %v264, 0.001953125
        %v267 = vmul.f32 %v265, 0.001953125
        %v268 = vld [vmem:[#allocation3] sm:$0xff]
        %v269 = vld [vmem:[#allocation3 + $0x8] sm:$0xff]
        %v270 = vmul.f32 %v268, 0.001953125
        %v271 = vmul.f32 %v269, 0.001953125
        %v272 = vmul.f32 %v266, %v266
        %v273 = vmul.f32 %v267, %v267
        %v274 = vsub.f32 %v270, %v272
        %v275 = vsub.f32 %v271, %v273
        %276 = vst.msk [vmem:[%s204] sm:$0xff] %vm243, %v266
        %277 = vst.msk [vmem:[%s204 + $0x8] sm:$0xff] %vm243, %v267
        %v278 = vadd.f32 %v274, 1e-05
        %v279 = vadd.f32 %v275, 1e-05
        %v280 = vrsqrt.pop %v278
        %v281 = vrsqrt.pop %v279
        %282 = vst.msk [vmem:[%s209] sm:$0xff] %vm243, %v280
        %283 = vst.msk [vmem:[%s209 + $0x8] sm:$0xff] %vm243, %v281
      $region36: #{down_forward.11} parent=27 // pred_fallthru
        _
      %p284 = scmp.lt.s32.totalorder %s19, 1
      %s285 = scalar_select %p284, %s19, 1
      %s286 = smul.addr %s285, 2
      %s287 = smul.addr %s286, 8
      %s288 = scalar_lea.vmem %s2, %s287
      %p289 = scmp.lt.s32.totalorder %s19, 1
      %s290 = scalar_select %p289, %s19, 1
      %s291 = smul.addr %s290, 2
      %s292 = smul.addr %s291, 8
      %s293 = scalar_lea.vmem %s3, %s292
      // Predicated region
      $region37: #{down_forward.11} parent=27 // pred_check
        %p294 = pneg %p96
      $region38: #{down_forward.11} parent=27 // pred_check_branch
        %296 = sbr.rel (%p294) target = $region40
      $region39: #{down_forward.11} parent=27 // pred_region
        _
      $region40: #{down_forward.11} parent=27 // pred_fallthru
        _
      // Predicated region
      $region41: #{down_forward.11} parent=27 // pred_check
        %p297 = pneg %p122
      $region42: #{down_forward.11} parent=27 // pred_check_branch
        %299 = sbr.rel (%p297) target = $region44
      $region43: #{down_forward.11} parent=27 // pred_region
        _
      $region44: #{down_forward.11} parent=27 // pred_fallthru
        _
    $region28: #{down_forward.11} parent=5 // pred_fallthru
      _
    %p300 = scmp.le.s32.totalorder 2, %s10
    // Predicated region
    $region45: #{down_forward.11} parent=5 // pred_check
      %p301 = pneg %p300
    $region46: #{down_forward.11} parent=5 // pred_check_branch
      %303 = sbr.rel (%p301) target = $region48
    $region47: #{down_forward.11} parent=5 // pred_region
      %s304 = ssub.s32 %s10, 2
      // Predicated region
      $region49: #{down_forward.11} parent=47 // pred_check
        %p305 = pneg %p102
      $region50: #{down_forward.11} parent=47 // pred_check_branch
        %307 = sbr.rel (%p305) target = $region52
      $region51: #{down_forward.11} parent=47 // pred_region
        %p308 = scmp.lt.s32.totalorder %s21, 1
        %s309 = scalar_select %p308, %s21, 1
        %s310 = smul.addr %s309, 2
        %s311 = smul.addr %s310, 8
        %s312 = scalar_lea.vmem %s2, %s311
      $region52: #{down_forward.11} parent=47 // pred_fallthru
        _
      // Predicated region
      $region53: #{down_forward.11} parent=47 // pred_check
        %p313 = pneg %p128
      $region54: #{down_forward.11} parent=47 // pred_check_branch
        %315 = sbr.rel (%p313) target = $region56
      $region55: #{down_forward.11} parent=47 // pred_region
        %p316 = scmp.lt.s32.totalorder %s21, 1
        %s317 = scalar_select %p316, %s21, 1
        %s318 = smul.addr %s317, 2
        %s319 = smul.addr %s318, 8
        %s320 = scalar_lea.vmem %s3, %s319
      $region56: #{down_forward.11} parent=47 // pred_fallthru
        _
    $region48: #{down_forward.11} parent=5 // pred_fallthru
      _
  $region6: #{down_forward.11} parent=0 // loop_footer
    %s14 = sadd.s32 1, %s10
  $region7: #{down_forward.11} parent=0 // loop_footer_branch
    %9 = sbr.rel target = $region3
  $region8: #{down_forward.11} parent=0 // loop_exit
    _

// kernel: down_forward.12
$region0: #{down_forward.12}
  #allocation0 [shape = 'u32[]', space=smem, size = 0x4, offset = 0x4, fixed_abs, tag = 'smem constant byte address 0x4 - core index']
  #allocation1 [shape = 'u32[144,128]{1,0:T(1,128)}', space=vmem, size = 0x12000, scoped, tag = 'internal scratch']
  %s0 = inlined_call_operand.vmem [shape: bf16[16,16,112], index: 0, kind: input, shape index: {}]
  %s1 = inlined_call_operand.vmem [shape: f32[2,16,1], index: 1, kind: input, shape index: {}]
  %s2 = inlined_call_operand.vmem [shape: f32[2,16,1], index: 2, kind: input, shape index: {}]
  %s3 = inlined_call_operand.vmem [shape: f32[8,1,112], index: 3, kind: input, shape index: {}]
  %s4 = inlined_call_operand.vmem [shape: f32[8,1,112], index: 4, kind: input, shape index: {}]
  %s5 = inlined_call_operand.vmem [shape: bf16[16,16,112], index: 5, kind: output, shape index: {}]
  %s6 = sld [smem:[#allocation0]]
  $region53: #{down_forward.12} parent=0
    _
  %s8 = ssub.s32 1, %s6
  %s9 = scalar_select 0, %s8, %s6
  loop: start=0, step=1, limit=18
  $region2: #{down_forward.12} parent=0 // loop_pre_header
    _
  $region3: #{down_forward.12} parent=0 // loop_header
    %s11 = sphi 0, %s15
    %p12 = scmp.ge.s32.totalorder %s11, 18
    %s18 = sphi 0, %s30
    %s19 = sphi 0, %s26
    %s20 = sphi 0, %s18
    %s21 = sphi 0, %s19
    %s22 = sphi 0, %s20
    %s23 = sphi 0, %s21
    %s37 = sphi 0, %s39
    %s40 = sphi 0, %s37
    %s41 = sphi 0, %s40
    %s57 = sphi 0, %s41
    %s63 = sphi 0, %s65
    %s66 = sphi 0, %s63
    %s67 = sphi 0, %s66
    %s83 = sphi 0, %s67
    %s89 = sphi 0, %s91
    %s92 = sphi 0, %s89
    %s93 = sphi 0, %s92
    %s109 = sphi 0, %s93
    %s115 = sphi 0, %s117
    %s118 = sphi 0, %s115
    %s119 = sphi 0, %s118
    %s135 = sphi 0, %s119
    %s141 = sphi 0, %s143
    %s144 = sphi 0, %s141
    %s145 = sphi 0, %s144
    %s161 = sphi 0, %s145
    %s171 = sphi 0, %s173
    %s174 = sphi 0, %s171
    %s175 = sphi 0, %s174
    %s191 = sphi 0, %s175
  $region4: #{down_forward.12} parent=0 // loop_header_branch
    %14 = sbr.rel (%p12) target = $region8
  $region5: #{down_forward.12} parent=0 // loop_body
    %s16 = ssub.s32 %s11, 1
    %s17 = ssub.s32 %s11, 2
    %s24 = sadd.s32 1, %s19
    %p25 = scmp.ge.s32.totalorder %s24, 8
    %s26 = scalar_select %p25, 0, %s24
    %s27 = sadd.s32 1, %s18
    %s28 = scalar_select %p25, %s27, %s18
    %p29 = scmp.ge.s32.totalorder %s28, 2
    %s30 = scalar_select %p29, 0, %s28
    %s31 = smul.u32 %s18, 8
    %s32 = sadd.s32 %s31, %s19
    %s33 = smul.u32 %s30, 8
    %s34 = sadd.s32 %s33, %s26
    %s35 = ssub.s32 %s32, %s34
    %p36 = scmp.eq.s32.totalorder %s35, 0
    %s38 = sadd.s32 %s37, 1
    %s39 = scalar_select %p36, %s37, %s38
    %p42 = pneg %p36
    %p43 = scmp.eq.s32.totalorder %s11, 15
    %p44 = por %p42, %p43
    %p45 = scmp.ne.s32.totalorder %s37, %s40
    %p46 = scmp.eq.s32.totalorder %s11, 0
    %p47 = por %p45, %p46
    %p48 = scmp.ne.s32.totalorder %s37, %s40
    %p49 = scmp.eq.s32.totalorder %s16, 15
    %p50 = por %p48, %p49
    %p51 = scmp.ne.s32.totalorder %s40, %s41
    %p52 = scmp.eq.s32.totalorder %s16, 0
    %p53 = por %p51, %p52
    %p54 = scmp.ne.s32.totalorder %s40, %s41
    %p55 = scmp.eq.s32.totalorder %s17, 15
    %p56 = por %p54, %p55
    %p58 = scmp.ne.s32.totalorder %s41, %s57
    %p59 = scmp.eq.s32.totalorder %s17, 0
    %p60 = por %p58, %p59
    %s61 = ssub.s32 %s18, %s30
    %p62 = scmp.eq.s32.totalorder %s61, 0
    %s64 = sadd.s32 %s63, 1
    %s65 = scalar_select %p62, %s63, %s64
    %p68 = pneg %p62
    %p69 = scmp.eq.s32.totalorder %s11, 15
    %p70 = por %p68, %p69
    %p71 = scmp.ne.s32.totalorder %s63, %s66
    %p72 = scmp.eq.s32.totalorder %s11, 0
    %p73 = por %p71, %p72
    %p74 = scmp.ne.s32.totalorder %s63, %s66
    %p75 = scmp.eq.s32.totalorder %s16, 15
    %p76 = por %p74, %p75
    %p77 = scmp.ne.s32.totalorder %s66, %s67
    %p78 = scmp.eq.s32.totalorder %s16, 0
    %p79 = por %p77, %p78
    %p80 = scmp.ne.s32.totalorder %s66, %s67
    %p81 = scmp.eq.s32.totalorder %s17, 15
    %p82 = por %p80, %p81
    %p84 = scmp.ne.s32.totalorder %s67, %s83
    %p85 = scmp.eq.s32.totalorder %s17, 0
    %p86 = por %p84, %p85
    %s87 = ssub.s32 %s18, %s30
    %p88 = scmp.eq.s32.totalorder %s87, 0
    %s90 = sadd.s32 %s89, 1
    %s91 = scalar_select %p88, %s89, %s90
    %p94 = pneg %p88
    %p95 = scmp.eq.s32.totalorder %s11, 15
    %p96 = por %p94, %p95
    %p97 = scmp.ne.s32.totalorder %s89, %s92
    %p98 = scmp.eq.s32.totalorder %s11, 0
    %p99 = por %p97, %p98
    %p100 = scmp.ne.s32.totalorder %s89, %s92
    %p101 = scmp.eq.s32.totalorder %s16, 15
    %p102 = por %p100, %p101
    %p103 = scmp.ne.s32.totalorder %s92, %s93
    %p104 = scmp.eq.s32.totalorder %s16, 0
    %p105 = por %p103, %p104
    %p106 = scmp.ne.s32.totalorder %s92, %s93
    %p107 = scmp.eq.s32.totalorder %s17, 15
    %p108 = por %p106, %p107
    %p110 = scmp.ne.s32.totalorder %s93, %s109
    %p111 = scmp.eq.s32.totalorder %s17, 0
    %p112 = por %p110, %p111
    %s113 = ssub.s32 %s19, %s26
    %p114 = scmp.eq.s32.totalorder %s113, 0
    %s116 = sadd.s32 %s115, 1
    %s117 = scalar_select %p114, %s115, %s116
    %p120 = pneg %p114
    %p121 = scmp.eq.s32.totalorder %s11, 15
    %p122 = por %p120, %p121
    %p123 = scmp.ne.s32.totalorder %s115, %s118
    %p124 = scmp.eq.s32.totalorder %s11, 0
    %p125 = por %p123, %p124
    %p126 = scmp.ne.s32.totalorder %s115, %s118
    %p127 = scmp.eq.s32.totalorder %s16, 15
    %p128 = por %p126, %p127
    %p129 = scmp.ne.s32.totalorder %s118, %s119
    %p130 = scmp.eq.s32.totalorder %s16, 0
    %p131 = por %p129, %p130
    %p132 = scmp.ne.s32.totalorder %s118, %s119
    %p133 = scmp.eq.s32.totalorder %s17, 15
    %p134 = por %p132, %p133
    %p136 = scmp.ne.s32.totalorder %s119, %s135
    %p137 = scmp.eq.s32.totalorder %s17, 0
    %p138 = por %p136, %p137
    %s139 = ssub.s32 %s19, %s26
    %p140 = scmp.eq.s32.totalorder %s139, 0
    %s142 = sadd.s32 %s141, 1
    %s143 = scalar_select %p140, %s141, %s142
    %p146 = pneg %p140
    %p147 = scmp.eq.s32.totalorder %s11, 15
    %p148 = por %p146, %p147
    %p149 = scmp.ne.s32.totalorder %s141, %s144
    %p150 = scmp.eq.s32.totalorder %s11, 0
    %p151 = por %p149, %p150
    %p152 = scmp.ne.s32.totalorder %s141, %s144
    %p153 = scmp.eq.s32.totalorder %s16, 15
    %p154 = por %p152, %p153
    %p155 = scmp.ne.s32.totalorder %s144, %s145
    %p156 = scmp.eq.s32.totalorder %s16, 0
    %p157 = por %p155, %p156
    %p158 = scmp.ne.s32.totalorder %s144, %s145
    %p159 = scmp.eq.s32.totalorder %s17, 15
    %p160 = por %p158, %p159
    %p162 = scmp.ne.s32.totalorder %s145, %s161
    %p163 = scmp.eq.s32.totalorder %s17, 0
    %p164 = por %p162, %p163
    %s165 = smul.u32 %s18, 8
    %s166 = sadd.s32 %s165, %s19
    %s167 = smul.u32 %s30, 8
    %s168 = sadd.s32 %s167, %s26
    %s169 = ssub.s32 %s166, %s168
    %p170 = scmp.eq.s32.totalorder %s169, 0
    %s172 = sadd.s32 %s171, 1
    %s173 = scalar_select %p170, %s171, %s172
    %p176 = pneg %p170
    %p177 = scmp.eq.s32.totalorder %s11, 15
    %p178 = por %p176, %p177
    %p179 = scmp.ne.s32.totalorder %s171, %s174
    %p180 = scmp.eq.s32.totalorder %s11, 0
    %p181 = por %p179, %p180
    %p182 = scmp.ne.s32.totalorder %s171, %s174
    %p183 = scmp.eq.s32.totalorder %s16, 15
    %p184 = por %p182, %p183
    %p185 = scmp.ne.s32.totalorder %s174, %s175
    %p186 = scmp.eq.s32.totalorder %s16, 0
    %p187 = por %p185, %p186
    %p188 = scmp.ne.s32.totalorder %s174, %s175
    %p189 = scmp.eq.s32.totalorder %s17, 15
    %p190 = por %p188, %p189
    %p192 = scmp.ne.s32.totalorder %s175, %s191
    %p193 = scmp.eq.s32.totalorder %s17, 0
    %p194 = por %p192, %p193
    %p195 = scmp.le.s32.totalorder 1, %s11
    %p196 = scmp.lt.s32.totalorder %s11, 17
    %p197 = pnand %p195, %p196
    %p198 = pneg %p197
    // Predicated region
    $region9: #{down_forward.12} parent=5 // pred_check
      _
    $region10: #{down_forward.12} parent=5 // pred_check_branch
      %200 = sbr.rel (%p197) target = $region12
    $region11: #{down_forward.12} parent=5 // pred_region
      %s201 = ssub.s32 %s11, 1
    $region12: #{down_forward.12} parent=5 // pred_fallthru
      _
    %p202 = scmp.lt.s32.totalorder %s11, 16
    // Predicated region
    $region13: #{down_forward.12} parent=5 // pred_check
      %p203 = pneg %p202
    $region14: #{down_forward.12} parent=5 // pred_check_branch
      %205 = sbr.rel (%p203) target = $region16
    $region15: #{down_forward.12} parent=5 // pred_region
      // Predicated region
      $region17: #{down_forward.12} parent=15 // pred_check
        %p206 = pneg %p47
      $region18: #{down_forward.12} parent=15 // pred_check_branch
        %208 = sbr.rel (%p206) target = $region20
      $region19: #{down_forward.12} parent=15 // pred_region
        %s209 = smul.u32 %s18, 8
        %s210 = sadd.s32 %s209, %s19
        %p211 = scmp.lt.s32.totalorder %s210, 15
        %s212 = scalar_select %p211, %s210, 15
        %s213 = smul.addr %s212, 2
        %s214 = smul.addr %s213, 4
        %s215 = scalar_lea.vmem %s0, %s214
        %s216 = smul.u32 %s18, 8
        %s217 = sadd.s32 %s216, %s19
      $region20: #{down_forward.12} parent=15 // pred_fallthru
        _
      // Predicated region
      $region21: #{down_forward.12} parent=15 // pred_check
        %p218 = pneg %p73
      $region22: #{down_forward.12} parent=15 // pred_check_branch
        %220 = sbr.rel (%p218) target = $region24
      $region23: #{down_forward.12} parent=15 // pred_region
        %p221 = scmp.lt.s32.totalorder %s18, 1
        %s222 = scalar_select %p221, %s18, 1
        %s223 = smul.addr %s222, 2
        %s224 = smul.addr %s223, 8
        %s225 = scalar_lea.vmem %s1, %s224
      $region24: #{down_forward.12} parent=15 // pred_fallthru
        _
      // Predicated region
      $region25: #{down_forward.12} parent=15 // pred_check
        %p226 = pneg %p99
      $region26: #{down_forward.12} parent=15 // pred_check_branch
        %228 = sbr.rel (%p226) target = $region28
      $region27: #{down_forward.12} parent=15 // pred_region
        %p229 = scmp.lt.s32.totalorder %s18, 1
        %s230 = scalar_select %p229, %s18, 1
        %s231 = smul.addr %s230, 2
        %s232 = smul.addr %s231, 8
        %s233 = scalar_lea.vmem %s2, %s232
      $region28: #{down_forward.12} parent=15 // pred_fallthru
        _
      // Predicated region
      $region29: #{down_forward.12} parent=15 // pred_check
        %p234 = pneg %p125
      $region30: #{down_forward.12} parent=15 // pred_check_branch
        %236 = sbr.rel (%p234) target = $region32
      $region31: #{down_forward.12} parent=15 // pred_region
        %p237 = scmp.lt.s32.totalorder %s19, 7
        %s238 = scalar_select %p237, %s19, 7
        %s239 = scalar_lea.vmem %s3, %s238
      $region32: #{down_forward.12} parent=15 // pred_fallthru
        _
      // Predicated region
      $region33: #{down_forward.12} parent=15 // pred_check
        %p240 = pneg %p151
      $region34: #{down_forward.12} parent=15 // pred_check_branch
        %242 = sbr.rel (%p240) target = $region36
      $region35: #{down_forward.12} parent=15 // pred_region
        %p243 = scmp.lt.s32.totalorder %s19, 7
        %s244 = scalar_select %p243, %s19, 7
        %s245 = scalar_lea.vmem %s4, %s244
      $region36: #{down_forward.12} parent=15 // pred_fallthru
        _
    $region16: #{down_forward.12} parent=5 // pred_fallthru
      _
    %p246 = scmp.le.s32.totalorder 1, %s11
    %p247 = scmp.lt.s32.totalorder %s11, 17
    %p248 = pnand %p246, %p247
    %p249 = pneg %p248
    // Predicated region
    $region37: #{down_forward.12} parent=5 // pred_check
      _
    $region38: #{down_forward.12} parent=5 // pred_check_branch
      %251 = sbr.rel (%p248) target = $region40
    $region39: #{down_forward.12} parent=5 // pred_region
      %s252 = ssub.s32 %s11, 1
      %s253 = smul.u32 %s20, 8
      %s254 = sadd.s32 %s253, %s21
      %p255 = scmp.lt.s32.totalorder %s254, 15
      %s256 = scalar_select %p255, %s254, 15
      %s257 = smul.addr %s256, 2
      %s258 = smul.addr %s257, 4
      %s259 = scalar_lea.vmem %s0, %s258
      %p260 = pneg %p53
      %p261 = pneg %p50
      %p262 = scmp.lt.s32.totalorder %s20, 1
      %s263 = scalar_select %p262, %s20, 1
      %s264 = smul.addr %s263, 2
      %s265 = smul.addr %s264, 8
      %s266 = scalar_lea.vmem %s1, %s265
      %p267 = pneg %p79
      %p268 = pneg %p76
      %p269 = scmp.lt.s32.totalorder %s20, 1
      %s270 = scalar_select %p269, %s20, 1
      %s271 = smul.addr %s270, 2
      %s272 = smul.addr %s271, 8
      %s273 = scalar_lea.vmem %s2, %s272
      %p274 = pneg %p105
      %p275 = pneg %p102
      %p276 = scmp.lt.s32.totalorder %s21, 7
      %s277 = scalar_select %p276, %s21, 7
      %s278 = scalar_lea.vmem %s3, %s277
      %p279 = pneg %p131
      %p280 = pneg %p128
      %p281 = scmp.lt.s32.totalorder %s21, 7
      %s282 = scalar_select %p281, %s21, 7
      %s283 = scalar_lea.vmem %s4, %s282
      %p284 = pneg %p157
      %p285 = pneg %p154
      %p286 = pneg %p187
      %p287 = pneg %p184
      %s288 = smul.u32 %s20, 8
      %s289 = sadd.s32 %s288, %s21
      %p290 = scmp.lt.s32.totalorder %s289, 15
      %s291 = scalar_select %p290, %s289, 15
      %s292 = smul.addr %s291, 2
      %s293 = smul.addr %s292, 4
      %s294 = scalar_lea.vmem %s5, %s293
      %s295 = smul.u32 %s20, 8
      %s296 = sadd.s32 %s295, %s21
      %p297 = scmp.lt.s32.totalorder %s296, 15
      %s298 = scalar_select %p297, %s296, 15
      %s299 = smul.addr %s298, 2
      %s300 = smul.addr %s299, 4
      %s301 = scalar_lea.vmem %s0, %s300
      %s302 = smul.u32 %s20, 8
      %s303 = sadd.s32 %s302, %s21
      %p304 = scmp.lt.s32.totalorder %s20, 1
      %s305 = scalar_select %p304, %s20, 1
      %s306 = smul.addr %s305, 2
      %s307 = smul.addr %s306, 8
      %s308 = scalar_lea.vmem %s1, %s307
      %p309 = scmp.lt.s32.totalorder %s20, 1
      %s310 = scalar_select %p309, %s20, 1
      %s311 = smul.addr %s310, 2
      %s312 = smul.addr %s311, 8
      %s313 = scalar_lea.vmem %s2, %s312
      %p314 = scmp.lt.s32.totalorder %s21, 7
      %s315 = scalar_select %p314, %s21, 7
      %s316 = scalar_lea.vmem %s3, %s315
      %p317 = scmp.lt.s32.totalorder %s21, 7
      %s318 = scalar_select %p317, %s21, 7
      %s319 = scalar_lea.vmem %s4, %s318
      %s320 = smul.u32 %s20, 8
      %s321 = sadd.s32 %s320, %s21
      %p322 = scmp.lt.s32.totalorder %s321, 15
      %s323 = scalar_select %p322, %s321, 15
      %s324 = smul.addr %s323, 2
      %s325 = smul.addr %s324, 4
      %s326 = scalar_lea.vmem %s5, %s325
      %s327 = smul.u32 %s20, 8
      %s328 = sadd.s32 %s327, %s21
      %v329 = vld [vmem:[%s301] sm:$0xf]
      %v330 = vld [vmem:[%s301 + $0x4] sm:$0xf]
      %v331 = vunpack.c.l.bf16 %v329
      %v332 = vunpack.c.l.bf16 %v330
      %v333 = vld [vmem:[%s308] sm:$0xff]
      %v334 = vld [vmem:[%s308 + $0x8] sm:$0xff]
      %336 = vset.pattern.permute.xlu0 0
      %337 = vperm.xlu0 %336, %v333
      %v338 = vpop.permute.xlu0 %337
      %341 = vset.pattern.permute.xlu0 0
      %342 = vperm.xlu0 %341, %v334
      %v343 = vpop.permute.xlu0 %342
      %v345 = vsub.f32 %v331, %v338
      %v346 = vsub.f32 %v332, %v343
      %v347 = vld [vmem:[%s313] sm:$0xff]
      %v348 = vld [vmem:[%s313 + $0x8] sm:$0xff]
      %350 = vset.pattern.permute.xlu0 0
      %351 = vperm.xlu0 %350, %v347
      %v352 = vpop.permute.xlu0 %351
      %355 = vset.pattern.permute.xlu0 0
      %356 = vperm.xlu0 %355, %v348
      %v357 = vpop.permute.xlu0 %356
      %v359 = vmul.f32 %v345, %v352
      %v360 = vmul.f32 %v346, %v357
      %v361 = vld [vmem:[%s316] sm:$0x1]
      %v363 = vlaneseq
      %v364 = vshrl.u32 %v363, 7
      %v365 = vsub.s32 0, %v364
      %v366 = vrot.slane %v361, %v365
      %v368 = vmul.f32 %v359, %v366
      %v369 = vmul.f32 %v360, %v366
      %v370 = vld [vmem:[%s319] sm:$0x1]
      %v372 = vlaneseq
      %v373 = vshrl.u32 %v372, 7
      %v374 = vsub.s32 0, %v373
      %v375 = vrot.slane %v370, %v374
      %v377 = vadd.f32 %v368, %v375
      %v378 = vadd.f32 %v369, %v375
      %v379 = vmax.f32 %v377, 0.0
      %v380 = vmax.f32 %v378, 0.0
      %v381 = vpack.c.bf16 %v380, %v379
      %v383 = vunpack.c.l.b16 %v381
      %v384 = vunpack.c.h.b16 %v381
      %v385 = vpack.c.b16 %v383, %v383
      %v386 = vpack.c.b16 %v384, %v384
      %vm389 = vcmask 912384
      %390 = vst.msk [vmem:[%s326] sm:$0xf] %vm389, %v385
      %391 = vst.msk [vmem:[%s326 + $0x4] sm:$0xf] %vm389, %v386
      %s392 = smul.u32 %s20, 8
      %s393 = sadd.s32 %s392, %s21
      %p394 = scmp.lt.s32.totalorder %s393, 15
      %s395 = scalar_select %p394, %s393, 15
      %s396 = smul.addr %s395, 2
      %s397 = smul.addr %s396, 4
      %s398 = scalar_lea.vmem %s5, %s397
      // Predicated region
      $region41: #{down_forward.12} parent=39 // pred_check
        %p399 = pneg %p184
      $region42: #{down_forward.12} parent=39 // pred_check_branch
        %401 = sbr.rel (%p399) target = $region44
      $region43: #{down_forward.12} parent=39 // pred_region
        %s402 = smul.u32 %s20, 8
        %s403 = sadd.s32 %s402, %s21
      $region44: #{down_forward.12} parent=39 // pred_fallthru
        _
    $region40: #{down_forward.12} parent=5 // pred_fallthru
      _
    %p404 = scmp.le.s32.totalorder 2, %s11
    // Predicated region
    $region45: #{down_forward.12} parent=5 // pred_check
      %p405 = pneg %p404
    $region46: #{down_forward.12} parent=5 // pred_check_branch
      %407 = sbr.rel (%p405) target = $region48
    $region47: #{down_forward.12} parent=5 // pred_region
      %s408 = ssub.s32 %s11, 2
      // Predicated region
      $region49: #{down_forward.12} parent=47 // pred_check
        %p409 = pneg %p190
      $region50: #{down_forward.12} parent=47 // pred_check_branch
        %411 = sbr.rel (%p409) target = $region52
      $region51: #{down_forward.12} parent=47 // pred_region
        %s412 = smul.u32 %s22, 8
        %s413 = sadd.s32 %s412, %s23
        %p414 = scmp.lt.s32.totalorder %s413, 15
        %s415 = scalar_select %p414, %s413, 15
        %s416 = smul.addr %s415, 2
        %s417 = smul.addr %s416, 4
        %s418 = scalar_lea.vmem %s5, %s417
      $region52: #{down_forward.12} parent=47 // pred_fallthru
        _
    $region48: #{down_forward.12} parent=5 // pred_fallthru
      _
  $region6: #{down_forward.12} parent=0 // loop_footer
    %s15 = sadd.s32 1, %s11
  $region7: #{down_forward.12} parent=0 // loop_footer_branch
    %10 = sbr.rel target = $region3
  $region8: #{down_forward.12} parent=0 // loop_exit
    _

// kernel: down_forward.10
$region0: #{down_forward.10}
  #allocation0 [shape = 'u32[]', space=smem, size = 0x4, offset = 0x4, fixed_abs, tag = 'smem constant byte address 0x4 - core index']
  #allocation1 [shape = 'u32[144,128]{1,0:T(1,128)}', space=vmem, size = 0x12000, scoped, tag = 'internal scratch']
  #allocation2 [shape = 'f32[16,112]{1,0:T(8,128)}', space=vmem, size = 0x2000, scoped, tag = 'scratch operand']
  %s0 = inlined_call_operand.vmem [shape: bf16[28,4,210], index: 0, kind: input, shape index: {}]
  %s1 = inlined_call_operand.vmem [shape: bf16[7,49,16,4], index: 1, kind: input, shape index: {}]
  %s2 = inlined_call_operand.vmem [shape: f32[16,1], index: 2, kind: input, shape index: {}]
  %s3 = inlined_call_operand.vmem [shape: bf16[16,16,112], index: 3, kind: output, shape index: {}]
  %s4 = sld [smem:[#allocation0]]
  $region53: #{down_forward.10} parent=0
    _
  %s6 = ssub.s32 1, %s4
  %s7 = scalar_select 0, %s6, %s4
  loop: start=0, step=1, limit=114
  $region2: #{down_forward.10} parent=0 // loop_pre_header
    _
  $region3: #{down_forward.10} parent=0 // loop_header
    %s9 = sphi 0, %s13
    %p10 = scmp.ge.s32.totalorder %s9, 114
    %s16 = sphi 0, %s35
    %s17 = sphi 0, %s31
    %s18 = sphi 0, %s27
    %s19 = sphi 0, %s16
    %s20 = sphi 0, %s17
    %s21 = sphi 0, %s18
    %s22 = sphi 0, %s19
    %s23 = sphi 0, %s20
    %s24 = sphi 0, %s21
    %s44 = sphi 0, %s46
    %s47 = sphi 0, %s44
    %s48 = sphi 0, %s47
    %s64 = sphi 0, %s48
    %s70 = sphi 0, %s72
    %s73 = sphi 0, %s70
    %s74 = sphi 0, %s73
    %s90 = sphi 0, %s74
    %s94 = sphi 0, %s94
    %s96 = sphi 0, %s94
    %s97 = sphi 0, %s96
    %s111 = sphi 0, %s97
    %s121 = sphi 0, %s123
    %s124 = sphi 0, %s121
    %s125 = sphi 0, %s124
    %s141 = sphi 0, %s125
  $region4: #{down_forward.10} parent=0 // loop_header_branch
    %12 = sbr.rel (%p10) target = $region8
  $region5: #{down_forward.10} parent=0 // loop_body
    %s14 = ssub.s32 %s9, 1
    %s15 = ssub.s32 %s9, 2
    %s25 = sadd.s32 1, %s18
    %p26 = scmp.ge.s32.totalorder %s25, 7
    %s27 = scalar_select %p26, 0, %s25
    %s28 = sadd.s32 1, %s17
    %s29 = scalar_select %p26, %s28, %s17
    %p30 = scmp.ge.s32.totalorder %s29, 8
    %s31 = scalar_select %p30, 0, %s29
    %s32 = sadd.s32 1, %s16
    %s33 = scalar_select %p30, %s32, %s16
    %p34 = scmp.ge.s32.totalorder %s33, 2
    %s35 = scalar_select %p34, 0, %s33
    %s36 = smul.u32 %s16, 14
    %s37 = sadd.s32 %s36, %s17
    %s38 = sadd.s32 %s37, %s18
    %s39 = smul.u32 %s35, 14
    %s40 = sadd.s32 %s39, %s31
    %s41 = sadd.s32 %s40, %s27
    %s42 = ssub.s32 %s38, %s41
    %p43 = scmp.eq.s32.totalorder %s42, 0
    %s45 = sadd.s32 %s44, 1
    %s46 = scalar_select %p43, %s44, %s45
    %p49 = pneg %p43
    %p50 = scmp.eq.s32.totalorder %s9, 111
    %p51 = por %p49, %p50
    %p52 = scmp.ne.s32.totalorder %s44, %s47
    %p53 = scmp.eq.s32.totalorder %s9, 0
    %p54 = por %p52, %p53
    %p55 = scmp.ne.s32.totalorder %s44, %s47
    %p56 = scmp.eq.s32.totalorder %s14, 111
    %p57 = por %p55, %p56
    %p58 = scmp.ne.s32.totalorder %s47, %s48
    %p59 = scmp.eq.s32.totalorder %s14, 0
    %p60 = por %p58, %p59
    %p61 = scmp.ne.s32.totalorder %s47, %s48
    %p62 = scmp.eq.s32.totalorder %s15, 111
    %p63 = por %p61, %p62
    %p65 = scmp.ne.s32.totalorder %s48, %s64
    %p66 = scmp.eq.s32.totalorder %s15, 0
    %p67 = por %p65, %p66
    %s68 = ssub.s32 %s18, %s27
    %p69 = scmp.eq.s32.totalorder %s68, 0
    %s71 = sadd.s32 %s70, 1
    %s72 = scalar_select %p69, %s70, %s71
    %p75 = pneg %p69
    %p76 = scmp.eq.s32.totalorder %s9, 111
    %p77 = por %p75, %p76
    %p78 = scmp.ne.s32.totalorder %s70, %s73
    %p79 = scmp.eq.s32.totalorder %s9, 0
    %p80 = por %p78, %p79
    %p81 = scmp.ne.s32.totalorder %s70, %s73
    %p82 = scmp.eq.s32.totalorder %s14, 111
    %p83 = por %p81, %p82
    %p84 = scmp.ne.s32.totalorder %s73, %s74
    %p85 = scmp.eq.s32.totalorder %s14, 0
    %p86 = por %p84, %p85
    %p87 = scmp.ne.s32.totalorder %s73, %s74
    %p88 = scmp.eq.s32.totalorder %s15, 111
    %p89 = por %p87, %p88
    %p91 = scmp.ne.s32.totalorder %s74, %s90
    %p92 = scmp.eq.s32.totalorder %s15, 0
    %p93 = por %p91, %p92
    %s95 = sadd.s32 %s94, 1
    %p98 = scmp.eq.s32.totalorder %s9, 111
    %p99 = scmp.ne.s32.totalorder %s94, %s96
    %p100 = scmp.eq.s32.totalorder %s9, 0
    %p101 = por %p99, %p100
    %p102 = scmp.ne.s32.totalorder %s94, %s96
    %p103 = scmp.eq.s32.totalorder %s14, 111
    %p104 = por %p102, %p103
    %p105 = scmp.ne.s32.totalorder %s96, %s97
    %p106 = scmp.eq.s32.totalorder %s14, 0
    %p107 = por %p105, %p106
    %p108 = scmp.ne.s32.totalorder %s96, %s97
    %p109 = scmp.eq.s32.totalorder %s15, 111
    %p110 = por %p108, %p109
    %p112 = scmp.ne.s32.totalorder %s97, %s111
    %p113 = scmp.eq.s32.totalorder %s15, 0
    %p114 = por %p112, %p113
    %s115 = smul.u32 %s16, 8
    %s116 = sadd.s32 %s115, %s17
    %s117 = smul.u32 %s35, 8
    %s118 = sadd.s32 %s117, %s31
    %s119 = ssub.s32 %s116, %s118
    %p120 = scmp.eq.s32.totalorder %s119, 0
    %s122 = sadd.s32 %s121, 1
    %s123 = scalar_select %p120, %s121, %s122
    %p126 = pneg %p120
    %p127 = scmp.eq.s32.totalorder %s9, 111
    %p128 = por %p126, %p127
    %p129 = scmp.ne.s32.totalorder %s121, %s124
    %p130 = scmp.eq.s32.totalorder %s9, 0
    %p131 = por %p129, %p130
    %p132 = scmp.ne.s32.totalorder %s121, %s124
    %p133 = scmp.eq.s32.totalorder %s14, 111
    %p134 = por %p132, %p133
    %p135 = scmp.ne.s32.totalorder %s124, %s125
    %p136 = scmp.eq.s32.totalorder %s14, 0
    %p137 = por %p135, %p136
    %p138 = scmp.ne.s32.totalorder %s124, %s125
    %p139 = scmp.eq.s32.totalorder %s15, 111
    %p140 = por %p138, %p139
    %p142 = scmp.ne.s32.totalorder %s125, %s141
    %p143 = scmp.eq.s32.totalorder %s15, 0
    %p144 = por %p142, %p143
    %p145 = scmp.le.s32.totalorder 1, %s9
    %p146 = scmp.lt.s32.totalorder %s9, 113
    %p147 = pnand %p145, %p146
    %p148 = pneg %p147
    // Predicated region
    $region9: #{down_forward.10} parent=5 // pred_check
      _
    $region10: #{down_forward.10} parent=5 // pred_check_branch
      %150 = sbr.rel (%p147) target = $region12
    $region11: #{down_forward.10} parent=5 // pred_region
      %s151 = ssub.s32 %s9, 1
      // Predicated region
      $region13: #{down_forward.10} parent=11 // pred_check
        %p152 = pneg %p107
      $region14: #{down_forward.10} parent=11 // pred_check_branch
        %154 = sbr.rel (%p152) target = $region16
      $region15: #{down_forward.10} parent=11 // pred_region
        _
      $region16: #{down_forward.10} parent=11 // pred_fallthru
        _
    $region12: #{down_forward.10} parent=5 // pred_fallthru
      _
    %p155 = scmp.lt.s32.totalorder %s9, 112
    // Predicated region
    $region17: #{down_forward.10} parent=5 // pred_check
      %p156 = pneg %p155
    $region18: #{down_forward.10} parent=5 // pred_check_branch
      %158 = sbr.rel (%p156) target = $region20
    $region19: #{down_forward.10} parent=5 // pred_region
      // Predicated region
      $region21: #{down_forward.10} parent=19 // pred_check
        %p159 = pneg %p54
      $region22: #{down_forward.10} parent=19 // pred_check_branch
        %161 = sbr.rel (%p159) target = $region24
      $region23: #{down_forward.10} parent=19 // pred_region
        %s162 = smul.u32 %s16, 14
        %s163 = sadd.s32 %s162, %s17
        %s164 = sadd.s32 %s163, %s18
        %p165 = scmp.lt.s32.totalorder %s164, 27
        %s166 = scalar_select %p165, %s164, 27
        %s167 = smul.addr %s166, 2
        %s168 = smul.addr %s167, 2
        %s169 = scalar_lea.vmem %s0, %s168
        %s170 = smul.u32 %s16, 14
        %s171 = sadd.s32 %s170, %s17
        %s172 = sadd.s32 %s171, %s18
      $region24: #{down_forward.10} parent=19 // pred_fallthru
        _
      // Predicated region
      $region25: #{down_forward.10} parent=19 // pred_check
        %p173 = pneg %p80
      $region26: #{down_forward.10} parent=19 // pred_check_branch
        %175 = sbr.rel (%p173) target = $region28
      $region27: #{down_forward.10} parent=19 // pred_region
        %p176 = scmp.lt.s32.totalorder %s18, 6
        %s177 = scalar_select %p176, %s18, 6
        %s178 = smul.addr %s177, 98
        %s179 = smul.addr %s178, 4
        %s180 = scalar_lea.vmem %s1, %s179
      $region28: #{down_forward.10} parent=19 // pred_fallthru
        _
    $region20: #{down_forward.10} parent=5 // pred_fallthru
      _
    %p181 = scmp.le.s32.totalorder 1, %s9
    %p182 = scmp.lt.s32.totalorder %s9, 113
    %p183 = pnand %p181, %p182
    %p184 = pneg %p183
    // Predicated region
    $region29: #{down_forward.10} parent=5 // pred_check
      _
    $region30: #{down_forward.10} parent=5 // pred_check_branch
      %186 = sbr.rel (%p183) target = $region32
    $region31: #{down_forward.10} parent=5 // pred_region
      %s187 = ssub.s32 %s9, 1
      %s188 = smul.u32 %s19, 14
      %s189 = sadd.s32 %s188, %s20
      %s190 = sadd.s32 %s189, %s21
      %p191 = scmp.lt.s32.totalorder %s190, 27
      %s192 = scalar_select %p191, %s190, 27
      %s193 = smul.addr %s192, 2
      %s194 = smul.addr %s193, 2
      %s195 = scalar_lea.vmem %s0, %s194
      %p196 = pneg %p60
      %p197 = pneg %p57
      %p198 = scmp.lt.s32.totalorder %s21, 6
      %s199 = scalar_select %p198, %s21, 6
      %s200 = smul.addr %s199, 98
      %s201 = smul.addr %s200, 4
      %s202 = scalar_lea.vmem %s1, %s201
      %p203 = pneg %p86
      %p204 = pneg %p83
      %p205 = pneg %p107
      %p206 = pneg %p104
      %p207 = pneg %p137
      %p208 = pneg %p134
      %s209 = smul.u32 %s19, 8
      %s210 = sadd.s32 %s209, %s20
      %p211 = scmp.lt.s32.totalorder %s210, 15
      %s212 = scalar_select %p211, %s210, 15
      %s213 = smul.addr %s212, 2
      %s214 = smul.addr %s213, 4
      %s215 = scalar_lea.vmem %s3, %s214
      %s216 = smul.u32 %s19, 14
      %s217 = sadd.s32 %s216, %s20
      %s218 = sadd.s32 %s217, %s21
      %p219 = scmp.lt.s32.totalorder %s218, 27
      %s220 = scalar_select %p219, %s218, 27
      %s221 = smul.addr %s220, 2
      %s222 = smul.addr %s221, 2
      %s223 = scalar_lea.vmem %s0, %s222
      %s224 = smul.u32 %s19, 14
      %s225 = sadd.s32 %s224, %s20
      %s226 = sadd.s32 %s225, %s21
      %p227 = scmp.lt.s32.totalorder %s21, 6
      %s228 = scalar_select %p227, %s21, 6
      %s229 = smul.addr %s228, 98
      %s230 = smul.addr %s229, 4
      %s231 = scalar_lea.vmem %s1, %s230
      %s232 = smul.u32 %s19, 8
      %s233 = sadd.s32 %s232, %s20
      %p234 = scmp.lt.s32.totalorder %s233, 15
      %s235 = scalar_select %p234, %s233, 15
      %s236 = smul.addr %s235, 2
      %s237 = smul.addr %s236, 4
      %s238 = scalar_lea.vmem %s3, %s237
      %s239 = smul.u32 %s19, 8
      %s240 = sadd.s32 %s239, %s20
      %p242 = scmp.eq.s32.totalorder %s21, 0
      // Predicated region
      $region33: #{down_forward.10} parent=31 // pred_check
        %p243 = pneg %p242
      $region34: #{down_forward.10} parent=31 // pred_check_branch
        %245 = sbr.rel (%p243) target = $region36
      $region35: #{down_forward.10} parent=31 // pred_region
        %vm246 = vcmask 916480
        %247 = vst.msk [vmem:[#allocation2] sm:$0xff] %vm246, 0.0
        %248 = vst.msk [vmem:[#allocation2 + $0x8] sm:$0xff] %vm246, 0.0
      $region36: #{down_forward.10} parent=31 // pred_fallthru
        _
      %v249 = vld [vmem:[%s223] sm:$0xf]
      %v250 = vld [vmem:[%s231] sm:$0xf]
      %v251 = vld [vmem:[%s231 + $0x4] sm:$0xf]
      %s252 = scalar_lea.vmem %s231, 8
      %v253 = vld [vmem:[%s252] sm:$0xf]
      %v254 = vld [vmem:[%s252 + $0x4] sm:$0xf]
      %v257 = vunpack.c.l.b16 %v253
      %v258 = vunpack.c.l.b16 %v254
      %v259 = vpack.c.b16 %v258, %v257
      %v262 = vunpack.c.l.s4 1983009808
      %v263 = vunpack.c.0.s8 %v262
      %v264 = vlaneseq
      %v265 = vshrl.u32 %v264, 7
      %v266 = vsub.s32 %v263, %v265
      %v267 = vrot.slane %v249, %v266
      %268 = vrot.lane.b32.xlu0 %v267, 127
      %v269 = vpop.permute.xlu0 %268
      %vm270 = vcmask 31744
      %v272 = vsel %vm270, %v259, 0
      %vm274 = vcmask 1041408
      %v276 = vsel %vm274, %v269, 0
      %278 = vmatprep.subr.bf16.mxu0 0
      %279 = vmatpush1.bf16.msra.mxu0 %v276
      %280 = vmatprep.subr.bf16.mxu0 0
      %281 = vmatpush1.bf16.msra.mxu0 0
      %282 = vmatprep.subr.bf16.mxu0 0
      %283 = vmatpush1.bf16.msra.mxu0 0
      %284 = vmatprep.subr.bf16.mxu0 0
      %285 = vmatpush1.bf16.msra.mxu0 0
      %286 = vmatprep.subr.bf16.mxu0 0
      %287 = vmatpush1.bf16.msra.mxu0 0
      %288 = vmatprep.subr.bf16.mxu0 0
      %289 = vmatpush1.bf16.msra.mxu0 0
      %290 = vmatprep.subr.bf16.mxu0 0
      %291 = vmatpush1.bf16.msra.mxu0 0
      %292 = vmatprep.subr.bf16.mxu0 0
      %293 = vmatpush1.bf16.msra.mxu0 0
      %294 = vmatprep.subr.bf16.mxu0 0
      %295 = vmatpush1.bf16.msra.mxu0 0
      %296 = vmatprep.subr.bf16.mxu0 0
      %297 = vmatpush1.bf16.msra.mxu0 0
      %298 = vmatprep.subr.bf16.mxu0 0
      %299 = vmatpush1.bf16.msra.mxu0 0
      %300 = vmatprep.subr.bf16.mxu0 0
      %301 = vmatpush1.bf16.msra.mxu0 0
      %302 = vmatprep.subr.bf16.mxu0 0
      %303 = vmatpush1.bf16.msra.mxu0 0
      %304 = vmatprep.subr.bf16.mxu0 0
      %305 = vmatpush1.bf16.msra.mxu0 0
      %306 = vmatprep.subr.bf16.mxu0 0
      %307 = vmatpush1.bf16.msra.mxu0 0
      %308 = vmatprep.subr.bf16.mxu0 0
      %309 = vmatpush1.bf16.msra.mxu0 0
      %310 = vmatprep.mubr.bf16.mxu0 0
      %311 = vmatmul.mubr.bf16.gmra.mrb[0].mxu0 %v272
      %v312 = vpop.f32.mrb[0].mxu0
      %v313 = vadd.f32 0.0, %v312
      %v314 = vpop.f32.mrb[0].mxu0
      %v315 = vpop.f32.mrb[0].mxu0
      %v316 = vadd.f32 0.0, %v315
      %v317 = vpop.f32.mrb[0].mxu0
      %318 = vdwg.mxu0
      %v321 = vunpack.c.l.b16 %v250
      %v322 = vunpack.c.l.b16 %v251
      %v323 = vpack.c.b16 %v322, %v321
      %v325 = vsel %vm270, %v323, 0
      %v328 = vsel %vm274, %v249, 0
      %330 = vmatprep.subr.bf16.mxu0 0
      %331 = vmatpush1.bf16.msra.mxu0 %v328
      %332 = vmatprep.subr.bf16.mxu0 0
      %333 = vmatpush1.bf16.msra.mxu0 0
      %334 = vmatprep.subr.bf16.mxu0 0
      %335 = vmatpush1.bf16.msra.mxu0 0
      %336 = vmatprep.subr.bf16.mxu0 0
      %337 = vmatpush1.bf16.msra.mxu0 0
      %338 = vmatprep.subr.bf16.mxu0 0
      %339 = vmatpush1.bf16.msra.mxu0 0
      %340 = vmatprep.subr.bf16.mxu0 0
      %341 = vmatpush1.bf16.msra.mxu0 0
      %342 = vmatprep.subr.bf16.mxu0 0
      %343 = vmatpush1.bf16.msra.mxu0 0
      %344 = vmatprep.subr.bf16.mxu0 0
      %345 = vmatpush1.bf16.msra.mxu0 0
      %346 = vmatprep.subr.bf16.mxu0 0
      %347 = vmatpush1.bf16.msra.mxu0 0
      %348 = vmatprep.subr.bf16.mxu0 0
      %349 = vmatpush1.bf16.msra.mxu0 0
      %350 = vmatprep.subr.bf16.mxu0 0
      %351 = vmatpush1.bf16.msra.mxu0 0
      %352 = vmatprep.subr.bf16.mxu0 0
      %353 = vmatpush1.bf16.msra.mxu0 0
      %354 = vmatprep.subr.bf16.mxu0 0
      %355 = vmatpush1.bf16.msra.mxu0 0
      %356 = vmatprep.subr.bf16.mxu0 0
      %357 = vmatpush1.bf16.msra.mxu0 0
      %358 = vmatprep.subr.bf16.mxu0 0
      %359 = vmatpush1.bf16.msra.mxu0 0
      %360 = vmatprep.subr.bf16.mxu0 0
      %361 = vmatpush1.bf16.msra.mxu0 0
      %362 = vmatprep.mubr.bf16.mxu0 0
      %363 = vmatmul.mubr.bf16.gmra.mrb[0].mxu0 %v325
      %v364 = vpop.f32.mrb[0].mxu0
      %v365 = vadd.f32 %v313, %v364
      %v366 = vpop.f32.mrb[0].mxu0
      %v367 = vpop.f32.mrb[0].mxu0
      %v368 = vadd.f32 %v316, %v367
      %v369 = vpop.f32.mrb[0].mxu0
      %370 = vdwg.mxu0
      %s371 = scalar_lea.vmem %s231, 16
      %v372 = vld [vmem:[%s371] sm:$0xf]
      %v373 = vld [vmem:[%s371 + $0x4] sm:$0xf]
      %v376 = vunpack.c.l.b16 %v372
      %v377 = vunpack.c.l.b16 %v373
      %v378 = vpack.c.b16 %v377, %v376
      %379 = vrot.lane.b32.xlu0 %v267, 126
      %v380 = vpop.permute.xlu0 %379
      %v382 = vsel %vm270, %v378, 0
      %v385 = vsel %vm274, %v380, 0
      %387 = vmatprep.subr.bf16.mxu0 0
      %388 = vmatpush1.bf16.msra.mxu0 %v385
      %389 = vmatprep.subr.bf16.mxu0 0
      %390 = vmatpush1.bf16.msra.mxu0 0
      %391 = vmatprep.subr.bf16.mxu0 0
      %392 = vmatpush1.bf16.msra.mxu0 0
      %393 = vmatprep.subr.bf16.mxu0 0
      %394 = vmatpush1.bf16.msra.mxu0 0
      %395 = vmatprep.subr.bf16.mxu0 0
      %396 = vmatpush1.bf16.msra.mxu0 0
      %397 = vmatprep.subr.bf16.mxu0 0
      %398 = vmatpush1.bf16.msra.mxu0 0
      %399 = vmatprep.subr.bf16.mxu0 0
      %400 = vmatpush1.bf16.msra.mxu0 0
      %401 = vmatprep.subr.bf16.mxu0 0
      %402 = vmatpush1.bf16.msra.mxu0 0
      %403 = vmatprep.subr.bf16.mxu0 0
      %404 = vmatpush1.bf16.msra.mxu0 0
      %405 = vmatprep.subr.bf16.mxu0 0
      %406 = vmatpush1.bf16.msra.mxu0 0
      %407 = vmatprep.subr.bf16.mxu0 0
      %408 = vmatpush1.bf16.msra.mxu0 0
      %409 = vmatprep.subr.bf16.mxu0 0
      %410 = vmatpush1.bf16.msra.mxu0 0
      %411 = vmatprep.subr.bf16.mxu0 0
      %412 = vmatpush1.bf16.msra.mxu0 0
      %413 = vmatprep.subr.bf16.mxu0 0
      %414 = vmatpush1.bf16.msra.mxu0 0
      %415 = vmatprep.subr.bf16.mxu0 0
      %416 = vmatpush1.bf16.msra.mxu0 0
      %417 = vmatprep.subr.bf16.mxu0 0
      %418 = vmatpush1.bf16.msra.mxu0 0
      %419 = vmatprep.mubr.bf16.mxu0 0
      %420 = vmatmul.mubr.bf16.gmra.mrb[0].mxu0 %v382
      %v421 = vpop.f32.mrb[0].mxu0
      %v422 = vadd.f32 0.0, %v421
      %v423 = vpop.f32.mrb[0].mxu0
      %v424 = vpop.f32.mrb[0].mxu0
      %v425 = vadd.f32 0.0, %v424
      %v426 = vpop.f32.mrb[0].mxu0
      %427 = vdwg.mxu0
      %v428 = vadd.f32 %v365, %v422
      %v429 = vadd.f32 %v368, %v425
      %s430 = scalar_lea.vmem %s231, 24
      %v431 = vld [vmem:[%s430] sm:$0xf]
      %v432 = vld [vmem:[%s430 + $0x4] sm:$0xf]
      %v435 = vunpack.c.l.b16 %v431
      %v436 = vunpack.c.l.b16 %v432
      %v437 = vpack.c.b16 %v436, %v435
      %438 = vrot.lane.b32.xlu0 %v267, 125
      %v439 = vpop.permute.xlu0 %438
      %v441 = vsel %vm270, %v437, 0
      %v444 = vsel %vm274, %v439, 0
      %446 = vmatprep.subr.bf16.mxu0 0
      %447 = vmatpush1.bf16.msra.mxu0 %v444
      %448 = vmatprep.subr.bf16.mxu0 0
      %449 = vmatpush1.bf16.msra.mxu0 0
      %450 = vmatprep.subr.bf16.mxu0 0
      %451 = vmatpush1.bf16.msra.mxu0 0
      %452 = vmatprep.subr.bf16.mxu0 0
      %453 = vmatpush1.bf16.msra.mxu0 0
      %454 = vmatprep.subr.bf16.mxu0 0
      %455 = vmatpush1.bf16.msra.mxu0 0
      %456 = vmatprep.subr.bf16.mxu0 0
      %457 = vmatpush1.bf16.msra.mxu0 0
      %458 = vmatprep.subr.bf16.mxu0 0
      %459 = vmatpush1.bf16.msra.mxu0 0
      %460 = vmatprep.subr.bf16.mxu0 0
      %461 = vmatpush1.bf16.msra.mxu0 0
      %462 = vmatprep.subr.bf16.mxu0 0
      %463 = vmatpush1.bf16.msra.mxu0 0
      %464 = vmatprep.subr.bf16.mxu0 0
      %465 = vmatpush1.bf16.msra.mxu0 0
      %466 = vmatprep.subr.bf16.mxu0 0
      %467 = vmatpush1.bf16.msra.mxu0 0
      %468 = vmatprep.subr.bf16.mxu0 0
      %469 = vmatpush1.bf16.msra.mxu0 0
      %470 = vmatprep.subr.bf16.mxu0 0
      %471 = vmatpush1.bf16.msra.mxu0 0
      %472 = vmatprep.subr.bf16.mxu0 0
      %473 = vmatpush1.bf16.msra.mxu0 0
      %474 = vmatprep.subr.bf16.mxu0 0
      %475 = vmatpush1.bf16.msra.mxu0 0
      %476 = vmatprep.subr.bf16.mxu0 0
      %477 = vmatpush1.bf16.msra.mxu0 0
      %478 = vmatprep.mubr.bf16.mxu0 0
      %479 = vmatmul.mubr.bf16.gmra.mrb[0].mxu0 %v441
      %v480 = vpop.f32.mrb[0].mxu0
      %v481 = vadd.f32 0.0, %v480
      %v482 = vpop.f32.mrb[0].mxu0
      %v483 = vpop.f32.mrb[0].mxu0
      %v484 = vadd.f32 0.0, %v483
      %v485 = vpop.f32.mrb[0].mxu0
      %486 = vdwg.mxu0
      %v487 = vadd.f32 %v428, %v481
      %v488 = vadd.f32 %v429, %v484
      %s489 = scalar_lea.vmem %s231, 32
      %v490 = vld [vmem:[%s489] sm:$0xf]
      %v491 = vld [vmem:[%s489 + $0x4] sm:$0xf]
      %v494 = vunpack.c.l.b16 %v490
      %v495 = vunpack.c.l.b16 %v491
      %v496 = vpack.c.b16 %v495, %v494
      %497 = vrot.lane.b32.xlu0 %v267, 124
      %v498 = vpop.permute.xlu0 %497
      %v500 = vsel %vm270, %v496, 0
      %v503 = vsel %vm274, %v498, 0
      %505 = vmatprep.subr.bf16.mxu0 0
      %506 = vmatpush1.bf16.msra.mxu0 %v503
      %507 = vmatprep.subr.bf16.mxu0 0
      %508 = vmatpush1.bf16.msra.mxu0 0
      %509 = vmatprep.subr.bf16.mxu0 0
      %510 = vmatpush1.bf16.msra.mxu0 0
      %511 = vmatprep.subr.bf16.mxu0 0
      %512 = vmatpush1.bf16.msra.mxu0 0
      %513 = vmatprep.subr.bf16.mxu0 0
      %514 = vmatpush1.bf16.msra.mxu0 0
      %515 = vmatprep.subr.bf16.mxu0 0
      %516 = vmatpush1.bf16.msra.mxu0 0
      %517 = vmatprep.subr.bf16.mxu0 0
      %518 = vmatpush1.bf16.msra.mxu0 0
      %519 = vmatprep.subr.bf16.mxu0 0
      %520 = vmatpush1.bf16.msra.mxu0 0
      %521 = vmatprep.subr.bf16.mxu0 0
      %522 = vmatpush1.bf16.msra.mxu0 0
      %523 = vmatprep.subr.bf16.mxu0 0
      %524 = vmatpush1.bf16.msra.mxu0 0
      %525 = vmatprep.subr.bf16.mxu0 0
      %526 = vmatpush1.bf16.msra.mxu0 0
      %527 = vmatprep.subr.bf16.mxu0 0
      %528 = vmatpush1.bf16.msra.mxu0 0
      %529 = vmatprep.subr.bf16.mxu0 0
      %530 = vmatpush1.bf16.msra.mxu0 0
      %531 = vmatprep.subr.bf16.mxu0 0
      %532 = vmatpush1.bf16.msra.mxu0 0
      %533 = vmatprep.subr.bf16.mxu0 0
      %534 = vmatpush1.bf16.msra.mxu0 0
      %535 = vmatprep.subr.bf16.mxu0 0
      %536 = vmatpush1.bf16.msra.mxu0 0
      %537 = vmatprep.mubr.bf16.mxu0 0
      %538 = vmatmul.mubr.bf16.gmra.mrb[0].mxu0 %v500
      %v539 = vpop.f32.mrb[0].mxu0
      %v540 = vadd.f32 0.0, %v539
      %v541 = vpop.f32.mrb[0].mxu0
      %v542 = vpop.f32.mrb[0].mxu0
      %v543 = vadd.f32 0.0, %v542
      %v544 = vpop.f32.mrb[0].mxu0
      %545 = vdwg.mxu0
      %v546 = vadd.f32 %v487, %v540
      %v547 = vadd.f32 %v488, %v543
      %s548 = scalar_lea.vmem %s231, 40
      %v549 = vld [vmem:[%s548] sm:$0xf]
      %v550 = vld [vmem:[%s548 + $0x4] sm:$0xf]
      %v553 = vunpack.c.l.b16 %v549
      %v554 = vunpack.c.l.b16 %v550
      %v555 = vpack.c.b16 %v554, %v553
      %556 = vrot.lane.b32.xlu0 %v267, 123
      %v557 = vpop.permute.xlu0 %556
      %v559 = vsel %vm270, %v555, 0
      %v562 = vsel %vm274, %v557, 0
      %564 = vmatprep.subr.bf16.mxu0 0
      %565 = vmatpush1.bf16.msra.mxu0 %v562
      %566 = vmatprep.subr.bf16.mxu0 0
      %567 = vmatpush1.bf16.msra.mxu0 0
      %568 = vmatprep.subr.bf16.mxu0 0
      %569 = vmatpush1.bf16.msra.mxu0 0
      %570 = vmatprep.subr.bf16.mxu0 0
      %571 = vmatpush1.bf16.msra.mxu0 0
      %572 = vmatprep.subr.bf16.mxu0 0
      %573 = vmatpush1.bf16.msra.mxu0 0
      %574 = vmatprep.subr.bf16.mxu0 0
      %575 = vmatpush1.bf16.msra.mxu0 0
      %576 = vmatprep.subr.bf16.mxu0 0
      %577 = vmatpush1.bf16.msra.mxu0 0
      %578 = vmatprep.subr.bf16.mxu0 0
      %579 = vmatpush1.bf16.msra.mxu0 0
      %580 = vmatprep.subr.bf16.mxu0 0
      %581 = vmatpush1.bf16.msra.mxu0 0
      %582 = vmatprep.subr.bf16.mxu0 0
      %583 = vmatpush1.bf16.msra.mxu0 0
      %584 = vmatprep.subr.bf16.mxu0 0
      %585 = vmatpush1.bf16.msra.mxu0 0
      %586 = vmatprep.subr.bf16.mxu0 0
      %587 = vmatpush1.bf16.msra.mxu0 0
      %588 = vmatprep.subr.bf16.mxu0 0
      %589 = vmatpush1.bf16.msra.mxu0 0
      %590 = vmatprep.subr.bf16.mxu0 0
      %591 = vmatpush1.bf16.msra.mxu0 0
      %592 = vmatprep.subr.bf16.mxu0 0
      %593 = vmatpush1.bf16.msra.mxu0 0
      %594 = vmatprep.subr.bf16.mxu0 0
      %595 = vmatpush1.bf16.msra.mxu0 0
      %596 = vmatprep.mubr.bf16.mxu0 0
      %597 = vmatmul.mubr.bf16.gmra.mrb[0].mxu0 %v559
      %v598 = vpop.f32.mrb[0].mxu0
      %v599 = vadd.f32 0.0, %v598
      %v600 = vpop.f32.mrb[0].mxu0
      %v601 = vpop.f32.mrb[0].mxu0
      %v602 = vadd.f32 0.0, %v601
      %v603 = vpop.f32.mrb[0].mxu0
      %604 = vdwg.mxu0
      %v605 = vadd.f32 %v546, %v599
      %v606 = vadd.f32 %v547, %v602
      %s607 = scalar_lea.vmem %s231, 48
      %v608 = vld [vmem:[%s607] sm:$0xf]
      %v609 = vld [vmem:[%s607 + $0x4] sm:$0xf]
      %v612 = vunpack.c.l.b16 %v608
      %v613 = vunpack.c.l.b16 %v609
      %v614 = vpack.c.b16 %v613, %v612
      %615 = vrot.lane.b32.xlu0 %v267, 122
      %v616 = vpop.permute.xlu0 %615
      %v618 = vsel %vm270, %v614, 0
      %v621 = vsel %vm274, %v616, 0
      %623 = vmatprep.subr.bf16.mxu0 0
      %624 = vmatpush1.bf16.msra.mxu0 %v621
      %625 = vmatprep.subr.bf16.mxu0 0
      %626 = vmatpush1.bf16.msra.mxu0 0
      %627 = vmatprep.subr.bf16.mxu0 0
      %628 = vmatpush1.bf16.msra.mxu0 0
      %629 = vmatprep.subr.bf16.mxu0 0
      %630 = vmatpush1.bf16.msra.mxu0 0
      %631 = vmatprep.subr.bf16.mxu0 0
      %632 = vmatpush1.bf16.msra.mxu0 0
      %633 = vmatprep.subr.bf16.mxu0 0
      %634 = vmatpush1.bf16.msra.mxu0 0
      %635 = vmatprep.subr.bf16.mxu0 0
      %636 = vmatpush1.bf16.msra.mxu0 0
      %637 = vmatprep.subr.bf16.mxu0 0
      %638 = vmatpush1.bf16.msra.mxu0 0
      %639 = vmatprep.subr.bf16.mxu0 0
      %640 = vmatpush1.bf16.msra.mxu0 0
      %641 = vmatprep.subr.bf16.mxu0 0
      %642 = vmatpush1.bf16.msra.mxu0 0
      %643 = vmatprep.subr.bf16.mxu0 0
      %644 = vmatpush1.bf16.msra.mxu0 0
      %645 = vmatprep.subr.bf16.mxu0 0
      %646 = vmatpush1.bf16.msra.mxu0 0
      %647 = vmatprep.subr.bf16.mxu0 0
      %648 = vmatpush1.bf16.msra.mxu0 0
      %649 = vmatprep.subr.bf16.mxu0 0
      %650 = vmatpush1.bf16.msra.mxu0 0
      %651 = vmatprep.subr.bf16.mxu0 0
      %652 = vmatpush1.bf16.msra.mxu0 0
      %653 = vmatprep.subr.bf16.mxu0 0
      %654 = vmatpush1.bf16.msra.mxu0 0
      %655 = vmatprep.mubr.bf16.mxu0 0
      %656 = vmatmul.mubr.bf16.gmra.mrb[0].mxu0 %v618
      %v657 = vpop.f32.mrb[0].mxu0
      %v658 = vadd.f32 0.0, %v657
      %v659 = vpop.f32.mrb[0].mxu0
      %v660 = vpop.f32.mrb[0].mxu0
      %v661 = vadd.f32 0.0, %v660
      %v662 = vpop.f32.mrb[0].mxu0
      %663 = vdwg.mxu0
      %v664 = vadd.f32 %v605, %v658
      %v665 = vadd.f32 %v606, %v661
      %s666 = scalar_lea.vmem %s231, 56
      %v667 = vld [vmem:[%s666] sm:$0xf]
      %v668 = vld [vmem:[%s666 + $0x4] sm:$0xf]
      %v671 = vunpack.c.l.b16 %v667
      %v672 = vunpack.c.l.b16 %v668
      %v673 = vpack.c.b16 %v672, %v671
      %674 = vrot.lane.b32.xlu0 %v267, 114
      %v675 = vpop.permute.xlu0 %674
      %v677 = vsel %vm270, %v673, 0
      %v680 = vsel %vm274, %v675, 0
      %682 = vmatprep.subr.bf16.mxu0 0
      %683 = vmatpush1.bf16.msra.mxu0 %v680
      %684 = vmatprep.subr.bf16.mxu0 0
      %685 = vmatpush1.bf16.msra.mxu0 0
      %686 = vmatprep.subr.bf16.mxu0 0
      %687 = vmatpush1.bf16.msra.mxu0 0
      %688 = vmatprep.subr.bf16.mxu0 0
      %689 = vmatpush1.bf16.msra.mxu0 0
      %690 = vmatprep.subr.bf16.mxu0 0
      %691 = vmatpush1.bf16.msra.mxu0 0
      %692 = vmatprep.subr.bf16.mxu0 0
      %693 = vmatpush1.bf16.msra.mxu0 0
      %694 = vmatprep.subr.bf16.mxu0 0
      %695 = vmatpush1.bf16.msra.mxu0 0
      %696 = vmatprep.subr.bf16.mxu0 0
      %697 = vmatpush1.bf16.msra.mxu0 0
      %698 = vmatprep.subr.bf16.mxu0 0
      %699 = vmatpush1.bf16.msra.mxu0 0
      %700 = vmatprep.subr.bf16.mxu0 0
      %701 = vmatpush1.bf16.msra.mxu0 0
      %702 = vmatprep.subr.bf16.mxu0 0
      %703 = vmatpush1.bf16.msra.mxu0 0
      %704 = vmatprep.subr.bf16.mxu0 0
      %705 = vmatpush1.bf16.msra.mxu0 0
      %706 = vmatprep.subr.bf16.mxu0 0
      %707 = vmatpush1.bf16.msra.mxu0 0
      %708 = vmatprep.subr.bf16.mxu0 0
      %709 = vmatpush1.bf16.msra.mxu0 0
      %710 = vmatprep.subr.bf16.mxu0 0
      %711 = vmatpush1.bf16.msra.mxu0 0
      %712 = vmatprep.subr.bf16.mxu0 0
      %713 = vmatpush1.bf16.msra.mxu0 0
      %714 = vmatprep.mubr.bf16.mxu0 0
      %715 = vmatmul.mubr.bf16.gmra.mrb[0].mxu0 %v677
      %v716 = vpop.f32.mrb[0].mxu0
      %v717 = vadd.f32 0.0, %v716
      %v718 = vpop.f32.mrb[0].mxu0
      %v719 = vpop.f32.mrb[0].mxu0
      %v720 = vadd.f32 0.0, %v719
      %v721 = vpop.f32.mrb[0].mxu0
      %722 = vdwg.mxu0
      %v723 = vadd.f32 %v664, %v717
      %v724 = vadd.f32 %v665, %v720
      %s725 = scalar_lea.vmem %s231, 64
      %v726 = vld [vmem:[%s725] sm:$0xf]
      %v727 = vld [vmem:[%s725 + $0x4] sm:$0xf]
      %v730 = vunpack.c.l.b16 %v726
      %v731 = vunpack.c.l.b16 %v727
      %v732 = vpack.c.b16 %v731, %v730
      %733 = vrot.lane.b32.xlu0 %v267, 113
      %v734 = vpop.permute.xlu0 %733
      %v736 = vsel %vm270, %v732, 0
      %v739 = vsel %vm274, %v734, 0
      %741 = vmatprep.subr.bf16.mxu0 0
      %742 = vmatpush1.bf16.msra.mxu0 %v739
      %743 = vmatprep.subr.bf16.mxu0 0
      %744 = vmatpush1.bf16.msra.mxu0 0
      %745 = vmatprep.subr.bf16.mxu0 0
      %746 = vmatpush1.bf16.msra.mxu0 0
      %747 = vmatprep.subr.bf16.mxu0 0
      %748 = vmatpush1.bf16.msra.mxu0 0
      %749 = vmatprep.subr.bf16.mxu0 0
      %750 = vmatpush1.bf16.msra.mxu0 0
      %751 = vmatprep.subr.bf16.mxu0 0
      %752 = vmatpush1.bf16.msra.mxu0 0
      %753 = vmatprep.subr.bf16.mxu0 0
      %754 = vmatpush1.bf16.msra.mxu0 0
      %755 = vmatprep.subr.bf16.mxu0 0
      %756 = vmatpush1.bf16.msra.mxu0 0
      %757 = vmatprep.subr.bf16.mxu0 0
      %758 = vmatpush1.bf16.msra.mxu0 0
      %759 = vmatprep.subr.bf16.mxu0 0
      %760 = vmatpush1.bf16.msra.mxu0 0
      %761 = vmatprep.subr.bf16.mxu0 0
      %762 = vmatpush1.bf16.msra.mxu0 0
      %763 = vmatprep.subr.bf16.mxu0 0
      %764 = vmatpush1.bf16.msra.mxu0 0
      %765 = vmatprep.subr.bf16.mxu0 0
      %766 = vmatpush1.bf16.msra.mxu0 0
      %767 = vmatprep.subr.bf16.mxu0 0
      %768 = vmatpush1.bf16.msra.mxu0 0
      %769 = vmatprep.subr.bf16.mxu0 0
      %770 = vmatpush1.bf16.msra.mxu0 0
      %771 = vmatprep.subr.bf16.mxu0 0
      %772 = vmatpush1.bf16.msra.mxu0 0
      %773 = vmatprep.mubr.bf16.mxu0 0
      %774 = vmatmul.mubr.bf16.gmra.mrb[0].mxu0 %v736
      %v775 = vpop.f32.mrb[0].mxu0
      %v776 = vadd.f32 0.0, %v775
      %v777 = vpop.f32.mrb[0].mxu0
      %v778 = vpop.f32.mrb[0].mxu0
      %v779 = vadd.f32 0.0, %v778
      %v780 = vpop.f32.mrb[0].mxu0
      %781 = vdwg.mxu0
      %v782 = vadd.f32 %v723, %v776
      %v783 = vadd.f32 %v724, %v779
      %s784 = scalar_lea.vmem %s231, 72
      %v785 = vld [vmem:[%s784] sm:$0xf]
      %v786 = vld [vmem:[%s784 + $0x4] sm:$0xf]
      %v789 = vunpack.c.l.b16 %v785
      %v790 = vunpack.c.l.b16 %v786
      %v791 = vpack.c.b16 %v790, %v789
      %792 = vrot.lane.b32.xlu0 %v267, 112
      %v793 = vpop.permute.xlu0 %792
      %v795 = vsel %vm270, %v791, 0
      %v798 = vsel %vm274, %v793, 0
      %800 = vmatprep.subr.bf16.mxu0 0
      %801 = vmatpush1.bf16.msra.mxu0 %v798
      %802 = vmatprep.subr.bf16.mxu0 0
      %803 = vmatpush1.bf16.msra.mxu0 0
      %804 = vmatprep.subr.bf16.mxu0 0
      %805 = vmatpush1.bf16.msra.mxu0 0
      %806 = vmatprep.subr.bf16.mxu0 0
      %807 = vmatpush1.bf16.msra.mxu0 0
      %808 = vmatprep.subr.bf16.mxu0 0
      %809 = vmatpush1.bf16.msra.mxu0 0
      %810 = vmatprep.subr.bf16.mxu0 0
      %811 = vmatpush1.bf16.msra.mxu0 0
      %812 = vmatprep.subr.bf16.mxu0 0
      %813 = vmatpush1.bf16.msra.mxu0 0
      %814 = vmatprep.subr.bf16.mxu0 0
      %815 = vmatpush1.bf16.msra.mxu0 0
      %816 = vmatprep.subr.bf16.mxu0 0
      %817 = vmatpush1.bf16.msra.mxu0 0
      %818 = vmatprep.subr.bf16.mxu0 0
      %819 = vmatpush1.bf16.msra.mxu0 0
      %820 = vmatprep.subr.bf16.mxu0 0
      %821 = vmatpush1.bf16.msra.mxu0 0
      %822 = vmatprep.subr.bf16.mxu0 0
      %823 = vmatpush1.bf16.msra.mxu0 0
      %824 = vmatprep.subr.bf16.mxu0 0
      %825 = vmatpush1.bf16.msra.mxu0 0
      %826 = vmatprep.subr.bf16.mxu0 0
      %827 = vmatpush1.bf16.msra.mxu0 0
      %828 = vmatprep.subr.bf16.mxu0 0
      %829 = vmatpush1.bf16.msra.mxu0 0
      %830 = vmatprep.subr.bf16.mxu0 0
      %831 = vmatpush1.bf16.msra.mxu0 0
      %832 = vmatprep.mubr.bf16.mxu0 0
      %833 = vmatmul.mubr.bf16.gmra.mrb[0].mxu0 %v795
      %v834 = vpop.f32.mrb[0].mxu0
      %v835 = vadd.f32 0.0, %v834
      %v836 = vpop.f32.mrb[0].mxu0
      %v837 = vpop.f32.mrb[0].mxu0
      %v838 = vadd.f32 0.0, %v837
      %v839 = vpop.f32.mrb[0].mxu0
      %840 = vdwg.mxu0
      %v841 = vadd.f32 %v782, %v835
      %v842 = vadd.f32 %v783, %v838
      %s843 = scalar_lea.vmem %s231, 80
      %v844 = vld [vmem:[%s843] sm:$0xf]
      %v845 = vld [vmem:[%s843 + $0x4] sm:$0xf]
      %v848 = vunpack.c.l.b16 %v844
      %v849 = vunpack.c.l.b16 %v845
      %v850 = vpack.c.b16 %v849, %v848
      %v851 = vcombine.high %v267, %v267
      %852 = vrot.lane.b32.xlu0 %v267, 111
      %v853 = vpop.permute.xlu0 %852
      %854 = vrot.lane.b32.xlu0 %v851, 111
      %v855 = vpop.permute.xlu0 %854
      %vm856 = vcmask 908288
      %v857 = vsel %vm856, %v853, %v855
      %v859 = vsel %vm270, %v850, 0
      %v862 = vsel %vm274, %v857, 0
      %864 = vmatprep.subr.bf16.mxu0 0
      %865 = vmatpush1.bf16.msra.mxu0 %v862
      %866 = vmatprep.subr.bf16.mxu0 0
      %867 = vmatpush1.bf16.msra.mxu0 0
      %868 = vmatprep.subr.bf16.mxu0 0
      %869 = vmatpush1.bf16.msra.mxu0 0
      %870 = vmatprep.subr.bf16.mxu0 0
      %871 = vmatpush1.bf16.msra.mxu0 0
      %872 = vmatprep.subr.bf16.mxu0 0
      %873 = vmatpush1.bf16.msra.mxu0 0
      %874 = vmatprep.subr.bf16.mxu0 0
      %875 = vmatpush1.bf16.msra.mxu0 0
      %876 = vmatprep.subr.bf16.mxu0 0
      %877 = vmatpush1.bf16.msra.mxu0 0
      %878 = vmatprep.subr.bf16.mxu0 0
      %879 = vmatpush1.bf16.msra.mxu0 0
      %880 = vmatprep.subr.bf16.mxu0 0
      %881 = vmatpush1.bf16.msra.mxu0 0
      %882 = vmatprep.subr.bf16.mxu0 0
      %883 = vmatpush1.bf16.msra.mxu0 0
      %884 = vmatprep.subr.bf16.mxu0 0
      %885 = vmatpush1.bf16.msra.mxu0 0
      %886 = vmatprep.subr.bf16.mxu0 0
      %887 = vmatpush1.bf16.msra.mxu0 0
      %888 = vmatprep.subr.bf16.mxu0 0
      %889 = vmatpush1.bf16.msra.mxu0 0
      %890 = vmatprep.subr.bf16.mxu0 0
      %891 = vmatpush1.bf16.msra.mxu0 0
      %892 = vmatprep.subr.bf16.mxu0 0
      %893 = vmatpush1.bf16.msra.mxu0 0
      %894 = vmatprep.subr.bf16.mxu0 0
      %895 = vmatpush1.bf16.msra.mxu0 0
      %896 = vmatprep.mubr.bf16.mxu0 0
      %897 = vmatmul.mubr.bf16.gmra.mrb[0].mxu0 %v859
      %v898 = vpop.f32.mrb[0].mxu0
      %v899 = vadd.f32 0.0, %v898
      %v900 = vpop.f32.mrb[0].mxu0
      %v901 = vpop.f32.mrb[0].mxu0
      %v902 = vadd.f32 0.0, %v901
      %v903 = vpop.f32.mrb[0].mxu0
      %904 = vdwg.mxu0
      %v905 = vadd.f32 %v841, %v899
      %v906 = vadd.f32 %v842, %v902
      %s907 = scalar_lea.vmem %s231, 88
      %v908 = vld [vmem:[%s907] sm:$0xf]
      %v909 = vld [vmem:[%s907 + $0x4] sm:$0xf]
      %v912 = vunpack.c.l.b16 %v908
      %v913 = vunpack.c.l.b16 %v909
      %v914 = vpack.c.b16 %v913, %v912
      %915 = vrot.lane.b32.xlu0 %v267, 110
      %v916 = vpop.permute.xlu0 %915
      %917 = vrot.lane.b32.xlu0 %v851, 110
      %v918 = vpop.permute.xlu0 %917
      %vm919 = vcmask 900096
      %v920 = vsel %vm919, %v916, %v918
      %v922 = vsel %vm270, %v914, 0
      %v925 = vsel %vm274, %v920, 0
      %927 = vmatprep.subr.bf16.mxu0 0
      %928 = vmatpush1.bf16.msra.mxu0 %v925
      %929 = vmatprep.subr.bf16.mxu0 0
      %930 = vmatpush1.bf16.msra.mxu0 0
      %931 = vmatprep.subr.bf16.mxu0 0
      %932 = vmatpush1.bf16.msra.mxu0 0
      %933 = vmatprep.subr.bf16.mxu0 0
      %934 = vmatpush1.bf16.msra.mxu0 0
      %935 = vmatprep.subr.bf16.mxu0 0
      %936 = vmatpush1.bf16.msra.mxu0 0
      %937 = vmatprep.subr.bf16.mxu0 0
      %938 = vmatpush1.bf16.msra.mxu0 0
      %939 = vmatprep.subr.bf16.mxu0 0
      %940 = vmatpush1.bf16.msra.mxu0 0
      %941 = vmatprep.subr.bf16.mxu0 0
      %942 = vmatpush1.bf16.msra.mxu0 0
      %943 = vmatprep.subr.bf16.mxu0 0
      %944 = vmatpush1.bf16.msra.mxu0 0
      %945 = vmatprep.subr.bf16.mxu0 0
      %946 = vmatpush1.bf16.msra.mxu0 0
      %947 = vmatprep.subr.bf16.mxu0 0
      %948 = vmatpush1.bf16.msra.mxu0 0
      %949 = vmatprep.subr.bf16.mxu0 0
      %950 = vmatpush1.bf16.msra.mxu0 0
      %951 = vmatprep.subr.bf16.mxu0 0
      %952 = vmatpush1.bf16.msra.mxu0 0
      %953 = vmatprep.subr.bf16.mxu0 0
      %954 = vmatpush1.bf16.msra.mxu0 0
      %955 = vmatprep.subr.bf16.mxu0 0
      %956 = vmatpush1.bf16.msra.mxu0 0
      %957 = vmatprep.subr.bf16.mxu0 0
      %958 = vmatpush1.bf16.msra.mxu0 0
      %959 = vmatprep.mubr.bf16.mxu0 0
      %960 = vmatmul.mubr.bf16.gmra.mrb[0].mxu0 %v922
      %v961 = vpop.f32.mrb[0].mxu0
      %v962 = vadd.f32 0.0, %v961
      %v963 = vpop.f32.mrb[0].mxu0
      %v964 = vpop.f32.mrb[0].mxu0
      %v965 = vadd.f32 0.0, %v964
      %v966 = vpop.f32.mrb[0].mxu0
      %967 = vdwg.mxu0
      %v968 = vadd.f32 %v905, %v962
      %v969 = vadd.f32 %v906, %v965
      %s970 = scalar_lea.vmem %s231, 96
      %v971 = vld [vmem:[%s970] sm:$0xf]
      %v972 = vld [vmem:[%s970 + $0x4] sm:$0xf]
      %v975 = vunpack.c.l.b16 %v971
      %v976 = vunpack.c.l.b16 %v972
      %v977 = vpack.c.b16 %v976, %v975
      %978 = vrot.lane.b32.xlu0 %v267, 109
      %v979 = vpop.permute.xlu0 %978
      %980 = vrot.lane.b32.xlu0 %v851, 109
      %v981 = vpop.permute.xlu0 %980
      %vm982 = vcmask 891904
      %v983 = vsel %vm982, %v979, %v981
      %v985 = vsel %vm270, %v977, 0
      %v988 = vsel %vm274, %v983, 0
      %990 = vmatprep.subr.bf16.mxu0 0
      %991 = vmatpush1.bf16.msra.mxu0 %v988
      %992 = vmatprep.subr.bf16.mxu0 0
      %993 = vmatpush1.bf16.msra.mxu0 0
      %994 = vmatprep.subr.bf16.mxu0 0
      %995 = vmatpush1.bf16.msra.mxu0 0
      %996 = vmatprep.subr.bf16.mxu0 0
      %997 = vmatpush1.bf16.msra.mxu0 0
      %998 = vmatprep.subr.bf16.mxu0 0
      %999 = vmatpush1.bf16.msra.mxu0 0
      %1000 = vmatprep.subr.bf16.mxu0 0
      %1001 = vmatpush1.bf16.msra.mxu0 0
      %1002 = vmatprep.subr.bf16.mxu0 0
      %1003 = vmatpush1.bf16.msra.mxu0 0
      %1004 = vmatprep.subr.bf16.mxu0 0
      %1005 = vmatpush1.bf16.msra.mxu0 0
      %1006 = vmatprep.subr.bf16.mxu0 0
      %1007 = vmatpush1.bf16.msra.mxu0 0
      %1008 = vmatprep.subr.bf16.mxu0 0
      %1009 = vmatpush1.bf16.msra.mxu0 0
      %1010 = vmatprep.subr.bf16.mxu0 0
      %1011 = vmatpush1.bf16.msra.mxu0 0
      %1012 = vmatprep.subr.bf16.mxu0 0
      %1013 = vmatpush1.bf16.msra.mxu0 0
      %1014 = vmatprep.subr.bf16.mxu0 0
      %1015 = vmatpush1.bf16.msra.mxu0 0
      %1016 = vmatprep.subr.bf16.mxu0 0
      %1017 = vmatpush1.bf16.msra.mxu0 0
      %1018 = vmatprep.subr.bf16.mxu0 0
      %1019 = vmatpush1.bf16.msra.mxu0 0
      %1020 = vmatprep.subr.bf16.mxu0 0
      %1021 = vmatpush1.bf16.msra.mxu0 0
      %1022 = vmatprep.mubr.bf16.mxu0 0
      %1023 = vmatmul.mubr.bf16.gmra.mrb[0].mxu0 %v985
      %v1024 = vpop.f32.mrb[0].mxu0
      %v1025 = vadd.f32 0.0, %v1024
      %v1026 = vpop.f32.mrb[0].mxu0
      %v1027 = vpop.f32.mrb[0].mxu0
      %v1028 = vadd.f32 0.0, %v1027
      %v1029 = vpop.f32.mrb[0].mxu0
      %1030 = vdwg.mxu0
      %v1031 = vadd.f32 %v968, %v1025
      %v1032 = vadd.f32 %v969, %v1028
      %s1033 = scalar_lea.vmem %s231, 104
      %v1034 = vld [vmem:[%s1033] sm:$0xf]
      %v1035 = vld [vmem:[%s1033 + $0x4] sm:$0xf]
      %v1038 = vunpack.c.l.b16 %v1034
      %v1039 = vunpack.c.l.b16 %v1035
      %v1040 = vpack.c.b16 %v1039, %v1038
      %1041 = vrot.lane.b32.xlu0 %v267, 108
      %v1042 = vpop.permute.xlu0 %1041
      %1043 = vrot.lane.b32.xlu0 %v851, 108
      %v1044 = vpop.permute.xlu0 %1043
      %vm1045 = vcmask 883712
      %v1046 = vsel %vm1045, %v1042, %v1044
      %v1048 = vsel %vm270, %v1040, 0
      %v1051 = vsel %vm274, %v1046, 0
      %1053 = vmatprep.subr.bf16.mxu0 0
      %1054 = vmatpush1.bf16.msra.mxu0 %v1051
      %1055 = vmatprep.subr.bf16.mxu0 0
      %1056 = vmatpush1.bf16.msra.mxu0 0
      %1057 = vmatprep.subr.bf16.mxu0 0
      %1058 = vmatpush1.bf16.msra.mxu0 0
      %1059 = vmatprep.subr.bf16.mxu0 0
      %1060 = vmatpush1.bf16.msra.mxu0 0
      %1061 = vmatprep.subr.bf16.mxu0 0
      %1062 = vmatpush1.bf16.msra.mxu0 0
      %1063 = vmatprep.subr.bf16.mxu0 0
      %1064 = vmatpush1.bf16.msra.mxu0 0
      %1065 = vmatprep.subr.bf16.mxu0 0
      %1066 = vmatpush1.bf16.msra.mxu0 0
      %1067 = vmatprep.subr.bf16.mxu0 0
      %1068 = vmatpush1.bf16.msra.mxu0 0
      %1069 = vmatprep.subr.bf16.mxu0 0
      %1070 = vmatpush1.bf16.msra.mxu0 0
      %1071 = vmatprep.subr.bf16.mxu0 0
      %1072 = vmatpush1.bf16.msra.mxu0 0
      %1073 = vmatprep.subr.bf16.mxu0 0
      %1074 = vmatpush1.bf16.msra.mxu0 0
      %1075 = vmatprep.subr.bf16.mxu0 0
      %1076 = vmatpush1.bf16.msra.mxu0 0
      %1077 = vmatprep.subr.bf16.mxu0 0
      %1078 = vmatpush1.bf16.msra.mxu0 0
      %1079 = vmatprep.subr.bf16.mxu0 0
      %1080 = vmatpush1.bf16.msra.mxu0 0
      %1081 = vmatprep.subr.bf16.mxu0 0
      %1082 = vmatpush1.bf16.msra.mxu0 0
      %1083 = vmatprep.subr.bf16.mxu0 0
      %1084 = vmatpush1.bf16.msra.mxu0 0
      %1085 = vmatprep.mubr.bf16.mxu0 0
      %1086 = vmatmul.mubr.bf16.gmra.mrb[0].mxu0 %v1048
      %v1087 = vpop.f32.mrb[0].mxu0
      %v1088 = vadd.f32 0.0, %v1087
      %v1089 = vpop.f32.mrb[0].mxu0
      %v1090 = vpop.f32.mrb[0].mxu0
      %v1091 = vadd.f32 0.0, %v1090
      %v1092 = vpop.f32.mrb[0].mxu0
      %1093 = vdwg.mxu0
      %v1094 = vadd.f32 %v1031, %v1088
      %v1095 = vadd.f32 %v1032, %v1091
      %s1096 = scalar_lea.vmem %s231, 112
      %v1097 = vld [vmem:[%s1096] sm:$0xf]
      %v1098 = vld [vmem:[%s1096 + $0x4] sm:$0xf]
      %v1101 = vunpack.c.l.b16 %v1097
      %v1102 = vunpack.c.l.b16 %v1098
      %v1103 = vpack.c.b16 %v1102, %v1101
      %1104 = vrot.lane.b32.xlu0 %v267, 100
      %v1105 = vpop.permute.xlu0 %1104
      %1106 = vrot.lane.b32.xlu0 %v851, 100
      %v1107 = vpop.permute.xlu0 %1106
      %vm1108 = vcmask 818176
      %v1109 = vsel %vm1108, %v1105, %v1107
      %v1111 = vsel %vm270, %v1103, 0
      %v1114 = vsel %vm274, %v1109, 0
      %1116 = vmatprep.subr.bf16.mxu0 0
      %1117 = vmatpush1.bf16.msra.mxu0 %v1114
      %1118 = vmatprep.subr.bf16.mxu0 0
      %1119 = vmatpush1.bf16.msra.mxu0 0
      %1120 = vmatprep.subr.bf16.mxu0 0
      %1121 = vmatpush1.bf16.msra.mxu0 0
      %1122 = vmatprep.subr.bf16.mxu0 0
      %1123 = vmatpush1.bf16.msra.mxu0 0
      %1124 = vmatprep.subr.bf16.mxu0 0
      %1125 = vmatpush1.bf16.msra.mxu0 0
      %1126 = vmatprep.subr.bf16.mxu0 0
      %1127 = vmatpush1.bf16.msra.mxu0 0
      %1128 = vmatprep.subr.bf16.mxu0 0
      %1129 = vmatpush1.bf16.msra.mxu0 0
      %1130 = vmatprep.subr.bf16.mxu0 0
      %1131 = vmatpush1.bf16.msra.mxu0 0
      %1132 = vmatprep.subr.bf16.mxu0 0
      %1133 = vmatpush1.bf16.msra.mxu0 0
      %1134 = vmatprep.subr.bf16.mxu0 0
      %1135 = vmatpush1.bf16.msra.mxu0 0
      %1136 = vmatprep.subr.bf16.mxu0 0
      %1137 = vmatpush1.bf16.msra.mxu0 0
      %1138 = vmatprep.subr.bf16.mxu0 0
      %1139 = vmatpush1.bf16.msra.mxu0 0
      %1140 = vmatprep.subr.bf16.mxu0 0
      %1141 = vmatpush1.bf16.msra.mxu0 0
      %1142 = vmatprep.subr.bf16.mxu0 0
      %1143 = vmatpush1.bf16.msra.mxu0 0
      %1144 = vmatprep.subr.bf16.mxu0 0
      %1145 = vmatpush1.bf16.msra.mxu0 0
      %1146 = vmatprep.subr.bf16.mxu0 0
      %1147 = vmatpush1.bf16.msra.mxu0 0
      %1148 = vmatprep.mubr.bf16.mxu0 0
      %1149 = vmatmul.mubr.bf16.gmra.mrb[0].mxu0 %v1111
      %v1150 = vpop.f32.mrb[0].mxu0
      %v1151 = vadd.f32 0.0, %v1150
      %v1152 = vpop.f32.mrb[0].mxu0
      %v1153 = vpop.f32.mrb[0].mxu0
      %v1154 = vadd.f32 0.0, %v1153
      %v1155 = vpop.f32.mrb[0].mxu0
      %1156 = vdwg.mxu0
      %v1157 = vadd.f32 %v1094, %v1151
      %v1158 = vadd.f32 %v1095, %v1154
      %s1159 = scalar_lea.vmem %s231, 120
      %v1160 = vld [vmem:[%s1159] sm:$0xf]
      %v1161 = vld [vmem:[%s1159 + $0x4] sm:$0xf]
      %v1164 = vunpack.c.l.b16 %v1160
      %v1165 = vunpack.c.l.b16 %v1161
      %v1166 = vpack.c.b16 %v1165, %v1164
      %1167 = vrot.lane.b32.xlu0 %v267, 99
      %v1168 = vpop.permute.xlu0 %1167
      %1169 = vrot.lane.b32.xlu0 %v851, 99
      %v1170 = vpop.permute.xlu0 %1169
      %vm1171 = vcmask 809984
      %v1172 = vsel %vm1171, %v1168, %v1170
      %v1174 = vsel %vm270, %v1166, 0
      %v1177 = vsel %vm274, %v1172, 0
      %1179 = vmatprep.subr.bf16.mxu0 0
      %1180 = vmatpush1.bf16.msra.mxu0 %v1177
      %1181 = vmatprep.subr.bf16.mxu0 0
      %1182 = vmatpush1.bf16.msra.mxu0 0
      %1183 = vmatprep.subr.bf16.mxu0 0
      %1184 = vmatpush1.bf16.msra.mxu0 0
      %1185 = vmatprep.subr.bf16.mxu0 0
      %1186 = vmatpush1.bf16.msra.mxu0 0
      %1187 = vmatprep.subr.bf16.mxu0 0
      %1188 = vmatpush1.bf16.msra.mxu0 0
      %1189 = vmatprep.subr.bf16.mxu0 0
      %1190 = vmatpush1.bf16.msra.mxu0 0
      %1191 = vmatprep.subr.bf16.mxu0 0
      %1192 = vmatpush1.bf16.msra.mxu0 0
      %1193 = vmatprep.subr.bf16.mxu0 0
      %1194 = vmatpush1.bf16.msra.mxu0 0
      %1195 = vmatprep.subr.bf16.mxu0 0
      %1196 = vmatpush1.bf16.msra.mxu0 0
      %1197 = vmatprep.subr.bf16.mxu0 0
      %1198 = vmatpush1.bf16.msra.mxu0 0
      %1199 = vmatprep.subr.bf16.mxu0 0
      %1200 = vmatpush1.bf16.msra.mxu0 0
      %1201 = vmatprep.subr.bf16.mxu0 0
      %1202 = vmatpush1.bf16.msra.mxu0 0
      %1203 = vmatprep.subr.bf16.mxu0 0
      %1204 = vmatpush1.bf16.msra.mxu0 0
      %1205 = vmatprep.subr.bf16.mxu0 0
      %1206 = vmatpush1.bf16.msra.mxu0 0
      %1207 = vmatprep.subr.bf16.mxu0 0
      %1208 = vmatpush1.bf16.msra.mxu0 0
      %1209 = vmatprep.subr.bf16.mxu0 0
      %1210 = vmatpush1.bf16.msra.mxu0 0
      %1211 = vmatprep.mubr.bf16.mxu0 0
      %1212 = vmatmul.mubr.bf16.gmra.mrb[0].mxu0 %v1174
      %v1213 = vpop.f32.mrb[0].mxu0
      %v1214 = vadd.f32 0.0, %v1213
      %v1215 = vpop.f32.mrb[0].mxu0
      %v1216 = vpop.f32.mrb[0].mxu0
      %v1217 = vadd.f32 0.0, %v1216
      %v1218 = vpop.f32.mrb[0].mxu0
      %1219 = vdwg.mxu0
      %v1220 = vadd.f32 %v1157, %v1214
      %v1221 = vadd.f32 %v1158, %v1217
      %s1222 = scalar_lea.vmem %s231, 128
      %v1223 = vld [vmem:[%s1222] sm:$0xf]
      %v1224 = vld [vmem:[%s1222 + $0x4] sm:$0xf]
      %v1227 = vunpack.c.l.b16 %v1223
      %v1228 = vunpack.c.l.b16 %v1224
      %v1229 = vpack.c.b16 %v1228, %v1227
      %1230 = vrot.lane.b32.xlu0 %v267, 98
      %v1231 = vpop.permute.xlu0 %1230
      %1232 = vrot.lane.b32.xlu0 %v851, 98
      %v1233 = vpop.permute.xlu0 %1232
      %vm1234 = vcmask 801792
      %v1235 = vsel %vm1234, %v1231, %v1233
      %v1237 = vsel %vm270, %v1229, 0
      %v1240 = vsel %vm274, %v1235, 0
      %1242 = vmatprep.subr.bf16.mxu0 0
      %1243 = vmatpush1.bf16.msra.mxu0 %v1240
      %1244 = vmatprep.subr.bf16.mxu0 0
      %1245 = vmatpush1.bf16.msra.mxu0 0
      %1246 = vmatprep.subr.bf16.mxu0 0
      %1247 = vmatpush1.bf16.msra.mxu0 0
      %1248 = vmatprep.subr.bf16.mxu0 0
      %1249 = vmatpush1.bf16.msra.mxu0 0
      %1250 = vmatprep.subr.bf16.mxu0 0
      %1251 = vmatpush1.bf16.msra.mxu0 0
      %1252 = vmatprep.subr.bf16.mxu0 0
      %1253 = vmatpush1.bf16.msra.mxu0 0
      %1254 = vmatprep.subr.bf16.mxu0 0
      %1255 = vmatpush1.bf16.msra.mxu0 0
      %1256 = vmatprep.subr.bf16.mxu0 0
      %1257 = vmatpush1.bf16.msra.mxu0 0
      %1258 = vmatprep.subr.bf16.mxu0 0
      %1259 = vmatpush1.bf16.msra.mxu0 0
      %1260 = vmatprep.subr.bf16.mxu0 0
      %1261 = vmatpush1.bf16.msra.mxu0 0
      %1262 = vmatprep.subr.bf16.mxu0 0
      %1263 = vmatpush1.bf16.msra.mxu0 0
      %1264 = vmatprep.subr.bf16.mxu0 0
      %1265 = vmatpush1.bf16.msra.mxu0 0
      %1266 = vmatprep.subr.bf16.mxu0 0
      %1267 = vmatpush1.bf16.msra.mxu0 0
      %1268 = vmatprep.subr.bf16.mxu0 0
      %1269 = vmatpush1.bf16.msra.mxu0 0
      %1270 = vmatprep.subr.bf16.mxu0 0
      %1271 = vmatpush1.bf16.msra.mxu0 0
      %1272 = vmatprep.subr.bf16.mxu0 0
      %1273 = vmatpush1.bf16.msra.mxu0 0
      %1274 = vmatprep.mubr.bf16.mxu0 0
      %1275 = vmatmul.mubr.bf16.gmra.mrb[0].mxu0 %v1237
      %v1276 = vpop.f32.mrb[0].mxu0
      %v1277 = vadd.f32 0.0, %v1276
      %v1278 = vpop.f32.mrb[0].mxu0
      %v1279 = vpop.f32.mrb[0].mxu0
      %v1280 = vadd.f32 0.0, %v1279
      %v1281 = vpop.f32.mrb[0].mxu0
      %1282 = vdwg.mxu0
      %v1283 = vadd.f32 %v1220, %v1277
      %v1284 = vadd.f32 %v1221, %v1280
      %s1285 = scalar_lea.vmem %s231, 136
      %v1286 = vld [vmem:[%s1285] sm:$0xf]
      %v1287 = vld [vmem:[%s1285 + $0x4] sm:$0xf]
      %v1290 = vunpack.c.l.b16 %v1286
      %v1291 = vunpack.c.l.b16 %v1287
      %v1292 = vpack.c.b16 %v1291, %v1290
      %1293 = vrot.lane.b32.xlu0 %v267, 97
      %v1294 = vpop.permute.xlu0 %1293
      %1295 = vrot.lane.b32.xlu0 %v851, 97
      %v1296 = vpop.permute.xlu0 %1295
      %vm1297 = vcmask 793600
      %v1298 = vsel %vm1297, %v1294, %v1296
      %v1300 = vsel %vm270, %v1292, 0
      %v1303 = vsel %vm274, %v1298, 0
      %1305 = vmatprep.subr.bf16.mxu0 0
      %1306 = vmatpush1.bf16.msra.mxu0 %v1303
      %1307 = vmatprep.subr.bf16.mxu0 0
      %1308 = vmatpush1.bf16.msra.mxu0 0
      %1309 = vmatprep.subr.bf16.mxu0 0
      %1310 = vmatpush1.bf16.msra.mxu0 0
      %1311 = vmatprep.subr.bf16.mxu0 0
      %1312 = vmatpush1.bf16.msra.mxu0 0
      %1313 = vmatprep.subr.bf16.mxu0 0
      %1314 = vmatpush1.bf16.msra.mxu0 0
      %1315 = vmatprep.subr.bf16.mxu0 0
      %1316 = vmatpush1.bf16.msra.mxu0 0
      %1317 = vmatprep.subr.bf16.mxu0 0
      %1318 = vmatpush1.bf16.msra.mxu0 0
      %1319 = vmatprep.subr.bf16.mxu0 0
      %1320 = vmatpush1.bf16.msra.mxu0 0
      %1321 = vmatprep.subr.bf16.mxu0 0
      %1322 = vmatpush1.bf16.msra.mxu0 0
      %1323 = vmatprep.subr.bf16.mxu0 0
      %1324 = vmatpush1.bf16.msra.mxu0 0
      %1325 = vmatprep.subr.bf16.mxu0 0
      %1326 = vmatpush1.bf16.msra.mxu0 0
      %1327 = vmatprep.subr.bf16.mxu0 0
      %1328 = vmatpush1.bf16.msra.mxu0 0
      %1329 = vmatprep.subr.bf16.mxu0 0
      %1330 = vmatpush1.bf16.msra.mxu0 0
      %1331 = vmatprep.subr.bf16.mxu0 0
      %1332 = vmatpush1.bf16.msra.mxu0 0
      %1333 = vmatprep.subr.bf16.mxu0 0
      %1334 = vmatpush1.bf16.msra.mxu0 0
      %1335 = vmatprep.subr.bf16.mxu0 0
      %1336 = vmatpush1.bf16.msra.mxu0 0
      %1337 = vmatprep.mubr.bf16.mxu0 0
      %1338 = vmatmul.mubr.bf16.gmra.mrb[0].mxu0 %v1300
      %v1339 = vpop.f32.mrb[0].mxu0
      %v1340 = vadd.f32 0.0, %v1339
      %v1341 = vpop.f32.mrb[0].mxu0
      %v1342 = vpop.f32.mrb[0].mxu0
      %v1343 = vadd.f32 0.0, %v1342
      %v1344 = vpop.f32.mrb[0].mxu0
      %1345 = vdwg.mxu0
      %v1346 = vadd.f32 %v1283, %v1340
      %v1347 = vadd.f32 %v1284, %v1343
      %s1348 = scalar_lea.vmem %s231, 144
      %v1349 = vld [vmem:[%s1348] sm:$0xf]
      %v1350 = vld [vmem:[%s1348 + $0x4] sm:$0xf]
      %v1353 = vunpack.c.l.b16 %v1349
      %v1354 = vunpack.c.l.b16 %v1350
      %v1355 = vpack.c.b16 %v1354, %v1353
      %1356 = vrot.lane.b32.xlu0 %v267, 96
      %v1357 = vpop.permute.xlu0 %1356
      %1358 = vrot.lane.b32.xlu0 %v851, 96
      %v1359 = vpop.permute.xlu0 %1358
      %vm1360 = vcmask 785408
      %v1361 = vsel %vm1360, %v1357, %v1359
      %v1363 = vsel %vm270, %v1355, 0
      %v1366 = vsel %vm274, %v1361, 0
      %1368 = vmatprep.subr.bf16.mxu0 0
      %1369 = vmatpush1.bf16.msra.mxu0 %v1366
      %1370 = vmatprep.subr.bf16.mxu0 0
      %1371 = vmatpush1.bf16.msra.mxu0 0
      %1372 = vmatprep.subr.bf16.mxu0 0
      %1373 = vmatpush1.bf16.msra.mxu0 0
      %1374 = vmatprep.subr.bf16.mxu0 0
      %1375 = vmatpush1.bf16.msra.mxu0 0
      %1376 = vmatprep.subr.bf16.mxu0 0
      %1377 = vmatpush1.bf16.msra.mxu0 0
      %1378 = vmatprep.subr.bf16.mxu0 0
      %1379 = vmatpush1.bf16.msra.mxu0 0
      %1380 = vmatprep.subr.bf16.mxu0 0
      %1381 = vmatpush1.bf16.msra.mxu0 0
      %1382 = vmatprep.subr.bf16.mxu0 0
      %1383 = vmatpush1.bf16.msra.mxu0 0
      %1384 = vmatprep.subr.bf16.mxu0 0
      %1385 = vmatpush1.bf16.msra.mxu0 0
      %1386 = vmatprep.subr.bf16.mxu0 0
      %1387 = vmatpush1.bf16.msra.mxu0 0
      %1388 = vmatprep.subr.bf16.mxu0 0
      %1389 = vmatpush1.bf16.msra.mxu0 0
      %1390 = vmatprep.subr.bf16.mxu0 0
      %1391 = vmatpush1.bf16.msra.mxu0 0
      %1392 = vmatprep.subr.bf16.mxu0 0
      %1393 = vmatpush1.bf16.msra.mxu0 0
      %1394 = vmatprep.subr.bf16.mxu0 0
      %1395 = vmatpush1.bf16.msra.mxu0 0
      %1396 = vmatprep.subr.bf16.mxu0 0
      %1397 = vmatpush1.bf16.msra.mxu0 0
      %1398 = vmatprep.subr.bf16.mxu0 0
      %1399 = vmatpush1.bf16.msra.mxu0 0
      %1400 = vmatprep.mubr.bf16.mxu0 0
      %1401 = vmatmul.mubr.bf16.gmra.mrb[0].mxu0 %v1363
      %v1402 = vpop.f32.mrb[0].mxu0
      %v1403 = vadd.f32 0.0, %v1402
      %v1404 = vpop.f32.mrb[0].mxu0
      %v1405 = vpop.f32.mrb[0].mxu0
      %v1406 = vadd.f32 0.0, %v1405
      %v1407 = vpop.f32.mrb[0].mxu0
      %1408 = vdwg.mxu0
      %v1409 = vadd.f32 %v1346, %v1403
      %v1410 = vadd.f32 %v1347, %v1406
      %s1411 = scalar_lea.vmem %s231, 152
      %v1412 = vld [vmem:[%s1411] sm:$0xf]
      %v1413 = vld [vmem:[%s1411 + $0x4] sm:$0xf]
      %v1416 = vunpack.c.l.b16 %v1412
      %v1417 = vunpack.c.l.b16 %v1413
      %v1418 = vpack.c.b16 %v1417, %v1416
      %1419 = vrot.lane.b32.xlu0 %v267, 95
      %v1420 = vpop.permute.xlu0 %1419
      %1421 = vrot.lane.b32.xlu0 %v851, 95
      %v1422 = vpop.permute.xlu0 %1421
      %vm1423 = vcmask 777216
      %v1424 = vsel %vm1423, %v1420, %v1422
      %v1426 = vsel %vm270, %v1418, 0
      %v1429 = vsel %vm274, %v1424, 0
      %1431 = vmatprep.subr.bf16.mxu0 0
      %1432 = vmatpush1.bf16.msra.mxu0 %v1429
      %1433 = vmatprep.subr.bf16.mxu0 0
      %1434 = vmatpush1.bf16.msra.mxu0 0
      %1435 = vmatprep.subr.bf16.mxu0 0
      %1436 = vmatpush1.bf16.msra.mxu0 0
      %1437 = vmatprep.subr.bf16.mxu0 0
      %1438 = vmatpush1.bf16.msra.mxu0 0
      %1439 = vmatprep.subr.bf16.mxu0 0
      %1440 = vmatpush1.bf16.msra.mxu0 0
      %1441 = vmatprep.subr.bf16.mxu0 0
      %1442 = vmatpush1.bf16.msra.mxu0 0
      %1443 = vmatprep.subr.bf16.mxu0 0
      %1444 = vmatpush1.bf16.msra.mxu0 0
      %1445 = vmatprep.subr.bf16.mxu0 0
      %1446 = vmatpush1.bf16.msra.mxu0 0
      %1447 = vmatprep.subr.bf16.mxu0 0
      %1448 = vmatpush1.bf16.msra.mxu0 0
      %1449 = vmatprep.subr.bf16.mxu0 0
      %1450 = vmatpush1.bf16.msra.mxu0 0
      %1451 = vmatprep.subr.bf16.mxu0 0
      %1452 = vmatpush1.bf16.msra.mxu0 0
      %1453 = vmatprep.subr.bf16.mxu0 0
      %1454 = vmatpush1.bf16.msra.mxu0 0
      %1455 = vmatprep.subr.bf16.mxu0 0
      %1456 = vmatpush1.bf16.msra.mxu0 0
      %1457 = vmatprep.subr.bf16.mxu0 0
      %1458 = vmatpush1.bf16.msra.mxu0 0
      %1459 = vmatprep.subr.bf16.mxu0 0
      %1460 = vmatpush1.bf16.msra.mxu0 0
      %1461 = vmatprep.subr.bf16.mxu0 0
      %1462 = vmatpush1.bf16.msra.mxu0 0
      %1463 = vmatprep.mubr.bf16.mxu0 0
      %1464 = vmatmul.mubr.bf16.gmra.mrb[0].mxu0 %v1426
      %v1465 = vpop.f32.mrb[0].mxu0
      %v1466 = vadd.f32 0.0, %v1465
      %v1467 = vpop.f32.mrb[0].mxu0
      %v1468 = vpop.f32.mrb[0].mxu0
      %v1469 = vadd.f32 0.0, %v1468
      %v1470 = vpop.f32.mrb[0].mxu0
      %1471 = vdwg.mxu0
      %v1472 = vadd.f32 %v1409, %v1466
      %v1473 = vadd.f32 %v1410, %v1469
      %s1474 = scalar_lea.vmem %s231, 160
      %v1475 = vld [vmem:[%s1474] sm:$0xf]
      %v1476 = vld [vmem:[%s1474 + $0x4] sm:$0xf]
      %v1479 = vunpack.c.l.b16 %v1475
      %v1480 = vunpack.c.l.b16 %v1476
      %v1481 = vpack.c.b16 %v1480, %v1479
      %1482 = vrot.lane.b32.xlu0 %v267, 94
      %v1483 = vpop.permute.xlu0 %1482
      %1484 = vrot.lane.b32.xlu0 %v851, 94
      %v1485 = vpop.permute.xlu0 %1484
      %vm1486 = vcmask 769024
      %v1487 = vsel %vm1486, %v1483, %v1485
      %v1489 = vsel %vm270, %v1481, 0
      %v1492 = vsel %vm274, %v1487, 0
      %1494 = vmatprep.subr.bf16.mxu0 0
      %1495 = vmatpush1.bf16.msra.mxu0 %v1492
      %1496 = vmatprep.subr.bf16.mxu0 0
      %1497 = vmatpush1.bf16.msra.mxu0 0
      %1498 = vmatprep.subr.bf16.mxu0 0
      %1499 = vmatpush1.bf16.msra.mxu0 0
      %1500 = vmatprep.subr.bf16.mxu0 0
      %1501 = vmatpush1.bf16.msra.mxu0 0
      %1502 = vmatprep.subr.bf16.mxu0 0
      %1503 = vmatpush1.bf16.msra.mxu0 0
      %1504 = vmatprep.subr.bf16.mxu0 0
      %1505 = vmatpush1.bf16.msra.mxu0 0
      %1506 = vmatprep.subr.bf16.mxu0 0
      %1507 = vmatpush1.bf16.msra.mxu0 0
      %1508 = vmatprep.subr.bf16.mxu0 0
      %1509 = vmatpush1.bf16.msra.mxu0 0
      %1510 = vmatprep.subr.bf16.mxu0 0
      %1511 = vmatpush1.bf16.msra.mxu0 0
      %1512 = vmatprep.subr.bf16.mxu0 0
      %1513 = vmatpush1.bf16.msra.mxu0 0
      %1514 = vmatprep.subr.bf16.mxu0 0
      %1515 = vmatpush1.bf16.msra.mxu0 0
      %1516 = vmatprep.subr.bf16.mxu0 0
      %1517 = vmatpush1.bf16.msra.mxu0 0
      %1518 = vmatprep.subr.bf16.mxu0 0
      %1519 = vmatpush1.bf16.msra.mxu0 0
      %1520 = vmatprep.subr.bf16.mxu0 0
      %1521 = vmatpush1.bf16.msra.mxu0 0
      %1522 = vmatprep.subr.bf16.mxu0 0
      %1523 = vmatpush1.bf16.msra.mxu0 0
      %1524 = vmatprep.subr.bf16.mxu0 0
      %1525 = vmatpush1.bf16.msra.mxu0 0
      %1526 = vmatprep.mubr.bf16.mxu0 0
      %1527 = vmatmul.mubr.bf16.gmra.mrb[0].mxu0 %v1489
      %v1528 = vpop.f32.mrb[0].mxu0
      %v1529 = vadd.f32 0.0, %v1528
      %v1530 = vpop.f32.mrb[0].mxu0
      %v1531 = vpop.f32.mrb[0].mxu0
      %v1532 = vadd.f32 0.0, %v1531
      %v1533 = vpop.f32.mrb[0].mxu0
      %1534 = vdwg.mxu0
      %v1535 = vadd.f32 %v1472, %v1529
      %v1536 = vadd.f32 %v1473, %v1532
      %s1537 = scalar_lea.vmem %s231, 168
      %v1538 = vld [vmem:[%s1537] sm:$0xf]
      %v1539 = vld [vmem:[%s1537 + $0x4] sm:$0xf]
      %v1542 = vunpack.c.l.b16 %v1538
      %v1543 = vunpack.c.l.b16 %v1539
      %v1544 = vpack.c.b16 %v1543, %v1542
      %1545 = vrot.lane.b32.xlu0 %v267, 86
      %v1546 = vpop.permute.xlu0 %1545
      %1547 = vrot.lane.b32.xlu0 %v851, 86
      %v1548 = vpop.permute.xlu0 %1547
      %vm1549 = vcmask 703488
      %v1550 = vsel %vm1549, %v1546, %v1548
      %v1552 = vsel %vm270, %v1544, 0
      %v1555 = vsel %vm274, %v1550, 0
      %1557 = vmatprep.subr.bf16.mxu0 0
      %1558 = vmatpush1.bf16.msra.mxu0 %v1555
      %1559 = vmatprep.subr.bf16.mxu0 0
      %1560 = vmatpush1.bf16.msra.mxu0 0
      %1561 = vmatprep.subr.bf16.mxu0 0
      %1562 = vmatpush1.bf16.msra.mxu0 0
      %1563 = vmatprep.subr.bf16.mxu0 0
      %1564 = vmatpush1.bf16.msra.mxu0 0
      %1565 = vmatprep.subr.bf16.mxu0 0
      %1566 = vmatpush1.bf16.msra.mxu0 0
      %1567 = vmatprep.subr.bf16.mxu0 0
      %1568 = vmatpush1.bf16.msra.mxu0 0
      %1569 = vmatprep.subr.bf16.mxu0 0
      %1570 = vmatpush1.bf16.msra.mxu0 0
      %1571 = vmatprep.subr.bf16.mxu0 0
      %1572 = vmatpush1.bf16.msra.mxu0 0
      %1573 = vmatprep.subr.bf16.mxu0 0
      %1574 = vmatpush1.bf16.msra.mxu0 0
      %1575 = vmatprep.subr.bf16.mxu0 0
      %1576 = vmatpush1.bf16.msra.mxu0 0
      %1577 = vmatprep.subr.bf16.mxu0 0
      %1578 = vmatpush1.bf16.msra.mxu0 0
      %1579 = vmatprep.subr.bf16.mxu0 0
      %1580 = vmatpush1.bf16.msra.mxu0 0
      %1581 = vmatprep.subr.bf16.mxu0 0
      %1582 = vmatpush1.bf16.msra.mxu0 0
      %1583 = vmatprep.subr.bf16.mxu0 0
      %1584 = vmatpush1.bf16.msra.mxu0 0
      %1585 = vmatprep.subr.bf16.mxu0 0
      %1586 = vmatpush1.bf16.msra.mxu0 0
      %1587 = vmatprep.subr.bf16.mxu0 0
      %1588 = vmatpush1.bf16.msra.mxu0 0
      %1589 = vmatprep.mubr.bf16.mxu0 0
      %1590 = vmatmul.mubr.bf16.gmra.mrb[0].mxu0 %v1552
      %v1591 = vpop.f32.mrb[0].mxu0
      %v1592 = vadd.f32 0.0, %v1591
      %v1593 = vpop.f32.mrb[0].mxu0
      %v1594 = vpop.f32.mrb[0].mxu0
      %v1595 = vadd.f32 0.0, %v1594
      %v1596 = vpop.f32.mrb[0].mxu0
      %1597 = vdwg.mxu0
      %v1598 = vadd.f32 %v1535, %v1592
      %v1599 = vadd.f32 %v1536, %v1595
      %s1600 = scalar_lea.vmem %s231, 176
      %v1601 = vld [vmem:[%s1600] sm:$0xf]
      %v1602 = vld [vmem:[%s1600 + $0x4] sm:$0xf]
      %v1605 = vunpack.c.l.b16 %v1601
      %v1606 = vunpack.c.l.b16 %v1602
      %v1607 = vpack.c.b16 %v1606, %v1605
      %1608 = vrot.lane.b32.xlu0 %v267, 85
      %v1609 = vpop.permute.xlu0 %1608
      %1610 = vrot.lane.b32.xlu0 %v851, 85
      %v1611 = vpop.permute.xlu0 %1610
      %vm1612 = vcmask 695296
      %v1613 = vsel %vm1612, %v1609, %v1611
      %v1615 = vsel %vm270, %v1607, 0
      %v1618 = vsel %vm274, %v1613, 0
      %1620 = vmatprep.subr.bf16.mxu0 0
      %1621 = vmatpush1.bf16.msra.mxu0 %v1618
      %1622 = vmatprep.subr.bf16.mxu0 0
      %1623 = vmatpush1.bf16.msra.mxu0 0
      %1624 = vmatprep.subr.bf16.mxu0 0
      %1625 = vmatpush1.bf16.msra.mxu0 0
      %1626 = vmatprep.subr.bf16.mxu0 0
      %1627 = vmatpush1.bf16.msra.mxu0 0
      %1628 = vmatprep.subr.bf16.mxu0 0
      %1629 = vmatpush1.bf16.msra.mxu0 0
      %1630 = vmatprep.subr.bf16.mxu0 0
      %1631 = vmatpush1.bf16.msra.mxu0 0
      %1632 = vmatprep.subr.bf16.mxu0 0
      %1633 = vmatpush1.bf16.msra.mxu0 0
      %1634 = vmatprep.subr.bf16.mxu0 0
      %1635 = vmatpush1.bf16.msra.mxu0 0
      %1636 = vmatprep.subr.bf16.mxu0 0
      %1637 = vmatpush1.bf16.msra.mxu0 0
      %1638 = vmatprep.subr.bf16.mxu0 0
      %1639 = vmatpush1.bf16.msra.mxu0 0
      %1640 = vmatprep.subr.bf16.mxu0 0
      %1641 = vmatpush1.bf16.msra.mxu0 0
      %1642 = vmatprep.subr.bf16.mxu0 0
      %1643 = vmatpush1.bf16.msra.mxu0 0
      %1644 = vmatprep.subr.bf16.mxu0 0
      %1645 = vmatpush1.bf16.msra.mxu0 0
      %1646 = vmatprep.subr.bf16.mxu0 0
      %1647 = vmatpush1.bf16.msra.mxu0 0
      %1648 = vmatprep.subr.bf16.mxu0 0
      %1649 = vmatpush1.bf16.msra.mxu0 0
      %1650 = vmatprep.subr.bf16.mxu0 0
      %1651 = vmatpush1.bf16.msra.mxu0 0
      %1652 = vmatprep.mubr.bf16.mxu0 0
      %1653 = vmatmul.mubr.bf16.gmra.mrb[0].mxu0 %v1615
      %v1654 = vpop.f32.mrb[0].mxu0
      %v1655 = vadd.f32 0.0, %v1654
      %v1656 = vpop.f32.mrb[0].mxu0
      %v1657 = vpop.f32.mrb[0].mxu0
      %v1658 = vadd.f32 0.0, %v1657
      %v1659 = vpop.f32.mrb[0].mxu0
      %1660 = vdwg.mxu0
      %v1661 = vadd.f32 %v1598, %v1655
      %v1662 = vadd.f32 %v1599, %v1658
      %s1663 = scalar_lea.vmem %s231, 184
      %v1664 = vld [vmem:[%s1663] sm:$0xf]
      %v1665 = vld [vmem:[%s1663 + $0x4] sm:$0xf]
      %v1668 = vunpack.c.l.b16 %v1664
      %v1669 = vunpack.c.l.b16 %v1665
      %v1670 = vpack.c.b16 %v1669, %v1668
      %1671 = vrot.lane.b32.xlu0 %v267, 84
      %v1672 = vpop.permute.xlu0 %1671
      %1673 = vrot.lane.b32.xlu0 %v851, 84
      %v1674 = vpop.permute.xlu0 %1673
      %vm1675 = vcmask 687104
      %v1676 = vsel %vm1675, %v1672, %v1674
      %v1678 = vsel %vm270, %v1670, 0
      %v1681 = vsel %vm274, %v1676, 0
      %1683 = vmatprep.subr.bf16.mxu0 0
      %1684 = vmatpush1.bf16.msra.mxu0 %v1681
      %1685 = vmatprep.subr.bf16.mxu0 0
      %1686 = vmatpush1.bf16.msra.mxu0 0
      %1687 = vmatprep.subr.bf16.mxu0 0
      %1688 = vmatpush1.bf16.msra.mxu0 0
      %1689 = vmatprep.subr.bf16.mxu0 0
      %1690 = vmatpush1.bf16.msra.mxu0 0
      %1691 = vmatprep.subr.bf16.mxu0 0
      %1692 = vmatpush1.bf16.msra.mxu0 0
      %1693 = vmatprep.subr.bf16.mxu0 0
      %1694 = vmatpush1.bf16.msra.mxu0 0
      %1695 = vmatprep.subr.bf16.mxu0 0
      %1696 = vmatpush1.bf16.msra.mxu0 0
      %1697 = vmatprep.subr.bf16.mxu0 0
      %1698 = vmatpush1.bf16.msra.mxu0 0
      %1699 = vmatprep.subr.bf16.mxu0 0
      %1700 = vmatpush1.bf16.msra.mxu0 0
      %1701 = vmatprep.subr.bf16.mxu0 0
      %1702 = vmatpush1.bf16.msra.mxu0 0
      %1703 = vmatprep.subr.bf16.mxu0 0
      %1704 = vmatpush1.bf16.msra.mxu0 0
      %1705 = vmatprep.subr.bf16.mxu0 0
      %1706 = vmatpush1.bf16.msra.mxu0 0
      %1707 = vmatprep.subr.bf16.mxu0 0
      %1708 = vmatpush1.bf16.msra.mxu0 0
      %1709 = vmatprep.subr.bf16.mxu0 0
      %1710 = vmatpush1.bf16.msra.mxu0 0
      %1711 = vmatprep.subr.bf16.mxu0 0
      %1712 = vmatpush1.bf16.msra.mxu0 0
      %1713 = vmatprep.subr.bf16.mxu0 0
      %1714 = vmatpush1.bf16.msra.mxu0 0
      %1715 = vmatprep.mubr.bf16.mxu0 0
      %1716 = vmatmul.mubr.bf16.gmra.mrb[0].mxu0 %v1678
      %v1717 = vpop.f32.mrb[0].mxu0
      %v1718 = vadd.f32 0.0, %v1717
      %v1719 = vpop.f32.mrb[0].mxu0
      %v1720 = vpop.f32.mrb[0].mxu0
      %v1721 = vadd.f32 0.0, %v1720
      %v1722 = vpop.f32.mrb[0].mxu0
      %1723 = vdwg.mxu0
      %v1724 = vadd.f32 %v1661, %v1718
      %v1725 = vadd.f32 %v1662, %v1721
      %s1726 = scalar_lea.vmem %s231, 192
      %v1727 = vld [vmem:[%s1726] sm:$0xf]
      %v1728 = vld [vmem:[%s1726 + $0x4] sm:$0xf]
      %v1731 = vunpack.c.l.b16 %v1727
      %v1732 = vunpack.c.l.b16 %v1728
      %v1733 = vpack.c.b16 %v1732, %v1731
      %1734 = vrot.lane.b32.xlu0 %v267, 83
      %v1735 = vpop.permute.xlu0 %1734
      %1736 = vrot.lane.b32.xlu0 %v851, 83
      %v1737 = vpop.permute.xlu0 %1736
      %vm1738 = vcmask 678912
      %v1739 = vsel %vm1738, %v1735, %v1737
      %v1741 = vsel %vm270, %v1733, 0
      %v1744 = vsel %vm274, %v1739, 0
      %1746 = vmatprep.subr.bf16.mxu0 0
      %1747 = vmatpush1.bf16.msra.mxu0 %v1744
      %1748 = vmatprep.subr.bf16.mxu0 0
      %1749 = vmatpush1.bf16.msra.mxu0 0
      %1750 = vmatprep.subr.bf16.mxu0 0
      %1751 = vmatpush1.bf16.msra.mxu0 0
      %1752 = vmatprep.subr.bf16.mxu0 0
      %1753 = vmatpush1.bf16.msra.mxu0 0
      %1754 = vmatprep.subr.bf16.mxu0 0
      %1755 = vmatpush1.bf16.msra.mxu0 0
      %1756 = vmatprep.subr.bf16.mxu0 0
      %1757 = vmatpush1.bf16.msra.mxu0 0
      %1758 = vmatprep.subr.bf16.mxu0 0
      %1759 = vmatpush1.bf16.msra.mxu0 0
      %1760 = vmatprep.subr.bf16.mxu0 0
      %1761 = vmatpush1.bf16.msra.mxu0 0
      %1762 = vmatprep.subr.bf16.mxu0 0
      %1763 = vmatpush1.bf16.msra.mxu0 0
      %1764 = vmatprep.subr.bf16.mxu0 0
      %1765 = vmatpush1.bf16.msra.mxu0 0
      %1766 = vmatprep.subr.bf16.mxu0 0
      %1767 = vmatpush1.bf16.msra.mxu0 0
      %1768 = vmatprep.subr.bf16.mxu0 0
      %1769 = vmatpush1.bf16.msra.mxu0 0
      %1770 = vmatprep.subr.bf16.mxu0 0
      %1771 = vmatpush1.bf16.msra.mxu0 0
      %1772 = vmatprep.subr.bf16.mxu0 0
      %1773 = vmatpush1.bf16.msra.mxu0 0
      %1774 = vmatprep.subr.bf16.mxu0 0
      %1775 = vmatpush1.bf16.msra.mxu0 0
      %1776 = vmatprep.subr.bf16.mxu0 0
      %1777 = vmatpush1.bf16.msra.mxu0 0
      %1778 = vmatprep.mubr.bf16.mxu0 0
      %1779 = vmatmul.mubr.bf16.gmra.mrb[0].mxu0 %v1741
      %v1780 = vpop.f32.mrb[0].mxu0
      %v1781 = vadd.f32 0.0, %v1780
      %v1782 = vpop.f32.mrb[0].mxu0
      %v1783 = vpop.f32.mrb[0].mxu0
      %v1784 = vadd.f32 0.0, %v1783
      %v1785 = vpop.f32.mrb[0].mxu0
      %1786 = vdwg.mxu0
      %v1787 = vadd.f32 %v1724, %v1781
      %v1788 = vadd.f32 %v1725, %v1784
      %s1789 = scalar_lea.vmem %s231, 200
      %v1790 = vld [vmem:[%s1789] sm:$0xf]
      %v1791 = vld [vmem:[%s1789 + $0x4] sm:$0xf]
      %v1794 = vunpack.c.l.b16 %v1790
      %v1795 = vunpack.c.l.b16 %v1791
      %v1796 = vpack.c.b16 %v1795, %v1794
      %1797 = vrot.lane.b32.xlu0 %v267, 82
      %v1798 = vpop.permute.xlu0 %1797
      %1799 = vrot.lane.b32.xlu0 %v851, 82
      %v1800 = vpop.permute.xlu0 %1799
      %vm1801 = vcmask 670720
      %v1802 = vsel %vm1801, %v1798, %v1800
      %v1804 = vsel %vm270, %v1796, 0
      %v1807 = vsel %vm274, %v1802, 0
      %1809 = vmatprep.subr.bf16.mxu0 0
      %1810 = vmatpush1.bf16.msra.mxu0 %v1807
      %1811 = vmatprep.subr.bf16.mxu0 0
      %1812 = vmatpush1.bf16.msra.mxu0 0
      %1813 = vmatprep.subr.bf16.mxu0 0
      %1814 = vmatpush1.bf16.msra.mxu0 0
      %1815 = vmatprep.subr.bf16.mxu0 0
      %1816 = vmatpush1.bf16.msra.mxu0 0
      %1817 = vmatprep.subr.bf16.mxu0 0
      %1818 = vmatpush1.bf16.msra.mxu0 0
      %1819 = vmatprep.subr.bf16.mxu0 0
      %1820 = vmatpush1.bf16.msra.mxu0 0
      %1821 = vmatprep.subr.bf16.mxu0 0
      %1822 = vmatpush1.bf16.msra.mxu0 0
      %1823 = vmatprep.subr.bf16.mxu0 0
      %1824 = vmatpush1.bf16.msra.mxu0 0
      %1825 = vmatprep.subr.bf16.mxu0 0
      %1826 = vmatpush1.bf16.msra.mxu0 0
      %1827 = vmatprep.subr.bf16.mxu0 0
      %1828 = vmatpush1.bf16.msra.mxu0 0
      %1829 = vmatprep.subr.bf16.mxu0 0
      %1830 = vmatpush1.bf16.msra.mxu0 0
      %1831 = vmatprep.subr.bf16.mxu0 0
      %1832 = vmatpush1.bf16.msra.mxu0 0
      %1833 = vmatprep.subr.bf16.mxu0 0
      %1834 = vmatpush1.bf16.msra.mxu0 0
      %1835 = vmatprep.subr.bf16.mxu0 0
      %1836 = vmatpush1.bf16.msra.mxu0 0
      %1837 = vmatprep.subr.bf16.mxu0 0
      %1838 = vmatpush1.bf16.msra.mxu0 0
      %1839 = vmatprep.subr.bf16.mxu0 0
      %1840 = vmatpush1.bf16.msra.mxu0 0
      %1841 = vmatprep.mubr.bf16.mxu0 0
      %1842 = vmatmul.mubr.bf16.gmra.mrb[0].mxu0 %v1804
      %v1843 = vpop.f32.mrb[0].mxu0
      %v1844 = vadd.f32 0.0, %v1843
      %v1845 = vpop.f32.mrb[0].mxu0
      %v1846 = vpop.f32.mrb[0].mxu0
      %v1847 = vadd.f32 0.0, %v1846
      %v1848 = vpop.f32.mrb[0].mxu0
      %1849 = vdwg.mxu0
      %v1850 = vadd.f32 %v1787, %v1844
      %v1851 = vadd.f32 %v1788, %v1847
      %s1852 = scalar_lea.vmem %s231, 208
      %v1853 = vld [vmem:[%s1852] sm:$0xf]
      %v1854 = vld [vmem:[%s1852 + $0x4] sm:$0xf]
      %v1857 = vunpack.c.l.b16 %v1853
      %v1858 = vunpack.c.l.b16 %v1854
      %v1859 = vpack.c.b16 %v1858, %v1857
      %1860 = vrot.lane.b32.xlu0 %v267, 81
      %v1861 = vpop.permute.xlu0 %1860
      %1862 = vrot.lane.b32.xlu0 %v851, 81
      %v1863 = vpop.permute.xlu0 %1862
      %vm1864 = vcmask 662528
      %v1865 = vsel %vm1864, %v1861, %v1863
      %v1867 = vsel %vm270, %v1859, 0
      %v1870 = vsel %vm274, %v1865, 0
      %1872 = vmatprep.subr.bf16.mxu0 0
      %1873 = vmatpush1.bf16.msra.mxu0 %v1870
      %1874 = vmatprep.subr.bf16.mxu0 0
      %1875 = vmatpush1.bf16.msra.mxu0 0
      %1876 = vmatprep.subr.bf16.mxu0 0
      %1877 = vmatpush1.bf16.msra.mxu0 0
      %1878 = vmatprep.subr.bf16.mxu0 0
      %1879 = vmatpush1.bf16.msra.mxu0 0
      %1880 = vmatprep.subr.bf16.mxu0 0
      %1881 = vmatpush1.bf16.msra.mxu0 0
      %1882 = vmatprep.subr.bf16.mxu0 0
      %1883 = vmatpush1.bf16.msra.mxu0 0
      %1884 = vmatprep.subr.bf16.mxu0 0
      %1885 = vmatpush1.bf16.msra.mxu0 0
      %1886 = vmatprep.subr.bf16.mxu0 0
      %1887 = vmatpush1.bf16.msra.mxu0 0
      %1888 = vmatprep.subr.bf16.mxu0 0
      %1889 = vmatpush1.bf16.msra.mxu0 0
      %1890 = vmatprep.subr.bf16.mxu0 0
      %1891 = vmatpush1.bf16.msra.mxu0 0
      %1892 = vmatprep.subr.bf16.mxu0 0
      %1893 = vmatpush1.bf16.msra.mxu0 0
      %1894 = vmatprep.subr.bf16.mxu0 0
      %1895 = vmatpush1.bf16.msra.mxu0 0
      %1896 = vmatprep.subr.bf16.mxu0 0
      %1897 = vmatpush1.bf16.msra.mxu0 0
      %1898 = vmatprep.subr.bf16.mxu0 0
      %1899 = vmatpush1.bf16.msra.mxu0 0
      %1900 = vmatprep.subr.bf16.mxu0 0
      %1901 = vmatpush1.bf16.msra.mxu0 0
      %1902 = vmatprep.subr.bf16.mxu0 0
      %1903 = vmatpush1.bf16.msra.mxu0 0
      %1904 = vmatprep.mubr.bf16.mxu0 0
      %1905 = vmatmul.mubr.bf16.gmra.mrb[0].mxu0 %v1867
      %v1906 = vpop.f32.mrb[0].mxu0
      %v1907 = vadd.f32 0.0, %v1906
      %v1908 = vpop.f32.mrb[0].mxu0
      %v1909 = vpop.f32.mrb[0].mxu0
      %v1910 = vadd.f32 0.0, %v1909
      %v1911 = vpop.f32.mrb[0].mxu0
      %1912 = vdwg.mxu0
      %v1913 = vadd.f32 %v1850, %v1907
      %v1914 = vadd.f32 %v1851, %v1910
      %s1915 = scalar_lea.vmem %s231, 216
      %v1916 = vld [vmem:[%s1915] sm:$0xf]
      %v1917 = vld [vmem:[%s1915 + $0x4] sm:$0xf]
      %v1920 = vunpack.c.l.b16 %v1916
      %v1921 = vunpack.c.l.b16 %v1917
      %v1922 = vpack.c.b16 %v1921, %v1920
      %1923 = vrot.lane.b32.xlu0 %v267, 80
      %v1924 = vpop.permute.xlu0 %1923
      %1925 = vrot.lane.b32.xlu0 %v851, 80
      %v1926 = vpop.permute.xlu0 %1925
      %vm1927 = vcmask 654336
      %v1928 = vsel %vm1927, %v1924, %v1926
      %v1930 = vsel %vm270, %v1922, 0
      %v1933 = vsel %vm274, %v1928, 0
      %1935 = vmatprep.subr.bf16.mxu0 0
      %1936 = vmatpush1.bf16.msra.mxu0 %v1933
      %1937 = vmatprep.subr.bf16.mxu0 0
      %1938 = vmatpush1.bf16.msra.mxu0 0
      %1939 = vmatprep.subr.bf16.mxu0 0
      %1940 = vmatpush1.bf16.msra.mxu0 0
      %1941 = vmatprep.subr.bf16.mxu0 0
      %1942 = vmatpush1.bf16.msra.mxu0 0
      %1943 = vmatprep.subr.bf16.mxu0 0
      %1944 = vmatpush1.bf16.msra.mxu0 0
      %1945 = vmatprep.subr.bf16.mxu0 0
      %1946 = vmatpush1.bf16.msra.mxu0 0
      %1947 = vmatprep.subr.bf16.mxu0 0
      %1948 = vmatpush1.bf16.msra.mxu0 0
      %1949 = vmatprep.subr.bf16.mxu0 0
      %1950 = vmatpush1.bf16.msra.mxu0 0
      %1951 = vmatprep.subr.bf16.mxu0 0
      %1952 = vmatpush1.bf16.msra.mxu0 0
      %1953 = vmatprep.subr.bf16.mxu0 0
      %1954 = vmatpush1.bf16.msra.mxu0 0
      %1955 = vmatprep.subr.bf16.mxu0 0
      %1956 = vmatpush1.bf16.msra.mxu0 0
      %1957 = vmatprep.subr.bf16.mxu0 0
      %1958 = vmatpush1.bf16.msra.mxu0 0
      %1959 = vmatprep.subr.bf16.mxu0 0
      %1960 = vmatpush1.bf16.msra.mxu0 0
      %1961 = vmatprep.subr.bf16.mxu0 0
      %1962 = vmatpush1.bf16.msra.mxu0 0
      %1963 = vmatprep.subr.bf16.mxu0 0
      %1964 = vmatpush1.bf16.msra.mxu0 0
      %1965 = vmatprep.subr.bf16.mxu0 0
      %1966 = vmatpush1.bf16.msra.mxu0 0
      %1967 = vmatprep.mubr.bf16.mxu0 0
      %1968 = vmatmul.mubr.bf16.gmra.mrb[0].mxu0 %v1930
      %v1969 = vpop.f32.mrb[0].mxu0
      %v1970 = vadd.f32 0.0, %v1969
      %v1971 = vpop.f32.mrb[0].mxu0
      %v1972 = vpop.f32.mrb[0].mxu0
      %v1973 = vadd.f32 0.0, %v1972
      %v1974 = vpop.f32.mrb[0].mxu0
      %1975 = vdwg.mxu0
      %v1976 = vadd.f32 %v1913, %v1970
      %v1977 = vadd.f32 %v1914, %v1973
      %s1978 = scalar_lea.vmem %s231, 224
      %v1979 = vld [vmem:[%s1978] sm:$0xf]
      %v1980 = vld [vmem:[%s1978 + $0x4] sm:$0xf]
      %v1983 = vunpack.c.l.b16 %v1979
      %v1984 = vunpack.c.l.b16 %v1980
      %v1985 = vpack.c.b16 %v1984, %v1983
      %1986 = vrot.lane.b32.xlu0 %v267, 72
      %v1987 = vpop.permute.xlu0 %1986
      %1988 = vrot.lane.b32.xlu0 %v851, 72
      %v1989 = vpop.permute.xlu0 %1988
      %vm1990 = vcmask 588800
      %v1991 = vsel %vm1990, %v1987, %v1989
      %v1993 = vsel %vm270, %v1985, 0
      %v1996 = vsel %vm274, %v1991, 0
      %1998 = vmatprep.subr.bf16.mxu0 0
      %1999 = vmatpush1.bf16.msra.mxu0 %v1996
      %2000 = vmatprep.subr.bf16.mxu0 0
      %2001 = vmatpush1.bf16.msra.mxu0 0
      %2002 = vmatprep.subr.bf16.mxu0 0
      %2003 = vmatpush1.bf16.msra.mxu0 0
      %2004 = vmatprep.subr.bf16.mxu0 0
      %2005 = vmatpush1.bf16.msra.mxu0 0
      %2006 = vmatprep.subr.bf16.mxu0 0
      %2007 = vmatpush1.bf16.msra.mxu0 0
      %2008 = vmatprep.subr.bf16.mxu0 0
      %2009 = vmatpush1.bf16.msra.mxu0 0
      %2010 = vmatprep.subr.bf16.mxu0 0
      %2011 = vmatpush1.bf16.msra.mxu0 0
      %2012 = vmatprep.subr.bf16.mxu0 0
      %2013 = vmatpush1.bf16.msra.mxu0 0
      %2014 = vmatprep.subr.bf16.mxu0 0
      %2015 = vmatpush1.bf16.msra.mxu0 0
      %2016 = vmatprep.subr.bf16.mxu0 0
      %2017 = vmatpush1.bf16.msra.mxu0 0
      %2018 = vmatprep.subr.bf16.mxu0 0
      %2019 = vmatpush1.bf16.msra.mxu0 0
      %2020 = vmatprep.subr.bf16.mxu0 0
      %2021 = vmatpush1.bf16.msra.mxu0 0
      %2022 = vmatprep.subr.bf16.mxu0 0
      %2023 = vmatpush1.bf16.msra.mxu0 0
      %2024 = vmatprep.subr.bf16.mxu0 0
      %2025 = vmatpush1.bf16.msra.mxu0 0
      %2026 = vmatprep.subr.bf16.mxu0 0
      %2027 = vmatpush1.bf16.msra.mxu0 0
      %2028 = vmatprep.subr.bf16.mxu0 0
      %2029 = vmatpush1.bf16.msra.mxu0 0
      %2030 = vmatprep.mubr.bf16.mxu0 0
      %2031 = vmatmul.mubr.bf16.gmra.mrb[0].mxu0 %v1993
      %v2032 = vpop.f32.mrb[0].mxu0
      %v2033 = vadd.f32 0.0, %v2032
      %v2034 = vpop.f32.mrb[0].mxu0
      %v2035 = vpop.f32.mrb[0].mxu0
      %v2036 = vadd.f32 0.0, %v2035
      %v2037 = vpop.f32.mrb[0].mxu0
      %2038 = vdwg.mxu0
      %v2039 = vadd.f32 %v1976, %v2033
      %v2040 = vadd.f32 %v1977, %v2036
      %s2041 = scalar_lea.vmem %s231, 232
      %v2042 = vld [vmem:[%s2041] sm:$0xf]
      %v2043 = vld [vmem:[%s2041 + $0x4] sm:$0xf]
      %v2046 = vunpack.c.l.b16 %v2042
      %v2047 = vunpack.c.l.b16 %v2043
      %v2048 = vpack.c.b16 %v2047, %v2046
      %2049 = vrot.lane.b32.xlu0 %v267, 71
      %v2050 = vpop.permute.xlu0 %2049
      %2051 = vrot.lane.b32.xlu0 %v851, 71
      %v2052 = vpop.permute.xlu0 %2051
      %vm2053 = vcmask 580608
      %v2054 = vsel %vm2053, %v2050, %v2052
      %v2056 = vsel %vm270, %v2048, 0
      %v2059 = vsel %vm274, %v2054, 0
      %2061 = vmatprep.subr.bf16.mxu0 0
      %2062 = vmatpush1.bf16.msra.mxu0 %v2059
      %2063 = vmatprep.subr.bf16.mxu0 0
      %2064 = vmatpush1.bf16.msra.mxu0 0
      %2065 = vmatprep.subr.bf16.mxu0 0
      %2066 = vmatpush1.bf16.msra.mxu0 0
      %2067 = vmatprep.subr.bf16.mxu0 0
      %2068 = vmatpush1.bf16.msra.mxu0 0
      %2069 = vmatprep.subr.bf16.mxu0 0
      %2070 = vmatpush1.bf16.msra.mxu0 0
      %2071 = vmatprep.subr.bf16.mxu0 0
      %2072 = vmatpush1.bf16.msra.mxu0 0
      %2073 = vmatprep.subr.bf16.mxu0 0
      %2074 = vmatpush1.bf16.msra.mxu0 0
      %2075 = vmatprep.subr.bf16.mxu0 0
      %2076 = vmatpush1.bf16.msra.mxu0 0
      %2077 = vmatprep.subr.bf16.mxu0 0
      %2078 = vmatpush1.bf16.msra.mxu0 0
      %2079 = vmatprep.subr.bf16.mxu0 0
      %2080 = vmatpush1.bf16.msra.mxu0 0
      %2081 = vmatprep.subr.bf16.mxu0 0
      %2082 = vmatpush1.bf16.msra.mxu0 0
      %2083 = vmatprep.subr.bf16.mxu0 0
      %2084 = vmatpush1.bf16.msra.mxu0 0
      %2085 = vmatprep.subr.bf16.mxu0 0
      %2086 = vmatpush1.bf16.msra.mxu0 0
      %2087 = vmatprep.subr.bf16.mxu0 0
      %2088 = vmatpush1.bf16.msra.mxu0 0
      %2089 = vmatprep.subr.bf16.mxu0 0
      %2090 = vmatpush1.bf16.msra.mxu0 0
      %2091 = vmatprep.subr.bf16.mxu0 0
      %2092 = vmatpush1.bf16.msra.mxu0 0
      %2093 = vmatprep.mubr.bf16.mxu0 0
      %2094 = vmatmul.mubr.bf16.gmra.mrb[0].mxu0 %v2056
      %v2095 = vpop.f32.mrb[0].mxu0
      %v2096 = vadd.f32 0.0, %v2095
      %v2097 = vpop.f32.mrb[0].mxu0
      %v2098 = vpop.f32.mrb[0].mxu0
      %v2099 = vadd.f32 0.0, %v2098
      %v2100 = vpop.f32.mrb[0].mxu0
      %2101 = vdwg.mxu0
      %v2102 = vadd.f32 %v2039, %v2096
      %v2103 = vadd.f32 %v2040, %v2099
      %s2104 = scalar_lea.vmem %s231, 240
      %v2105 = vld [vmem:[%s2104] sm:$0xf]
      %v2106 = vld [vmem:[%s2104 + $0x4] sm:$0xf]
      %v2109 = vunpack.c.l.b16 %v2105
      %v2110 = vunpack.c.l.b16 %v2106
      %v2111 = vpack.c.b16 %v2110, %v2109
      %2112 = vrot.lane.b32.xlu0 %v267, 70
      %v2113 = vpop.permute.xlu0 %2112
      %2114 = vrot.lane.b32.xlu0 %v851, 70
      %v2115 = vpop.permute.xlu0 %2114
      %vm2116 = vcmask 572416
      %v2117 = vsel %vm2116, %v2113, %v2115
      %v2119 = vsel %vm270, %v2111, 0
      %v2122 = vsel %vm274, %v2117, 0
      %2124 = vmatprep.subr.bf16.mxu0 0
      %2125 = vmatpush1.bf16.msra.mxu0 %v2122
      %2126 = vmatprep.subr.bf16.mxu0 0
      %2127 = vmatpush1.bf16.msra.mxu0 0
      %2128 = vmatprep.subr.bf16.mxu0 0
      %2129 = vmatpush1.bf16.msra.mxu0 0
      %2130 = vmatprep.subr.bf16.mxu0 0
      %2131 = vmatpush1.bf16.msra.mxu0 0
      %2132 = vmatprep.subr.bf16.mxu0 0
      %2133 = vmatpush1.bf16.msra.mxu0 0
      %2134 = vmatprep.subr.bf16.mxu0 0
      %2135 = vmatpush1.bf16.msra.mxu0 0
      %2136 = vmatprep.subr.bf16.mxu0 0
      %2137 = vmatpush1.bf16.msra.mxu0 0
      %2138 = vmatprep.subr.bf16.mxu0 0
      %2139 = vmatpush1.bf16.msra.mxu0 0
      %2140 = vmatprep.subr.bf16.mxu0 0
      %2141 = vmatpush1.bf16.msra.mxu0 0
      %2142 = vmatprep.subr.bf16.mxu0 0
      %2143 = vmatpush1.bf16.msra.mxu0 0
      %2144 = vmatprep.subr.bf16.mxu0 0
      %2145 = vmatpush1.bf16.msra.mxu0 0
      %2146 = vmatprep.subr.bf16.mxu0 0
      %2147 = vmatpush1.bf16.msra.mxu0 0
      %2148 = vmatprep.subr.bf16.mxu0 0
      %2149 = vmatpush1.bf16.msra.mxu0 0
      %2150 = vmatprep.subr.bf16.mxu0 0
      %2151 = vmatpush1.bf16.msra.mxu0 0
      %2152 = vmatprep.subr.bf16.mxu0 0
      %2153 = vmatpush1.bf16.msra.mxu0 0
      %2154 = vmatprep.subr.bf16.mxu0 0
      %2155 = vmatpush1.bf16.msra.mxu0 0
      %2156 = vmatprep.mubr.bf16.mxu0 0
      %2157 = vmatmul.mubr.bf16.gmra.mrb[0].mxu0 %v2119
      %v2158 = vpop.f32.mrb[0].mxu0
      %v2159 = vadd.f32 0.0, %v2158
      %v2160 = vpop.f32.mrb[0].mxu0
      %v2161 = vpop.f32.mrb[0].mxu0
      %v2162 = vadd.f32 0.0, %v2161
      %v2163 = vpop.f32.mrb[0].mxu0
      %2164 = vdwg.mxu0
      %v2165 = vadd.f32 %v2102, %v2159
      %v2166 = vadd.f32 %v2103, %v2162
      %s2167 = scalar_lea.vmem %s231, 248
      %v2168 = vld [vmem:[%s2167] sm:$0xf]
      %v2169 = vld [vmem:[%s2167 + $0x4] sm:$0xf]
      %v2172 = vunpack.c.l.b16 %v2168
      %v2173 = vunpack.c.l.b16 %v2169
      %v2174 = vpack.c.b16 %v2173, %v2172
      %2175 = vrot.lane.b32.xlu0 %v267, 69
      %v2176 = vpop.permute.xlu0 %2175
      %2177 = vrot.lane.b32.xlu0 %v851, 69
      %v2178 = vpop.permute.xlu0 %2177
      %vm2179 = vcmask 564224
      %v2180 = vsel %vm2179, %v2176, %v2178
      %v2182 = vsel %vm270, %v2174, 0
      %v2185 = vsel %vm274, %v2180, 0
      %2187 = vmatprep.subr.bf16.mxu0 0
      %2188 = vmatpush1.bf16.msra.mxu0 %v2185
      %2189 = vmatprep.subr.bf16.mxu0 0
      %2190 = vmatpush1.bf16.msra.mxu0 0
      %2191 = vmatprep.subr.bf16.mxu0 0
      %2192 = vmatpush1.bf16.msra.mxu0 0
      %2193 = vmatprep.subr.bf16.mxu0 0
      %2194 = vmatpush1.bf16.msra.mxu0 0
      %2195 = vmatprep.subr.bf16.mxu0 0
      %2196 = vmatpush1.bf16.msra.mxu0 0
      %2197 = vmatprep.subr.bf16.mxu0 0
      %2198 = vmatpush1.bf16.msra.mxu0 0
      %2199 = vmatprep.subr.bf16.mxu0 0
      %2200 = vmatpush1.bf16.msra.mxu0 0
      %2201 = vmatprep.subr.bf16.mxu0 0
      %2202 = vmatpush1.bf16.msra.mxu0 0
      %2203 = vmatprep.subr.bf16.mxu0 0
      %2204 = vmatpush1.bf16.msra.mxu0 0
      %2205 = vmatprep.subr.bf16.mxu0 0
      %2206 = vmatpush1.bf16.msra.mxu0 0
      %2207 = vmatprep.subr.bf16.mxu0 0
      %2208 = vmatpush1.bf16.msra.mxu0 0
      %2209 = vmatprep.subr.bf16.mxu0 0
      %2210 = vmatpush1.bf16.msra.mxu0 0
      %2211 = vmatprep.subr.bf16.mxu0 0
      %2212 = vmatpush1.bf16.msra.mxu0 0
      %2213 = vmatprep.subr.bf16.mxu0 0
      %2214 = vmatpush1.bf16.msra.mxu0 0
      %2215 = vmatprep.subr.bf16.mxu0 0
      %2216 = vmatpush1.bf16.msra.mxu0 0
      %2217 = vmatprep.subr.bf16.mxu0 0
      %2218 = vmatpush1.bf16.msra.mxu0 0
      %2219 = vmatprep.mubr.bf16.mxu0 0
      %2220 = vmatmul.mubr.bf16.gmra.mrb[0].mxu0 %v2182
      %v2221 = vpop.f32.mrb[0].mxu0
      %v2222 = vadd.f32 0.0, %v2221
      %v2223 = vpop.f32.mrb[0].mxu0
      %v2224 = vpop.f32.mrb[0].mxu0
      %v2225 = vadd.f32 0.0, %v2224
      %v2226 = vpop.f32.mrb[0].mxu0
      %2227 = vdwg.mxu0
      %v2228 = vadd.f32 %v2165, %v2222
      %v2229 = vadd.f32 %v2166, %v2225
      %s2230 = scalar_lea.vmem %s231, 256
      %v2231 = vld [vmem:[%s2230] sm:$0xf]
      %v2232 = vld [vmem:[%s2230 + $0x4] sm:$0xf]
      %v2235 = vunpack.c.l.b16 %v2231
      %v2236 = vunpack.c.l.b16 %v2232
      %v2237 = vpack.c.b16 %v2236, %v2235
      %2238 = vrot.lane.b32.xlu0 %v267, 68
      %v2239 = vpop.permute.xlu0 %2238
      %2240 = vrot.lane.b32.xlu0 %v851, 68
      %v2241 = vpop.permute.xlu0 %2240
      %vm2242 = vcmask 556032
      %v2243 = vsel %vm2242, %v2239, %v2241
      %v2245 = vsel %vm270, %v2237, 0
      %v2248 = vsel %vm274, %v2243, 0
      %2250 = vmatprep.subr.bf16.mxu0 0
      %2251 = vmatpush1.bf16.msra.mxu0 %v2248
      %2252 = vmatprep.subr.bf16.mxu0 0
      %2253 = vmatpush1.bf16.msra.mxu0 0
      %2254 = vmatprep.subr.bf16.mxu0 0
      %2255 = vmatpush1.bf16.msra.mxu0 0
      %2256 = vmatprep.subr.bf16.mxu0 0
      %2257 = vmatpush1.bf16.msra.mxu0 0
      %2258 = vmatprep.subr.bf16.mxu0 0
      %2259 = vmatpush1.bf16.msra.mxu0 0
      %2260 = vmatprep.subr.bf16.mxu0 0
      %2261 = vmatpush1.bf16.msra.mxu0 0
      %2262 = vmatprep.subr.bf16.mxu0 0
      %2263 = vmatpush1.bf16.msra.mxu0 0
      %2264 = vmatprep.subr.bf16.mxu0 0
      %2265 = vmatpush1.bf16.msra.mxu0 0
      %2266 = vmatprep.subr.bf16.mxu0 0
      %2267 = vmatpush1.bf16.msra.mxu0 0
      %2268 = vmatprep.subr.bf16.mxu0 0
      %2269 = vmatpush1.bf16.msra.mxu0 0
      %2270 = vmatprep.subr.bf16.mxu0 0
      %2271 = vmatpush1.bf16.msra.mxu0 0
      %2272 = vmatprep.subr.bf16.mxu0 0
      %2273 = vmatpush1.bf16.msra.mxu0 0
      %2274 = vmatprep.subr.bf16.mxu0 0
      %2275 = vmatpush1.bf16.msra.mxu0 0
      %2276 = vmatprep.subr.bf16.mxu0 0
      %2277 = vmatpush1.bf16.msra.mxu0 0
      %2278 = vmatprep.subr.bf16.mxu0 0
      %2279 = vmatpush1.bf16.msra.mxu0 0
      %2280 = vmatprep.subr.bf16.mxu0 0
      %2281 = vmatpush1.bf16.msra.mxu0 0
      %2282 = vmatprep.mubr.bf16.mxu0 0
      %2283 = vmatmul.mubr.bf16.gmra.mrb[0].mxu0 %v2245
      %v2284 = vpop.f32.mrb[0].mxu0
      %v2285 = vadd.f32 0.0, %v2284
      %v2286 = vpop.f32.mrb[0].mxu0
      %v2287 = vpop.f32.mrb[0].mxu0
      %v2288 = vadd.f32 0.0, %v2287
      %v2289 = vpop.f32.mrb[0].mxu0
      %2290 = vdwg.mxu0
      %v2291 = vadd.f32 %v2228, %v2285
      %v2292 = vadd.f32 %v2229, %v2288
      %s2293 = scalar_lea.vmem %s231, 264
      %v2294 = vld [vmem:[%s2293] sm:$0xf]
      %v2295 = vld [vmem:[%s2293 + $0x4] sm:$0xf]
      %v2298 = vunpack.c.l.b16 %v2294
      %v2299 = vunpack.c.l.b16 %v2295
      %v2300 = vpack.c.b16 %v2299, %v2298
      %2301 = vrot.lane.b32.xlu0 %v267, 67
      %v2302 = vpop.permute.xlu0 %2301
      %2303 = vrot.lane.b32.xlu0 %v851, 67
      %v2304 = vpop.permute.xlu0 %2303
      %vm2305 = vcmask 547840
      %v2306 = vsel %vm2305, %v2302, %v2304
      %v2308 = vsel %vm270, %v2300, 0
      %v2311 = vsel %vm274, %v2306, 0
      %2313 = vmatprep.subr.bf16.mxu0 0
      %2314 = vmatpush1.bf16.msra.mxu0 %v2311
      %2315 = vmatprep.subr.bf16.mxu0 0
      %2316 = vmatpush1.bf16.msra.mxu0 0
      %2317 = vmatprep.subr.bf16.mxu0 0
      %2318 = vmatpush1.bf16.msra.mxu0 0
      %2319 = vmatprep.subr.bf16.mxu0 0
      %2320 = vmatpush1.bf16.msra.mxu0 0
      %2321 = vmatprep.subr.bf16.mxu0 0
      %2322 = vmatpush1.bf16.msra.mxu0 0
      %2323 = vmatprep.subr.bf16.mxu0 0
      %2324 = vmatpush1.bf16.msra.mxu0 0
      %2325 = vmatprep.subr.bf16.mxu0 0
      %2326 = vmatpush1.bf16.msra.mxu0 0
      %2327 = vmatprep.subr.bf16.mxu0 0
      %2328 = vmatpush1.bf16.msra.mxu0 0
      %2329 = vmatprep.subr.bf16.mxu0 0
      %2330 = vmatpush1.bf16.msra.mxu0 0
      %2331 = vmatprep.subr.bf16.mxu0 0
      %2332 = vmatpush1.bf16.msra.mxu0 0
      %2333 = vmatprep.subr.bf16.mxu0 0
      %2334 = vmatpush1.bf16.msra.mxu0 0
      %2335 = vmatprep.subr.bf16.mxu0 0
      %2336 = vmatpush1.bf16.msra.mxu0 0
      %2337 = vmatprep.subr.bf16.mxu0 0
      %2338 = vmatpush1.bf16.msra.mxu0 0
      %2339 = vmatprep.subr.bf16.mxu0 0
      %2340 = vmatpush1.bf16.msra.mxu0 0
      %2341 = vmatprep.subr.bf16.mxu0 0
      %2342 = vmatpush1.bf16.msra.mxu0 0
      %2343 = vmatprep.subr.bf16.mxu0 0
      %2344 = vmatpush1.bf16.msra.mxu0 0
      %2345 = vmatprep.mubr.bf16.mxu0 0
      %2346 = vmatmul.mubr.bf16.gmra.mrb[0].mxu0 %v2308
      %v2347 = vpop.f32.mrb[0].mxu0
      %v2348 = vadd.f32 0.0, %v2347
      %v2349 = vpop.f32.mrb[0].mxu0
      %v2350 = vpop.f32.mrb[0].mxu0
      %v2351 = vadd.f32 0.0, %v2350
      %v2352 = vpop.f32.mrb[0].mxu0
      %2353 = vdwg.mxu0
      %v2354 = vadd.f32 %v2291, %v2348
      %v2355 = vadd.f32 %v2292, %v2351
      %s2356 = scalar_lea.vmem %s231, 272
      %v2357 = vld [vmem:[%s2356] sm:$0xf]
      %v2358 = vld [vmem:[%s2356 + $0x4] sm:$0xf]
      %v2361 = vunpack.c.l.b16 %v2357
      %v2362 = vunpack.c.l.b16 %v2358
      %v2363 = vpack.c.b16 %v2362, %v2361
      %2364 = vrot.lane.b32.xlu0 %v267, 66
      %v2365 = vpop.permute.xlu0 %2364
      %2366 = vrot.lane.b32.xlu0 %v851, 66
      %v2367 = vpop.permute.xlu0 %2366
      %vm2368 = vcmask 539648
      %v2369 = vsel %vm2368, %v2365, %v2367
      %v2371 = vsel %vm270, %v2363, 0
      %v2374 = vsel %vm274, %v2369, 0
      %2376 = vmatprep.subr.bf16.mxu0 0
      %2377 = vmatpush1.bf16.msra.mxu0 %v2374
      %2378 = vmatprep.subr.bf16.mxu0 0
      %2379 = vmatpush1.bf16.msra.mxu0 0
      %2380 = vmatprep.subr.bf16.mxu0 0
      %2381 = vmatpush1.bf16.msra.mxu0 0
      %2382 = vmatprep.subr.bf16.mxu0 0
      %2383 = vmatpush1.bf16.msra.mxu0 0
      %2384 = vmatprep.subr.bf16.mxu0 0
      %2385 = vmatpush1.bf16.msra.mxu0 0
      %2386 = vmatprep.subr.bf16.mxu0 0
      %2387 = vmatpush1.bf16.msra.mxu0 0
      %2388 = vmatprep.subr.bf16.mxu0 0
      %2389 = vmatpush1.bf16.msra.mxu0 0
      %2390 = vmatprep.subr.bf16.mxu0 0
      %2391 = vmatpush1.bf16.msra.mxu0 0
      %2392 = vmatprep.subr.bf16.mxu0 0
      %2393 = vmatpush1.bf16.msra.mxu0 0
      %2394 = vmatprep.subr.bf16.mxu0 0
      %2395 = vmatpush1.bf16.msra.mxu0 0
      %2396 = vmatprep.subr.bf16.mxu0 0
      %2397 = vmatpush1.bf16.msra.mxu0 0
      %2398 = vmatprep.subr.bf16.mxu0 0
      %2399 = vmatpush1.bf16.msra.mxu0 0
      %2400 = vmatprep.subr.bf16.mxu0 0
      %2401 = vmatpush1.bf16.msra.mxu0 0
      %2402 = vmatprep.subr.bf16.mxu0 0
      %2403 = vmatpush1.bf16.msra.mxu0 0
      %2404 = vmatprep.subr.bf16.mxu0 0
      %2405 = vmatpush1.bf16.msra.mxu0 0
      %2406 = vmatprep.subr.bf16.mxu0 0
      %2407 = vmatpush1.bf16.msra.mxu0 0
      %2408 = vmatprep.mubr.bf16.mxu0 0
      %2409 = vmatmul.mubr.bf16.gmra.mrb[0].mxu0 %v2371
      %v2410 = vpop.f32.mrb[0].mxu0
      %v2411 = vadd.f32 0.0, %v2410
      %v2412 = vpop.f32.mrb[0].mxu0
      %v2413 = vpop.f32.mrb[0].mxu0
      %v2414 = vadd.f32 0.0, %v2413
      %v2415 = vpop.f32.mrb[0].mxu0
      %2416 = vdwg.mxu0
      %v2417 = vadd.f32 %v2354, %v2411
      %v2418 = vadd.f32 %v2355, %v2414
      %s2419 = scalar_lea.vmem %s231, 280
      %v2420 = vld [vmem:[%s2419] sm:$0xf]
      %v2421 = vld [vmem:[%s2419 + $0x4] sm:$0xf]
      %v2424 = vunpack.c.l.b16 %v2420
      %v2425 = vunpack.c.l.b16 %v2421
      %v2426 = vpack.c.b16 %v2425, %v2424
      %2427 = vrot.lane.b32.xlu0 %v267, 58
      %v2428 = vpop.permute.xlu0 %2427
      %2429 = vrot.lane.b32.xlu0 %v851, 58
      %v2430 = vpop.permute.xlu0 %2429
      %vm2431 = vcmask 474112
      %v2432 = vsel %vm2431, %v2428, %v2430
      %v2434 = vsel %vm270, %v2426, 0
      %v2437 = vsel %vm274, %v2432, 0
      %2439 = vmatprep.subr.bf16.mxu0 0
      %2440 = vmatpush1.bf16.msra.mxu0 %v2437
      %2441 = vmatprep.subr.bf16.mxu0 0
      %2442 = vmatpush1.bf16.msra.mxu0 0
      %2443 = vmatprep.subr.bf16.mxu0 0
      %2444 = vmatpush1.bf16.msra.mxu0 0
      %2445 = vmatprep.subr.bf16.mxu0 0
      %2446 = vmatpush1.bf16.msra.mxu0 0
      %2447 = vmatprep.subr.bf16.mxu0 0
      %2448 = vmatpush1.bf16.msra.mxu0 0
      %2449 = vmatprep.subr.bf16.mxu0 0
      %2450 = vmatpush1.bf16.msra.mxu0 0
      %2451 = vmatprep.subr.bf16.mxu0 0
      %2452 = vmatpush1.bf16.msra.mxu0 0
      %2453 = vmatprep.subr.bf16.mxu0 0
      %2454 = vmatpush1.bf16.msra.mxu0 0
      %2455 = vmatprep.subr.bf16.mxu0 0
      %2456 = vmatpush1.bf16.msra.mxu0 0
      %2457 = vmatprep.subr.bf16.mxu0 0
      %2458 = vmatpush1.bf16.msra.mxu0 0
      %2459 = vmatprep.subr.bf16.mxu0 0
      %2460 = vmatpush1.bf16.msra.mxu0 0
      %2461 = vmatprep.subr.bf16.mxu0 0
      %2462 = vmatpush1.bf16.msra.mxu0 0
      %2463 = vmatprep.subr.bf16.mxu0 0
      %2464 = vmatpush1.bf16.msra.mxu0 0
      %2465 = vmatprep.subr.bf16.mxu0 0
      %2466 = vmatpush1.bf16.msra.mxu0 0
      %2467 = vmatprep.subr.bf16.mxu0 0
      %2468 = vmatpush1.bf16.msra.mxu0 0
      %2469 = vmatprep.subr.bf16.mxu0 0
      %2470 = vmatpush1.bf16.msra.mxu0 0
      %2471 = vmatprep.mubr.bf16.mxu0 0
      %2472 = vmatmul.mubr.bf16.gmra.mrb[0].mxu0 %v2434
      %v2473 = vpop.f32.mrb[0].mxu0
      %v2474 = vadd.f32 0.0, %v2473
      %v2475 = vpop.f32.mrb[0].mxu0
      %v2476 = vpop.f32.mrb[0].mxu0
      %v2477 = vadd.f32 0.0, %v2476
      %v2478 = vpop.f32.mrb[0].mxu0
      %2479 = vdwg.mxu0
      %v2480 = vadd.f32 %v2417, %v2474
      %v2481 = vadd.f32 %v2418, %v2477
      %s2482 = scalar_lea.vmem %s231, 288
      %v2483 = vld [vmem:[%s2482] sm:$0xf]
      %v2484 = vld [vmem:[%s2482 + $0x4] sm:$0xf]
      %v2487 = vunpack.c.l.b16 %v2483
      %v2488 = vunpack.c.l.b16 %v2484
      %v2489 = vpack.c.b16 %v2488, %v2487
      %2490 = vrot.lane.b32.xlu0 %v267, 57
      %v2491 = vpop.permute.xlu0 %2490
      %2492 = vrot.lane.b32.xlu0 %v851, 57
      %v2493 = vpop.permute.xlu0 %2492
      %vm2494 = vcmask 465920
      %v2495 = vsel %vm2494, %v2491, %v2493
      %v2497 = vsel %vm270, %v2489, 0
      %v2500 = vsel %vm274, %v2495, 0
      %2502 = vmatprep.subr.bf16.mxu0 0
      %2503 = vmatpush1.bf16.msra.mxu0 %v2500
      %2504 = vmatprep.subr.bf16.mxu0 0
      %2505 = vmatpush1.bf16.msra.mxu0 0
      %2506 = vmatprep.subr.bf16.mxu0 0
      %2507 = vmatpush1.bf16.msra.mxu0 0
      %2508 = vmatprep.subr.bf16.mxu0 0
      %2509 = vmatpush1.bf16.msra.mxu0 0
      %2510 = vmatprep.subr.bf16.mxu0 0
      %2511 = vmatpush1.bf16.msra.mxu0 0
      %2512 = vmatprep.subr.bf16.mxu0 0
      %2513 = vmatpush1.bf16.msra.mxu0 0
      %2514 = vmatprep.subr.bf16.mxu0 0
      %2515 = vmatpush1.bf16.msra.mxu0 0
      %2516 = vmatprep.subr.bf16.mxu0 0
      %2517 = vmatpush1.bf16.msra.mxu0 0
      %2518 = vmatprep.subr.bf16.mxu0 0
      %2519 = vmatpush1.bf16.msra.mxu0 0
      %2520 = vmatprep.subr.bf16.mxu0 0
      %2521 = vmatpush1.bf16.msra.mxu0 0
      %2522 = vmatprep.subr.bf16.mxu0 0
      %2523 = vmatpush1.bf16.msra.mxu0 0
      %2524 = vmatprep.subr.bf16.mxu0 0
      %2525 = vmatpush1.bf16.msra.mxu0 0
      %2526 = vmatprep.subr.bf16.mxu0 0
      %2527 = vmatpush1.bf16.msra.mxu0 0
      %2528 = vmatprep.subr.bf16.mxu0 0
      %2529 = vmatpush1.bf16.msra.mxu0 0
      %2530 = vmatprep.subr.bf16.mxu0 0
      %2531 = vmatpush1.bf16.msra.mxu0 0
      %2532 = vmatprep.subr.bf16.mxu0 0
      %2533 = vmatpush1.bf16.msra.mxu0 0
      %2534 = vmatprep.mubr.bf16.mxu0 0
      %2535 = vmatmul.mubr.bf16.gmra.mrb[0].mxu0 %v2497
      %v2536 = vpop.f32.mrb[0].mxu0
      %v2537 = vadd.f32 0.0, %v2536
      %v2538 = vpop.f32.mrb[0].mxu0
      %v2539 = vpop.f32.mrb[0].mxu0
      %v2540 = vadd.f32 0.0, %v2539
      %v2541 = vpop.f32.mrb[0].mxu0
      %2542 = vdwg.mxu0
      %v2543 = vadd.f32 %v2480, %v2537
      %v2544 = vadd.f32 %v2481, %v2540
      %s2545 = scalar_lea.vmem %s231, 296
      %v2546 = vld [vmem:[%s2545] sm:$0xf]
      %v2547 = vld [vmem:[%s2545 + $0x4] sm:$0xf]
      %v2550 = vunpack.c.l.b16 %v2546
      %v2551 = vunpack.c.l.b16 %v2547
      %v2552 = vpack.c.b16 %v2551, %v2550
      %2553 = vrot.lane.b32.xlu0 %v267, 56
      %v2554 = vpop.permute.xlu0 %2553
      %2555 = vrot.lane.b32.xlu0 %v851, 56
      %v2556 = vpop.permute.xlu0 %2555
      %vm2557 = vcmask 457728
      %v2558 = vsel %vm2557, %v2554, %v2556
      %v2560 = vsel %vm270, %v2552, 0
      %v2563 = vsel %vm274, %v2558, 0
      %2565 = vmatprep.subr.bf16.mxu0 0
      %2566 = vmatpush1.bf16.msra.mxu0 %v2563
      %2567 = vmatprep.subr.bf16.mxu0 0
      %2568 = vmatpush1.bf16.msra.mxu0 0
      %2569 = vmatprep.subr.bf16.mxu0 0
      %2570 = vmatpush1.bf16.msra.mxu0 0
      %2571 = vmatprep.subr.bf16.mxu0 0
      %2572 = vmatpush1.bf16.msra.mxu0 0
      %2573 = vmatprep.subr.bf16.mxu0 0
      %2574 = vmatpush1.bf16.msra.mxu0 0
      %2575 = vmatprep.subr.bf16.mxu0 0
      %2576 = vmatpush1.bf16.msra.mxu0 0
      %2577 = vmatprep.subr.bf16.mxu0 0
      %2578 = vmatpush1.bf16.msra.mxu0 0
      %2579 = vmatprep.subr.bf16.mxu0 0
      %2580 = vmatpush1.bf16.msra.mxu0 0
      %2581 = vmatprep.subr.bf16.mxu0 0
      %2582 = vmatpush1.bf16.msra.mxu0 0
      %2583 = vmatprep.subr.bf16.mxu0 0
      %2584 = vmatpush1.bf16.msra.mxu0 0
      %2585 = vmatprep.subr.bf16.mxu0 0
      %2586 = vmatpush1.bf16.msra.mxu0 0
      %2587 = vmatprep.subr.bf16.mxu0 0
      %2588 = vmatpush1.bf16.msra.mxu0 0
      %2589 = vmatprep.subr.bf16.mxu0 0
      %2590 = vmatpush1.bf16.msra.mxu0 0
      %2591 = vmatprep.subr.bf16.mxu0 0
      %2592 = vmatpush1.bf16.msra.mxu0 0
      %2593 = vmatprep.subr.bf16.mxu0 0
      %2594 = vmatpush1.bf16.msra.mxu0 0
      %2595 = vmatprep.subr.bf16.mxu0 0
      %2596 = vmatpush1.bf16.msra.mxu0 0
      %2597 = vmatprep.mubr.bf16.mxu0 0
      %2598 = vmatmul.mubr.bf16.gmra.mrb[0].mxu0 %v2560
      %v2599 = vpop.f32.mrb[0].mxu0
      %v2600 = vadd.f32 0.0, %v2599
      %v2601 = vpop.f32.mrb[0].mxu0
      %v2602 = vpop.f32.mrb[0].mxu0
      %v2603 = vadd.f32 0.0, %v2602
      %v2604 = vpop.f32.mrb[0].mxu0
      %2605 = vdwg.mxu0
      %v2606 = vadd.f32 %v2543, %v2600
      %v2607 = vadd.f32 %v2544, %v2603
      %s2608 = scalar_lea.vmem %s231, 304
      %v2609 = vld [vmem:[%s2608] sm:$0xf]
      %v2610 = vld [vmem:[%s2608 + $0x4] sm:$0xf]
      %v2613 = vunpack.c.l.b16 %v2609
      %v2614 = vunpack.c.l.b16 %v2610
      %v2615 = vpack.c.b16 %v2614, %v2613
      %2616 = vrot.lane.b32.xlu0 %v267, 55
      %v2617 = vpop.permute.xlu0 %2616
      %2618 = vrot.lane.b32.xlu0 %v851, 55
      %v2619 = vpop.permute.xlu0 %2618
      %vm2620 = vcmask 449536
      %v2621 = vsel %vm2620, %v2617, %v2619
      %v2623 = vsel %vm270, %v2615, 0
      %v2626 = vsel %vm274, %v2621, 0
      %2628 = vmatprep.subr.bf16.mxu0 0
      %2629 = vmatpush1.bf16.msra.mxu0 %v2626
      %2630 = vmatprep.subr.bf16.mxu0 0
      %2631 = vmatpush1.bf16.msra.mxu0 0
      %2632 = vmatprep.subr.bf16.mxu0 0
      %2633 = vmatpush1.bf16.msra.mxu0 0
      %2634 = vmatprep.subr.bf16.mxu0 0
      %2635 = vmatpush1.bf16.msra.mxu0 0
      %2636 = vmatprep.subr.bf16.mxu0 0
      %2637 = vmatpush1.bf16.msra.mxu0 0
      %2638 = vmatprep.subr.bf16.mxu0 0
      %2639 = vmatpush1.bf16.msra.mxu0 0
      %2640 = vmatprep.subr.bf16.mxu0 0
      %2641 = vmatpush1.bf16.msra.mxu0 0
      %2642 = vmatprep.subr.bf16.mxu0 0
      %2643 = vmatpush1.bf16.msra.mxu0 0
      %2644 = vmatprep.subr.bf16.mxu0 0
      %2645 = vmatpush1.bf16.msra.mxu0 0
      %2646 = vmatprep.subr.bf16.mxu0 0
      %2647 = vmatpush1.bf16.msra.mxu0 0
      %2648 = vmatprep.subr.bf16.mxu0 0
      %2649 = vmatpush1.bf16.msra.mxu0 0
      %2650 = vmatprep.subr.bf16.mxu0 0
      %2651 = vmatpush1.bf16.msra.mxu0 0
      %2652 = vmatprep.subr.bf16.mxu0 0
      %2653 = vmatpush1.bf16.msra.mxu0 0
      %2654 = vmatprep.subr.bf16.mxu0 0
      %2655 = vmatpush1.bf16.msra.mxu0 0
      %2656 = vmatprep.subr.bf16.mxu0 0
      %2657 = vmatpush1.bf16.msra.mxu0 0
      %2658 = vmatprep.subr.bf16.mxu0 0
      %2659 = vmatpush1.bf16.msra.mxu0 0
      %2660 = vmatprep.mubr.bf16.mxu0 0
      %2661 = vmatmul.mubr.bf16.gmra.mrb[0].mxu0 %v2623
      %v2662 = vpop.f32.mrb[0].mxu0
      %v2663 = vadd.f32 0.0, %v2662
      %v2664 = vpop.f32.mrb[0].mxu0
      %v2665 = vpop.f32.mrb[0].mxu0
      %v2666 = vadd.f32 0.0, %v2665
      %v2667 = vpop.f32.mrb[0].mxu0
      %2668 = vdwg.mxu0
      %v2669 = vadd.f32 %v2606, %v2663
      %v2670 = vadd.f32 %v2607, %v2666
      %s2671 = scalar_lea.vmem %s231, 312
      %v2672 = vld [vmem:[%s2671] sm:$0xf]
      %v2673 = vld [vmem:[%s2671 + $0x4] sm:$0xf]
      %v2676 = vunpack.c.l.b16 %v2672
      %v2677 = vunpack.c.l.b16 %v2673
      %v2678 = vpack.c.b16 %v2677, %v2676
      %2679 = vrot.lane.b32.xlu0 %v267, 54
      %v2680 = vpop.permute.xlu0 %2679
      %2681 = vrot.lane.b32.xlu0 %v851, 54
      %v2682 = vpop.permute.xlu0 %2681
      %vm2683 = vcmask 441344
      %v2684 = vsel %vm2683, %v2680, %v2682
      %v2686 = vsel %vm270, %v2678, 0
      %v2689 = vsel %vm274, %v2684, 0
      %2691 = vmatprep.subr.bf16.mxu0 0
      %2692 = vmatpush1.bf16.msra.mxu0 %v2689
      %2693 = vmatprep.subr.bf16.mxu0 0
      %2694 = vmatpush1.bf16.msra.mxu0 0
      %2695 = vmatprep.subr.bf16.mxu0 0
      %2696 = vmatpush1.bf16.msra.mxu0 0
      %2697 = vmatprep.subr.bf16.mxu0 0
      %2698 = vmatpush1.bf16.msra.mxu0 0
      %2699 = vmatprep.subr.bf16.mxu0 0
      %2700 = vmatpush1.bf16.msra.mxu0 0
      %2701 = vmatprep.subr.bf16.mxu0 0
      %2702 = vmatpush1.bf16.msra.mxu0 0
      %2703 = vmatprep.subr.bf16.mxu0 0
      %2704 = vmatpush1.bf16.msra.mxu0 0
      %2705 = vmatprep.subr.bf16.mxu0 0
      %2706 = vmatpush1.bf16.msra.mxu0 0
      %2707 = vmatprep.subr.bf16.mxu0 0
      %2708 = vmatpush1.bf16.msra.mxu0 0
      %2709 = vmatprep.subr.bf16.mxu0 0
      %2710 = vmatpush1.bf16.msra.mxu0 0
      %2711 = vmatprep.subr.bf16.mxu0 0
      %2712 = vmatpush1.bf16.msra.mxu0 0
      %2713 = vmatprep.subr.bf16.mxu0 0
      %2714 = vmatpush1.bf16.msra.mxu0 0
      %2715 = vmatprep.subr.bf16.mxu0 0
      %2716 = vmatpush1.bf16.msra.mxu0 0
      %2717 = vmatprep.subr.bf16.mxu0 0
      %2718 = vmatpush1.bf16.msra.mxu0 0
      %2719 = vmatprep.subr.bf16.mxu0 0
      %2720 = vmatpush1.bf16.msra.mxu0 0
      %2721 = vmatprep.subr.bf16.mxu0 0
      %2722 = vmatpush1.bf16.msra.mxu0 0
      %2723 = vmatprep.mubr.bf16.mxu0 0
      %2724 = vmatmul.mubr.bf16.gmra.mrb[0].mxu0 %v2686
      %v2725 = vpop.f32.mrb[0].mxu0
      %v2726 = vadd.f32 0.0, %v2725
      %v2727 = vpop.f32.mrb[0].mxu0
      %v2728 = vpop.f32.mrb[0].mxu0
      %v2729 = vadd.f32 0.0, %v2728
      %v2730 = vpop.f32.mrb[0].mxu0
      %2731 = vdwg.mxu0
      %v2732 = vadd.f32 %v2669, %v2726
      %v2733 = vadd.f32 %v2670, %v2729
      %s2734 = scalar_lea.vmem %s231, 320
      %v2735 = vld [vmem:[%s2734] sm:$0xf]
      %v2736 = vld [vmem:[%s2734 + $0x4] sm:$0xf]
      %v2739 = vunpack.c.l.b16 %v2735
      %v2740 = vunpack.c.l.b16 %v2736
      %v2741 = vpack.c.b16 %v2740, %v2739
      %2742 = vrot.lane.b32.xlu0 %v267, 53
      %v2743 = vpop.permute.xlu0 %2742
      %2744 = vrot.lane.b32.xlu0 %v851, 53
      %v2745 = vpop.permute.xlu0 %2744
      %vm2746 = vcmask 433152
      %v2747 = vsel %vm2746, %v2743, %v2745
      %v2749 = vsel %vm270, %v2741, 0
      %v2752 = vsel %vm274, %v2747, 0
      %2754 = vmatprep.subr.bf16.mxu0 0
      %2755 = vmatpush1.bf16.msra.mxu0 %v2752
      %2756 = vmatprep.subr.bf16.mxu0 0
      %2757 = vmatpush1.bf16.msra.mxu0 0
      %2758 = vmatprep.subr.bf16.mxu0 0
      %2759 = vmatpush1.bf16.msra.mxu0 0
      %2760 = vmatprep.subr.bf16.mxu0 0
      %2761 = vmatpush1.bf16.msra.mxu0 0
      %2762 = vmatprep.subr.bf16.mxu0 0
      %2763 = vmatpush1.bf16.msra.mxu0 0
      %2764 = vmatprep.subr.bf16.mxu0 0
      %2765 = vmatpush1.bf16.msra.mxu0 0
      %2766 = vmatprep.subr.bf16.mxu0 0
      %2767 = vmatpush1.bf16.msra.mxu0 0
      %2768 = vmatprep.subr.bf16.mxu0 0
      %2769 = vmatpush1.bf16.msra.mxu0 0
      %2770 = vmatprep.subr.bf16.mxu0 0
      %2771 = vmatpush1.bf16.msra.mxu0 0
      %2772 = vmatprep.subr.bf16.mxu0 0
      %2773 = vmatpush1.bf16.msra.mxu0 0
      %2774 = vmatprep.subr.bf16.mxu0 0
      %2775 = vmatpush1.bf16.msra.mxu0 0
      %2776 = vmatprep.subr.bf16.mxu0 0
      %2777 = vmatpush1.bf16.msra.mxu0 0
      %2778 = vmatprep.subr.bf16.mxu0 0
      %2779 = vmatpush1.bf16.msra.mxu0 0
      %2780 = vmatprep.subr.bf16.mxu0 0
      %2781 = vmatpush1.bf16.msra.mxu0 0
      %2782 = vmatprep.subr.bf16.mxu0 0
      %2783 = vmatpush1.bf16.msra.mxu0 0
      %2784 = vmatprep.subr.bf16.mxu0 0
      %2785 = vmatpush1.bf16.msra.mxu0 0
      %2786 = vmatprep.mubr.bf16.mxu0 0
      %2787 = vmatmul.mubr.bf16.gmra.mrb[0].mxu0 %v2749
      %v2788 = vpop.f32.mrb[0].mxu0
      %v2789 = vadd.f32 0.0, %v2788
      %v2790 = vpop.f32.mrb[0].mxu0
      %v2791 = vpop.f32.mrb[0].mxu0
      %v2792 = vadd.f32 0.0, %v2791
      %v2793 = vpop.f32.mrb[0].mxu0
      %2794 = vdwg.mxu0
      %v2795 = vadd.f32 %v2732, %v2789
      %v2796 = vadd.f32 %v2733, %v2792
      %s2797 = scalar_lea.vmem %s231, 328
      %v2798 = vld [vmem:[%s2797] sm:$0xf]
      %v2799 = vld [vmem:[%s2797 + $0x4] sm:$0xf]
      %v2802 = vunpack.c.l.b16 %v2798
      %v2803 = vunpack.c.l.b16 %v2799
      %v2804 = vpack.c.b16 %v2803, %v2802
      %2805 = vrot.lane.b32.xlu0 %v267, 52
      %v2806 = vpop.permute.xlu0 %2805
      %2807 = vrot.lane.b32.xlu0 %v851, 52
      %v2808 = vpop.permute.xlu0 %2807
      %vm2809 = vcmask 424960
      %v2810 = vsel %vm2809, %v2806, %v2808
      %v2812 = vsel %vm270, %v2804, 0
      %v2815 = vsel %vm274, %v2810, 0
      %2817 = vmatprep.subr.bf16.mxu0 0
      %2818 = vmatpush1.bf16.msra.mxu0 %v2815
      %2819 = vmatprep.subr.bf16.mxu0 0
      %2820 = vmatpush1.bf16.msra.mxu0 0
      %2821 = vmatprep.subr.bf16.mxu0 0
      %2822 = vmatpush1.bf16.msra.mxu0 0
      %2823 = vmatprep.subr.bf16.mxu0 0
      %2824 = vmatpush1.bf16.msra.mxu0 0
      %2825 = vmatprep.subr.bf16.mxu0 0
      %2826 = vmatpush1.bf16.msra.mxu0 0
      %2827 = vmatprep.subr.bf16.mxu0 0
      %2828 = vmatpush1.bf16.msra.mxu0 0
      %2829 = vmatprep.subr.bf16.mxu0 0
      %2830 = vmatpush1.bf16.msra.mxu0 0
      %2831 = vmatprep.subr.bf16.mxu0 0
      %2832 = vmatpush1.bf16.msra.mxu0 0
      %2833 = vmatprep.subr.bf16.mxu0 0
      %2834 = vmatpush1.bf16.msra.mxu0 0
      %2835 = vmatprep.subr.bf16.mxu0 0
      %2836 = vmatpush1.bf16.msra.mxu0 0
      %2837 = vmatprep.subr.bf16.mxu0 0
      %2838 = vmatpush1.bf16.msra.mxu0 0
      %2839 = vmatprep.subr.bf16.mxu0 0
      %2840 = vmatpush1.bf16.msra.mxu0 0
      %2841 = vmatprep.subr.bf16.mxu0 0
      %2842 = vmatpush1.bf16.msra.mxu0 0
      %2843 = vmatprep.subr.bf16.mxu0 0
      %2844 = vmatpush1.bf16.msra.mxu0 0
      %2845 = vmatprep.subr.bf16.mxu0 0
      %2846 = vmatpush1.bf16.msra.mxu0 0
      %2847 = vmatprep.subr.bf16.mxu0 0
      %2848 = vmatpush1.bf16.msra.mxu0 0
      %2849 = vmatprep.mubr.bf16.mxu0 0
      %2850 = vmatmul.mubr.bf16.gmra.mrb[0].mxu0 %v2812
      %v2851 = vpop.f32.mrb[0].mxu0
      %v2852 = vadd.f32 0.0, %v2851
      %v2853 = vpop.f32.mrb[0].mxu0
      %v2854 = vpop.f32.mrb[0].mxu0
      %v2855 = vadd.f32 0.0, %v2854
      %v2856 = vpop.f32.mrb[0].mxu0
      %2857 = vdwg.mxu0
      %v2858 = vadd.f32 %v2795, %v2852
      %v2859 = vadd.f32 %v2796, %v2855
      %s2860 = scalar_lea.vmem %s231, 336
      %v2861 = vld [vmem:[%s2860] sm:$0xf]
      %v2862 = vld [vmem:[%s2860 + $0x4] sm:$0xf]
      %v2865 = vunpack.c.l.b16 %v2861
      %v2866 = vunpack.c.l.b16 %v2862
      %v2867 = vpack.c.b16 %v2866, %v2865
      %2868 = vrot.lane.b32.xlu0 %v267, 44
      %v2869 = vpop.permute.xlu0 %2868
      %2870 = vrot.lane.b32.xlu0 %v851, 44
      %v2871 = vpop.permute.xlu0 %2870
      %vm2872 = vcmask 359424
      %v2873 = vsel %vm2872, %v2869, %v2871
      %v2875 = vsel %vm270, %v2867, 0
      %v2878 = vsel %vm274, %v2873, 0
      %2880 = vmatprep.subr.bf16.mxu0 0
      %2881 = vmatpush1.bf16.msra.mxu0 %v2878
      %2882 = vmatprep.subr.bf16.mxu0 0
      %2883 = vmatpush1.bf16.msra.mxu0 0
      %2884 = vmatprep.subr.bf16.mxu0 0
      %2885 = vmatpush1.bf16.msra.mxu0 0
      %2886 = vmatprep.subr.bf16.mxu0 0
      %2887 = vmatpush1.bf16.msra.mxu0 0
      %2888 = vmatprep.subr.bf16.mxu0 0
      %2889 = vmatpush1.bf16.msra.mxu0 0
      %2890 = vmatprep.subr.bf16.mxu0 0
      %2891 = vmatpush1.bf16.msra.mxu0 0
      %2892 = vmatprep.subr.bf16.mxu0 0
      %2893 = vmatpush1.bf16.msra.mxu0 0
      %2894 = vmatprep.subr.bf16.mxu0 0
      %2895 = vmatpush1.bf16.msra.mxu0 0
      %2896 = vmatprep.subr.bf16.mxu0 0
      %2897 = vmatpush1.bf16.msra.mxu0 0
      %2898 = vmatprep.subr.bf16.mxu0 0
      %2899 = vmatpush1.bf16.msra.mxu0 0
      %2900 = vmatprep.subr.bf16.mxu0 0
      %2901 = vmatpush1.bf16.msra.mxu0 0
      %2902 = vmatprep.subr.bf16.mxu0 0
      %2903 = vmatpush1.bf16.msra.mxu0 0
      %2904 = vmatprep.subr.bf16.mxu0 0
      %2905 = vmatpush1.bf16.msra.mxu0 0
      %2906 = vmatprep.subr.bf16.mxu0 0
      %2907 = vmatpush1.bf16.msra.mxu0 0
      %2908 = vmatprep.subr.bf16.mxu0 0
      %2909 = vmatpush1.bf16.msra.mxu0 0
      %2910 = vmatprep.subr.bf16.mxu0 0
      %2911 = vmatpush1.bf16.msra.mxu0 0
      %2912 = vmatprep.mubr.bf16.mxu0 0
      %2913 = vmatmul.mubr.bf16.gmra.mrb[0].mxu0 %v2875
      %v2914 = vpop.f32.mrb[0].mxu0
      %v2915 = vadd.f32 0.0, %v2914
      %v2916 = vpop.f32.mrb[0].mxu0
      %v2917 = vpop.f32.mrb[0].mxu0
      %v2918 = vadd.f32 0.0, %v2917
      %v2919 = vpop.f32.mrb[0].mxu0
      %2920 = vdwg.mxu0
      %v2921 = vadd.f32 %v2858, %v2915
      %v2922 = vadd.f32 %v2859, %v2918
      %s2923 = scalar_lea.vmem %s231, 344
      %v2924 = vld [vmem:[%s2923] sm:$0xf]
      %v2925 = vld [vmem:[%s2923 + $0x4] sm:$0xf]
      %v2928 = vunpack.c.l.b16 %v2924
      %v2929 = vunpack.c.l.b16 %v2925
      %v2930 = vpack.c.b16 %v2929, %v2928
      %2931 = vrot.lane.b32.xlu0 %v267, 43
      %v2932 = vpop.permute.xlu0 %2931
      %2933 = vrot.lane.b32.xlu0 %v851, 43
      %v2934 = vpop.permute.xlu0 %2933
      %vm2935 = vcmask 351232
      %v2936 = vsel %vm2935, %v2932, %v2934
      %v2938 = vsel %vm270, %v2930, 0
      %v2941 = vsel %vm274, %v2936, 0
      %2943 = vmatprep.subr.bf16.mxu0 0
      %2944 = vmatpush1.bf16.msra.mxu0 %v2941
      %2945 = vmatprep.subr.bf16.mxu0 0
      %2946 = vmatpush1.bf16.msra.mxu0 0
      %2947 = vmatprep.subr.bf16.mxu0 0
      %2948 = vmatpush1.bf16.msra.mxu0 0
      %2949 = vmatprep.subr.bf16.mxu0 0
      %2950 = vmatpush1.bf16.msra.mxu0 0
      %2951 = vmatprep.subr.bf16.mxu0 0
      %2952 = vmatpush1.bf16.msra.mxu0 0
      %2953 = vmatprep.subr.bf16.mxu0 0
      %2954 = vmatpush1.bf16.msra.mxu0 0
      %2955 = vmatprep.subr.bf16.mxu0 0
      %2956 = vmatpush1.bf16.msra.mxu0 0
      %2957 = vmatprep.subr.bf16.mxu0 0
      %2958 = vmatpush1.bf16.msra.mxu0 0
      %2959 = vmatprep.subr.bf16.mxu0 0
      %2960 = vmatpush1.bf16.msra.mxu0 0
      %2961 = vmatprep.subr.bf16.mxu0 0
      %2962 = vmatpush1.bf16.msra.mxu0 0
      %2963 = vmatprep.subr.bf16.mxu0 0
      %2964 = vmatpush1.bf16.msra.mxu0 0
      %2965 = vmatprep.subr.bf16.mxu0 0
      %2966 = vmatpush1.bf16.msra.mxu0 0
      %2967 = vmatprep.subr.bf16.mxu0 0
      %2968 = vmatpush1.bf16.msra.mxu0 0
      %2969 = vmatprep.subr.bf16.mxu0 0
      %2970 = vmatpush1.bf16.msra.mxu0 0
      %2971 = vmatprep.subr.bf16.mxu0 0
      %2972 = vmatpush1.bf16.msra.mxu0 0
      %2973 = vmatprep.subr.bf16.mxu0 0
      %2974 = vmatpush1.bf16.msra.mxu0 0
      %2975 = vmatprep.mubr.bf16.mxu0 0
      %2976 = vmatmul.mubr.bf16.gmra.mrb[0].mxu0 %v2938
      %v2977 = vpop.f32.mrb[0].mxu0
      %v2978 = vadd.f32 0.0, %v2977
      %v2979 = vpop.f32.mrb[0].mxu0
      %v2980 = vpop.f32.mrb[0].mxu0
      %v2981 = vadd.f32 0.0, %v2980
      %v2982 = vpop.f32.mrb[0].mxu0
      %2983 = vdwg.mxu0
      %v2984 = vadd.f32 %v2921, %v2978
      %v2985 = vadd.f32 %v2922, %v2981
      %s2986 = scalar_lea.vmem %s231, 352
      %v2987 = vld [vmem:[%s2986] sm:$0xf]
      %v2988 = vld [vmem:[%s2986 + $0x4] sm:$0xf]
      %v2991 = vunpack.c.l.b16 %v2987
      %v2992 = vunpack.c.l.b16 %v2988
      %v2993 = vpack.c.b16 %v2992, %v2991
      %2994 = vrot.lane.b32.xlu0 %v267, 42
      %v2995 = vpop.permute.xlu0 %2994
      %2996 = vrot.lane.b32.xlu0 %v851, 42
      %v2997 = vpop.permute.xlu0 %2996
      %vm2998 = vcmask 343040
      %v2999 = vsel %vm2998, %v2995, %v2997
      %v3001 = vsel %vm270, %v2993, 0
      %v3004 = vsel %vm274, %v2999, 0
      %3006 = vmatprep.subr.bf16.mxu0 0
      %3007 = vmatpush1.bf16.msra.mxu0 %v3004
      %3008 = vmatprep.subr.bf16.mxu0 0
      %3009 = vmatpush1.bf16.msra.mxu0 0
      %3010 = vmatprep.subr.bf16.mxu0 0
      %3011 = vmatpush1.bf16.msra.mxu0 0
      %3012 = vmatprep.subr.bf16.mxu0 0
      %3013 = vmatpush1.bf16.msra.mxu0 0
      %3014 = vmatprep.subr.bf16.mxu0 0
      %3015 = vmatpush1.bf16.msra.mxu0 0
      %3016 = vmatprep.subr.bf16.mxu0 0
      %3017 = vmatpush1.bf16.msra.mxu0 0
      %3018 = vmatprep.subr.bf16.mxu0 0
      %3019 = vmatpush1.bf16.msra.mxu0 0
      %3020 = vmatprep.subr.bf16.mxu0 0
      %3021 = vmatpush1.bf16.msra.mxu0 0
      %3022 = vmatprep.subr.bf16.mxu0 0
      %3023 = vmatpush1.bf16.msra.mxu0 0
      %3024 = vmatprep.subr.bf16.mxu0 0
      %3025 = vmatpush1.bf16.msra.mxu0 0
      %3026 = vmatprep.subr.bf16.mxu0 0
      %3027 = vmatpush1.bf16.msra.mxu0 0
      %3028 = vmatprep.subr.bf16.mxu0 0
      %3029 = vmatpush1.bf16.msra.mxu0 0
      %3030 = vmatprep.subr.bf16.mxu0 0
      %3031 = vmatpush1.bf16.msra.mxu0 0
      %3032 = vmatprep.subr.bf16.mxu0 0
      %3033 = vmatpush1.bf16.msra.mxu0 0
      %3034 = vmatprep.subr.bf16.mxu0 0
      %3035 = vmatpush1.bf16.msra.mxu0 0
      %3036 = vmatprep.subr.bf16.mxu0 0
      %3037 = vmatpush1.bf16.msra.mxu0 0
      %3038 = vmatprep.mubr.bf16.mxu0 0
      %3039 = vmatmul.mubr.bf16.gmra.mrb[0].mxu0 %v3001
      %v3040 = vpop.f32.mrb[0].mxu0
      %v3041 = vadd.f32 0.0, %v3040
      %v3042 = vpop.f32.mrb[0].mxu0
      %v3043 = vpop.f32.mrb[0].mxu0
      %v3044 = vadd.f32 0.0, %v3043
      %v3045 = vpop.f32.mrb[0].mxu0
      %3046 = vdwg.mxu0
      %v3047 = vadd.f32 %v2984, %v3041
      %v3048 = vadd.f32 %v2985, %v3044
      %s3049 = scalar_lea.vmem %s231, 360
      %v3050 = vld [vmem:[%s3049] sm:$0xf]
      %v3051 = vld [vmem:[%s3049 + $0x4] sm:$0xf]
      %v3054 = vunpack.c.l.b16 %v3050
      %v3055 = vunpack.c.l.b16 %v3051
      %v3056 = vpack.c.b16 %v3055, %v3054
      %3057 = vrot.lane.b32.xlu0 %v267, 41
      %v3058 = vpop.permute.xlu0 %3057
      %3059 = vrot.lane.b32.xlu0 %v851, 41
      %v3060 = vpop.permute.xlu0 %3059
      %vm3061 = vcmask 334848
      %v3062 = vsel %vm3061, %v3058, %v3060
      %v3064 = vsel %vm270, %v3056, 0
      %v3067 = vsel %vm274, %v3062, 0
      %3069 = vmatprep.subr.bf16.mxu0 0
      %3070 = vmatpush1.bf16.msra.mxu0 %v3067
      %3071 = vmatprep.subr.bf16.mxu0 0
      %3072 = vmatpush1.bf16.msra.mxu0 0
      %3073 = vmatprep.subr.bf16.mxu0 0
      %3074 = vmatpush1.bf16.msra.mxu0 0
      %3075 = vmatprep.subr.bf16.mxu0 0
      %3076 = vmatpush1.bf16.msra.mxu0 0
      %3077 = vmatprep.subr.bf16.mxu0 0
      %3078 = vmatpush1.bf16.msra.mxu0 0
      %3079 = vmatprep.subr.bf16.mxu0 0
      %3080 = vmatpush1.bf16.msra.mxu0 0
      %3081 = vmatprep.subr.bf16.mxu0 0
      %3082 = vmatpush1.bf16.msra.mxu0 0
      %3083 = vmatprep.subr.bf16.mxu0 0
      %3084 = vmatpush1.bf16.msra.mxu0 0
      %3085 = vmatprep.subr.bf16.mxu0 0
      %3086 = vmatpush1.bf16.msra.mxu0 0
      %3087 = vmatprep.subr.bf16.mxu0 0
      %3088 = vmatpush1.bf16.msra.mxu0 0
      %3089 = vmatprep.subr.bf16.mxu0 0
      %3090 = vmatpush1.bf16.msra.mxu0 0
      %3091 = vmatprep.subr.bf16.mxu0 0
      %3092 = vmatpush1.bf16.msra.mxu0 0
      %3093 = vmatprep.subr.bf16.mxu0 0
      %3094 = vmatpush1.bf16.msra.mxu0 0
      %3095 = vmatprep.subr.bf16.mxu0 0
      %3096 = vmatpush1.bf16.msra.mxu0 0
      %3097 = vmatprep.subr.bf16.mxu0 0
      %3098 = vmatpush1.bf16.msra.mxu0 0
      %3099 = vmatprep.subr.bf16.mxu0 0
      %3100 = vmatpush1.bf16.msra.mxu0 0
      %3101 = vmatprep.mubr.bf16.mxu0 0
      %3102 = vmatmul.mubr.bf16.gmra.mrb[0].mxu0 %v3064
      %v3103 = vpop.f32.mrb[0].mxu0
      %v3104 = vadd.f32 0.0, %v3103
      %v3105 = vpop.f32.mrb[0].mxu0
      %v3106 = vpop.f32.mrb[0].mxu0
      %v3107 = vadd.f32 0.0, %v3106
      %v3108 = vpop.f32.mrb[0].mxu0
      %3109 = vdwg.mxu0
      %v3110 = vadd.f32 %v3047, %v3104
      %v3111 = vadd.f32 %v3048, %v3107
      %s3112 = scalar_lea.vmem %s231, 368
      %v3113 = vld [vmem:[%s3112] sm:$0xf]
      %v3114 = vld [vmem:[%s3112 + $0x4] sm:$0xf]
      %v3117 = vunpack.c.l.b16 %v3113
      %v3118 = vunpack.c.l.b16 %v3114
      %v3119 = vpack.c.b16 %v3118, %v3117
      %3120 = vrot.lane.b32.xlu0 %v267, 40
      %v3121 = vpop.permute.xlu0 %3120
      %3122 = vrot.lane.b32.xlu0 %v851, 40
      %v3123 = vpop.permute.xlu0 %3122
      %vm3124 = vcmask 326656
      %v3125 = vsel %vm3124, %v3121, %v3123
      %v3127 = vsel %vm270, %v3119, 0
      %v3130 = vsel %vm274, %v3125, 0
      %3132 = vmatprep.subr.bf16.mxu0 0
      %3133 = vmatpush1.bf16.msra.mxu0 %v3130
      %3134 = vmatprep.subr.bf16.mxu0 0
      %3135 = vmatpush1.bf16.msra.mxu0 0
      %3136 = vmatprep.subr.bf16.mxu0 0
      %3137 = vmatpush1.bf16.msra.mxu0 0
      %3138 = vmatprep.subr.bf16.mxu0 0
      %3139 = vmatpush1.bf16.msra.mxu0 0
      %3140 = vmatprep.subr.bf16.mxu0 0
      %3141 = vmatpush1.bf16.msra.mxu0 0
      %3142 = vmatprep.subr.bf16.mxu0 0
      %3143 = vmatpush1.bf16.msra.mxu0 0
      %3144 = vmatprep.subr.bf16.mxu0 0
      %3145 = vmatpush1.bf16.msra.mxu0 0
      %3146 = vmatprep.subr.bf16.mxu0 0
      %3147 = vmatpush1.bf16.msra.mxu0 0
      %3148 = vmatprep.subr.bf16.mxu0 0
      %3149 = vmatpush1.bf16.msra.mxu0 0
      %3150 = vmatprep.subr.bf16.mxu0 0
      %3151 = vmatpush1.bf16.msra.mxu0 0
      %3152 = vmatprep.subr.bf16.mxu0 0
      %3153 = vmatpush1.bf16.msra.mxu0 0
      %3154 = vmatprep.subr.bf16.mxu0 0
      %3155 = vmatpush1.bf16.msra.mxu0 0
      %3156 = vmatprep.subr.bf16.mxu0 0
      %3157 = vmatpush1.bf16.msra.mxu0 0
      %3158 = vmatprep.subr.bf16.mxu0 0
      %3159 = vmatpush1.bf16.msra.mxu0 0
      %3160 = vmatprep.subr.bf16.mxu0 0
      %3161 = vmatpush1.bf16.msra.mxu0 0
      %3162 = vmatprep.subr.bf16.mxu0 0
      %3163 = vmatpush1.bf16.msra.mxu0 0
      %3164 = vmatprep.mubr.bf16.mxu0 0
      %3165 = vmatmul.mubr.bf16.gmra.mrb[0].mxu0 %v3127
      %v3166 = vpop.f32.mrb[0].mxu0
      %v3167 = vadd.f32 0.0, %v3166
      %v3168 = vpop.f32.mrb[0].mxu0
      %v3169 = vpop.f32.mrb[0].mxu0
      %v3170 = vadd.f32 0.0, %v3169
      %v3171 = vpop.f32.mrb[0].mxu0
      %3172 = vdwg.mxu0
      %v3173 = vadd.f32 %v3110, %v3167
      %v3174 = vadd.f32 %v3111, %v3170
      %s3175 = scalar_lea.vmem %s231, 376
      %v3176 = vld [vmem:[%s3175] sm:$0xf]
      %v3177 = vld [vmem:[%s3175 + $0x4] sm:$0xf]
      %v3180 = vunpack.c.l.b16 %v3176
      %v3181 = vunpack.c.l.b16 %v3177
      %v3182 = vpack.c.b16 %v3181, %v3180
      %3183 = vrot.lane.b32.xlu0 %v267, 39
      %v3184 = vpop.permute.xlu0 %3183
      %3185 = vrot.lane.b32.xlu0 %v851, 39
      %v3186 = vpop.permute.xlu0 %3185
      %vm3187 = vcmask 318464
      %v3188 = vsel %vm3187, %v3184, %v3186
      %v3190 = vsel %vm270, %v3182, 0
      %v3193 = vsel %vm274, %v3188, 0
      %3195 = vmatprep.subr.bf16.mxu0 0
      %3196 = vmatpush1.bf16.msra.mxu0 %v3193
      %3197 = vmatprep.subr.bf16.mxu0 0
      %3198 = vmatpush1.bf16.msra.mxu0 0
      %3199 = vmatprep.subr.bf16.mxu0 0
      %3200 = vmatpush1.bf16.msra.mxu0 0
      %3201 = vmatprep.subr.bf16.mxu0 0
      %3202 = vmatpush1.bf16.msra.mxu0 0
      %3203 = vmatprep.subr.bf16.mxu0 0
      %3204 = vmatpush1.bf16.msra.mxu0 0
      %3205 = vmatprep.subr.bf16.mxu0 0
      %3206 = vmatpush1.bf16.msra.mxu0 0
      %3207 = vmatprep.subr.bf16.mxu0 0
      %3208 = vmatpush1.bf16.msra.mxu0 0
      %3209 = vmatprep.subr.bf16.mxu0 0
      %3210 = vmatpush1.bf16.msra.mxu0 0
      %3211 = vmatprep.subr.bf16.mxu0 0
      %3212 = vmatpush1.bf16.msra.mxu0 0
      %3213 = vmatprep.subr.bf16.mxu0 0
      %3214 = vmatpush1.bf16.msra.mxu0 0
      %3215 = vmatprep.subr.bf16.mxu0 0
      %3216 = vmatpush1.bf16.msra.mxu0 0
      %3217 = vmatprep.subr.bf16.mxu0 0
      %3218 = vmatpush1.bf16.msra.mxu0 0
      %3219 = vmatprep.subr.bf16.mxu0 0
      %3220 = vmatpush1.bf16.msra.mxu0 0
      %3221 = vmatprep.subr.bf16.mxu0 0
      %3222 = vmatpush1.bf16.msra.mxu0 0
      %3223 = vmatprep.subr.bf16.mxu0 0
      %3224 = vmatpush1.bf16.msra.mxu0 0
      %3225 = vmatprep.subr.bf16.mxu0 0
      %3226 = vmatpush1.bf16.msra.mxu0 0
      %3227 = vmatprep.mubr.bf16.mxu0 0
      %3228 = vmatmul.mubr.bf16.gmra.mrb[0].mxu0 %v3190
      %v3229 = vpop.f32.mrb[0].mxu0
      %v3230 = vadd.f32 0.0, %v3229
      %v3231 = vpop.f32.mrb[0].mxu0
      %v3232 = vpop.f32.mrb[0].mxu0
      %v3233 = vadd.f32 0.0, %v3232
      %v3234 = vpop.f32.mrb[0].mxu0
      %3235 = vdwg.mxu0
      %v3236 = vadd.f32 %v3173, %v3230
      %v3237 = vadd.f32 %v3174, %v3233
      %s3238 = scalar_lea.vmem %s231, 384
      %v3239 = vld [vmem:[%s3238] sm:$0xf]
      %v3240 = vld [vmem:[%s3238 + $0x4] sm:$0xf]
      %v3243 = vunpack.c.l.b16 %v3239
      %v3244 = vunpack.c.l.b16 %v3240
      %v3245 = vpack.c.b16 %v3244, %v3243
      %3246 = vrot.lane.b32.xlu0 %v267, 38
      %v3247 = vpop.permute.xlu0 %3246
      %3248 = vrot.lane.b32.xlu0 %v851, 38
      %v3249 = vpop.permute.xlu0 %3248
      %vm3250 = vcmask 310272
      %v3251 = vsel %vm3250, %v3247, %v3249
      %v3253 = vsel %vm270, %v3245, 0
      %v3256 = vsel %vm274, %v3251, 0
      %3258 = vmatprep.subr.bf16.mxu0 0
      %3259 = vmatpush1.bf16.msra.mxu0 %v3256
      %3260 = vmatprep.subr.bf16.mxu0 0
      %3261 = vmatpush1.bf16.msra.mxu0 0
      %3262 = vmatprep.subr.bf16.mxu0 0
      %3263 = vmatpush1.bf16.msra.mxu0 0
      %3264 = vmatprep.subr.bf16.mxu0 0
      %3265 = vmatpush1.bf16.msra.mxu0 0
      %3266 = vmatprep.subr.bf16.mxu0 0
      %3267 = vmatpush1.bf16.msra.mxu0 0
      %3268 = vmatprep.subr.bf16.mxu0 0
      %3269 = vmatpush1.bf16.msra.mxu0 0
      %3270 = vmatprep.subr.bf16.mxu0 0
      %3271 = vmatpush1.bf16.msra.mxu0 0
      %3272 = vmatprep.subr.bf16.mxu0 0
      %3273 = vmatpush1.bf16.msra.mxu0 0
      %3274 = vmatprep.subr.bf16.mxu0 0
      %3275 = vmatpush1.bf16.msra.mxu0 0
      %3276 = vmatprep.subr.bf16.mxu0 0
      %3277 = vmatpush1.bf16.msra.mxu0 0
      %3278 = vmatprep.subr.bf16.mxu0 0
      %3279 = vmatpush1.bf16.msra.mxu0 0
      %3280 = vmatprep.subr.bf16.mxu0 0
      %3281 = vmatpush1.bf16.msra.mxu0 0
      %3282 = vmatprep.subr.bf16.mxu0 0
      %3283 = vmatpush1.bf16.msra.mxu0 0
      %3284 = vmatprep.subr.bf16.mxu0 0
      %3285 = vmatpush1.bf16.msra.mxu0 0
      %3286 = vmatprep.subr.bf16.mxu0 0
      %3287 = vmatpush1.bf16.msra.mxu0 0
      %3288 = vmatprep.subr.bf16.mxu0 0
      %3289 = vmatpush1.bf16.msra.mxu0 0
      %3290 = vmatprep.mubr.bf16.mxu0 0
      %3291 = vmatmul.mubr.bf16.gmra.mrb[0].mxu0 %v3253
      %v3292 = vpop.f32.mrb[0].mxu0
      %v3293 = vadd.f32 0.0, %v3292
      %v3294 = vpop.f32.mrb[0].mxu0
      %v3295 = vpop.f32.mrb[0].mxu0
      %v3296 = vadd.f32 0.0, %v3295
      %v3297 = vpop.f32.mrb[0].mxu0
      %3298 = vdwg.mxu0
      %v3299 = vadd.f32 %v3236, %v3293
      %v3300 = vadd.f32 %v3237, %v3296
      %v3301 = vld [vmem:[#allocation2] sm:$0xff]
      %v3302 = vld [vmem:[#allocation2 + $0x8] sm:$0xff]
      %v3303 = vadd.f32 %v3301, %v3299
      %v3304 = vadd.f32 %v3302, %v3300
      %vm3305 = vcmask 916480
      %3306 = vst.msk [vmem:[#allocation2] sm:$0xff] %vm3305, %v3303
      %3307 = vst.msk [vmem:[#allocation2 + $0x8] sm:$0xff] %vm3305, %v3304
      %p3308 = scmp.eq.s32.totalorder %s21, 6
      // Predicated region
      $region37: #{down_forward.10} parent=31 // pred_check
        %p3309 = pneg %p3308
      $region38: #{down_forward.10} parent=31 // pred_check_branch
        %3311 = sbr.rel (%p3309) target = $region40
      $region39: #{down_forward.10} parent=31 // pred_region
        %v3312 = vld [vmem:[#allocation2] sm:$0xff]
        %v3313 = vld [vmem:[#allocation2 + $0x8] sm:$0xff]
        %v3314 = vld [vmem:[%s2] sm:$0xff]
        %v3315 = vld [vmem:[%s2 + $0x8] sm:$0xff]
        %3317 = vset.pattern.permute.xlu0 0
        %3318 = vperm.xlu0 %3317, %v3314
        %v3319 = vpop.permute.xlu0 %3318
        %3322 = vset.pattern.permute.xlu0 0
        %3323 = vperm.xlu0 %3322, %v3315
        %v3324 = vpop.permute.xlu0 %3323
        %v3326 = vadd.f32 %v3312, %v3319
        %v3327 = vadd.f32 %v3313, %v3324
        %v3328 = vpack.c.bf16 %v3327, %v3326
        %v3330 = vunpack.c.l.b16 %v3328
        %v3331 = vunpack.c.h.b16 %v3328
        %v3332 = vpack.c.b16 %v3330, %v3330
        %v3333 = vpack.c.b16 %v3331, %v3331
        %vm3336 = vcmask 912384
        %3337 = vst.msk [vmem:[%s238] sm:$0xf] %vm3336, %v3332
        %3338 = vst.msk [vmem:[%s238 + $0x4] sm:$0xf] %vm3336, %v3333
      $region40: #{down_forward.10} parent=31 // pred_fallthru
        _
      %s3339 = smul.u32 %s19, 8
      %s3340 = sadd.s32 %s3339, %s20
      %p3341 = scmp.lt.s32.totalorder %s3340, 15
      %s3342 = scalar_select %p3341, %s3340, 15
      %s3343 = smul.addr %s3342, 2
      %s3344 = smul.addr %s3343, 4
      %s3345 = scalar_lea.vmem %s3, %s3344
      // Predicated region
      $region41: #{down_forward.10} parent=31 // pred_check
        %p3346 = pneg %p134
      $region42: #{down_forward.10} parent=31 // pred_check_branch
        %3348 = sbr.rel (%p3346) target = $region44
      $region43: #{down_forward.10} parent=31 // pred_region
        %s3349 = smul.u32 %s19, 8
        %s3350 = sadd.s32 %s3349, %s20
      $region44: #{down_forward.10} parent=31 // pred_fallthru
        _
    $region32: #{down_forward.10} parent=5 // pred_fallthru
      _
    %p3351 = scmp.le.s32.totalorder 2, %s9
    // Predicated region
    $region45: #{down_forward.10} parent=5 // pred_check
      %p3352 = pneg %p3351
    $region46: #{down_forward.10} parent=5 // pred_check_branch
      %3354 = sbr.rel (%p3352) target = $region48
    $region47: #{down_forward.10} parent=5 // pred_region
      %s3355 = ssub.s32 %s9, 2
      // Predicated region
      $region49: #{down_forward.10} parent=47 // pred_check
        %p3356 = pneg %p140
      $region50: #{down_forward.10} parent=47 // pred_check_branch
        %3358 = sbr.rel (%p3356) target = $region52
      $region51: #{down_forward.10} parent=47 // pred_region
        %s3359 = smul.u32 %s22, 8
        %s3360 = sadd.s32 %s3359, %s23
        %p3361 = scmp.lt.s32.totalorder %s3360, 15
        %s3362 = scalar_select %p3361, %s3360, 15
        %s3363 = smul.addr %s3362, 2
        %s3364 = smul.addr %s3363, 4
        %s3365 = scalar_lea.vmem %s3, %s3364
      $region52: #{down_forward.10} parent=47 // pred_fallthru
        _
    $region48: #{down_forward.10} parent=5 // pred_fallthru
      _
  $region6: #{down_forward.10} parent=0 // loop_footer
    %s13 = sadd.s32 1, %s9
  $region7: #{down_forward.10} parent=0 // loop_footer_branch
    %8 = sbr.rel target = $region3
  $region8: #{down_forward.10} parent=0 // loop_exit
    _

// kernel: down_forward.14
$region0: #{down_forward.14}
  #allocation0 [shape = 'u32[]', space=smem, size = 0x4, offset = 0x4, fixed_abs, tag = 'smem constant byte address 0x4 - core index']
  #allocation1 [shape = 'u32[144,128]{1,0:T(1,128)}', space=vmem, size = 0x12000, scoped, tag = 'internal scratch']
  #allocation2 [shape = 'f32[16,1]{1,0:T(8,128)}', space=vmem, size = 0x2000, scoped, tag = 'scratch operand']
  #allocation3 [shape = 'f32[16,1]{1,0:T(8,128)}', space=vmem, size = 0x2000, scoped, tag = 'scratch operand']
  %s0 = inlined_call_operand.vmem [shape: bf16[16,16,80], index: 0, kind: input, shape index: {}]
  %s1 = inlined_call_operand.vmem [shape: f32[1,80], index: 1, kind: input, shape index: {}]
  %s2 = inlined_call_operand.vmem [shape: f32[2,16,1], index: 2, kind: output, shape index: {0}]
  %s3 = inlined_call_operand.vmem [shape: f32[2,16,1], index: 3, kind: output, shape index: {1}]
  %4 = xla_tuple %s2, %s3
  %s5 = sld [smem:[#allocation0]]
  $region57: #{down_forward.14} parent=0
    _
  %s7 = ssub.s32 1, %s5
  %s8 = scalar_select 0, %s7, %s5
  loop: start=0, step=1, limit=18
  $region2: #{down_forward.14} parent=0 // loop_pre_header
    _
  $region3: #{down_forward.14} parent=0 // loop_header
    %s10 = sphi 0, %s14
    %p11 = scmp.ge.s32.totalorder %s10, 18
    %s17 = sphi 0, %s29
    %s18 = sphi 0, %s25
    %s19 = sphi 0, %s17
    %s20 = sphi 0, %s18
    %s21 = sphi 0, %s19
    %s22 = sphi 0, %s20
    %s36 = sphi 0, %s38
    %s39 = sphi 0, %s36
    %s40 = sphi 0, %s39
    %s56 = sphi 0, %s40
    %s60 = sphi 0, %s60
    %s62 = sphi 0, %s60
    %s63 = sphi 0, %s62
    %s77 = sphi 0, %s63
    %s83 = sphi 0, %s85
    %s86 = sphi 0, %s83
    %s87 = sphi 0, %s86
    %s103 = sphi 0, %s87
    %s109 = sphi 0, %s111
    %s112 = sphi 0, %s109
    %s113 = sphi 0, %s112
    %s129 = sphi 0, %s113
  $region4: #{down_forward.14} parent=0 // loop_header_branch
    %13 = sbr.rel (%p11) target = $region8
  $region5: #{down_forward.14} parent=0 // loop_body
    %s15 = ssub.s32 %s10, 1
    %s16 = ssub.s32 %s10, 2
    %s23 = sadd.s32 1, %s18
    %p24 = scmp.ge.s32.totalorder %s23, 8
    %s25 = scalar_select %p24, 0, %s23
    %s26 = sadd.s32 1, %s17
    %s27 = scalar_select %p24, %s26, %s17
    %p28 = scmp.ge.s32.totalorder %s27, 2
    %s29 = scalar_select %p28, 0, %s27
    %s30 = smul.u32 %s17, 8
    %s31 = sadd.s32 %s30, %s18
    %s32 = smul.u32 %s29, 8
    %s33 = sadd.s32 %s32, %s25
    %s34 = ssub.s32 %s31, %s33
    %p35 = scmp.eq.s32.totalorder %s34, 0
    %s37 = sadd.s32 %s36, 1
    %s38 = scalar_select %p35, %s36, %s37
    %p41 = pneg %p35
    %p42 = scmp.eq.s32.totalorder %s10, 15
    %p43 = por %p41, %p42
    %p44 = scmp.ne.s32.totalorder %s36, %s39
    %p45 = scmp.eq.s32.totalorder %s10, 0
    %p46 = por %p44, %p45
    %p47 = scmp.ne.s32.totalorder %s36, %s39
    %p48 = scmp.eq.s32.totalorder %s15, 15
    %p49 = por %p47, %p48
    %p50 = scmp.ne.s32.totalorder %s39, %s40
    %p51 = scmp.eq.s32.totalorder %s15, 0
    %p52 = por %p50, %p51
    %p53 = scmp.ne.s32.totalorder %s39, %s40
    %p54 = scmp.eq.s32.totalorder %s16, 15
    %p55 = por %p53, %p54
    %p57 = scmp.ne.s32.totalorder %s40, %s56
    %p58 = scmp.eq.s32.totalorder %s16, 0
    %p59 = por %p57, %p58
    %s61 = sadd.s32 %s60, 1
    %p64 = scmp.eq.s32.totalorder %s10, 15
    %p65 = scmp.ne.s32.totalorder %s60, %s62
    %p66 = scmp.eq.s32.totalorder %s10, 0
    %p67 = por %p65, %p66
    %p68 = scmp.ne.s32.totalorder %s60, %s62
    %p69 = scmp.eq.s32.totalorder %s15, 15
    %p70 = por %p68, %p69
    %p71 = scmp.ne.s32.totalorder %s62, %s63
    %p72 = scmp.eq.s32.totalorder %s15, 0
    %p73 = por %p71, %p72
    %p74 = scmp.ne.s32.totalorder %s62, %s63
    %p75 = scmp.eq.s32.totalorder %s16, 15
    %p76 = por %p74, %p75
    %p78 = scmp.ne.s32.totalorder %s63, %s77
    %p79 = scmp.eq.s32.totalorder %s16, 0
    %p80 = por %p78, %p79
    %s81 = ssub.s32 %s17, %s29
    %p82 = scmp.eq.s32.totalorder %s81, 0
    %s84 = sadd.s32 %s83, 1
    %s85 = scalar_select %p82, %s83, %s84
    %p88 = pneg %p82
    %p89 = scmp.eq.s32.totalorder %s10, 15
    %p90 = por %p88, %p89
    %p91 = scmp.ne.s32.totalorder %s83, %s86
    %p92 = scmp.eq.s32.totalorder %s10, 0
    %p93 = por %p91, %p92
    %p94 = scmp.ne.s32.totalorder %s83, %s86
    %p95 = scmp.eq.s32.totalorder %s15, 15
    %p96 = por %p94, %p95
    %p97 = scmp.ne.s32.totalorder %s86, %s87
    %p98 = scmp.eq.s32.totalorder %s15, 0
    %p99 = por %p97, %p98
    %p100 = scmp.ne.s32.totalorder %s86, %s87
    %p101 = scmp.eq.s32.totalorder %s16, 15
    %p102 = por %p100, %p101
    %p104 = scmp.ne.s32.totalorder %s87, %s103
    %p105 = scmp.eq.s32.totalorder %s16, 0
    %p106 = por %p104, %p105
    %s107 = ssub.s32 %s17, %s29
    %p108 = scmp.eq.s32.totalorder %s107, 0
    %s110 = sadd.s32 %s109, 1
    %s111 = scalar_select %p108, %s109, %s110
    %p114 = pneg %p108
    %p115 = scmp.eq.s32.totalorder %s10, 15
    %p116 = por %p114, %p115
    %p117 = scmp.ne.s32.totalorder %s109, %s112
    %p118 = scmp.eq.s32.totalorder %s10, 0
    %p119 = por %p117, %p118
    %p120 = scmp.ne.s32.totalorder %s109, %s112
    %p121 = scmp.eq.s32.totalorder %s15, 15
    %p122 = por %p120, %p121
    %p123 = scmp.ne.s32.totalorder %s112, %s113
    %p124 = scmp.eq.s32.totalorder %s15, 0
    %p125 = por %p123, %p124
    %p126 = scmp.ne.s32.totalorder %s112, %s113
    %p127 = scmp.eq.s32.totalorder %s16, 15
    %p128 = por %p126, %p127
    %p130 = scmp.ne.s32.totalorder %s113, %s129
    %p131 = scmp.eq.s32.totalorder %s16, 0
    %p132 = por %p130, %p131
    %p133 = scmp.le.s32.totalorder 1, %s10
    %p134 = scmp.lt.s32.totalorder %s10, 17
    %p135 = pnand %p133, %p134
    %p136 = pneg %p135
    // Predicated region
    $region9: #{down_forward.14} parent=5 // pred_check
      _
    $region10: #{down_forward.14} parent=5 // pred_check_branch
      %138 = sbr.rel (%p135) target = $region12
    $region11: #{down_forward.14} parent=5 // pred_region
      %s139 = ssub.s32 %s10, 1
      // Predicated region
      $region13: #{down_forward.14} parent=11 // pred_check
        %p140 = pneg %p73
      $region14: #{down_forward.14} parent=11 // pred_check_branch
        %142 = sbr.rel (%p140) target = $region16
      $region15: #{down_forward.14} parent=11 // pred_region
        _
      $region16: #{down_forward.14} parent=11 // pred_fallthru
        _
    $region12: #{down_forward.14} parent=5 // pred_fallthru
      _
    %p143 = scmp.lt.s32.totalorder %s10, 16
    // Predicated region
    $region17: #{down_forward.14} parent=5 // pred_check
      %p144 = pneg %p143
    $region18: #{down_forward.14} parent=5 // pred_check_branch
      %146 = sbr.rel (%p144) target = $region20
    $region19: #{down_forward.14} parent=5 // pred_region
      // Predicated region
      $region21: #{down_forward.14} parent=19 // pred_check
        %p147 = pneg %p46
      $region22: #{down_forward.14} parent=19 // pred_check_branch
        %149 = sbr.rel (%p147) target = $region24
      $region23: #{down_forward.14} parent=19 // pred_region
        %s150 = smul.u32 %s17, 8
        %s151 = sadd.s32 %s150, %s18
        %p152 = scmp.lt.s32.totalorder %s151, 15
        %s153 = scalar_select %p152, %s151, 15
        %s154 = smul.addr %s153, 2
        %s155 = smul.addr %s154, 4
        %s156 = scalar_lea.vmem %s0, %s155
        %s157 = smul.u32 %s17, 8
        %s158 = sadd.s32 %s157, %s18
      $region24: #{down_forward.14} parent=19 // pred_fallthru
        _
    $region20: #{down_forward.14} parent=5 // pred_fallthru
      _
    %p159 = scmp.le.s32.totalorder 1, %s10
    %p160 = scmp.lt.s32.totalorder %s10, 17
    %p161 = pnand %p159, %p160
    %p162 = pneg %p161
    // Predicated region
    $region25: #{down_forward.14} parent=5 // pred_check
      _
    $region26: #{down_forward.14} parent=5 // pred_check_branch
      %164 = sbr.rel (%p161) target = $region28
    $region27: #{down_forward.14} parent=5 // pred_region
      %s165 = ssub.s32 %s10, 1
      %s166 = smul.u32 %s19, 8
      %s167 = sadd.s32 %s166, %s20
      %p168 = scmp.lt.s32.totalorder %s167, 15
      %s169 = scalar_select %p168, %s167, 15
      %s170 = smul.addr %s169, 2
      %s171 = smul.addr %s170, 4
      %s172 = scalar_lea.vmem %s0, %s171
      %p173 = pneg %p52
      %p174 = pneg %p49
      %p175 = pneg %p73
      %p176 = pneg %p70
      %p177 = pneg %p99
      %p178 = pneg %p96
      %p179 = scmp.lt.s32.totalorder %s19, 1
      %s180 = scalar_select %p179, %s19, 1
      %s181 = smul.addr %s180, 2
      %s182 = smul.addr %s181, 8
      %s183 = scalar_lea.vmem %s2, %s182
      %p184 = pneg %p125
      %p185 = pneg %p122
      %p186 = scmp.lt.s32.totalorder %s19, 1
      %s187 = scalar_select %p186, %s19, 1
      %s188 = smul.addr %s187, 2
      %s189 = smul.addr %s188, 8
      %s190 = scalar_lea.vmem %s3, %s189
      %s191 = smul.u32 %s19, 8
      %s192 = sadd.s32 %s191, %s20
      %p193 = scmp.lt.s32.totalorder %s192, 15
      %s194 = scalar_select %p193, %s192, 15
      %s195 = smul.addr %s194, 2
      %s196 = smul.addr %s195, 4
      %s197 = scalar_lea.vmem %s0, %s196
      %s198 = smul.u32 %s19, 8
      %s199 = sadd.s32 %s198, %s20
      %p200 = scmp.lt.s32.totalorder %s19, 1
      %s201 = scalar_select %p200, %s19, 1
      %s202 = smul.addr %s201, 2
      %s203 = smul.addr %s202, 8
      %s204 = scalar_lea.vmem %s2, %s203
      %p205 = scmp.lt.s32.totalorder %s19, 1
      %s206 = scalar_select %p205, %s19, 1
      %s207 = smul.addr %s206, 2
      %s208 = smul.addr %s207, 8
      %s209 = scalar_lea.vmem %s3, %s208
      %p210 = scmp.eq.s32.totalorder %s20, 0
      // Predicated region
      $region29: #{down_forward.14} parent=27 // pred_check
        %p211 = pneg %p210
      $region30: #{down_forward.14} parent=27 // pred_check_branch
        %213 = sbr.rel (%p211) target = $region32
      $region31: #{down_forward.14} parent=27 // pred_region
        %vm214 = vcmask 7168
        %215 = vst.msk [vmem:[#allocation2] sm:$0xff] %vm214, 0.0
        %216 = vst.msk [vmem:[#allocation2 + $0x8] sm:$0xff] %vm214, 0.0
        %217 = vst.msk [vmem:[#allocation3] sm:$0xff] %vm214, 0.0
        %218 = vst.msk [vmem:[#allocation3 + $0x8] sm:$0xff] %vm214, 0.0
      $region32: #{down_forward.14} parent=27 // pred_fallthru
        _
      %v219 = vld [vmem:[%s197] sm:$0xf]
      %v220 = vld [vmem:[%s197 + $0x4] sm:$0xf]
      %v221 = vunpack.c.l.bf16 %v219
      %v222 = vunpack.c.l.bf16 %v220
      %v223 = vld [vmem:[%s1] sm:$0x1]
      %v225 = vlaneseq
      %v226 = vshrl.u32 %v225, 7
      %v227 = vsub.s32 0, %v226
      %v228 = vrot.slane %v223, %v227
      %v230 = vmul.f32 %v221, %v228
      %v231 = vmul.f32 %v222, %v228
      %v232 = vld [vmem:[#allocation2] sm:$0xff]
      %v233 = vld [vmem:[#allocation2 + $0x8] sm:$0xff]
      %vm234 = vcmask 654336
      %v235 = vsel %vm234, %v230, 0.0
      %236 = vadd.xlane.f32.xlu0 %v235
      %v237 = vpop.xlane.xlu0 %236
      %v238 = vsel %vm234, %v231, 0.0
      %239 = vadd.xlane.f32.xlu0 %v238
      %v240 = vpop.xlane.xlu0 %239
      %v241 = vadd.f32 %v232, %v237
      %v242 = vadd.f32 %v233, %v240
      %vm243 = vcmask 7168
      %244 = vst.msk [vmem:[#allocation2] sm:$0xff] %vm243, %v241
      %245 = vst.msk [vmem:[#allocation2 + $0x8] sm:$0xff] %vm243, %v242
      %v246 = vld [vmem:[#allocation3] sm:$0xff]
      %v247 = vld [vmem:[#allocation3 + $0x8] sm:$0xff]
      %v248 = vmul.f32 %v230, %v230
      %v249 = vmul.f32 %v231, %v231
      %v250 = vsel %vm234, %v248, 0.0
      %251 = vadd.xlane.f32.xlu0 %v250
      %v252 = vpop.xlane.xlu0 %251
      %v253 = vsel %vm234, %v249, 0.0
      %254 = vadd.xlane.f32.xlu0 %v253
      %v255 = vpop.xlane.xlu0 %254
      %v256 = vadd.f32 %v246, %v252
      %v257 = vadd.f32 %v247, %v255
      %258 = vst.msk [vmem:[#allocation3] sm:$0xff] %vm243, %v256
      %259 = vst.msk [vmem:[#allocation3 + $0x8] sm:$0xff] %vm243, %v257
      %p260 = scmp.eq.s32.totalorder %s20, 7
      // Predicated region
      $region33: #{down_forward.14} parent=27 // pred_check
        %p261 = pneg %p260
      $region34: #{down_forward.14} parent=27 // pred_check_branch
        %263 = sbr.rel (%p261) target = $region36
      $region35: #{down_forward.14} parent=27 // pred_region
        %v264 = vld [vmem:[#allocation2] sm:$0xff]
        %v265 = vld [vmem:[#allocation2 + $0x8] sm:$0xff]
        %v266 = vmul.f32 %v264, 0.001953125
        %v267 = vmul.f32 %v265, 0.001953125
        %v268 = vld [vmem:[#allocation3] sm:$0xff]
        %v269 = vld [vmem:[#allocation3 + $0x8] sm:$0xff]
        %v270 = vmul.f32 %v268, 0.001953125
        %v271 = vmul.f32 %v269, 0.001953125
        %v272 = vmul.f32 %v266, %v266
        %v273 = vmul.f32 %v267, %v267
        %v274 = vsub.f32 %v270, %v272
        %v275 = vsub.f32 %v271, %v273
        %276 = vst.msk [vmem:[%s204] sm:$0xff] %vm243, %v266
        %277 = vst.msk [vmem:[%s204 + $0x8] sm:$0xff] %vm243, %v267
        %v278 = vadd.f32 %v274, 1e-05
        %v279 = vadd.f32 %v275, 1e-05
        %v280 = vrsqrt.pop %v278
        %v281 = vrsqrt.pop %v279
        %282 = vst.msk [vmem:[%s209] sm:$0xff] %vm243, %v280
        %283 = vst.msk [vmem:[%s209 + $0x8] sm:$0xff] %vm243, %v281
      $region36: #{down_forward.14} parent=27 // pred_fallthru
        _
      %p284 = scmp.lt.s32.totalorder %s19, 1
      %s285 = scalar_select %p284, %s19, 1
      %s286 = smul.addr %s285, 2
      %s287 = smul.addr %s286, 8
      %s288 = scalar_lea.vmem %s2, %s287
      %p289 = scmp.lt.s32.totalorder %s19, 1
      %s290 = scalar_select %p289, %s19, 1
      %s291 = smul.addr %s290, 2
      %s292 = smul.addr %s291, 8
      %s293 = scalar_lea.vmem %s3, %s292
      // Predicated region
      $region37: #{down_forward.14} parent=27 // pred_check
        %p294 = pneg %p96
      $region38: #{down_forward.14} parent=27 // pred_check_branch
        %296 = sbr.rel (%p294) target = $region40
      $region39: #{down_forward.14} parent=27 // pred_region
        _
      $region40: #{down_forward.14} parent=27 // pred_fallthru
        _
      // Predicated region
      $region41: #{down_forward.14} parent=27 // pred_check
        %p297 = pneg %p122
      $region42: #{down_forward.14} parent=27 // pred_check_branch
        %299 = sbr.rel (%p297) target = $region44
      $region43: #{down_forward.14} parent=27 // pred_region
        _
      $region44: #{down_forward.14} parent=27 // pred_fallthru
        _
    $region28: #{down_forward.14} parent=5 // pred_fallthru
      _
    %p300 = scmp.le.s32.totalorder 2, %s10
    // Predicated region
    $region45: #{down_forward.14} parent=5 // pred_check
      %p301 = pneg %p300
    $region46: #{down_forward.14} parent=5 // pred_check_branch
      %303 = sbr.rel (%p301) target = $region48
    $region47: #{down_forward.14} parent=5 // pred_region
      %s304 = ssub.s32 %s10, 2
      // Predicated region
      $region49: #{down_forward.14} parent=47 // pred_check
        %p305 = pneg %p102
      $region50: #{down_forward.14} parent=47 // pred_check_branch
        %307 = sbr.rel (%p305) target = $region52
      $region51: #{down_forward.14} parent=47 // pred_region
        %p308 = scmp.lt.s32.totalorder %s21, 1
        %s309 = scalar_select %p308, %s21, 1
        %s310 = smul.addr %s309, 2
        %s311 = smul.addr %s310, 8
        %s312 = scalar_lea.vmem %s2, %s311
      $region52: #{down_forward.14} parent=47 // pred_fallthru
        _
      // Predicated region
      $region53: #{down_forward.14} parent=47 // pred_check
        %p313 = pneg %p128
      $region54: #{down_forward.14} parent=47 // pred_check_branch
        %315 = sbr.rel (%p313) target = $region56
      $region55: #{down_forward.14} parent=47 // pred_region
        %p316 = scmp.lt.s32.totalorder %s21, 1
        %s317 = scalar_select %p316, %s21, 1
        %s318 = smul.addr %s317, 2
        %s319 = smul.addr %s318, 8
        %s320 = scalar_lea.vmem %s3, %s319
      $region56: #{down_forward.14} parent=47 // pred_fallthru
        _
    $region48: #{down_forward.14} parent=5 // pred_fallthru
      _
  $region6: #{down_forward.14} parent=0 // loop_footer
    %s14 = sadd.s32 1, %s10
  $region7: #{down_forward.14} parent=0 // loop_footer_branch
    %9 = sbr.rel target = $region3
  $region8: #{down_forward.14} parent=0 // loop_exit
    _

// kernel: down_forward.13
$region0: #{down_forward.13}
  #allocation0 [shape = 'u32[]', space=smem, size = 0x4, offset = 0x4, fixed_abs, tag = 'smem constant byte address 0x4 - core index']
  #allocation1 [shape = 'u32[144,128]{1,0:T(1,128)}', space=vmem, size = 0x12000, scoped, tag = 'internal scratch']
  #allocation2 [shape = 'f32[16,80]{1,0:T(8,128)}', space=vmem, size = 0x2000, scoped, tag = 'scratch operand']
  %s0 = inlined_call_operand.vmem [shape: bf16[20,16,110], index: 0, kind: input, shape index: {}]
  %s1 = inlined_call_operand.vmem [shape: bf16[3,9,16,16], index: 1, kind: input, shape index: {}]
  %s2 = inlined_call_operand.vmem [shape: f32[16,1], index: 2, kind: input, shape index: {}]
  %s3 = inlined_call_operand.vmem [shape: bf16[16,16,80], index: 3, kind: output, shape index: {}]
  %s4 = sld [smem:[#allocation0]]
  $region53: #{down_forward.13} parent=0
    _
  %s6 = ssub.s32 1, %s4
  %s7 = scalar_select 0, %s6, %s4
  loop: start=0, step=1, limit=50
  $region2: #{down_forward.13} parent=0 // loop_pre_header
    _
  $region3: #{down_forward.13} parent=0 // loop_header
    %s9 = sphi 0, %s13
    %p10 = scmp.ge.s32.totalorder %s9, 50
    %s16 = sphi 0, %s35
    %s17 = sphi 0, %s31
    %s18 = sphi 0, %s27
    %s19 = sphi 0, %s16
    %s20 = sphi 0, %s17
    %s21 = sphi 0, %s18
    %s22 = sphi 0, %s19
    %s23 = sphi 0, %s20
    %s24 = sphi 0, %s21
    %s44 = sphi 0, %s46
    %s47 = sphi 0, %s44
    %s48 = sphi 0, %s47
    %s64 = sphi 0, %s48
    %s70 = sphi 0, %s72
    %s73 = sphi 0, %s70
    %s74 = sphi 0, %s73
    %s90 = sphi 0, %s74
    %s94 = sphi 0, %s94
    %s96 = sphi 0, %s94
    %s97 = sphi 0, %s96
    %s111 = sphi 0, %s97
    %s121 = sphi 0, %s123
    %s124 = sphi 0, %s121
    %s125 = sphi 0, %s124
    %s141 = sphi 0, %s125
  $region4: #{down_forward.13} parent=0 // loop_header_branch
    %12 = sbr.rel (%p10) target = $region8
  $region5: #{down_forward.13} parent=0 // loop_body
    %s14 = ssub.s32 %s9, 1
    %s15 = ssub.s32 %s9, 2
    %s25 = sadd.s32 1, %s18
    %p26 = scmp.ge.s32.totalorder %s25, 3
    %s27 = scalar_select %p26, 0, %s25
    %s28 = sadd.s32 1, %s17
    %s29 = scalar_select %p26, %s28, %s17
    %p30 = scmp.ge.s32.totalorder %s29, 8
    %s31 = scalar_select %p30, 0, %s29
    %s32 = sadd.s32 1, %s16
    %s33 = scalar_select %p30, %s32, %s16
    %p34 = scmp.ge.s32.totalorder %s33, 2
    %s35 = scalar_select %p34, 0, %s33
    %s36 = smul.u32 %s16, 10
    %s37 = sadd.s32 %s36, %s17
    %s38 = sadd.s32 %s37, %s18
    %s39 = smul.u32 %s35, 10
    %s40 = sadd.s32 %s39, %s31
    %s41 = sadd.s32 %s40, %s27
    %s42 = ssub.s32 %s38, %s41
    %p43 = scmp.eq.s32.totalorder %s42, 0
    %s45 = sadd.s32 %s44, 1
    %s46 = scalar_select %p43, %s44, %s45
    %p49 = pneg %p43
    %p50 = scmp.eq.s32.totalorder %s9, 47
    %p51 = por %p49, %p50
    %p52 = scmp.ne.s32.totalorder %s44, %s47
    %p53 = scmp.eq.s32.totalorder %s9, 0
    %p54 = por %p52, %p53
    %p55 = scmp.ne.s32.totalorder %s44, %s47
    %p56 = scmp.eq.s32.totalorder %s14, 47
    %p57 = por %p55, %p56
    %p58 = scmp.ne.s32.totalorder %s47, %s48
    %p59 = scmp.eq.s32.totalorder %s14, 0
    %p60 = por %p58, %p59
    %p61 = scmp.ne.s32.totalorder %s47, %s48
    %p62 = scmp.eq.s32.totalorder %s15, 47
    %p63 = por %p61, %p62
    %p65 = scmp.ne.s32.totalorder %s48, %s64
    %p66 = scmp.eq.s32.totalorder %s15, 0
    %p67 = por %p65, %p66
    %s68 = ssub.s32 %s18, %s27
    %p69 = scmp.eq.s32.totalorder %s68, 0
    %s71 = sadd.s32 %s70, 1
    %s72 = scalar_select %p69, %s70, %s71
    %p75 = pneg %p69
    %p76 = scmp.eq.s32.totalorder %s9, 47
    %p77 = por %p75, %p76
    %p78 = scmp.ne.s32.totalorder %s70, %s73
    %p79 = scmp.eq.s32.totalorder %s9, 0
    %p80 = por %p78, %p79
    %p81 = scmp.ne.s32.totalorder %s70, %s73
    %p82 = scmp.eq.s32.totalorder %s14, 47
    %p83 = por %p81, %p82
    %p84 = scmp.ne.s32.totalorder %s73, %s74
    %p85 = scmp.eq.s32.totalorder %s14, 0
    %p86 = por %p84, %p85
    %p87 = scmp.ne.s32.totalorder %s73, %s74
    %p88 = scmp.eq.s32.totalorder %s15, 47
    %p89 = por %p87, %p88
    %p91 = scmp.ne.s32.totalorder %s74, %s90
    %p92 = scmp.eq.s32.totalorder %s15, 0
    %p93 = por %p91, %p92
    %s95 = sadd.s32 %s94, 1
    %p98 = scmp.eq.s32.totalorder %s9, 47
    %p99 = scmp.ne.s32.totalorder %s94, %s96
    %p100 = scmp.eq.s32.totalorder %s9, 0
    %p101 = por %p99, %p100
    %p102 = scmp.ne.s32.totalorder %s94, %s96
    %p103 = scmp.eq.s32.totalorder %s14, 47
    %p104 = por %p102, %p103
    %p105 = scmp.ne.s32.totalorder %s96, %s97
    %p106 = scmp.eq.s32.totalorder %s14, 0
    %p107 = por %p105, %p106
    %p108 = scmp.ne.s32.totalorder %s96, %s97
    %p109 = scmp.eq.s32.totalorder %s15, 47
    %p110 = por %p108, %p109
    %p112 = scmp.ne.s32.totalorder %s97, %s111
    %p113 = scmp.eq.s32.totalorder %s15, 0
    %p114 = por %p112, %p113
    %s115 = smul.u32 %s16, 8
    %s116 = sadd.s32 %s115, %s17
    %s117 = smul.u32 %s35, 8
    %s118 = sadd.s32 %s117, %s31
    %s119 = ssub.s32 %s116, %s118
    %p120 = scmp.eq.s32.totalorder %s119, 0
    %s122 = sadd.s32 %s121, 1
    %s123 = scalar_select %p120, %s121, %s122
    %p126 = pneg %p120
    %p127 = scmp.eq.s32.totalorder %s9, 47
    %p128 = por %p126, %p127
    %p129 = scmp.ne.s32.totalorder %s121, %s124
    %p130 = scmp.eq.s32.totalorder %s9, 0
    %p131 = por %p129, %p130
    %p132 = scmp.ne.s32.totalorder %s121, %s124
    %p133 = scmp.eq.s32.totalorder %s14, 47
    %p134 = por %p132, %p133
    %p135 = scmp.ne.s32.totalorder %s124, %s125
    %p136 = scmp.eq.s32.totalorder %s14, 0
    %p137 = por %p135, %p136
    %p138 = scmp.ne.s32.totalorder %s124, %s125
    %p139 = scmp.eq.s32.totalorder %s15, 47
    %p140 = por %p138, %p139
    %p142 = scmp.ne.s32.totalorder %s125, %s141
    %p143 = scmp.eq.s32.totalorder %s15, 0
    %p144 = por %p142, %p143
    %p145 = scmp.le.s32.totalorder 1, %s9
    %p146 = scmp.lt.s32.totalorder %s9, 49
    %p147 = pnand %p145, %p146
    %p148 = pneg %p147
    // Predicated region
    $region9: #{down_forward.13} parent=5 // pred_check
      _
    $region10: #{down_forward.13} parent=5 // pred_check_branch
      %150 = sbr.rel (%p147) target = $region12
    $region11: #{down_forward.13} parent=5 // pred_region
      %s151 = ssub.s32 %s9, 1
      // Predicated region
      $region13: #{down_forward.13} parent=11 // pred_check
        %p152 = pneg %p107
      $region14: #{down_forward.13} parent=11 // pred_check_branch
        %154 = sbr.rel (%p152) target = $region16
      $region15: #{down_forward.13} parent=11 // pred_region
        _
      $region16: #{down_forward.13} parent=11 // pred_fallthru
        _
    $region12: #{down_forward.13} parent=5 // pred_fallthru
      _
    %p155 = scmp.lt.s32.totalorder %s9, 48
    // Predicated region
    $region17: #{down_forward.13} parent=5 // pred_check
      %p156 = pneg %p155
    $region18: #{down_forward.13} parent=5 // pred_check_branch
      %158 = sbr.rel (%p156) target = $region20
    $region19: #{down_forward.13} parent=5 // pred_region
      // Predicated region
      $region21: #{down_forward.13} parent=19 // pred_check
        %p159 = pneg %p54
      $region22: #{down_forward.13} parent=19 // pred_check_branch
        %161 = sbr.rel (%p159) target = $region24
      $region23: #{down_forward.13} parent=19 // pred_region
        %s162 = smul.u32 %s16, 10
        %s163 = sadd.s32 %s162, %s17
        %s164 = sadd.s32 %s163, %s18
        %p165 = scmp.lt.s32.totalorder %s164, 19
        %s166 = scalar_select %p165, %s164, 19
        %s167 = smul.addr %s166, 2
        %s168 = smul.addr %s167, 4
        %s169 = scalar_lea.vmem %s0, %s168
        %s170 = smul.u32 %s16, 10
        %s171 = sadd.s32 %s170, %s17
        %s172 = sadd.s32 %s171, %s18
      $region24: #{down_forward.13} parent=19 // pred_fallthru
        _
      // Predicated region
      $region25: #{down_forward.13} parent=19 // pred_check
        %p173 = pneg %p80
      $region26: #{down_forward.13} parent=19 // pred_check_branch
        %175 = sbr.rel (%p173) target = $region28
      $region27: #{down_forward.13} parent=19 // pred_region
        %p176 = scmp.lt.s32.totalorder %s18, 2
        %s177 = scalar_select %p176, %s18, 2
        %s178 = smul.addr %s177, 18
        %s179 = smul.addr %s178, 4
        %s180 = scalar_lea.vmem %s1, %s179
      $region28: #{down_forward.13} parent=19 // pred_fallthru
        _
    $region20: #{down_forward.13} parent=5 // pred_fallthru
      _
    %p181 = scmp.le.s32.totalorder 1, %s9
    %p182 = scmp.lt.s32.totalorder %s9, 49
    %p183 = pnand %p181, %p182
    %p184 = pneg %p183
    // Predicated region
    $region29: #{down_forward.13} parent=5 // pred_check
      _
    $region30: #{down_forward.13} parent=5 // pred_check_branch
      %186 = sbr.rel (%p183) target = $region32
    $region31: #{down_forward.13} parent=5 // pred_region
      %s187 = ssub.s32 %s9, 1
      %s188 = smul.u32 %s19, 10
      %s189 = sadd.s32 %s188, %s20
      %s190 = sadd.s32 %s189, %s21
      %p191 = scmp.lt.s32.totalorder %s190, 19
      %s192 = scalar_select %p191, %s190, 19
      %s193 = smul.addr %s192, 2
      %s194 = smul.addr %s193, 4
      %s195 = scalar_lea.vmem %s0, %s194
      %p196 = pneg %p60
      %p197 = pneg %p57
      %p198 = scmp.lt.s32.totalorder %s21, 2
      %s199 = scalar_select %p198, %s21, 2
      %s200 = smul.addr %s199, 18
      %s201 = smul.addr %s200, 4
      %s202 = scalar_lea.vmem %s1, %s201
      %p203 = pneg %p86
      %p204 = pneg %p83
      %p205 = pneg %p107
      %p206 = pneg %p104
      %p207 = pneg %p137
      %p208 = pneg %p134
      %s209 = smul.u32 %s19, 8
      %s210 = sadd.s32 %s209, %s20
      %p211 = scmp.lt.s32.totalorder %s210, 15
      %s212 = scalar_select %p211, %s210, 15
      %s213 = smul.addr %s212, 2
      %s214 = smul.addr %s213, 4
      %s215 = scalar_lea.vmem %s3, %s214
      %s216 = smul.u32 %s19, 10
      %s217 = sadd.s32 %s216, %s20
      %s218 = sadd.s32 %s217, %s21
      %p219 = scmp.lt.s32.totalorder %s218, 19
      %s220 = scalar_select %p219, %s218, 19
      %s221 = smul.addr %s220, 2
      %s222 = smul.addr %s221, 4
      %s223 = scalar_lea.vmem %s0, %s222
      %s224 = smul.u32 %s19, 10
      %s225 = sadd.s32 %s224, %s20
      %s226 = sadd.s32 %s225, %s21
      %p227 = scmp.lt.s32.totalorder %s21, 2
      %s228 = scalar_select %p227, %s21, 2
      %s229 = smul.addr %s228, 18
      %s230 = smul.addr %s229, 4
      %s231 = scalar_lea.vmem %s1, %s230
      %s232 = smul.u32 %s19, 8
      %s233 = sadd.s32 %s232, %s20
      %p234 = scmp.lt.s32.totalorder %s233, 15
      %s235 = scalar_select %p234, %s233, 15
      %s236 = smul.addr %s235, 2
      %s237 = smul.addr %s236, 4
      %s238 = scalar_lea.vmem %s3, %s237
      %s239 = smul.u32 %s19, 8
      %s240 = sadd.s32 %s239, %s20
      %p242 = scmp.eq.s32.totalorder %s21, 0
      // Predicated region
      $region33: #{down_forward.13} parent=31 // pred_check
        %p243 = pneg %p242
      $region34: #{down_forward.13} parent=31 // pred_check_branch
        %245 = sbr.rel (%p243) target = $region36
      $region35: #{down_forward.13} parent=31 // pred_region
        %vm246 = vcmask 654336
        %247 = vst.msk [vmem:[#allocation2] sm:$0xff] %vm246, 0.0
        %248 = vst.msk [vmem:[#allocation2 + $0x8] sm:$0xff] %vm246, 0.0
      $region36: #{down_forward.13} parent=31 // pred_fallthru
        _
      %v249 = vld [vmem:[%s223] sm:$0xf]
      %v250 = vld [vmem:[%s223 + $0x4] sm:$0xf]
      %v251 = vld [vmem:[%s231] sm:$0xf]
      %v252 = vld [vmem:[%s231 + $0x4] sm:$0xf]
      %s253 = scalar_lea.vmem %s231, 8
      %v254 = vld [vmem:[%s253] sm:$0xf]
      %v255 = vld [vmem:[%s253 + $0x4] sm:$0xf]
      %v258 = vunpack.c.l.b16 %v254
      %v259 = vunpack.c.l.b16 %v255
      %v260 = vpack.c.b16 %v259, %v258
      %v263 = vunpack.c.l.b16 %v249
      %v264 = vunpack.c.l.b16 %v250
      %v265 = vpack.c.b16 %v264, %v263
      %266 = vrot.lane.b32.xlu0 %v265, 127
      %v267 = vpop.permute.xlu0 %266
      %vm269 = vcmask 130048
      %v271 = vsel %vm269, %v260, 0
      %273 = vmatprep.subr.bf16.mxu0 0
      %274 = vmatpush1.bf16.msra.mxu0 %v267
      %275 = vmatprep.subr.bf16.mxu0 0
      %276 = vmatpush1.bf16.msra.mxu0 0
      %277 = vmatprep.subr.bf16.mxu0 0
      %278 = vmatpush1.bf16.msra.mxu0 0
      %279 = vmatprep.subr.bf16.mxu0 0
      %280 = vmatpush1.bf16.msra.mxu0 0
      %281 = vmatprep.subr.bf16.mxu0 0
      %282 = vmatpush1.bf16.msra.mxu0 0
      %283 = vmatprep.subr.bf16.mxu0 0
      %284 = vmatpush1.bf16.msra.mxu0 0
      %285 = vmatprep.subr.bf16.mxu0 0
      %286 = vmatpush1.bf16.msra.mxu0 0
      %287 = vmatprep.subr.bf16.mxu0 0
      %288 = vmatpush1.bf16.msra.mxu0 0
      %289 = vmatprep.subr.bf16.mxu0 0
      %290 = vmatpush1.bf16.msra.mxu0 0
      %291 = vmatprep.subr.bf16.mxu0 0
      %292 = vmatpush1.bf16.msra.mxu0 0
      %293 = vmatprep.subr.bf16.mxu0 0
      %294 = vmatpush1.bf16.msra.mxu0 0
      %295 = vmatprep.subr.bf16.mxu0 0
      %296 = vmatpush1.bf16.msra.mxu0 0
      %297 = vmatprep.subr.bf16.mxu0 0
      %298 = vmatpush1.bf16.msra.mxu0 0
      %299 = vmatprep.subr.bf16.mxu0 0
      %300 = vmatpush1.bf16.msra.mxu0 0
      %301 = vmatprep.subr.bf16.mxu0 0
      %302 = vmatpush1.bf16.msra.mxu0 0
      %303 = vmatprep.subr.bf16.mxu0 0
      %304 = vmatpush1.bf16.msra.mxu0 0
      %305 = vmatprep.mubr.bf16.mxu0 0
      %306 = vmatmul.mubr.bf16.gmra.mrb[0].mxu0 %v271
      %v307 = vpop.f32.mrb[0].mxu0
      %v308 = vadd.f32 0.0, %v307
      %v309 = vpop.f32.mrb[0].mxu0
      %v310 = vpop.f32.mrb[0].mxu0
      %v311 = vadd.f32 0.0, %v310
      %v312 = vpop.f32.mrb[0].mxu0
      %313 = vdwg.mxu0
      %v316 = vunpack.c.l.b16 %v251
      %v317 = vunpack.c.l.b16 %v252
      %v318 = vpack.c.b16 %v317, %v316
      %v321 = vsel %vm269, %v318, 0
      %323 = vmatprep.subr.bf16.mxu0 0
      %324 = vmatpush1.bf16.msra.mxu0 %v265
      %325 = vmatprep.subr.bf16.mxu0 0
      %326 = vmatpush1.bf16.msra.mxu0 0
      %327 = vmatprep.subr.bf16.mxu0 0
      %328 = vmatpush1.bf16.msra.mxu0 0
      %329 = vmatprep.subr.bf16.mxu0 0
      %330 = vmatpush1.bf16.msra.mxu0 0
      %331 = vmatprep.subr.bf16.mxu0 0
      %332 = vmatpush1.bf16.msra.mxu0 0
      %333 = vmatprep.subr.bf16.mxu0 0
      %334 = vmatpush1.bf16.msra.mxu0 0
      %335 = vmatprep.subr.bf16.mxu0 0
      %336 = vmatpush1.bf16.msra.mxu0 0
      %337 = vmatprep.subr.bf16.mxu0 0
      %338 = vmatpush1.bf16.msra.mxu0 0
      %339 = vmatprep.subr.bf16.mxu0 0
      %340 = vmatpush1.bf16.msra.mxu0 0
      %341 = vmatprep.subr.bf16.mxu0 0
      %342 = vmatpush1.bf16.msra.mxu0 0
      %343 = vmatprep.subr.bf16.mxu0 0
      %344 = vmatpush1.bf16.msra.mxu0 0
      %345 = vmatprep.subr.bf16.mxu0 0
      %346 = vmatpush1.bf16.msra.mxu0 0
      %347 = vmatprep.subr.bf16.mxu0 0
      %348 = vmatpush1.bf16.msra.mxu0 0
      %349 = vmatprep.subr.bf16.mxu0 0
      %350 = vmatpush1.bf16.msra.mxu0 0
      %351 = vmatprep.subr.bf16.mxu0 0
      %352 = vmatpush1.bf16.msra.mxu0 0
      %353 = vmatprep.subr.bf16.mxu0 0
      %354 = vmatpush1.bf16.msra.mxu0 0
      %355 = vmatprep.mubr.bf16.mxu0 0
      %356 = vmatmul.mubr.bf16.gmra.mrb[0].mxu0 %v321
      %v357 = vpop.f32.mrb[0].mxu0
      %v358 = vadd.f32 %v308, %v357
      %v359 = vpop.f32.mrb[0].mxu0
      %v360 = vpop.f32.mrb[0].mxu0
      %v361 = vadd.f32 %v311, %v360
      %v362 = vpop.f32.mrb[0].mxu0
      %363 = vdwg.mxu0
      %s364 = scalar_lea.vmem %s231, 16
      %v365 = vld [vmem:[%s364] sm:$0xf]
      %v366 = vld [vmem:[%s364 + $0x4] sm:$0xf]
      %v369 = vunpack.c.l.b16 %v365
      %v370 = vunpack.c.l.b16 %v366
      %v371 = vpack.c.b16 %v370, %v369
      %372 = vrot.lane.b32.xlu0 %v265, 126
      %v373 = vpop.permute.xlu0 %372
      %v376 = vsel %vm269, %v371, 0
      %378 = vmatprep.subr.bf16.mxu0 0
      %379 = vmatpush1.bf16.msra.mxu0 %v373
      %380 = vmatprep.subr.bf16.mxu0 0
      %381 = vmatpush1.bf16.msra.mxu0 0
      %382 = vmatprep.subr.bf16.mxu0 0
      %383 = vmatpush1.bf16.msra.mxu0 0
      %384 = vmatprep.subr.bf16.mxu0 0
      %385 = vmatpush1.bf16.msra.mxu0 0
      %386 = vmatprep.subr.bf16.mxu0 0
      %387 = vmatpush1.bf16.msra.mxu0 0
      %388 = vmatprep.subr.bf16.mxu0 0
      %389 = vmatpush1.bf16.msra.mxu0 0
      %390 = vmatprep.subr.bf16.mxu0 0
      %391 = vmatpush1.bf16.msra.mxu0 0
      %392 = vmatprep.subr.bf16.mxu0 0
      %393 = vmatpush1.bf16.msra.mxu0 0
      %394 = vmatprep.subr.bf16.mxu0 0
      %395 = vmatpush1.bf16.msra.mxu0 0
      %396 = vmatprep.subr.bf16.mxu0 0
      %397 = vmatpush1.bf16.msra.mxu0 0
      %398 = vmatprep.subr.bf16.mxu0 0
      %399 = vmatpush1.bf16.msra.mxu0 0
      %400 = vmatprep.subr.bf16.mxu0 0
      %401 = vmatpush1.bf16.msra.mxu0 0
      %402 = vmatprep.subr.bf16.mxu0 0
      %403 = vmatpush1.bf16.msra.mxu0 0
      %404 = vmatprep.subr.bf16.mxu0 0
      %405 = vmatpush1.bf16.msra.mxu0 0
      %406 = vmatprep.subr.bf16.mxu0 0
      %407 = vmatpush1.bf16.msra.mxu0 0
      %408 = vmatprep.subr.bf16.mxu0 0
      %409 = vmatpush1.bf16.msra.mxu0 0
      %410 = vmatprep.mubr.bf16.mxu0 0
      %411 = vmatmul.mubr.bf16.gmra.mrb[0].mxu0 %v376
      %v412 = vpop.f32.mrb[0].mxu0
      %v413 = vadd.f32 0.0, %v412
      %v414 = vpop.f32.mrb[0].mxu0
      %v415 = vpop.f32.mrb[0].mxu0
      %v416 = vadd.f32 0.0, %v415
      %v417 = vpop.f32.mrb[0].mxu0
      %418 = vdwg.mxu0
      %v419 = vadd.f32 %v358, %v413
      %v420 = vadd.f32 %v361, %v416
      %s421 = scalar_lea.vmem %s231, 24
      %v422 = vld [vmem:[%s421] sm:$0xf]
      %v423 = vld [vmem:[%s421 + $0x4] sm:$0xf]
      %v426 = vunpack.c.l.b16 %v422
      %v427 = vunpack.c.l.b16 %v423
      %v428 = vpack.c.b16 %v427, %v426
      %429 = vrot.lane.b32.xlu0 %v265, 118
      %v430 = vpop.permute.xlu0 %429
      %v433 = vsel %vm269, %v428, 0
      %435 = vmatprep.subr.bf16.mxu0 0
      %436 = vmatpush1.bf16.msra.mxu0 %v430
      %437 = vmatprep.subr.bf16.mxu0 0
      %438 = vmatpush1.bf16.msra.mxu0 0
      %439 = vmatprep.subr.bf16.mxu0 0
      %440 = vmatpush1.bf16.msra.mxu0 0
      %441 = vmatprep.subr.bf16.mxu0 0
      %442 = vmatpush1.bf16.msra.mxu0 0
      %443 = vmatprep.subr.bf16.mxu0 0
      %444 = vmatpush1.bf16.msra.mxu0 0
      %445 = vmatprep.subr.bf16.mxu0 0
      %446 = vmatpush1.bf16.msra.mxu0 0
      %447 = vmatprep.subr.bf16.mxu0 0
      %448 = vmatpush1.bf16.msra.mxu0 0
      %449 = vmatprep.subr.bf16.mxu0 0
      %450 = vmatpush1.bf16.msra.mxu0 0
      %451 = vmatprep.subr.bf16.mxu0 0
      %452 = vmatpush1.bf16.msra.mxu0 0
      %453 = vmatprep.subr.bf16.mxu0 0
      %454 = vmatpush1.bf16.msra.mxu0 0
      %455 = vmatprep.subr.bf16.mxu0 0
      %456 = vmatpush1.bf16.msra.mxu0 0
      %457 = vmatprep.subr.bf16.mxu0 0
      %458 = vmatpush1.bf16.msra.mxu0 0
      %459 = vmatprep.subr.bf16.mxu0 0
      %460 = vmatpush1.bf16.msra.mxu0 0
      %461 = vmatprep.subr.bf16.mxu0 0
      %462 = vmatpush1.bf16.msra.mxu0 0
      %463 = vmatprep.subr.bf16.mxu0 0
      %464 = vmatpush1.bf16.msra.mxu0 0
      %465 = vmatprep.subr.bf16.mxu0 0
      %466 = vmatpush1.bf16.msra.mxu0 0
      %467 = vmatprep.mubr.bf16.mxu0 0
      %468 = vmatmul.mubr.bf16.gmra.mrb[0].mxu0 %v433
      %v469 = vpop.f32.mrb[0].mxu0
      %v470 = vadd.f32 0.0, %v469
      %v471 = vpop.f32.mrb[0].mxu0
      %v472 = vpop.f32.mrb[0].mxu0
      %v473 = vadd.f32 0.0, %v472
      %v474 = vpop.f32.mrb[0].mxu0
      %475 = vdwg.mxu0
      %v476 = vadd.f32 %v419, %v470
      %v477 = vadd.f32 %v420, %v473
      %s478 = scalar_lea.vmem %s231, 32
      %v479 = vld [vmem:[%s478] sm:$0xf]
      %v480 = vld [vmem:[%s478 + $0x4] sm:$0xf]
      %v483 = vunpack.c.l.b16 %v479
      %v484 = vunpack.c.l.b16 %v480
      %v485 = vpack.c.b16 %v484, %v483
      %486 = vrot.lane.b32.xlu0 %v265, 117
      %v487 = vpop.permute.xlu0 %486
      %v490 = vsel %vm269, %v485, 0
      %492 = vmatprep.subr.bf16.mxu0 0
      %493 = vmatpush1.bf16.msra.mxu0 %v487
      %494 = vmatprep.subr.bf16.mxu0 0
      %495 = vmatpush1.bf16.msra.mxu0 0
      %496 = vmatprep.subr.bf16.mxu0 0
      %497 = vmatpush1.bf16.msra.mxu0 0
      %498 = vmatprep.subr.bf16.mxu0 0
      %499 = vmatpush1.bf16.msra.mxu0 0
      %500 = vmatprep.subr.bf16.mxu0 0
      %501 = vmatpush1.bf16.msra.mxu0 0
      %502 = vmatprep.subr.bf16.mxu0 0
      %503 = vmatpush1.bf16.msra.mxu0 0
      %504 = vmatprep.subr.bf16.mxu0 0
      %505 = vmatpush1.bf16.msra.mxu0 0
      %506 = vmatprep.subr.bf16.mxu0 0
      %507 = vmatpush1.bf16.msra.mxu0 0
      %508 = vmatprep.subr.bf16.mxu0 0
      %509 = vmatpush1.bf16.msra.mxu0 0
      %510 = vmatprep.subr.bf16.mxu0 0
      %511 = vmatpush1.bf16.msra.mxu0 0
      %512 = vmatprep.subr.bf16.mxu0 0
      %513 = vmatpush1.bf16.msra.mxu0 0
      %514 = vmatprep.subr.bf16.mxu0 0
      %515 = vmatpush1.bf16.msra.mxu0 0
      %516 = vmatprep.subr.bf16.mxu0 0
      %517 = vmatpush1.bf16.msra.mxu0 0
      %518 = vmatprep.subr.bf16.mxu0 0
      %519 = vmatpush1.bf16.msra.mxu0 0
      %520 = vmatprep.subr.bf16.mxu0 0
      %521 = vmatpush1.bf16.msra.mxu0 0
      %522 = vmatprep.subr.bf16.mxu0 0
      %523 = vmatpush1.bf16.msra.mxu0 0
      %524 = vmatprep.mubr.bf16.mxu0 0
      %525 = vmatmul.mubr.bf16.gmra.mrb[0].mxu0 %v490
      %v526 = vpop.f32.mrb[0].mxu0
      %v527 = vadd.f32 0.0, %v526
      %v528 = vpop.f32.mrb[0].mxu0
      %v529 = vpop.f32.mrb[0].mxu0
      %v530 = vadd.f32 0.0, %v529
      %v531 = vpop.f32.mrb[0].mxu0
      %532 = vdwg.mxu0
      %v533 = vadd.f32 %v476, %v527
      %v534 = vadd.f32 %v477, %v530
      %s535 = scalar_lea.vmem %s231, 40
      %v536 = vld [vmem:[%s535] sm:$0xf]
      %v537 = vld [vmem:[%s535 + $0x4] sm:$0xf]
      %v540 = vunpack.c.l.b16 %v536
      %v541 = vunpack.c.l.b16 %v537
      %v542 = vpack.c.b16 %v541, %v540
      %543 = vrot.lane.b32.xlu0 %v265, 116
      %v544 = vpop.permute.xlu0 %543
      %v547 = vsel %vm269, %v542, 0
      %549 = vmatprep.subr.bf16.mxu0 0
      %550 = vmatpush1.bf16.msra.mxu0 %v544
      %551 = vmatprep.subr.bf16.mxu0 0
      %552 = vmatpush1.bf16.msra.mxu0 0
      %553 = vmatprep.subr.bf16.mxu0 0
      %554 = vmatpush1.bf16.msra.mxu0 0
      %555 = vmatprep.subr.bf16.mxu0 0
      %556 = vmatpush1.bf16.msra.mxu0 0
      %557 = vmatprep.subr.bf16.mxu0 0
      %558 = vmatpush1.bf16.msra.mxu0 0
      %559 = vmatprep.subr.bf16.mxu0 0
      %560 = vmatpush1.bf16.msra.mxu0 0
      %561 = vmatprep.subr.bf16.mxu0 0
      %562 = vmatpush1.bf16.msra.mxu0 0
      %563 = vmatprep.subr.bf16.mxu0 0
      %564 = vmatpush1.bf16.msra.mxu0 0
      %565 = vmatprep.subr.bf16.mxu0 0
      %566 = vmatpush1.bf16.msra.mxu0 0
      %567 = vmatprep.subr.bf16.mxu0 0
      %568 = vmatpush1.bf16.msra.mxu0 0
      %569 = vmatprep.subr.bf16.mxu0 0
      %570 = vmatpush1.bf16.msra.mxu0 0
      %571 = vmatprep.subr.bf16.mxu0 0
      %572 = vmatpush1.bf16.msra.mxu0 0
      %573 = vmatprep.subr.bf16.mxu0 0
      %574 = vmatpush1.bf16.msra.mxu0 0
      %575 = vmatprep.subr.bf16.mxu0 0
      %576 = vmatpush1.bf16.msra.mxu0 0
      %577 = vmatprep.subr.bf16.mxu0 0
      %578 = vmatpush1.bf16.msra.mxu0 0
      %579 = vmatprep.subr.bf16.mxu0 0
      %580 = vmatpush1.bf16.msra.mxu0 0
      %581 = vmatprep.mubr.bf16.mxu0 0
      %582 = vmatmul.mubr.bf16.gmra.mrb[0].mxu0 %v547
      %v583 = vpop.f32.mrb[0].mxu0
      %v584 = vadd.f32 0.0, %v583
      %v585 = vpop.f32.mrb[0].mxu0
      %v586 = vpop.f32.mrb[0].mxu0
      %v587 = vadd.f32 0.0, %v586
      %v588 = vpop.f32.mrb[0].mxu0
      %589 = vdwg.mxu0
      %v590 = vadd.f32 %v533, %v584
      %v591 = vadd.f32 %v534, %v587
      %s592 = scalar_lea.vmem %s231, 48
      %v593 = vld [vmem:[%s592] sm:$0xf]
      %v594 = vld [vmem:[%s592 + $0x4] sm:$0xf]
      %v597 = vunpack.c.l.b16 %v593
      %v598 = vunpack.c.l.b16 %v594
      %v599 = vpack.c.b16 %v598, %v597
      %600 = vrot.lane.b32.xlu0 %v265, 108
      %v601 = vpop.permute.xlu0 %600
      %v604 = vsel %vm269, %v599, 0
      %606 = vmatprep.subr.bf16.mxu0 0
      %607 = vmatpush1.bf16.msra.mxu0 %v601
      %608 = vmatprep.subr.bf16.mxu0 0
      %609 = vmatpush1.bf16.msra.mxu0 0
      %610 = vmatprep.subr.bf16.mxu0 0
      %611 = vmatpush1.bf16.msra.mxu0 0
      %612 = vmatprep.subr.bf16.mxu0 0
      %613 = vmatpush1.bf16.msra.mxu0 0
      %614 = vmatprep.subr.bf16.mxu0 0
      %615 = vmatpush1.bf16.msra.mxu0 0
      %616 = vmatprep.subr.bf16.mxu0 0
      %617 = vmatpush1.bf16.msra.mxu0 0
      %618 = vmatprep.subr.bf16.mxu0 0
      %619 = vmatpush1.bf16.msra.mxu0 0
      %620 = vmatprep.subr.bf16.mxu0 0
      %621 = vmatpush1.bf16.msra.mxu0 0
      %622 = vmatprep.subr.bf16.mxu0 0
      %623 = vmatpush1.bf16.msra.mxu0 0
      %624 = vmatprep.subr.bf16.mxu0 0
      %625 = vmatpush1.bf16.msra.mxu0 0
      %626 = vmatprep.subr.bf16.mxu0 0
      %627 = vmatpush1.bf16.msra.mxu0 0
      %628 = vmatprep.subr.bf16.mxu0 0
      %629 = vmatpush1.bf16.msra.mxu0 0
      %630 = vmatprep.subr.bf16.mxu0 0
      %631 = vmatpush1.bf16.msra.mxu0 0
      %632 = vmatprep.subr.bf16.mxu0 0
      %633 = vmatpush1.bf16.msra.mxu0 0
      %634 = vmatprep.subr.bf16.mxu0 0
      %635 = vmatpush1.bf16.msra.mxu0 0
      %636 = vmatprep.subr.bf16.mxu0 0
      %637 = vmatpush1.bf16.msra.mxu0 0
      %638 = vmatprep.mubr.bf16.mxu0 0
      %639 = vmatmul.mubr.bf16.gmra.mrb[0].mxu0 %v604
      %v640 = vpop.f32.mrb[0].mxu0
      %v641 = vadd.f32 0.0, %v640
      %v642 = vpop.f32.mrb[0].mxu0
      %v643 = vpop.f32.mrb[0].mxu0
      %v644 = vadd.f32 0.0, %v643
      %v645 = vpop.f32.mrb[0].mxu0
      %646 = vdwg.mxu0
      %v647 = vadd.f32 %v590, %v641
      %v648 = vadd.f32 %v591, %v644
      %s649 = scalar_lea.vmem %s231, 56
      %v650 = vld [vmem:[%s649] sm:$0xf]
      %v651 = vld [vmem:[%s649 + $0x4] sm:$0xf]
      %v654 = vunpack.c.l.b16 %v650
      %v655 = vunpack.c.l.b16 %v651
      %v656 = vpack.c.b16 %v655, %v654
      %657 = vrot.lane.b32.xlu0 %v265, 107
      %v658 = vpop.permute.xlu0 %657
      %v661 = vsel %vm269, %v656, 0
      %663 = vmatprep.subr.bf16.mxu0 0
      %664 = vmatpush1.bf16.msra.mxu0 %v658
      %665 = vmatprep.subr.bf16.mxu0 0
      %666 = vmatpush1.bf16.msra.mxu0 0
      %667 = vmatprep.subr.bf16.mxu0 0
      %668 = vmatpush1.bf16.msra.mxu0 0
      %669 = vmatprep.subr.bf16.mxu0 0
      %670 = vmatpush1.bf16.msra.mxu0 0
      %671 = vmatprep.subr.bf16.mxu0 0
      %672 = vmatpush1.bf16.msra.mxu0 0
      %673 = vmatprep.subr.bf16.mxu0 0
      %674 = vmatpush1.bf16.msra.mxu0 0
      %675 = vmatprep.subr.bf16.mxu0 0
      %676 = vmatpush1.bf16.msra.mxu0 0
      %677 = vmatprep.subr.bf16.mxu0 0
      %678 = vmatpush1.bf16.msra.mxu0 0
      %679 = vmatprep.subr.bf16.mxu0 0
      %680 = vmatpush1.bf16.msra.mxu0 0
      %681 = vmatprep.subr.bf16.mxu0 0
      %682 = vmatpush1.bf16.msra.mxu0 0
      %683 = vmatprep.subr.bf16.mxu0 0
      %684 = vmatpush1.bf16.msra.mxu0 0
      %685 = vmatprep.subr.bf16.mxu0 0
      %686 = vmatpush1.bf16.msra.mxu0 0
      %687 = vmatprep.subr.bf16.mxu0 0
      %688 = vmatpush1.bf16.msra.mxu0 0
      %689 = vmatprep.subr.bf16.mxu0 0
      %690 = vmatpush1.bf16.msra.mxu0 0
      %691 = vmatprep.subr.bf16.mxu0 0
      %692 = vmatpush1.bf16.msra.mxu0 0
      %693 = vmatprep.subr.bf16.mxu0 0
      %694 = vmatpush1.bf16.msra.mxu0 0
      %695 = vmatprep.mubr.bf16.mxu0 0
      %696 = vmatmul.mubr.bf16.gmra.mrb[0].mxu0 %v661
      %v697 = vpop.f32.mrb[0].mxu0
      %v698 = vadd.f32 0.0, %v697
      %v699 = vpop.f32.mrb[0].mxu0
      %v700 = vpop.f32.mrb[0].mxu0
      %v701 = vadd.f32 0.0, %v700
      %v702 = vpop.f32.mrb[0].mxu0
      %703 = vdwg.mxu0
      %v704 = vadd.f32 %v647, %v698
      %v705 = vadd.f32 %v648, %v701
      %s706 = scalar_lea.vmem %s231, 64
      %v707 = vld [vmem:[%s706] sm:$0xf]
      %v708 = vld [vmem:[%s706 + $0x4] sm:$0xf]
      %v711 = vunpack.c.l.b16 %v707
      %v712 = vunpack.c.l.b16 %v708
      %v713 = vpack.c.b16 %v712, %v711
      %714 = vrot.lane.b32.xlu0 %v265, 106
      %v715 = vpop.permute.xlu0 %714
      %v718 = vsel %vm269, %v713, 0
      %720 = vmatprep.subr.bf16.mxu0 0
      %721 = vmatpush1.bf16.msra.mxu0 %v715
      %722 = vmatprep.subr.bf16.mxu0 0
      %723 = vmatpush1.bf16.msra.mxu0 0
      %724 = vmatprep.subr.bf16.mxu0 0
      %725 = vmatpush1.bf16.msra.mxu0 0
      %726 = vmatprep.subr.bf16.mxu0 0
      %727 = vmatpush1.bf16.msra.mxu0 0
      %728 = vmatprep.subr.bf16.mxu0 0
      %729 = vmatpush1.bf16.msra.mxu0 0
      %730 = vmatprep.subr.bf16.mxu0 0
      %731 = vmatpush1.bf16.msra.mxu0 0
      %732 = vmatprep.subr.bf16.mxu0 0
      %733 = vmatpush1.bf16.msra.mxu0 0
      %734 = vmatprep.subr.bf16.mxu0 0
      %735 = vmatpush1.bf16.msra.mxu0 0
      %736 = vmatprep.subr.bf16.mxu0 0
      %737 = vmatpush1.bf16.msra.mxu0 0
      %738 = vmatprep.subr.bf16.mxu0 0
      %739 = vmatpush1.bf16.msra.mxu0 0
      %740 = vmatprep.subr.bf16.mxu0 0
      %741 = vmatpush1.bf16.msra.mxu0 0
      %742 = vmatprep.subr.bf16.mxu0 0
      %743 = vmatpush1.bf16.msra.mxu0 0
      %744 = vmatprep.subr.bf16.mxu0 0
      %745 = vmatpush1.bf16.msra.mxu0 0
      %746 = vmatprep.subr.bf16.mxu0 0
      %747 = vmatpush1.bf16.msra.mxu0 0
      %748 = vmatprep.subr.bf16.mxu0 0
      %749 = vmatpush1.bf16.msra.mxu0 0
      %750 = vmatprep.subr.bf16.mxu0 0
      %751 = vmatpush1.bf16.msra.mxu0 0
      %752 = vmatprep.mubr.bf16.mxu0 0
      %753 = vmatmul.mubr.bf16.gmra.mrb[0].mxu0 %v718
      %v754 = vpop.f32.mrb[0].mxu0
      %v755 = vadd.f32 0.0, %v754
      %v756 = vpop.f32.mrb[0].mxu0
      %v757 = vpop.f32.mrb[0].mxu0
      %v758 = vadd.f32 0.0, %v757
      %v759 = vpop.f32.mrb[0].mxu0
      %760 = vdwg.mxu0
      %v761 = vadd.f32 %v704, %v755
      %v762 = vadd.f32 %v705, %v758
      %v763 = vld [vmem:[#allocation2] sm:$0xff]
      %v764 = vld [vmem:[#allocation2 + $0x8] sm:$0xff]
      %v765 = vadd.f32 %v763, %v761
      %v766 = vadd.f32 %v764, %v762
      %vm767 = vcmask 654336
      %768 = vst.msk [vmem:[#allocation2] sm:$0xff] %vm767, %v765
      %769 = vst.msk [vmem:[#allocation2 + $0x8] sm:$0xff] %vm767, %v766
      %p770 = scmp.eq.s32.totalorder %s21, 2
      // Predicated region
      $region37: #{down_forward.13} parent=31 // pred_check
        %p771 = pneg %p770
      $region38: #{down_forward.13} parent=31 // pred_check_branch
        %773 = sbr.rel (%p771) target = $region40
      $region39: #{down_forward.13} parent=31 // pred_region
        %v774 = vld [vmem:[#allocation2] sm:$0xff]
        %v775 = vld [vmem:[#allocation2 + $0x8] sm:$0xff]
        %v776 = vld [vmem:[%s2] sm:$0xff]
        %v777 = vld [vmem:[%s2 + $0x8] sm:$0xff]
        %779 = vset.pattern.permute.xlu0 0
        %780 = vperm.xlu0 %779, %v776
        %v781 = vpop.permute.xlu0 %780
        %784 = vset.pattern.permute.xlu0 0
        %785 = vperm.xlu0 %784, %v777
        %v786 = vpop.permute.xlu0 %785
        %v788 = vadd.f32 %v774, %v781
        %v789 = vadd.f32 %v775, %v786
        %v790 = vpack.c.bf16 %v789, %v788
        %v792 = vunpack.c.l.b16 %v790
        %v793 = vunpack.c.h.b16 %v790
        %v794 = vpack.c.b16 %v792, %v792
        %v795 = vpack.c.b16 %v793, %v793
        %vm798 = vcmask 650240
        %799 = vst.msk [vmem:[%s238] sm:$0xf] %vm798, %v794
        %800 = vst.msk [vmem:[%s238 + $0x4] sm:$0xf] %vm798, %v795
      $region40: #{down_forward.13} parent=31 // pred_fallthru
        _
      %s801 = smul.u32 %s19, 8
      %s802 = sadd.s32 %s801, %s20
      %p803 = scmp.lt.s32.totalorder %s802, 15
      %s804 = scalar_select %p803, %s802, 15
      %s805 = smul.addr %s804, 2
      %s806 = smul.addr %s805, 4
      %s807 = scalar_lea.vmem %s3, %s806
      // Predicated region
      $region41: #{down_forward.13} parent=31 // pred_check
        %p808 = pneg %p134
      $region42: #{down_forward.13} parent=31 // pred_check_branch
        %810 = sbr.rel (%p808) target = $region44
      $region43: #{down_forward.13} parent=31 // pred_region
        %s811 = smul.u32 %s19, 8
        %s812 = sadd.s32 %s811, %s20
      $region44: #{down_forward.13} parent=31 // pred_fallthru
        _
    $region32: #{down_forward.13} parent=5 // pred_fallthru
      _
    %p813 = scmp.le.s32.totalorder 2, %s9
    // Predicated region
    $region45: #{down_forward.13} parent=5 // pred_check
      %p814 = pneg %p813
    $region46: #{down_forward.13} parent=5 // pred_check_branch
      %816 = sbr.rel (%p814) target = $region48
    $region47: #{down_forward.13} parent=5 // pred_region
      %s817 = ssub.s32 %s9, 2
      // Predicated region
      $region49: #{down_forward.13} parent=47 // pred_check
        %p818 = pneg %p140
      $region50: #{down_forward.13} parent=47 // pred_check_branch
        %820 = sbr.rel (%p818) target = $region52
      $region51: #{down_forward.13} parent=47 // pred_region
        %s821 = smul.u32 %s22, 8
        %s822 = sadd.s32 %s821, %s23
        %p823 = scmp.lt.s32.totalorder %s822, 15
        %s824 = scalar_select %p823, %s822, 15
        %s825 = smul.addr %s824, 2
        %s826 = smul.addr %s825, 4
        %s827 = scalar_lea.vmem %s3, %s826
      $region52: #{down_forward.13} parent=47 // pred_fallthru
        _
    $region48: #{down_forward.13} parent=5 // pred_fallthru
      _
  $region6: #{down_forward.13} parent=0 // loop_footer
    %s13 = sadd.s32 1, %s9
  $region7: #{down_forward.13} parent=0 // loop_footer_branch
    %8 = sbr.rel target = $region3
  $region8: #{down_forward.13} parent=0 // loop_exit
    _

// kernel: down_forward.15
$region0: #{down_forward.15}
  #allocation0 [shape = 'u32[]', space=smem, size = 0x4, offset = 0x4, fixed_abs, tag = 'smem constant byte address 0x4 - core index']
  #allocation1 [shape = 'u32[144,128]{1,0:T(1,128)}', space=vmem, size = 0x12000, scoped, tag = 'internal scratch']
  %s0 = inlined_call_operand.vmem [shape: bf16[16,16,80], index: 0, kind: input, shape index: {}]
  %s1 = inlined_call_operand.vmem [shape: f32[2,16,1], index: 1, kind: input, shape index: {}]
  %s2 = inlined_call_operand.vmem [shape: f32[2,16,1], index: 2, kind: input, shape index: {}]
  %s3 = inlined_call_operand.vmem [shape: f32[8,1,80], index: 3, kind: input, shape index: {}]
  %s4 = inlined_call_operand.vmem [shape: f32[8,1,80], index: 4, kind: input, shape index: {}]
  %s5 = inlined_call_operand.vmem [shape: bf16[16,16], index: 5, kind: input, shape index: {}]
  %s6 = inlined_call_operand.vmem [shape: f32[16,1], index: 6, kind: input, shape index: {}]
  %s7 = inlined_call_operand.vmem [shape: bf16[16,16,80], index: 7, kind: output, shape index: {}]
  %s8 = sld [smem:[#allocation0]]
  $region61: #{down_forward.15} parent=0
    _
  %s10 = ssub.s32 1, %s8
  %s11 = scalar_select 0, %s10, %s8
  loop: start=0, step=1, limit=18
  $region2: #{down_forward.15} parent=0 // loop_pre_header
    _
  $region3: #{down_forward.15} parent=0 // loop_header
    %s13 = sphi 0, %s17
    %p14 = scmp.ge.s32.totalorder %s13, 18
    %s20 = sphi 0, %s32
    %s21 = sphi 0, %s28
    %s22 = sphi 0, %s20
    %s23 = sphi 0, %s21
    %s24 = sphi 0, %s22
    %s25 = sphi 0, %s23
    %s39 = sphi 0, %s41
    %s42 = sphi 0, %s39
    %s43 = sphi 0, %s42
    %s59 = sphi 0, %s43
    %s65 = sphi 0, %s67
    %s68 = sphi 0, %s65
    %s69 = sphi 0, %s68
    %s85 = sphi 0, %s69
    %s91 = sphi 0, %s93
    %s94 = sphi 0, %s91
    %s95 = sphi 0, %s94
    %s111 = sphi 0, %s95
    %s117 = sphi 0, %s119
    %s120 = sphi 0, %s117
    %s121 = sphi 0, %s120
    %s137 = sphi 0, %s121
    %s143 = sphi 0, %s145
    %s146 = sphi 0, %s143
    %s147 = sphi 0, %s146
    %s163 = sphi 0, %s147
    %s167 = sphi 0, %s167
    %s169 = sphi 0, %s167
    %s170 = sphi 0, %s169
    %s184 = sphi 0, %s170
    %s188 = sphi 0, %s188
    %s190 = sphi 0, %s188
    %s191 = sphi 0, %s190
    %s205 = sphi 0, %s191
    %s215 = sphi 0, %s217
    %s218 = sphi 0, %s215
    %s219 = sphi 0, %s218
    %s235 = sphi 0, %s219
  $region4: #{down_forward.15} parent=0 // loop_header_branch
    %16 = sbr.rel (%p14) target = $region8
  $region5: #{down_forward.15} parent=0 // loop_body
    %s18 = ssub.s32 %s13, 1
    %s19 = ssub.s32 %s13, 2
    %s26 = sadd.s32 1, %s21
    %p27 = scmp.ge.s32.totalorder %s26, 8
    %s28 = scalar_select %p27, 0, %s26
    %s29 = sadd.s32 1, %s20
    %s30 = scalar_select %p27, %s29, %s20
    %p31 = scmp.ge.s32.totalorder %s30, 2
    %s32 = scalar_select %p31, 0, %s30
    %s33 = smul.u32 %s20, 8
    %s34 = sadd.s32 %s33, %s21
    %s35 = smul.u32 %s32, 8
    %s36 = sadd.s32 %s35, %s28
    %s37 = ssub.s32 %s34, %s36
    %p38 = scmp.eq.s32.totalorder %s37, 0
    %s40 = sadd.s32 %s39, 1
    %s41 = scalar_select %p38, %s39, %s40
    %p44 = pneg %p38
    %p45 = scmp.eq.s32.totalorder %s13, 15
    %p46 = por %p44, %p45
    %p47 = scmp.ne.s32.totalorder %s39, %s42
    %p48 = scmp.eq.s32.totalorder %s13, 0
    %p49 = por %p47, %p48
    %p50 = scmp.ne.s32.totalorder %s39, %s42
    %p51 = scmp.eq.s32.totalorder %s18, 15
    %p52 = por %p50, %p51
    %p53 = scmp.ne.s32.totalorder %s42, %s43
    %p54 = scmp.eq.s32.totalorder %s18, 0
    %p55 = por %p53, %p54
    %p56 = scmp.ne.s32.totalorder %s42, %s43
    %p57 = scmp.eq.s32.totalorder %s19, 15
    %p58 = por %p56, %p57
    %p60 = scmp.ne.s32.totalorder %s43, %s59
    %p61 = scmp.eq.s32.totalorder %s19, 0
    %p62 = por %p60, %p61
    %s63 = ssub.s32 %s20, %s32
    %p64 = scmp.eq.s32.totalorder %s63, 0
    %s66 = sadd.s32 %s65, 1
    %s67 = scalar_select %p64, %s65, %s66
    %p70 = pneg %p64
    %p71 = scmp.eq.s32.totalorder %s13, 15
    %p72 = por %p70, %p71
    %p73 = scmp.ne.s32.totalorder %s65, %s68
    %p74 = scmp.eq.s32.totalorder %s13, 0
    %p75 = por %p73, %p74
    %p76 = scmp.ne.s32.totalorder %s65, %s68
    %p77 = scmp.eq.s32.totalorder %s18, 15
    %p78 = por %p76, %p77
    %p79 = scmp.ne.s32.totalorder %s68, %s69
    %p80 = scmp.eq.s32.totalorder %s18, 0
    %p81 = por %p79, %p80
    %p82 = scmp.ne.s32.totalorder %s68, %s69
    %p83 = scmp.eq.s32.totalorder %s19, 15
    %p84 = por %p82, %p83
    %p86 = scmp.ne.s32.totalorder %s69, %s85
    %p87 = scmp.eq.s32.totalorder %s19, 0
    %p88 = por %p86, %p87
    %s89 = ssub.s32 %s20, %s32
    %p90 = scmp.eq.s32.totalorder %s89, 0
    %s92 = sadd.s32 %s91, 1
    %s93 = scalar_select %p90, %s91, %s92
    %p96 = pneg %p90
    %p97 = scmp.eq.s32.totalorder %s13, 15
    %p98 = por %p96, %p97
    %p99 = scmp.ne.s32.totalorder %s91, %s94
    %p100 = scmp.eq.s32.totalorder %s13, 0
    %p101 = por %p99, %p100
    %p102 = scmp.ne.s32.totalorder %s91, %s94
    %p103 = scmp.eq.s32.totalorder %s18, 15
    %p104 = por %p102, %p103
    %p105 = scmp.ne.s32.totalorder %s94, %s95
    %p106 = scmp.eq.s32.totalorder %s18, 0
    %p107 = por %p105, %p106
    %p108 = scmp.ne.s32.totalorder %s94, %s95
    %p109 = scmp.eq.s32.totalorder %s19, 15
    %p110 = por %p108, %p109
    %p112 = scmp.ne.s32.totalorder %s95, %s111
    %p113 = scmp.eq.s32.totalorder %s19, 0
    %p114 = por %p112, %p113
    %s115 = ssub.s32 %s21, %s28
    %p116 = scmp.eq.s32.totalorder %s115, 0
    %s118 = sadd.s32 %s117, 1
    %s119 = scalar_select %p116, %s117, %s118
    %p122 = pneg %p116
    %p123 = scmp.eq.s32.totalorder %s13, 15
    %p124 = por %p122, %p123
    %p125 = scmp.ne.s32.totalorder %s117, %s120
    %p126 = scmp.eq.s32.totalorder %s13, 0
    %p127 = por %p125, %p126
    %p128 = scmp.ne.s32.totalorder %s117, %s120
    %p129 = scmp.eq.s32.totalorder %s18, 15
    %p130 = por %p128, %p129
    %p131 = scmp.ne.s32.totalorder %s120, %s121
    %p132 = scmp.eq.s32.totalorder %s18, 0
    %p133 = por %p131, %p132
    %p134 = scmp.ne.s32.totalorder %s120, %s121
    %p135 = scmp.eq.s32.totalorder %s19, 15
    %p136 = por %p134, %p135
    %p138 = scmp.ne.s32.totalorder %s121, %s137
    %p139 = scmp.eq.s32.totalorder %s19, 0
    %p140 = por %p138, %p139
    %s141 = ssub.s32 %s21, %s28
    %p142 = scmp.eq.s32.totalorder %s141, 0
    %s144 = sadd.s32 %s143, 1
    %s145 = scalar_select %p142, %s143, %s144
    %p148 = pneg %p142
    %p149 = scmp.eq.s32.totalorder %s13, 15
    %p150 = por %p148, %p149
    %p151 = scmp.ne.s32.totalorder %s143, %s146
    %p152 = scmp.eq.s32.totalorder %s13, 0
    %p153 = por %p151, %p152
    %p154 = scmp.ne.s32.totalorder %s143, %s146
    %p155 = scmp.eq.s32.totalorder %s18, 15
    %p156 = por %p154, %p155
    %p157 = scmp.ne.s32.totalorder %s146, %s147
    %p158 = scmp.eq.s32.totalorder %s18, 0
    %p159 = por %p157, %p158
    %p160 = scmp.ne.s32.totalorder %s146, %s147
    %p161 = scmp.eq.s32.totalorder %s19, 15
    %p162 = por %p160, %p161
    %p164 = scmp.ne.s32.totalorder %s147, %s163
    %p165 = scmp.eq.s32.totalorder %s19, 0
    %p166 = por %p164, %p165
    %s168 = sadd.s32 %s167, 1
    %p171 = scmp.eq.s32.totalorder %s13, 15
    %p172 = scmp.ne.s32.totalorder %s167, %s169
    %p173 = scmp.eq.s32.totalorder %s13, 0
    %p174 = por %p172, %p173
    %p175 = scmp.ne.s32.totalorder %s167, %s169
    %p176 = scmp.eq.s32.totalorder %s18, 15
    %p177 = por %p175, %p176
    %p178 = scmp.ne.s32.totalorder %s169, %s170
    %p179 = scmp.eq.s32.totalorder %s18, 0
    %p180 = por %p178, %p179
    %p181 = scmp.ne.s32.totalorder %s169, %s170
    %p182 = scmp.eq.s32.totalorder %s19, 15
    %p183 = por %p181, %p182
    %p185 = scmp.ne.s32.totalorder %s170, %s184
    %p186 = scmp.eq.s32.totalorder %s19, 0
    %p187 = por %p185, %p186
    %s189 = sadd.s32 %s188, 1
    %p192 = scmp.eq.s32.totalorder %s13, 15
    %p193 = scmp.ne.s32.totalorder %s188, %s190
    %p194 = scmp.eq.s32.totalorder %s13, 0
    %p195 = por %p193, %p194
    %p196 = scmp.ne.s32.totalorder %s188, %s190
    %p197 = scmp.eq.s32.totalorder %s18, 15
    %p198 = por %p196, %p197
    %p199 = scmp.ne.s32.totalorder %s190, %s191
    %p200 = scmp.eq.s32.totalorder %s18, 0
    %p201 = por %p199, %p200
    %p202 = scmp.ne.s32.totalorder %s190, %s191
    %p203 = scmp.eq.s32.totalorder %s19, 15
    %p204 = por %p202, %p203
    %p206 = scmp.ne.s32.totalorder %s191, %s205
    %p207 = scmp.eq.s32.totalorder %s19, 0
    %p208 = por %p206, %p207
    %s209 = smul.u32 %s20, 8
    %s210 = sadd.s32 %s209, %s21
    %s211 = smul.u32 %s32, 8
    %s212 = sadd.s32 %s211, %s28
    %s213 = ssub.s32 %s210, %s212
    %p214 = scmp.eq.s32.totalorder %s213, 0
    %s216 = sadd.s32 %s215, 1
    %s217 = scalar_select %p214, %s215, %s216
    %p220 = pneg %p214
    %p221 = scmp.eq.s32.totalorder %s13, 15
    %p222 = por %p220, %p221
    %p223 = scmp.ne.s32.totalorder %s215, %s218
    %p224 = scmp.eq.s32.totalorder %s13, 0
    %p225 = por %p223, %p224
    %p226 = scmp.ne.s32.totalorder %s215, %s218
    %p227 = scmp.eq.s32.totalorder %s18, 15
    %p228 = por %p226, %p227
    %p229 = scmp.ne.s32.totalorder %s218, %s219
    %p230 = scmp.eq.s32.totalorder %s18, 0
    %p231 = por %p229, %p230
    %p232 = scmp.ne.s32.totalorder %s218, %s219
    %p233 = scmp.eq.s32.totalorder %s19, 15
    %p234 = por %p232, %p233
    %p236 = scmp.ne.s32.totalorder %s219, %s235
    %p237 = scmp.eq.s32.totalorder %s19, 0
    %p238 = por %p236, %p237
    %p239 = scmp.le.s32.totalorder 1, %s13
    %p240 = scmp.lt.s32.totalorder %s13, 17
    %p241 = pnand %p239, %p240
    %p242 = pneg %p241
    // Predicated region
    $region9: #{down_forward.15} parent=5 // pred_check
      _
    $region10: #{down_forward.15} parent=5 // pred_check_branch
      %244 = sbr.rel (%p241) target = $region12
    $region11: #{down_forward.15} parent=5 // pred_region
      %s245 = ssub.s32 %s13, 1
      // Predicated region
      $region13: #{down_forward.15} parent=11 // pred_check
        %p246 = pneg %p180
      $region14: #{down_forward.15} parent=11 // pred_check_branch
        %248 = sbr.rel (%p246) target = $region16
      $region15: #{down_forward.15} parent=11 // pred_region
        _
      $region16: #{down_forward.15} parent=11 // pred_fallthru
        _
      // Predicated region
      $region17: #{down_forward.15} parent=11 // pred_check
        %p249 = pneg %p201
      $region18: #{down_forward.15} parent=11 // pred_check_branch
        %251 = sbr.rel (%p249) target = $region20
      $region19: #{down_forward.15} parent=11 // pred_region
        _
      $region20: #{down_forward.15} parent=11 // pred_fallthru
        _
    $region12: #{down_forward.15} parent=5 // pred_fallthru
      _
    %p252 = scmp.lt.s32.totalorder %s13, 16
    // Predicated region
    $region21: #{down_forward.15} parent=5 // pred_check
      %p253 = pneg %p252
    $region22: #{down_forward.15} parent=5 // pred_check_branch
      %255 = sbr.rel (%p253) target = $region24
    $region23: #{down_forward.15} parent=5 // pred_region
      // Predicated region
      $region25: #{down_forward.15} parent=23 // pred_check
        %p256 = pneg %p49
      $region26: #{down_forward.15} parent=23 // pred_check_branch
        %258 = sbr.rel (%p256) target = $region28
      $region27: #{down_forward.15} parent=23 // pred_region
        %s259 = smul.u32 %s20, 8
        %s260 = sadd.s32 %s259, %s21
        %p261 = scmp.lt.s32.totalorder %s260, 15
        %s262 = scalar_select %p261, %s260, 15
        %s263 = smul.addr %s262, 2
        %s264 = smul.addr %s263, 4
        %s265 = scalar_lea.vmem %s0, %s264
        %s266 = smul.u32 %s20, 8
        %s267 = sadd.s32 %s266, %s21
      $region28: #{down_forward.15} parent=23 // pred_fallthru
        _
      // Predicated region
      $region29: #{down_forward.15} parent=23 // pred_check
        %p268 = pneg %p75
      $region30: #{down_forward.15} parent=23 // pred_check_branch
        %270 = sbr.rel (%p268) target = $region32
      $region31: #{down_forward.15} parent=23 // pred_region
        %p271 = scmp.lt.s32.totalorder %s20, 1
        %s272 = scalar_select %p271, %s20, 1
        %s273 = smul.addr %s272, 2
        %s274 = smul.addr %s273, 8
        %s275 = scalar_lea.vmem %s1, %s274
      $region32: #{down_forward.15} parent=23 // pred_fallthru
        _
      // Predicated region
      $region33: #{down_forward.15} parent=23 // pred_check
        %p276 = pneg %p101
      $region34: #{down_forward.15} parent=23 // pred_check_branch
        %278 = sbr.rel (%p276) target = $region36
      $region35: #{down_forward.15} parent=23 // pred_region
        %p279 = scmp.lt.s32.totalorder %s20, 1
        %s280 = scalar_select %p279, %s20, 1
        %s281 = smul.addr %s280, 2
        %s282 = smul.addr %s281, 8
        %s283 = scalar_lea.vmem %s2, %s282
      $region36: #{down_forward.15} parent=23 // pred_fallthru
        _
      // Predicated region
      $region37: #{down_forward.15} parent=23 // pred_check
        %p284 = pneg %p127
      $region38: #{down_forward.15} parent=23 // pred_check_branch
        %286 = sbr.rel (%p284) target = $region40
      $region39: #{down_forward.15} parent=23 // pred_region
        %p287 = scmp.lt.s32.totalorder %s21, 7
        %s288 = scalar_select %p287, %s21, 7
        %s289 = scalar_lea.vmem %s3, %s288
      $region40: #{down_forward.15} parent=23 // pred_fallthru
        _
      // Predicated region
      $region41: #{down_forward.15} parent=23 // pred_check
        %p290 = pneg %p153
      $region42: #{down_forward.15} parent=23 // pred_check_branch
        %292 = sbr.rel (%p290) target = $region44
      $region43: #{down_forward.15} parent=23 // pred_region
        %p293 = scmp.lt.s32.totalorder %s21, 7
        %s294 = scalar_select %p293, %s21, 7
        %s295 = scalar_lea.vmem %s4, %s294
      $region44: #{down_forward.15} parent=23 // pred_fallthru
        _
    $region24: #{down_forward.15} parent=5 // pred_fallthru
      _
    %p296 = scmp.le.s32.totalorder 1, %s13
    %p297 = scmp.lt.s32.totalorder %s13, 17
    %p298 = pnand %p296, %p297
    %p299 = pneg %p298
    // Predicated region
    $region45: #{down_forward.15} parent=5 // pred_check
      _
    $region46: #{down_forward.15} parent=5 // pred_check_branch
      %301 = sbr.rel (%p298) target = $region48
    $region47: #{down_forward.15} parent=5 // pred_region
      %s302 = ssub.s32 %s13, 1
      %s303 = smul.u32 %s22, 8
      %s304 = sadd.s32 %s303, %s23
      %p305 = scmp.lt.s32.totalorder %s304, 15
      %s306 = scalar_select %p305, %s304, 15
      %s307 = smul.addr %s306, 2
      %s308 = smul.addr %s307, 4
      %s309 = scalar_lea.vmem %s0, %s308
      %p310 = pneg %p55
      %p311 = pneg %p52
      %p312 = scmp.lt.s32.totalorder %s22, 1
      %s313 = scalar_select %p312, %s22, 1
      %s314 = smul.addr %s313, 2
      %s315 = smul.addr %s314, 8
      %s316 = scalar_lea.vmem %s1, %s315
      %p317 = pneg %p81
      %p318 = pneg %p78
      %p319 = scmp.lt.s32.totalorder %s22, 1
      %s320 = scalar_select %p319, %s22, 1
      %s321 = smul.addr %s320, 2
      %s322 = smul.addr %s321, 8
      %s323 = scalar_lea.vmem %s2, %s322
      %p324 = pneg %p107
      %p325 = pneg %p104
      %p326 = scmp.lt.s32.totalorder %s23, 7
      %s327 = scalar_select %p326, %s23, 7
      %s328 = scalar_lea.vmem %s3, %s327
      %p329 = pneg %p133
      %p330 = pneg %p130
      %p331 = scmp.lt.s32.totalorder %s23, 7
      %s332 = scalar_select %p331, %s23, 7
      %s333 = scalar_lea.vmem %s4, %s332
      %p334 = pneg %p159
      %p335 = pneg %p156
      %p336 = pneg %p180
      %p337 = pneg %p177
      %p338 = pneg %p201
      %p339 = pneg %p198
      %p340 = pneg %p231
      %p341 = pneg %p228
      %s342 = smul.u32 %s22, 8
      %s343 = sadd.s32 %s342, %s23
      %p344 = scmp.lt.s32.totalorder %s343, 15
      %s345 = scalar_select %p344, %s343, 15
      %s346 = smul.addr %s345, 2
      %s347 = smul.addr %s346, 4
      %s348 = scalar_lea.vmem %s7, %s347
      %s349 = smul.u32 %s22, 8
      %s350 = sadd.s32 %s349, %s23
      %p351 = scmp.lt.s32.totalorder %s350, 15
      %s352 = scalar_select %p351, %s350, 15
      %s353 = smul.addr %s352, 2
      %s354 = smul.addr %s353, 4
      %s355 = scalar_lea.vmem %s0, %s354
      %s356 = smul.u32 %s22, 8
      %s357 = sadd.s32 %s356, %s23
      %p358 = scmp.lt.s32.totalorder %s22, 1
      %s359 = scalar_select %p358, %s22, 1
      %s360 = smul.addr %s359, 2
      %s361 = smul.addr %s360, 8
      %s362 = scalar_lea.vmem %s1, %s361
      %p363 = scmp.lt.s32.totalorder %s22, 1
      %s364 = scalar_select %p363, %s22, 1
      %s365 = smul.addr %s364, 2
      %s366 = smul.addr %s365, 8
      %s367 = scalar_lea.vmem %s2, %s366
      %p368 = scmp.lt.s32.totalorder %s23, 7
      %s369 = scalar_select %p368, %s23, 7
      %s370 = scalar_lea.vmem %s3, %s369
      %p371 = scmp.lt.s32.totalorder %s23, 7
      %s372 = scalar_select %p371, %s23, 7
      %s373 = scalar_lea.vmem %s4, %s372
      %s374 = smul.u32 %s22, 8
      %s375 = sadd.s32 %s374, %s23
      %p376 = scmp.lt.s32.totalorder %s375, 15
      %s377 = scalar_select %p376, %s375, 15
      %s378 = smul.addr %s377, 2
      %s379 = smul.addr %s378, 4
      %s380 = scalar_lea.vmem %s7, %s379
      %s381 = smul.u32 %s22, 8
      %s382 = sadd.s32 %s381, %s23
      %v384 = vld [vmem:[%s355] sm:$0xf]
      %v385 = vld [vmem:[%s355 + $0x4] sm:$0xf]
      %v386 = vunpack.c.l.bf16 %v384
      %v387 = vunpack.c.l.bf16 %v385
      %v388 = vld [vmem:[%s362] sm:$0xff]
      %v389 = vld [vmem:[%s362 + $0x8] sm:$0xff]
      %391 = vset.pattern.permute.xlu0 0
      %392 = vperm.xlu0 %391, %v388
      %v393 = vpop.permute.xlu0 %392
      %396 = vset.pattern.permute.xlu0 0
      %397 = vperm.xlu0 %396, %v389
      %v398 = vpop.permute.xlu0 %397
      %v400 = vsub.f32 %v386, %v393
      %v401 = vsub.f32 %v387, %v398
      %v402 = vld [vmem:[%s367] sm:$0xff]
      %v403 = vld [vmem:[%s367 + $0x8] sm:$0xff]
      %405 = vset.pattern.permute.xlu0 0
      %406 = vperm.xlu0 %405, %v402
      %v407 = vpop.permute.xlu0 %406
      %410 = vset.pattern.permute.xlu0 0
      %411 = vperm.xlu0 %410, %v403
      %v412 = vpop.permute.xlu0 %411
      %v414 = vmul.f32 %v400, %v407
      %v415 = vmul.f32 %v401, %v412
      %v416 = vld [vmem:[%s370] sm:$0x1]
      %v418 = vlaneseq
      %v419 = vshrl.u32 %v418, 7
      %v420 = vsub.s32 0, %v419
      %v421 = vrot.slane %v416, %v420
      %v423 = vmul.f32 %v414, %v421
      %v424 = vmul.f32 %v415, %v421
      %v425 = vld [vmem:[%s373] sm:$0x1]
      %v427 = vlaneseq
      %v428 = vshrl.u32 %v427, 7
      %v429 = vsub.s32 0, %v428
      %v430 = vrot.slane %v425, %v429
      %v432 = vadd.f32 %v423, %v430
      %v433 = vadd.f32 %v424, %v430
      %v434 = vmax.f32 %v432, 0.0
      %v435 = vmax.f32 %v433, 0.0
      %v436 = vpack.c.bf16 %v435, %v434
      %v437 = vld [vmem:[%s5] sm:$0xf]
      %v438 = vld [vmem:[%s5 + $0x4] sm:$0xf]
      %v439 = vld [vmem:[%s6] sm:$0xff]
      %v440 = vld [vmem:[%s6 + $0x8] sm:$0xff]
      %442 = vset.pattern.permute.xlu0 0
      %443 = vperm.xlu0 %442, %v439
      %v444 = vpop.permute.xlu0 %443
      %447 = vset.pattern.permute.xlu0 0
      %448 = vperm.xlu0 %447, %v440
      %v449 = vpop.permute.xlu0 %448
      %v453 = vunpack.c.l.b16 %v437
      %v454 = vunpack.c.l.b16 %v438
      %v455 = vpack.c.b16 %v454, %v453
      %vm456 = vcmask 130048
      %v458 = vsel %vm456, %v455, 0
      %460 = vmatprep.subr.bf16.mxu0 0
      %461 = vmatpush1.bf16.msra.mxu0 %v436
      %462 = vmatprep.subr.bf16.mxu0 0
      %463 = vmatpush1.bf16.msra.mxu0 0
      %464 = vmatprep.subr.bf16.mxu0 0
      %465 = vmatpush1.bf16.msra.mxu0 0
      %466 = vmatprep.subr.bf16.mxu0 0
      %467 = vmatpush1.bf16.msra.mxu0 0
      %468 = vmatprep.subr.bf16.mxu0 0
      %469 = vmatpush1.bf16.msra.mxu0 0
      %470 = vmatprep.subr.bf16.mxu0 0
      %471 = vmatpush1.bf16.msra.mxu0 0
      %472 = vmatprep.subr.bf16.mxu0 0
      %473 = vmatpush1.bf16.msra.mxu0 0
      %474 = vmatprep.subr.bf16.mxu0 0
      %475 = vmatpush1.bf16.msra.mxu0 0
      %476 = vmatprep.subr.bf16.mxu0 0
      %477 = vmatpush1.bf16.msra.mxu0 0
      %478 = vmatprep.subr.bf16.mxu0 0
      %479 = vmatpush1.bf16.msra.mxu0 0
      %480 = vmatprep.subr.bf16.mxu0 0
      %481 = vmatpush1.bf16.msra.mxu0 0
      %482 = vmatprep.subr.bf16.mxu0 0
      %483 = vmatpush1.bf16.msra.mxu0 0
      %484 = vmatprep.subr.bf16.mxu0 0
      %485 = vmatpush1.bf16.msra.mxu0 0
      %486 = vmatprep.subr.bf16.mxu0 0
      %487 = vmatpush1.bf16.msra.mxu0 0
      %488 = vmatprep.subr.bf16.mxu0 0
      %489 = vmatpush1.bf16.msra.mxu0 0
      %490 = vmatprep.subr.bf16.mxu0 0
      %491 = vmatpush1.bf16.msra.mxu0 0
      %492 = vmatprep.mubr.bf16.mxu0 0
      %493 = vmatmul.mubr.bf16.gmra.mrb[0].mxu0 %v458
      %v494 = vpop.f32.mrb[0].mxu0
      %v495 = vadd.f32 %v444, %v494
      %v496 = vpop.f32.mrb[0].mxu0
      %v497 = vpop.f32.mrb[0].mxu0
      %v498 = vadd.f32 %v449, %v497
      %v499 = vpop.f32.mrb[0].mxu0
      %500 = vdwg.mxu0
      %v501 = vpack.c.bf16 %v498, %v495
      %v503 = vunpack.c.l.b16 %v501
      %v504 = vunpack.c.h.b16 %v501
      %v505 = vpack.c.b16 %v503, %v503
      %v506 = vpack.c.b16 %v504, %v504
      %vm509 = vcmask 650240
      %510 = vst.msk [vmem:[%s380] sm:$0xf] %vm509, %v505
      %511 = vst.msk [vmem:[%s380 + $0x4] sm:$0xf] %vm509, %v506
      %s512 = smul.u32 %s22, 8
      %s513 = sadd.s32 %s512, %s23
      %p514 = scmp.lt.s32.totalorder %s513, 15
      %s515 = scalar_select %p514, %s513, 15
      %s516 = smul.addr %s515, 2
      %s517 = smul.addr %s516, 4
      %s518 = scalar_lea.vmem %s7, %s517
      // Predicated region
      $region49: #{down_forward.15} parent=47 // pred_check
        %p519 = pneg %p228
      $region50: #{down_forward.15} parent=47 // pred_check_branch
        %521 = sbr.rel (%p519) target = $region52
      $region51: #{down_forward.15} parent=47 // pred_region
        %s522 = smul.u32 %s22, 8
        %s523 = sadd.s32 %s522, %s23
      $region52: #{down_forward.15} parent=47 // pred_fallthru
        _
    $region48: #{down_forward.15} parent=5 // pred_fallthru
      _
    %p524 = scmp.le.s32.totalorder 2, %s13
    // Predicated region
    $region53: #{down_forward.15} parent=5 // pred_check
      %p525 = pneg %p524
    $region54: #{down_forward.15} parent=5 // pred_check_branch
      %527 = sbr.rel (%p525) target = $region56
    $region55: #{down_forward.15} parent=5 // pred_region
      %s528 = ssub.s32 %s13, 2
      // Predicated region
      $region57: #{down_forward.15} parent=55 // pred_check
        %p529 = pneg %p234
      $region58: #{down_forward.15} parent=55 // pred_check_branch
        %531 = sbr.rel (%p529) target = $region60
      $region59: #{down_forward.15} parent=55 // pred_region
        %s532 = smul.u32 %s24, 8
        %s533 = sadd.s32 %s532, %s25
        %p534 = scmp.lt.s32.totalorder %s533, 15
        %s535 = scalar_select %p534, %s533, 15
        %s536 = smul.addr %s535, 2
        %s537 = smul.addr %s536, 4
        %s538 = scalar_lea.vmem %s7, %s537
      $region60: #{down_forward.15} parent=55 // pred_fallthru
        _
    $region56: #{down_forward.15} parent=5 // pred_fallthru
      _
  $region6: #{down_forward.15} parent=0 // loop_footer
    %s17 = sadd.s32 1, %s13
  $region7: #{down_forward.15} parent=0 // loop_footer_branch
    %12 = sbr.rel target = $region3
  $region8: #{down_forward.15} parent=0 // loop_exit
    _

// kernel: down_forward.17
$region0: #{down_forward.17}
  #allocation0 [shape = 'u32[]', space=smem, size = 0x4, offset = 0x4, fixed_abs, tag = 'smem constant byte address 0x4 - core index']
  #allocation1 [shape = 'u32[144,128]{1,0:T(1,128)}', space=vmem, size = 0x12000, scoped, tag = 'internal scratch']
  %s0 = inlined_call_operand.vmem [shape: bf16[16,16,80], index: 0, kind: input, shape index: {}]
  %s1 = inlined_call_operand.vmem [shape: f32[2,16,1], index: 1, kind: input, shape index: {}]
  %s2 = inlined_call_operand.vmem [shape: f32[2,16,1], index: 2, kind: input, shape index: {}]
  %s3 = inlined_call_operand.vmem [shape: f32[8,1,80], index: 3, kind: input, shape index: {}]
  %s4 = inlined_call_operand.vmem [shape: f32[8,1,80], index: 4, kind: input, shape index: {}]
  %s5 = inlined_call_operand.vmem [shape: f32[16,16,80], index: 5, kind: output, shape index: {}]
  %s6 = sld [smem:[#allocation0]]
  $region53: #{down_forward.17} parent=0
    _
  %s8 = ssub.s32 1, %s6
  %s9 = scalar_select 0, %s8, %s6
  loop: start=0, step=1, limit=18
  $region2: #{down_forward.17} parent=0 // loop_pre_header
    _
  $region3: #{down_forward.17} parent=0 // loop_header
    %s11 = sphi 0, %s15
    %p12 = scmp.ge.s32.totalorder %s11, 18
    %s18 = sphi 0, %s30
    %s19 = sphi 0, %s26
    %s20 = sphi 0, %s18
    %s21 = sphi 0, %s19
    %s22 = sphi 0, %s20
    %s23 = sphi 0, %s21
    %s37 = sphi 0, %s39
    %s40 = sphi 0, %s37
    %s41 = sphi 0, %s40
    %s57 = sphi 0, %s41
    %s63 = sphi 0, %s65
    %s66 = sphi 0, %s63
    %s67 = sphi 0, %s66
    %s83 = sphi 0, %s67
    %s89 = sphi 0, %s91
    %s92 = sphi 0, %s89
    %s93 = sphi 0, %s92
    %s109 = sphi 0, %s93
    %s115 = sphi 0, %s117
    %s118 = sphi 0, %s115
    %s119 = sphi 0, %s118
    %s135 = sphi 0, %s119
    %s141 = sphi 0, %s143
    %s144 = sphi 0, %s141
    %s145 = sphi 0, %s144
    %s161 = sphi 0, %s145
    %s171 = sphi 0, %s173
    %s174 = sphi 0, %s171
    %s175 = sphi 0, %s174
    %s191 = sphi 0, %s175
  $region4: #{down_forward.17} parent=0 // loop_header_branch
    %14 = sbr.rel (%p12) target = $region8
  $region5: #{down_forward.17} parent=0 // loop_body
    %s16 = ssub.s32 %s11, 1
    %s17 = ssub.s32 %s11, 2
    %s24 = sadd.s32 1, %s19
    %p25 = scmp.ge.s32.totalorder %s24, 8
    %s26 = scalar_select %p25, 0, %s24
    %s27 = sadd.s32 1, %s18
    %s28 = scalar_select %p25, %s27, %s18
    %p29 = scmp.ge.s32.totalorder %s28, 2
    %s30 = scalar_select %p29, 0, %s28
    %s31 = smul.u32 %s18, 8
    %s32 = sadd.s32 %s31, %s19
    %s33 = smul.u32 %s30, 8
    %s34 = sadd.s32 %s33, %s26
    %s35 = ssub.s32 %s32, %s34
    %p36 = scmp.eq.s32.totalorder %s35, 0
    %s38 = sadd.s32 %s37, 1
    %s39 = scalar_select %p36, %s37, %s38
    %p42 = pneg %p36
    %p43 = scmp.eq.s32.totalorder %s11, 15
    %p44 = por %p42, %p43
    %p45 = scmp.ne.s32.totalorder %s37, %s40
    %p46 = scmp.eq.s32.totalorder %s11, 0
    %p47 = por %p45, %p46
    %p48 = scmp.ne.s32.totalorder %s37, %s40
    %p49 = scmp.eq.s32.totalorder %s16, 15
    %p50 = por %p48, %p49
    %p51 = scmp.ne.s32.totalorder %s40, %s41
    %p52 = scmp.eq.s32.totalorder %s16, 0
    %p53 = por %p51, %p52
    %p54 = scmp.ne.s32.totalorder %s40, %s41
    %p55 = scmp.eq.s32.totalorder %s17, 15
    %p56 = por %p54, %p55
    %p58 = scmp.ne.s32.totalorder %s41, %s57
    %p59 = scmp.eq.s32.totalorder %s17, 0
    %p60 = por %p58, %p59
    %s61 = ssub.s32 %s18, %s30
    %p62 = scmp.eq.s32.totalorder %s61, 0
    %s64 = sadd.s32 %s63, 1
    %s65 = scalar_select %p62, %s63, %s64
    %p68 = pneg %p62
    %p69 = scmp.eq.s32.totalorder %s11, 15
    %p70 = por %p68, %p69
    %p71 = scmp.ne.s32.totalorder %s63, %s66
    %p72 = scmp.eq.s32.totalorder %s11, 0
    %p73 = por %p71, %p72
    %p74 = scmp.ne.s32.totalorder %s63, %s66
    %p75 = scmp.eq.s32.totalorder %s16, 15
    %p76 = por %p74, %p75
    %p77 = scmp.ne.s32.totalorder %s66, %s67
    %p78 = scmp.eq.s32.totalorder %s16, 0
    %p79 = por %p77, %p78
    %p80 = scmp.ne.s32.totalorder %s66, %s67
    %p81 = scmp.eq.s32.totalorder %s17, 15
    %p82 = por %p80, %p81
    %p84 = scmp.ne.s32.totalorder %s67, %s83
    %p85 = scmp.eq.s32.totalorder %s17, 0
    %p86 = por %p84, %p85
    %s87 = ssub.s32 %s18, %s30
    %p88 = scmp.eq.s32.totalorder %s87, 0
    %s90 = sadd.s32 %s89, 1
    %s91 = scalar_select %p88, %s89, %s90
    %p94 = pneg %p88
    %p95 = scmp.eq.s32.totalorder %s11, 15
    %p96 = por %p94, %p95
    %p97 = scmp.ne.s32.totalorder %s89, %s92
    %p98 = scmp.eq.s32.totalorder %s11, 0
    %p99 = por %p97, %p98
    %p100 = scmp.ne.s32.totalorder %s89, %s92
    %p101 = scmp.eq.s32.totalorder %s16, 15
    %p102 = por %p100, %p101
    %p103 = scmp.ne.s32.totalorder %s92, %s93
    %p104 = scmp.eq.s32.totalorder %s16, 0
    %p105 = por %p103, %p104
    %p106 = scmp.ne.s32.totalorder %s92, %s93
    %p107 = scmp.eq.s32.totalorder %s17, 15
    %p108 = por %p106, %p107
    %p110 = scmp.ne.s32.totalorder %s93, %s109
    %p111 = scmp.eq.s32.totalorder %s17, 0
    %p112 = por %p110, %p111
    %s113 = ssub.s32 %s19, %s26
    %p114 = scmp.eq.s32.totalorder %s113, 0
    %s116 = sadd.s32 %s115, 1
    %s117 = scalar_select %p114, %s115, %s116
    %p120 = pneg %p114
    %p121 = scmp.eq.s32.totalorder %s11, 15
    %p122 = por %p120, %p121
    %p123 = scmp.ne.s32.totalorder %s115, %s118
    %p124 = scmp.eq.s32.totalorder %s11, 0
    %p125 = por %p123, %p124
    %p126 = scmp.ne.s32.totalorder %s115, %s118
    %p127 = scmp.eq.s32.totalorder %s16, 15
    %p128 = por %p126, %p127
    %p129 = scmp.ne.s32.totalorder %s118, %s119
    %p130 = scmp.eq.s32.totalorder %s16, 0
    %p131 = por %p129, %p130
    %p132 = scmp.ne.s32.totalorder %s118, %s119
    %p133 = scmp.eq.s32.totalorder %s17, 15
    %p134 = por %p132, %p133
    %p136 = scmp.ne.s32.totalorder %s119, %s135
    %p137 = scmp.eq.s32.totalorder %s17, 0
    %p138 = por %p136, %p137
    %s139 = ssub.s32 %s19, %s26
    %p140 = scmp.eq.s32.totalorder %s139, 0
    %s142 = sadd.s32 %s141, 1
    %s143 = scalar_select %p140, %s141, %s142
    %p146 = pneg %p140
    %p147 = scmp.eq.s32.totalorder %s11, 15
    %p148 = por %p146, %p147
    %p149 = scmp.ne.s32.totalorder %s141, %s144
    %p150 = scmp.eq.s32.totalorder %s11, 0
    %p151 = por %p149, %p150
    %p152 = scmp.ne.s32.totalorder %s141, %s144
    %p153 = scmp.eq.s32.totalorder %s16, 15
    %p154 = por %p152, %p153
    %p155 = scmp.ne.s32.totalorder %s144, %s145
    %p156 = scmp.eq.s32.totalorder %s16, 0
    %p157 = por %p155, %p156
    %p158 = scmp.ne.s32.totalorder %s144, %s145
    %p159 = scmp.eq.s32.totalorder %s17, 15
    %p160 = por %p158, %p159
    %p162 = scmp.ne.s32.totalorder %s145, %s161
    %p163 = scmp.eq.s32.totalorder %s17, 0
    %p164 = por %p162, %p163
    %s165 = smul.u32 %s18, 8
    %s166 = sadd.s32 %s165, %s19
    %s167 = smul.u32 %s30, 8
    %s168 = sadd.s32 %s167, %s26
    %s169 = ssub.s32 %s166, %s168
    %p170 = scmp.eq.s32.totalorder %s169, 0
    %s172 = sadd.s32 %s171, 1
    %s173 = scalar_select %p170, %s171, %s172
    %p176 = pneg %p170
    %p177 = scmp.eq.s32.totalorder %s11, 15
    %p178 = por %p176, %p177
    %p179 = scmp.ne.s32.totalorder %s171, %s174
    %p180 = scmp.eq.s32.totalorder %s11, 0
    %p181 = por %p179, %p180
    %p182 = scmp.ne.s32.totalorder %s171, %s174
    %p183 = scmp.eq.s32.totalorder %s16, 15
    %p184 = por %p182, %p183
    %p185 = scmp.ne.s32.totalorder %s174, %s175
    %p186 = scmp.eq.s32.totalorder %s16, 0
    %p187 = por %p185, %p186
    %p188 = scmp.ne.s32.totalorder %s174, %s175
    %p189 = scmp.eq.s32.totalorder %s17, 15
    %p190 = por %p188, %p189
    %p192 = scmp.ne.s32.totalorder %s175, %s191
    %p193 = scmp.eq.s32.totalorder %s17, 0
    %p194 = por %p192, %p193
    %p195 = scmp.le.s32.totalorder 1, %s11
    %p196 = scmp.lt.s32.totalorder %s11, 17
    %p197 = pnand %p195, %p196
    %p198 = pneg %p197
    // Predicated region
    $region9: #{down_forward.17} parent=5 // pred_check
      _
    $region10: #{down_forward.17} parent=5 // pred_check_branch
      %200 = sbr.rel (%p197) target = $region12
    $region11: #{down_forward.17} parent=5 // pred_region
      %s201 = ssub.s32 %s11, 1
    $region12: #{down_forward.17} parent=5 // pred_fallthru
      _
    %p202 = scmp.lt.s32.totalorder %s11, 16
    // Predicated region
    $region13: #{down_forward.17} parent=5 // pred_check
      %p203 = pneg %p202
    $region14: #{down_forward.17} parent=5 // pred_check_branch
      %205 = sbr.rel (%p203) target = $region16
    $region15: #{down_forward.17} parent=5 // pred_region
      // Predicated region
      $region17: #{down_forward.17} parent=15 // pred_check
        %p206 = pneg %p47
      $region18: #{down_forward.17} parent=15 // pred_check_branch
        %208 = sbr.rel (%p206) target = $region20
      $region19: #{down_forward.17} parent=15 // pred_region
        %s209 = smul.u32 %s18, 8
        %s210 = sadd.s32 %s209, %s19
        %p211 = scmp.lt.s32.totalorder %s210, 15
        %s212 = scalar_select %p211, %s210, 15
        %s213 = smul.addr %s212, 2
        %s214 = smul.addr %s213, 4
        %s215 = scalar_lea.vmem %s0, %s214
        %s216 = smul.u32 %s18, 8
        %s217 = sadd.s32 %s216, %s19
      $region20: #{down_forward.17} parent=15 // pred_fallthru
        _
      // Predicated region
      $region21: #{down_forward.17} parent=15 // pred_check
        %p218 = pneg %p73
      $region22: #{down_forward.17} parent=15 // pred_check_branch
        %220 = sbr.rel (%p218) target = $region24
      $region23: #{down_forward.17} parent=15 // pred_region
        %p221 = scmp.lt.s32.totalorder %s18, 1
        %s222 = scalar_select %p221, %s18, 1
        %s223 = smul.addr %s222, 2
        %s224 = smul.addr %s223, 8
        %s225 = scalar_lea.vmem %s1, %s224
      $region24: #{down_forward.17} parent=15 // pred_fallthru
        _
      // Predicated region
      $region25: #{down_forward.17} parent=15 // pred_check
        %p226 = pneg %p99
      $region26: #{down_forward.17} parent=15 // pred_check_branch
        %228 = sbr.rel (%p226) target = $region28
      $region27: #{down_forward.17} parent=15 // pred_region
        %p229 = scmp.lt.s32.totalorder %s18, 1
        %s230 = scalar_select %p229, %s18, 1
        %s231 = smul.addr %s230, 2
        %s232 = smul.addr %s231, 8
        %s233 = scalar_lea.vmem %s2, %s232
      $region28: #{down_forward.17} parent=15 // pred_fallthru
        _
      // Predicated region
      $region29: #{down_forward.17} parent=15 // pred_check
        %p234 = pneg %p125
      $region30: #{down_forward.17} parent=15 // pred_check_branch
        %236 = sbr.rel (%p234) target = $region32
      $region31: #{down_forward.17} parent=15 // pred_region
        %p237 = scmp.lt.s32.totalorder %s19, 7
        %s238 = scalar_select %p237, %s19, 7
        %s239 = scalar_lea.vmem %s3, %s238
      $region32: #{down_forward.17} parent=15 // pred_fallthru
        _
      // Predicated region
      $region33: #{down_forward.17} parent=15 // pred_check
        %p240 = pneg %p151
      $region34: #{down_forward.17} parent=15 // pred_check_branch
        %242 = sbr.rel (%p240) target = $region36
      $region35: #{down_forward.17} parent=15 // pred_region
        %p243 = scmp.lt.s32.totalorder %s19, 7
        %s244 = scalar_select %p243, %s19, 7
        %s245 = scalar_lea.vmem %s4, %s244
      $region36: #{down_forward.17} parent=15 // pred_fallthru
        _
    $region16: #{down_forward.17} parent=5 // pred_fallthru
      _
    %p246 = scmp.le.s32.totalorder 1, %s11
    %p247 = scmp.lt.s32.totalorder %s11, 17
    %p248 = pnand %p246, %p247
    %p249 = pneg %p248
    // Predicated region
    $region37: #{down_forward.17} parent=5 // pred_check
      _
    $region38: #{down_forward.17} parent=5 // pred_check_branch
      %251 = sbr.rel (%p248) target = $region40
    $region39: #{down_forward.17} parent=5 // pred_region
      %s252 = ssub.s32 %s11, 1
      %s253 = smul.u32 %s20, 8
      %s254 = sadd.s32 %s253, %s21
      %p255 = scmp.lt.s32.totalorder %s254, 15
      %s256 = scalar_select %p255, %s254, 15
      %s257 = smul.addr %s256, 2
      %s258 = smul.addr %s257, 4
      %s259 = scalar_lea.vmem %s0, %s258
      %p260 = pneg %p53
      %p261 = pneg %p50
      %p262 = scmp.lt.s32.totalorder %s20, 1
      %s263 = scalar_select %p262, %s20, 1
      %s264 = smul.addr %s263, 2
      %s265 = smul.addr %s264, 8
      %s266 = scalar_lea.vmem %s1, %s265
      %p267 = pneg %p79
      %p268 = pneg %p76
      %p269 = scmp.lt.s32.totalorder %s20, 1
      %s270 = scalar_select %p269, %s20, 1
      %s271 = smul.addr %s270, 2
      %s272 = smul.addr %s271, 8
      %s273 = scalar_lea.vmem %s2, %s272
      %p274 = pneg %p105
      %p275 = pneg %p102
      %p276 = scmp.lt.s32.totalorder %s21, 7
      %s277 = scalar_select %p276, %s21, 7
      %s278 = scalar_lea.vmem %s3, %s277
      %p279 = pneg %p131
      %p280 = pneg %p128
      %p281 = scmp.lt.s32.totalorder %s21, 7
      %s282 = scalar_select %p281, %s21, 7
      %s283 = scalar_lea.vmem %s4, %s282
      %p284 = pneg %p157
      %p285 = pneg %p154
      %p286 = pneg %p187
      %p287 = pneg %p184
      %s288 = smul.u32 %s20, 8
      %s289 = sadd.s32 %s288, %s21
      %p290 = scmp.lt.s32.totalorder %s289, 15
      %s291 = scalar_select %p290, %s289, 15
      %s292 = smul.addr %s291, 2
      %s293 = smul.addr %s292, 8
      %s294 = scalar_lea.vmem %s5, %s293
      %s295 = smul.u32 %s20, 8
      %s296 = sadd.s32 %s295, %s21
      %p297 = scmp.lt.s32.totalorder %s296, 15
      %s298 = scalar_select %p297, %s296, 15
      %s299 = smul.addr %s298, 2
      %s300 = smul.addr %s299, 4
      %s301 = scalar_lea.vmem %s0, %s300
      %s302 = smul.u32 %s20, 8
      %s303 = sadd.s32 %s302, %s21
      %p304 = scmp.lt.s32.totalorder %s20, 1
      %s305 = scalar_select %p304, %s20, 1
      %s306 = smul.addr %s305, 2
      %s307 = smul.addr %s306, 8
      %s308 = scalar_lea.vmem %s1, %s307
      %p309 = scmp.lt.s32.totalorder %s20, 1
      %s310 = scalar_select %p309, %s20, 1
      %s311 = smul.addr %s310, 2
      %s312 = smul.addr %s311, 8
      %s313 = scalar_lea.vmem %s2, %s312
      %p314 = scmp.lt.s32.totalorder %s21, 7
      %s315 = scalar_select %p314, %s21, 7
      %s316 = scalar_lea.vmem %s3, %s315
      %p317 = scmp.lt.s32.totalorder %s21, 7
      %s318 = scalar_select %p317, %s21, 7
      %s319 = scalar_lea.vmem %s4, %s318
      %s320 = smul.u32 %s20, 8
      %s321 = sadd.s32 %s320, %s21
      %p322 = scmp.lt.s32.totalorder %s321, 15
      %s323 = scalar_select %p322, %s321, 15
      %s324 = smul.addr %s323, 2
      %s325 = smul.addr %s324, 8
      %s326 = scalar_lea.vmem %s5, %s325
      %s327 = smul.u32 %s20, 8
      %s328 = sadd.s32 %s327, %s21
      %v329 = vld [vmem:[%s301] sm:$0xf]
      %v330 = vld [vmem:[%s301 + $0x4] sm:$0xf]
      %v331 = vunpack.c.l.bf16 %v329
      %v332 = vunpack.c.l.bf16 %v330
      %v333 = vld [vmem:[%s308] sm:$0xff]
      %v334 = vld [vmem:[%s308 + $0x8] sm:$0xff]
      %336 = vset.pattern.permute.xlu0 0
      %337 = vperm.xlu0 %336, %v333
      %v338 = vpop.permute.xlu0 %337
      %341 = vset.pattern.permute.xlu0 0
      %342 = vperm.xlu0 %341, %v334
      %v343 = vpop.permute.xlu0 %342
      %v345 = vsub.f32 %v331, %v338
      %v346 = vsub.f32 %v332, %v343
      %v347 = vld [vmem:[%s313] sm:$0xff]
      %v348 = vld [vmem:[%s313 + $0x8] sm:$0xff]
      %350 = vset.pattern.permute.xlu0 0
      %351 = vperm.xlu0 %350, %v347
      %v352 = vpop.permute.xlu0 %351
      %355 = vset.pattern.permute.xlu0 0
      %356 = vperm.xlu0 %355, %v348
      %v357 = vpop.permute.xlu0 %356
      %v359 = vmul.f32 %v345, %v352
      %v360 = vmul.f32 %v346, %v357
      %v361 = vld [vmem:[%s316] sm:$0x1]
      %v363 = vlaneseq
      %v364 = vshrl.u32 %v363, 7
      %v365 = vsub.s32 0, %v364
      %v366 = vrot.slane %v361, %v365
      %v368 = vmul.f32 %v359, %v366
      %v369 = vmul.f32 %v360, %v366
      %v370 = vld [vmem:[%s319] sm:$0x1]
      %v372 = vlaneseq
      %v373 = vshrl.u32 %v372, 7
      %v374 = vsub.s32 0, %v373
      %v375 = vrot.slane %v370, %v374
      %v377 = vadd.f32 %v368, %v375
      %v378 = vadd.f32 %v369, %v375
      %v379 = vmax.f32 %v377, 0.0
      %v380 = vmax.f32 %v378, 0.0
      %vm381 = vcmask 654336
      %382 = vst.msk [vmem:[%s326] sm:$0xff] %vm381, %v379
      %383 = vst.msk [vmem:[%s326 + $0x8] sm:$0xff] %vm381, %v380
      %s384 = smul.u32 %s20, 8
      %s385 = sadd.s32 %s384, %s21
      %p386 = scmp.lt.s32.totalorder %s385, 15
      %s387 = scalar_select %p386, %s385, 15
      %s388 = smul.addr %s387, 2
      %s389 = smul.addr %s388, 8
      %s390 = scalar_lea.vmem %s5, %s389
      // Predicated region
      $region41: #{down_forward.17} parent=39 // pred_check
        %p391 = pneg %p184
      $region42: #{down_forward.17} parent=39 // pred_check_branch
        %393 = sbr.rel (%p391) target = $region44
      $region43: #{down_forward.17} parent=39 // pred_region
        %s394 = smul.u32 %s20, 8
        %s395 = sadd.s32 %s394, %s21
      $region44: #{down_forward.17} parent=39 // pred_fallthru
        _
    $region40: #{down_forward.17} parent=5 // pred_fallthru
      _
    %p396 = scmp.le.s32.totalorder 2, %s11
    // Predicated region
    $region45: #{down_forward.17} parent=5 // pred_check
      %p397 = pneg %p396
    $region46: #{down_forward.17} parent=5 // pred_check_branch
      %399 = sbr.rel (%p397) target = $region48
    $region47: #{down_forward.17} parent=5 // pred_region
      %s400 = ssub.s32 %s11, 2
      // Predicated region
      $region49: #{down_forward.17} parent=47 // pred_check
        %p401 = pneg %p190
      $region50: #{down_forward.17} parent=47 // pred_check_branch
        %403 = sbr.rel (%p401) target = $region52
      $region51: #{down_forward.17} parent=47 // pred_region
        %s404 = smul.u32 %s22, 8
        %s405 = sadd.s32 %s404, %s23
        %p406 = scmp.lt.s32.totalorder %s405, 15
        %s407 = scalar_select %p406, %s405, 15
        %s408 = smul.addr %s407, 2
        %s409 = smul.addr %s408, 8
        %s410 = scalar_lea.vmem %s5, %s409
      $region52: #{down_forward.17} parent=47 // pred_fallthru
        _
    $region48: #{down_forward.17} parent=5 // pred_fallthru
      _
  $region6: #{down_forward.17} parent=0 // loop_footer
    %s15 = sadd.s32 1, %s11
  $region7: #{down_forward.17} parent=0 // loop_footer_branch
    %10 = sbr.rel target = $region3
  $region8: #{down_forward.17} parent=0 // loop_exit
    _

</llo_original>
